<compile_context>
chip_gen: v5e
topology: v5e:2x2
jax: 0.10.0
libtpu: 0.0.40
codegen_flags: <defaults>
</compile_context>

<pallas_src>
import functools

import jax
import jax.numpy as jnp
from jax import lax
from jax.experimental import pallas as pl
from jax.experimental.pallas import tpu as pltpu

_LANE = 128   # lane width: channels are zero-padded to a multiple of this


# -----------------------------------------------------------------------------
# Fused ResBlock Pallas kernel (one image per grid step)
# -----------------------------------------------------------------------------
def _resblock_kernel(*refs, H, W, has_shortcut):
    """conv3x3+BN+ReLU -> conv3x3+BN -> (+shortcut) -> ReLU, fully in VMEM.

    refs (has_shortcut=True):
      x_ref      (L, Ci)      bf16  flattened padded input (wrapper-built)
      w1_ref     (9, Ci, Co)  bf16  BN1-scale folded
      w2_ref     (9, Co, Co)  bf16  BN2-scale folded
      ws_ref     (Ci, Co)     bf16  BNs-scale folded 1x1 shortcut weight
      affine_ref (8, Co)      f32   rows: b1', (b2'+bs'), 0...
      mask_ref   (M, 1)       f32   1.0 on valid image columns, 0.0 on junk
      out_ref    (M, Co)      bf16  flattened conv output (junk cols included)
      scratch:   ypad (L, Co) bf16, acc (M, Co) f32
    where Wp = W+2, M = H*Wp, L = (H+2)*Wp + 2.
    """
    if has_shortcut:
        (x_ref, w1_ref, w2_ref, ws_ref, affine_ref, mask_ref, out_ref,
         ypad_ref, acc_ref) = refs
    else:
        (x_ref, w1_ref, w2_ref, affine_ref, mask_ref, out_ref,
         ypad_ref, acc_ref) = refs

    f32 = jnp.float32
    Wp = W + 2
    M = H * Wp                       # flattened conv-output rows (junk cols incl.)
    Co = out_ref.shape[-1]

    def conv3x3(src_ref, w_ref):
        # 9 shifted contiguous (M, C) x (C, Co) MXU matmuls; the 3 dx taps of
        # each kernel row are value-chained, the accumulator scratch is touched
        # once per row (first row '=' -> no zero-init).
        for dy in range(3):
            base = dy * Wp
            part = jnp.dot(src_ref[pl.ds(base, M), :], w_ref[3 * dy],
                           preferred_element_type=f32)
            for dx in (1, 2):
                part = part + jnp.dot(src_ref[pl.ds(base + dx, M), :],
                                      w_ref[3 * dy + dx],
                                      preferred_element_type=f32)
            if dy == 0:
                acc_ref[...] = part
            else:
                acc_ref[...] += part

    # ---- conv1 (BN1 scale folded into w1) -----------------------------------
    conv3x3(x_ref, w1_ref)

    # ---- bias + ReLU, zero junk columns, stage bf16 activation for conv2 ----
    # Masking the junk columns makes the shifted store below land zeros exactly
    # on the halo columns of ypad, so no full-scratch zero-fill is needed.
    y1 = jnp.maximum(acc_ref[...] + affine_ref[0:1, :], 0.0) * mask_ref[...]
    zeros_halo = jnp.zeros((Wp + 1, Co), ypad_ref.dtype)
    ypad_ref[pl.ds(0, Wp + 1), :] = zeros_halo                 # top halo rows
    ypad_ref[pl.ds((H + 1) * Wp + 1, Wp + 1), :] = zeros_halo  # bottom halo rows
    ypad_ref[pl.ds(Wp + 1, M), :] = y1.astype(ypad_ref.dtype)  # interior

    # ---- conv2 (BN2 scale folded into w2) -----------------------------------
    conv3x3(ypad_ref, w2_ref)

    # ---- residual branch accumulated in place (1x1 conv or identity) --------
    x_center = x_ref[pl.ds(Wp + 1, M), :]            # center tap = original pixels
    if has_shortcut:
        acc_ref[...] += jnp.dot(x_center, ws_ref[...], preferred_element_type=f32)
    else:
        acc_ref[...] += x_center.astype(f32)         # valid only when Ci == Co

    # ---- combined bias (b2' + bs') + ReLU, bf16 writeback --------------------
    out_ref[...] = jnp.maximum(acc_ref[...] + affine_ref[1:2, :],
                               0.0).astype(out_ref.dtype)


# -----------------------------------------------------------------------------
# Helpers
# -----------------------------------------------------------------------------
def _round_up(x, m):
    return (x + m - 1) // m * m


def _pad_axes(a, targets):
    pads = [(0, 0)] * a.ndim
    for ax, t in targets.items():
        pads[ax] = (0, t - a.shape[ax])
    return jnp.pad(a, pads)


def _fold_bn(bn_p, conv_bias):
    """Fold eval-mode BN + conv bias into per-channel (scale, bias)."""
    scale = bn_p['gamma'] / jnp.sqrt(bn_p['var'] + bn_p['eps'])
    bias = bn_p['beta'] + scale * (conv_bias - bn_p['mean'])
    return scale, bias


# -----------------------------------------------------------------------------
# Wrapper (NCHW<->NHWC, padding/flattening, BN folding, bf16 cast, pallas_call)
# -----------------------------------------------------------------------------
def resblock_forward(x_nchw, p):
    assert p['stride'] == 1, "only stride=1 supported"
    x = jnp.transpose(x_nchw, (0, 2, 3, 1))            # NCHW -> NHWC
    N, H, W, Cin = x.shape
    Cout = p['w1'].shape[-1]
    Ci_p = _round_up(Cin, _LANE)
    Co_p = _round_up(Cout, _LANE)
    has_shortcut = p['ws'] is not None
    if not has_shortcut:
        assert Cin == Cout and Ci_p == Co_p

    cdt = jnp.bfloat16
    Wp = W + 2                      # padded row width (1-pixel halo each side)
    M = H * Wp                      # flattened output rows (junk cols included)
    L = (H + 2) * Wp + 2            # flattened padded-input rows (+2 tail rows)

    # Fully padded + row-flattened input: zeros everywhere outside the image
    # (spatial halo, channel padding, 2 tail rows) -> every conv tap is a
    # contiguous slice inside the kernel.
    x_pad = _pad_axes(jnp.pad(x, ((0, 0), (1, 1), (1, 1), (0, 0))),
                      {3: Ci_p}).astype(cdt)
    x_flat = jnp.pad(x_pad.reshape(N, (H + 2) * Wp, Ci_p),
                     ((0, 0), (0, 2), (0, 0)))

    # Fold BN scales into the conv weights (static, done once by XLA), keep
    # only per-channel biases for the kernel.
    s1, b1 = _fold_bn(p['bn1'], p['b1'])
    s2, b2 = _fold_bn(p['bn2'], p['b2'])
    w1 = _pad_axes(p['w1'] * s1, {2: Ci_p, 3: Co_p}).astype(cdt)
    w2 = _pad_axes(p['w2'] * s2, {2: Co_p, 3: Co_p}).astype(cdt)
    w1 = w1.reshape(9, Ci_p, Co_p)
    w2 = w2.reshape(9, Co_p, Co_p)
    if has_shortcut:
        ss, bs = _fold_bn(p['bns'], p['bs'])
        ws = _pad_axes(p['ws'] * ss, {0: Ci_p, 1: Co_p}).astype(cdt)
        b_out = b2 + bs
    else:
        b_out = b2
    rows = [b1, b_out] + [jnp.zeros((Cout,), jnp.float32)] * 6   # pad to 8 rows
    affine = jnp.stack(
        [jnp.pad(r.astype(jnp.float32), (0, Co_p - Cout)) for r in rows])

    # 1.0 on valid image columns of the flattened output, 0.0 on junk columns.
    colmask = (jnp.arange(M) % Wp < W).astype(jnp.float32).reshape(M, 1)

    operands = [x_flat, w1, w2]
    in_specs = [
        pl.BlockSpec((None, L, Ci_p), lambda n: (n, 0, 0)),
        pl.BlockSpec((9, Ci_p, Co_p), lambda n: (0, 0, 0)),
        pl.BlockSpec((9, Co_p, Co_p), lambda n: (0, 0, 0)),
    ]
    if has_shortcut:
        operands.append(ws)
        in_specs.append(pl.BlockSpec((Ci_p, Co_p), lambda n: (0, 0)))
    operands += [affine, colmask]
    in_specs += [pl.BlockSpec((8, Co_p), lambda n: (0, 0)),
                 pl.BlockSpec((M, 1), lambda n: (0, 0))]

    kernel = functools.partial(_resblock_kernel, H=H, W=W,
                               has_shortcut=has_shortcut)

    flops = 2 * N * M * (9 * Ci_p * Co_p + 9 * Co_p * Co_p + Ci_p * Co_p)
    bytes_accessed = int(sum(o.size * o.dtype.itemsize for o in operands)
                         + N * M * Co_p * 2)

    out = pl.pallas_call(
        kernel,
        out_shape=jax.ShapeDtypeStruct((N, M, Co_p), cdt),
        grid_spec=pltpu.PrefetchScalarGridSpec(
            num_scalar_prefetch=0,
            grid=(N,),
            in_specs=in_specs,
            out_specs=pl.BlockSpec((None, M, Co_p), lambda n: (n, 0, 0)),
            scratch_shapes=[
                pltpu.VMEM((L, Co_p), cdt),           # padded conv1 activation
                pltpu.VMEM((M, Co_p), jnp.float32),   # shared accumulator
            ]),
        compiler_params=pltpu.CompilerParams(
            dimension_semantics=("parallel",),
            vmem_limit_bytes=32 * 1024 * 1024),
        cost_estimate=pl.CostEstimate(flops=flops, transcendentals=0,
                                      bytes_accessed=bytes_accessed),
    )(*operands)

    # un-flatten, drop junk columns / channel padding, restore NCHW in f32
    out = out.reshape(N, H, Wp, Co_p)[:, :, :W, :Cout].astype(jnp.float32)
    return jnp.transpose(out, (0, 3, 1, 2))


# -----------------------------------------------------------------------------
# Parameter init (deterministic, mirrors nn.Conv2d / nn.BatchNorm2d shapes)
# -----------------------------------------------------------------------------
def init_resblock_params(key, n_in, n_out, kernel_size=3, stride=1,
                         dtype=jnp.float32):
    assert kernel_size == 3
    assert stride == 1, "only stride=1 supported"
    ks = jax.random.split(key, 10)

    def conv_w(k, kh, kw, cin, cout):                    # HWIO layout
        bound = 1.0 / (cin * kh * kw) ** 0.5
        return jax.random.uniform(k, (kh, kw, cin, cout), dtype, -bound, bound)

    def bn(kg, kb, c):
        return dict(gamma=jax.random.uniform(kg, (c,), dtype, 0.5, 1.5),
                    beta=jax.random.uniform(kb, (c,), dtype, -0.5, 0.5),
                    mean=jnp.zeros((c,), dtype),         # running stats init
                    var=jnp.ones((c,), dtype),
                    eps=1e-5)

    p = dict(
        w1=conv_w(ks[0], 3, 3, n_in, n_out),
        b1=jax.random.uniform(ks[1], (n_out,), dtype, -0.1, 0.1),
        bn1=bn(ks[2], ks[3], n_out),
        w2=conv_w(ks[4], 3, 3, n_out, n_out),
        b2=jax.random.uniform(ks[5], (n_out,), dtype, -0.1, 0.1),
        bn2=bn(ks[6], ks[7], n_out),
        stride=stride,
    )
    if stride != 1 or n_out != n_in:
        p['ws'] = conv_w(ks[8], 1, 1, n_in, n_out)[0, 0]   # (Cin, Cout)
        p['bs'] = jax.random.uniform(ks[9], (n_out,), dtype, -0.1, 0.1)
        p['bns'] = bn(jax.random.fold_in(key, 11),
                      jax.random.fold_in(key, 12), n_out)
    else:
        p['ws'] = None
    return p


# -----------------------------------------------------------------------------
# Pure-JAX f32 reference (lax.conv) for correctness checking
# -----------------------------------------------------------------------------
def resblock_reference(x_nchw, p):
    x = jnp.transpose(x_nchw, (0, 2, 3, 1))

    def conv(x, w, b, stride=1, pad=1):
        y = lax.conv_general_dilated(
            x, w, (stride, stride), [(pad, pad), (pad, pad)],
            dimension_numbers=('NHWC', 'HWIO', 'NHWC'))
        return y + b

    def bn(x, bnp):
        return (x - bnp['mean']) / jnp.sqrt(bnp['var'] + bnp['eps']) \
            * bnp['gamma'] + bnp['beta']

    if p['ws'] is not None:
        residual = conv(x, p['ws'][None, None], p['bs'], stride=p['stride'],
                        pad=0)
        residual = bn(residual, p['bns'])
    else:
        residual = x
    out = jax.nn.relu(bn(conv(x, p['w1'], p['b1']), p['bn1']))
    out = bn(conv(out, p['w2'], p['b2']), p['bn2'])
    out = jax.nn.relu(out + residual)
    return jnp.transpose(out, (0, 3, 1, 2))


# -----------------------------------------------------------------------------
if __name__ == "__main__":
    key = jax.random.PRNGKey(0)
    kx, kp = jax.random.split(key)

    # module's shortcut-active configuration (n_in != n_out), stride=1
    N, C_IN, C_OUT, H, W = 2, 4, 8, 16, 16
    x = jax.random.normal(kx, (N, C_IN, H, W), jnp.float32)      # NCHW input
    params = init_resblock_params(kp, C_IN, C_OUT, kernel_size=3, stride=1)

    out = jax.block_until_ready(resblock_forward(x, params))
    ref = jax.block_until_ready(resblock_reference(x, params))

    assert out.shape == (N, C_OUT, H, W)
    max_err = jnp.max(jnp.abs(out - ref))
    # bf16 matmul inputs + bf16 writeback (f32 accumulation) -> loosened tol
    assert jnp.allclose(out, ref, atol=5e-2, rtol=5e-2), f"max err {max_err}"
    print("KERNEL_OK")
</pallas_src>

<mosaic_0001>
module attributes {stable_mosaic.version = 11 : i64} {
  func.func @_resblock_kernel(%arg0: i32, %arg1: memref<1x326x128xbf16, #tpu.memory_space<vmem>>, %arg2: memref<9x128x128xbf16, #tpu.memory_space<vmem>>, %arg3: memref<9x128x128xbf16, #tpu.memory_space<vmem>>, %arg4: memref<128x128xbf16, #tpu.memory_space<vmem>>, %arg5: memref<8x128xf32, #tpu.memory_space<vmem>>, %arg6: memref<288x1xf32, #tpu.memory_space<vmem>>, %arg7: memref<1x288x128xbf16, #tpu.memory_space<vmem>>, %arg8: memref<326x128xbf16, #tpu.memory_space<vmem>>, %arg9: memref<288x128xf32, #tpu.memory_space<vmem>>) attributes {dimension_semantics = [#tpu.dimension_semantics<parallel>], iteration_bounds = array<i64: 2>, scalar_prefetch = 0 : i64, scratch_operands = 2 : i64, tpu.core_type = #tpu.core_type<tc>, window_params = [{transform_indices = @transform_0, window_bounds = array<i64: 1, 326, 128>}, {pipeline_mode = #tpu.pipeline_mode<synchronous>, transform_indices = @transform_1, window_bounds = array<i64: 9, 128, 128>}, {pipeline_mode = #tpu.pipeline_mode<synchronous>, transform_indices = @transform_2, window_bounds = array<i64: 9, 128, 128>}, {pipeline_mode = #tpu.pipeline_mode<synchronous>, transform_indices = @transform_3, window_bounds = array<i64: 128, 128>}, {pipeline_mode = #tpu.pipeline_mode<synchronous>, transform_indices = @transform_4, window_bounds = array<i64: 8, 128>}, {pipeline_mode = #tpu.pipeline_mode<synchronous>, transform_indices = @transform_5, window_bounds = array<i64: 288, 1>}, {transform_indices = @transform_6, window_bounds = array<i64: 1, 288, 128>}]} {
    %c0 = arith.constant 0 : index
    %c0_0 = arith.constant 0 : index
    %c0_1 = arith.constant 0 : index
    %0 = vector.load %arg1[%c0, %c0_0, %c0_1] : memref<1x326x128xbf16, #tpu.memory_space<vmem>>, vector<1x288x128xbf16>
    %1 = vector.shape_cast %0 : vector<1x288x128xbf16> to vector<288x128xbf16>
    %c0_2 = arith.constant 0 : index
    %c0_3 = arith.constant 0 : index
    %c0_4 = arith.constant 0 : index
    %2 = vector.load %arg2[%c0_2, %c0_3, %c0_4] : memref<9x128x128xbf16, #tpu.memory_space<vmem>>, vector<1x128x128xbf16>
    %3 = vector.shape_cast %2 : vector<1x128x128xbf16> to vector<128x128xbf16>
    %cst = arith.constant dense<0.000000e+00> : vector<288x128xf32>
    %4 = tpu.matmul %1, %3, %cst {dimension_numbers = #tpu.dot_dimension_numbers<[1], [0], [0], [1], [0, 0, 1, 1], [], []>} : vector<288x128xbf16>, vector<128x128xbf16>, vector<288x128xf32> -> vector<288x128xf32>
    %c0_5 = arith.constant 0 : index
    %c1 = arith.constant 1 : index
    %c0_6 = arith.constant 0 : index
    %5 = vector.load %arg1[%c0_5, %c1, %c0_6] : memref<1x326x128xbf16, #tpu.memory_space<vmem>>, vector<1x288x128xbf16>
    %6 = vector.shape_cast %5 : vector<1x288x128xbf16> to vector<288x128xbf16>
    %c1_7 = arith.constant 1 : index
    %c0_8 = arith.constant 0 : index
    %c0_9 = arith.constant 0 : index
    %7 = vector.load %arg2[%c1_7, %c0_8, %c0_9] : memref<9x128x128xbf16, #tpu.memory_space<vmem>>, vector<1x128x128xbf16>
    %8 = vector.shape_cast %7 : vector<1x128x128xbf16> to vector<128x128xbf16>
    %cst_10 = arith.constant dense<0.000000e+00> : vector<288x128xf32>
    %9 = tpu.matmul %6, %8, %cst_10 {dimension_numbers = #tpu.dot_dimension_numbers<[1], [0], [0], [1], [0, 0, 1, 1], [], []>} : vector<288x128xbf16>, vector<128x128xbf16>, vector<288x128xf32> -> vector<288x128xf32>
    %10 = arith.addf %4, %9 : vector<288x128xf32>
    %c0_11 = arith.constant 0 : index
    %c2 = arith.constant 2 : index
    %c0_12 = arith.constant 0 : index
    %11 = vector.load %arg1[%c0_11, %c2, %c0_12] : memref<1x326x128xbf16, #tpu.memory_space<vmem>>, vector<1x288x128xbf16>
    %12 = vector.shape_cast %11 : vector<1x288x128xbf16> to vector<288x128xbf16>
    %c2_13 = arith.constant 2 : index
    %c0_14 = arith.constant 0 : index
    %c0_15 = arith.constant 0 : index
    %13 = vector.load %arg2[%c2_13, %c0_14, %c0_15] : memref<9x128x128xbf16, #tpu.memory_space<vmem>>, vector<1x128x128xbf16>
    %14 = vector.shape_cast %13 : vector<1x128x128xbf16> to vector<128x128xbf16>
    %cst_16 = arith.constant dense<0.000000e+00> : vector<288x128xf32>
    %15 = tpu.matmul %12, %14, %cst_16 {dimension_numbers = #tpu.dot_dimension_numbers<[1], [0], [0], [1], [0, 0, 1, 1], [], []>} : vector<288x128xbf16>, vector<128x128xbf16>, vector<288x128xf32> -> vector<288x128xf32>
    %16 = arith.addf %10, %15 : vector<288x128xf32>
    %c0_17 = arith.constant 0 : index
    %c0_18 = arith.constant 0 : index
    %17 = vector.load %arg9[%c0_17, %c0_18] : memref<288x128xf32, #tpu.memory_space<vmem>>, vector<288x128xf32>
    tpu.vector_store %arg9[%c0_17, %c0_18], %16 {strides = array<i32>} : memref<288x128xf32, #tpu.memory_space<vmem>>, vector<288x128xf32>,
    %c0_19 = arith.constant 0 : index
    %c18 = arith.constant 18 : index
    %c0_20 = arith.constant 0 : index
    %18 = vector.load %arg1[%c0_19, %c18, %c0_20] : memref<1x326x128xbf16, #tpu.memory_space<vmem>>, vector<1x288x128xbf16>
    %19 = vector.shape_cast %18 : vector<1x288x128xbf16> to vector<288x128xbf16>
    %c3 = arith.constant 3 : index
    %c0_21 = arith.constant 0 : index
    %c0_22 = arith.constant 0 : index
    %20 = vector.load %arg2[%c3, %c0_21, %c0_22] : memref<9x128x128xbf16, #tpu.memory_space<vmem>>, vector<1x128x128xbf16>
    %21 = vector.shape_cast %20 : vector<1x128x128xbf16> to vector<128x128xbf16>
    %cst_23 = arith.constant dense<0.000000e+00> : vector<288x128xf32>
    %22 = tpu.matmul %19, %21, %cst_23 {dimension_numbers = #tpu.dot_dimension_numbers<[1], [0], [0], [1], [0, 0, 1, 1], [], []>} : vector<288x128xbf16>, vector<128x128xbf16>, vector<288x128xf32> -> vector<288x128xf32>
    %c0_24 = arith.constant 0 : index
    %c19 = arith.constant 19 : index
    %c0_25 = arith.constant 0 : index
    %23 = vector.load %arg1[%c0_24, %c19, %c0_25] : memref<1x326x128xbf16, #tpu.memory_space<vmem>>, vector<1x288x128xbf16>
    %24 = vector.shape_cast %23 : vector<1x288x128xbf16> to vector<288x128xbf16>
    %c4 = arith.constant 4 : index
    %c0_26 = arith.constant 0 : index
    %c0_27 = arith.constant 0 : index
    %25 = vector.load %arg2[%c4, %c0_26, %c0_27] : memref<9x128x128xbf16, #tpu.memory_space<vmem>>, vector<1x128x128xbf16>
    %26 = vector.shape_cast %25 : vector<1x128x128xbf16> to vector<128x128xbf16>
    %cst_28 = arith.constant dense<0.000000e+00> : vector<288x128xf32>
    %27 = tpu.matmul %24, %26, %cst_28 {dimension_numbers = #tpu.dot_dimension_numbers<[1], [0], [0], [1], [0, 0, 1, 1], [], []>} : vector<288x128xbf16>, vector<128x128xbf16>, vector<288x128xf32> -> vector<288x128xf32>
    %28 = arith.addf %22, %27 : vector<288x128xf32>
    %c0_29 = arith.constant 0 : index
    %c20 = arith.constant 20 : index
    %c0_30 = arith.constant 0 : index
    %29 = vector.load %arg1[%c0_29, %c20, %c0_30] : memref<1x326x128xbf16, #tpu.memory_space<vmem>>, vector<1x288x128xbf16>
    %30 = vector.shape_cast %29 : vector<1x288x128xbf16> to vector<288x128xbf16>
    %c5 = arith.constant 5 : index
    %c0_31 = arith.constant 0 : index
    %c0_32 = arith.constant 0 : index
    %31 = vector.load %arg2[%c5, %c0_31, %c0_32] : memref<9x128x128xbf16, #tpu.memory_space<vmem>>, vector<1x128x128xbf16>
    %32 = vector.shape_cast %31 : vector<1x128x128xbf16> to vector<128x128xbf16>
    %cst_33 = arith.constant dense<0.000000e+00> : vector<288x128xf32>
    %33 = tpu.matmul %30, %32, %cst_33 {dimension_numbers = #tpu.dot_dimension_numbers<[1], [0], [0], [1], [0, 0, 1, 1], [], []>} : vector<288x128xbf16>, vector<128x128xbf16>, vector<288x128xf32> -> vector<288x128xf32>
    %34 = arith.addf %28, %33 : vector<288x128xf32>
    %c0_34 = arith.constant 0 : index
    %c0_35 = arith.constant 0 : index
    %35 = vector.load %arg9[%c0_34, %c0_35] : memref<288x128xf32, #tpu.memory_space<vmem>>, vector<288x128xf32>
    %36 = arith.addf %35, %34 : vector<288x128xf32>
    %c0_36 = arith.constant 0 : index
    %c0_37 = arith.constant 0 : index
    %37 = vector.load %arg9[%c0_36, %c0_37] : memref<288x128xf32, #tpu.memory_space<vmem>>, vector<288x128xf32>
    tpu.vector_store %arg9[%c0_36, %c0_37], %36 {strides = array<i32>} : memref<288x128xf32, #tpu.memory_space<vmem>>, vector<288x128xf32>,
    %c0_38 = arith.constant 0 : index
    %c36 = arith.constant 36 : index
    %c0_39 = arith.constant 0 : index
    %38 = vector.load %arg1[%c0_38, %c36, %c0_39] : memref<1x326x128xbf16, #tpu.memory_space<vmem>>, vector<1x288x128xbf16>
    %39 = vector.shape_cast %38 : vector<1x288x128xbf16> to vector<288x128xbf16>
    %c6 = arith.constant 6 : index
    %c0_40 = arith.constant 0 : index
    %c0_41 = arith.constant 0 : index
    %40 = vector.load %arg2[%c6, %c0_40, %c0_41] : memref<9x128x128xbf16, #tpu.memory_space<vmem>>, vector<1x128x128xbf16>
    %41 = vector.shape_cast %40 : vector<1x128x128xbf16> to vector<128x128xbf16>
    %cst_42 = arith.constant dense<0.000000e+00> : vector<288x128xf32>
    %42 = tpu.matmul %39, %41, %cst_42 {dimension_numbers = #tpu.dot_dimension_numbers<[1], [0], [0], [1], [0, 0, 1, 1], [], []>} : vector<288x128xbf16>, vector<128x128xbf16>, vector<288x128xf32> -> vector<288x128xf32>
    %c0_43 = arith.constant 0 : index
    %c37 = arith.constant 37 : index
    %c0_44 = arith.constant 0 : index
    %43 = vector.load %arg1[%c0_43, %c37, %c0_44] : memref<1x326x128xbf16, #tpu.memory_space<vmem>>, vector<1x288x128xbf16>
    %44 = vector.shape_cast %43 : vector<1x288x128xbf16> to vector<288x128xbf16>
    %c7 = arith.constant 7 : index
    %c0_45 = arith.constant 0 : index
    %c0_46 = arith.constant 0 : index
    %45 = vector.load %arg2[%c7, %c0_45, %c0_46] : memref<9x128x128xbf16, #tpu.memory_space<vmem>>, vector<1x128x128xbf16>
    %46 = vector.shape_cast %45 : vector<1x128x128xbf16> to vector<128x128xbf16>
    %cst_47 = arith.constant dense<0.000000e+00> : vector<288x128xf32>
    %47 = tpu.matmul %44, %46, %cst_47 {dimension_numbers = #tpu.dot_dimension_numbers<[1], [0], [0], [1], [0, 0, 1, 1], [], []>} : vector<288x128xbf16>, vector<128x128xbf16>, vector<288x128xf32> -> vector<288x128xf32>
    %48 = arith.addf %42, %47 : vector<288x128xf32>
    %c0_48 = arith.constant 0 : index
    %c38 = arith.constant 38 : index
    %c0_49 = arith.constant 0 : index
    %49 = vector.load %arg1[%c0_48, %c38, %c0_49] : memref<1x326x128xbf16, #tpu.memory_space<vmem>>, vector<1x288x128xbf16>
    %50 = vector.shape_cast %49 : vector<1x288x128xbf16> to vector<288x128xbf16>
    %c8 = arith.constant 8 : index
    %c0_50 = arith.constant 0 : index
    %c0_51 = arith.constant 0 : index
    %51 = vector.load %arg2[%c8, %c0_50, %c0_51] : memref<9x128x128xbf16, #tpu.memory_space<vmem>>, vector<1x128x128xbf16>
    %52 = vector.shape_cast %51 : vector<1x128x128xbf16> to vector<128x128xbf16>
    %cst_52 = arith.constant dense<0.000000e+00> : vector<288x128xf32>
    %53 = tpu.matmul %50, %52, %cst_52 {dimension_numbers = #tpu.dot_dimension_numbers<[1], [0], [0], [1], [0, 0, 1, 1], [], []>} : vector<288x128xbf16>, vector<128x128xbf16>, vector<288x128xf32> -> vector<288x128xf32>
    %54 = arith.addf %48, %53 : vector<288x128xf32>
    %c0_53 = arith.constant 0 : index
    %c0_54 = arith.constant 0 : index
    %55 = vector.load %arg9[%c0_53, %c0_54] : memref<288x128xf32, #tpu.memory_space<vmem>>, vector<288x128xf32>
    %56 = arith.addf %55, %54 : vector<288x128xf32>
    %c0_55 = arith.constant 0 : index
    %c0_56 = arith.constant 0 : index
    %57 = vector.load %arg9[%c0_55, %c0_56] : memref<288x128xf32, #tpu.memory_space<vmem>>, vector<288x128xf32>
    tpu.vector_store %arg9[%c0_55, %c0_56], %56 {strides = array<i32>} : memref<288x128xf32, #tpu.memory_space<vmem>>, vector<288x128xf32>,
    %c0_57 = arith.constant 0 : index
    %c0_58 = arith.constant 0 : index
    %58 = vector.load %arg9[%c0_57, %c0_58] : memref<288x128xf32, #tpu.memory_space<vmem>>, vector<288x128xf32>
    %c0_59 = arith.constant 0 : index
    %c0_60 = arith.constant 0 : index
    %59 = vector.load %arg5[%c0_59, %c0_60] : memref<8x128xf32, #tpu.memory_space<vmem>>, vector<1x128xf32>
    %60 = vector.broadcast %59 : vector<1x128xf32> to vector<288x128xf32>
    %61 = arith.addf %58, %60 : vector<288x128xf32>
    %cst_61 = arith.constant 0.000000e+00 : f32
    %62 = vector.broadcast %cst_61 : f32 to vector<288x128xf32>
    %63 = arith.maximumf %61, %62 : vector<288x128xf32>
    %c0_62 = arith.constant 0 : index
    %c0_63 = arith.constant 0 : index
    %64 = vector.load %arg6[%c0_62, %c0_63] : memref<288x1xf32, #tpu.memory_space<vmem>>, vector<288x1xf32>
    %65 = vector.broadcast %64 : vector<288x1xf32> to vector<288x128xf32>
    %66 = arith.mulf %63, %65 : vector<288x128xf32>
    %cst_64 = arith.constant 0.000000e+00 : bf16
    %67 = vector.broadcast %cst_64 : bf16 to vector<19x128xbf16>
    %c0_65 = arith.constant 0 : index
    %c0_66 = arith.constant 0 : index
    %68 = vector.load %arg8[%c0_65, %c0_66] : memref<326x128xbf16, #tpu.memory_space<vmem>>, vector<19x128xbf16>
    tpu.vector_store %arg8[%c0_65, %c0_66], %67 {strides = array<i32>} : memref<326x128xbf16, #tpu.memory_space<vmem>>, vector<19x128xbf16>,
    %c307 = arith.constant 307 : index
    %c0_67 = arith.constant 0 : index
    %69 = vector.load %arg8[%c307, %c0_67] : memref<326x128xbf16, #tpu.memory_space<vmem>>, vector<19x128xbf16>
    tpu.vector_store %arg8[%c307, %c0_67], %67 {strides = array<i32>} : memref<326x128xbf16, #tpu.memory_space<vmem>>, vector<19x128xbf16>,
    %70 = arith.truncf %66 : vector<288x128xf32> to vector<288x128xbf16>
    %c19_68 = arith.constant 19 : index
    %c0_69 = arith.constant 0 : index
    %71 = vector.load %arg8[%c19_68, %c0_69] : memref<326x128xbf16, #tpu.memory_space<vmem>>, vector<288x128xbf16>
    tpu.vector_store %arg8[%c19_68, %c0_69], %70 {strides = array<i32>} : memref<326x128xbf16, #tpu.memory_space<vmem>>, vector<288x128xbf16>,
    %c0_70 = arith.constant 0 : index
    %c0_71 = arith.constant 0 : index
    %72 = vector.load %arg8[%c0_70, %c0_71] : memref<326x128xbf16, #tpu.memory_space<vmem>>, vector<288x128xbf16>
    %c0_72 = arith.constant 0 : index
    %c0_73 = arith.constant 0 : index
    %c0_74 = arith.constant 0 : index
    %73 = vector.load %arg3[%c0_72, %c0_73, %c0_74] : memref<9x128x128xbf16, #tpu.memory_space<vmem>>, vector<1x128x128xbf16>
    %74 = vector.shape_cast %73 : vector<1x128x128xbf16> to vector<128x128xbf16>
    %cst_75 = arith.constant dense<0.000000e+00> : vector<288x128xf32>
    %75 = tpu.matmul %72, %74, %cst_75 {dimension_numbers = #tpu.dot_dimension_numbers<[1], [0], [0], [1], [0, 0, 1, 1], [], []>} : vector<288x128xbf16>, vector<128x128xbf16>, vector<288x128xf32> -> vector<288x128xf32>
    %c1_76 = arith.constant 1 : index
    %c0_77 = arith.constant 0 : index
    %76 = vector.load %arg8[%c1_76, %c0_77] : memref<326x128xbf16, #tpu.memory_space<vmem>>, vector<288x128xbf16>
    %c1_78 = arith.constant 1 : index
    %c0_79 = arith.constant 0 : index
    %c0_80 = arith.constant 0 : index
    %77 = vector.load %arg3[%c1_78, %c0_79, %c0_80] : memref<9x128x128xbf16, #tpu.memory_space<vmem>>, vector<1x128x128xbf16>
    %78 = vector.shape_cast %77 : vector<1x128x128xbf16> to vector<128x128xbf16>
    %cst_81 = arith.constant dense<0.000000e+00> : vector<288x128xf32>
    %79 = tpu.matmul %76, %78, %cst_81 {dimension_numbers = #tpu.dot_dimension_numbers<[1], [0], [0], [1], [0, 0, 1, 1], [], []>} : vector<288x128xbf16>, vector<128x128xbf16>, vector<288x128xf32> -> vector<288x128xf32>
    %80 = arith.addf %75, %79 : vector<288x128xf32>
    %c2_82 = arith.constant 2 : index
    %c0_83 = arith.constant 0 : index
    %81 = vector.load %arg8[%c2_82, %c0_83] : memref<326x128xbf16, #tpu.memory_space<vmem>>, vector<288x128xbf16>
    %c2_84 = arith.constant 2 : index
    %c0_85 = arith.constant 0 : index
    %c0_86 = arith.constant 0 : index
    %82 = vector.load %arg3[%c2_84, %c0_85, %c0_86] : memref<9x128x128xbf16, #tpu.memory_space<vmem>>, vector<1x128x128xbf16>
    %83 = vector.shape_cast %82 : vector<1x128x128xbf16> to vector<128x128xbf16>
    %cst_87 = arith.constant dense<0.000000e+00> : vector<288x128xf32>
    %84 = tpu.matmul %81, %83, %cst_87 {dimension_numbers = #tpu.dot_dimension_numbers<[1], [0], [0], [1], [0, 0, 1, 1], [], []>} : vector<288x128xbf16>, vector<128x128xbf16>, vector<288x128xf32> -> vector<288x128xf32>
    %85 = arith.addf %80, %84 : vector<288x128xf32>
    %c0_88 = arith.constant 0 : index
    %c0_89 = arith.constant 0 : index
    %86 = vector.load %arg9[%c0_88, %c0_89] : memref<288x128xf32, #tpu.memory_space<vmem>>, vector<288x128xf32>
    tpu.vector_store %arg9[%c0_88, %c0_89], %85 {strides = array<i32>} : memref<288x128xf32, #tpu.memory_space<vmem>>, vector<288x128xf32>,
    %c18_90 = arith.constant 18 : index
    %c0_91 = arith.constant 0 : index
    %87 = vector.load %arg8[%c18_90, %c0_91] : memref<326x128xbf16, #tpu.memory_space<vmem>>, vector<288x128xbf16>
    %c3_92 = arith.constant 3 : index
    %c0_93 = arith.constant 0 : index
    %c0_94 = arith.constant 0 : index
    %88 = vector.load %arg3[%c3_92, %c0_93, %c0_94] : memref<9x128x128xbf16, #tpu.memory_space<vmem>>, vector<1x128x128xbf16>
    %89 = vector.shape_cast %88 : vector<1x128x128xbf16> to vector<128x128xbf16>
    %cst_95 = arith.constant dense<0.000000e+00> : vector<288x128xf32>
    %90 = tpu.matmul %87, %89, %cst_95 {dimension_numbers = #tpu.dot_dimension_numbers<[1], [0], [0], [1], [0, 0, 1, 1], [], []>} : vector<288x128xbf16>, vector<128x128xbf16>, vector<288x128xf32> -> vector<288x128xf32>
    %c19_96 = arith.constant 19 : index
    %c0_97 = arith.constant 0 : index
    %91 = vector.load %arg8[%c19_96, %c0_97] : memref<326x128xbf16, #tpu.memory_space<vmem>>, vector<288x128xbf16>
    %c4_98 = arith.constant 4 : index
    %c0_99 = arith.constant 0 : index
    %c0_100 = arith.constant 0 : index
    %92 = vector.load %arg3[%c4_98, %c0_99, %c0_100] : memref<9x128x128xbf16, #tpu.memory_space<vmem>>, vector<1x128x128xbf16>
    %93 = vector.shape_cast %92 : vector<1x128x128xbf16> to vector<128x128xbf16>
    %cst_101 = arith.constant dense<0.000000e+00> : vector<288x128xf32>
    %94 = tpu.matmul %91, %93, %cst_101 {dimension_numbers = #tpu.dot_dimension_numbers<[1], [0], [0], [1], [0, 0, 1, 1], [], []>} : vector<288x128xbf16>, vector<128x128xbf16>, vector<288x128xf32> -> vector<288x128xf32>
    %95 = arith.addf %90, %94 : vector<288x128xf32>
    %c20_102 = arith.constant 20 : index
    %c0_103 = arith.constant 0 : index
    %96 = vector.load %arg8[%c20_102, %c0_103] : memref<326x128xbf16, #tpu.memory_space<vmem>>, vector<288x128xbf16>
    %c5_104 = arith.constant 5 : index
    %c0_105 = arith.constant 0 : index
    %c0_106 = arith.constant 0 : index
    %97 = vector.load %arg3[%c5_104, %c0_105, %c0_106] : memref<9x128x128xbf16, #tpu.memory_space<vmem>>, vector<1x128x128xbf16>
    %98 = vector.shape_cast %97 : vector<1x128x128xbf16> to vector<128x128xbf16>
    %cst_107 = arith.constant dense<0.000000e+00> : vector<288x128xf32>
    %99 = tpu.matmul %96, %98, %cst_107 {dimension_numbers = #tpu.dot_dimension_numbers<[1], [0], [0], [1], [0, 0, 1, 1], [], []>} : vector<288x128xbf16>, vector<128x128xbf16>, vector<288x128xf32> -> vector<288x128xf32>
    %100 = arith.addf %95, %99 : vector<288x128xf32>
    %c0_108 = arith.constant 0 : index
    %c0_109 = arith.constant 0 : index
    %101 = vector.load %arg9[%c0_108, %c0_109] : memref<288x128xf32, #tpu.memory_space<vmem>>, vector<288x128xf32>
    %102 = arith.addf %101, %100 : vector<288x128xf32>
    %c0_110 = arith.constant 0 : index
    %c0_111 = arith.constant 0 : index
    %103 = vector.load %arg9[%c0_110, %c0_111] : memref<288x128xf32, #tpu.memory_space<vmem>>, vector<288x128xf32>
    tpu.vector_store %arg9[%c0_110, %c0_111], %102 {strides = array<i32>} : memref<288x128xf32, #tpu.memory_space<vmem>>, vector<288x128xf32>,
    %c36_112 = arith.constant 36 : index
    %c0_113 = arith.constant 0 : index
    %104 = vector.load %arg8[%c36_112, %c0_113] : memref<326x128xbf16, #tpu.memory_space<vmem>>, vector<288x128xbf16>
    %c6_114 = arith.constant 6 : index
    %c0_115 = arith.constant 0 : index
    %c0_116 = arith.constant 0 : index
    %105 = vector.load %arg3[%c6_114, %c0_115, %c0_116] : memref<9x128x128xbf16, #tpu.memory_space<vmem>>, vector<1x128x128xbf16>
    %106 = vector.shape_cast %105 : vector<1x128x128xbf16> to vector<128x128xbf16>
    %cst_117 = arith.constant dense<0.000000e+00> : vector<288x128xf32>
    %107 = tpu.matmul %104, %106, %cst_117 {dimension_numbers = #tpu.dot_dimension_numbers<[1], [0], [0], [1], [0, 0, 1, 1], [], []>} : vector<288x128xbf16>, vector<128x128xbf16>, vector<288x128xf32> -> vector<288x128xf32>
    %c37_118 = arith.constant 37 : index
    %c0_119 = arith.constant 0 : index
    %108 = vector.load %arg8[%c37_118, %c0_119] : memref<326x128xbf16, #tpu.memory_space<vmem>>, vector<288x128xbf16>
    %c7_120 = arith.constant 7 : index
    %c0_121 = arith.constant 0 : index
    %c0_122 = arith.constant 0 : index
    %109 = vector.load %arg3[%c7_120, %c0_121, %c0_122] : memref<9x128x128xbf16, #tpu.memory_space<vmem>>, vector<1x128x128xbf16>
    %110 = vector.shape_cast %109 : vector<1x128x128xbf16> to vector<128x128xbf16>
    %cst_123 = arith.constant dense<0.000000e+00> : vector<288x128xf32>
    %111 = tpu.matmul %108, %110, %cst_123 {dimension_numbers = #tpu.dot_dimension_numbers<[1], [0], [0], [1], [0, 0, 1, 1], [], []>} : vector<288x128xbf16>, vector<128x128xbf16>, vector<288x128xf32> -> vector<288x128xf32>
    %112 = arith.addf %107, %111 : vector<288x128xf32>
    %c38_124 = arith.constant 38 : index
    %c0_125 = arith.constant 0 : index
    %113 = vector.load %arg8[%c38_124, %c0_125] : memref<326x128xbf16, #tpu.memory_space<vmem>>, vector<288x128xbf16>
    %c8_126 = arith.constant 8 : index
    %c0_127 = arith.constant 0 : index
    %c0_128 = arith.constant 0 : index
    %114 = vector.load %arg3[%c8_126, %c0_127, %c0_128] : memref<9x128x128xbf16, #tpu.memory_space<vmem>>, vector<1x128x128xbf16>
    %115 = vector.shape_cast %114 : vector<1x128x128xbf16> to vector<128x128xbf16>
    %cst_129 = arith.constant dense<0.000000e+00> : vector<288x128xf32>
    %116 = tpu.matmul %113, %115, %cst_129 {dimension_numbers = #tpu.dot_dimension_numbers<[1], [0], [0], [1], [0, 0, 1, 1], [], []>} : vector<288x128xbf16>, vector<128x128xbf16>, vector<288x128xf32> -> vector<288x128xf32>
    %117 = arith.addf %112, %116 : vector<288x128xf32>
    %c0_130 = arith.constant 0 : index
    %c0_131 = arith.constant 0 : index
    %118 = vector.load %arg9[%c0_130, %c0_131] : memref<288x128xf32, #tpu.memory_space<vmem>>, vector<288x128xf32>
    %119 = arith.addf %118, %117 : vector<288x128xf32>
    %c0_132 = arith.constant 0 : index
    %c0_133 = arith.constant 0 : index
    %120 = vector.load %arg9[%c0_132, %c0_133] : memref<288x128xf32, #tpu.memory_space<vmem>>, vector<288x128xf32>
    tpu.vector_store %arg9[%c0_132, %c0_133], %119 {strides = array<i32>} : memref<288x128xf32, #tpu.memory_space<vmem>>, vector<288x128xf32>,
    %c0_134 = arith.constant 0 : index
    %c19_135 = arith.constant 19 : index
    %c0_136 = arith.constant 0 : index
    %121 = vector.load %arg1[%c0_134, %c19_135, %c0_136] : memref<1x326x128xbf16, #tpu.memory_space<vmem>>, vector<1x288x128xbf16>
    %122 = vector.shape_cast %121 : vector<1x288x128xbf16> to vector<288x128xbf16>
    %c0_137 = arith.constant 0 : index
    %c0_138 = arith.constant 0 : index
    %123 = vector.load %arg9[%c0_137, %c0_138] : memref<288x128xf32, #tpu.memory_space<vmem>>, vector<288x128xf32>
    %c0_139 = arith.constant 0 : index
    %c0_140 = arith.constant 0 : index
    %124 = vector.load %arg4[%c0_139, %c0_140] : memref<128x128xbf16, #tpu.memory_space<vmem>>, vector<128x128xbf16>
    %cst_141 = arith.constant dense<0.000000e+00> : vector<288x128xf32>
    %125 = tpu.matmul %122, %124, %cst_141 {dimension_numbers = #tpu.dot_dimension_numbers<[1], [0], [0], [1], [0, 0, 1, 1], [], []>} : vector<288x128xbf16>, vector<128x128xbf16>, vector<288x128xf32> -> vector<288x128xf32>
    %126 = arith.addf %123, %125 : vector<288x128xf32>
    %c0_142 = arith.constant 0 : index
    %c0_143 = arith.constant 0 : index
    %127 = vector.load %arg9[%c0_142, %c0_143] : memref<288x128xf32, #tpu.memory_space<vmem>>, vector<288x128xf32>
    tpu.vector_store %arg9[%c0_142, %c0_143], %126 {strides = array<i32>} : memref<288x128xf32, #tpu.memory_space<vmem>>, vector<288x128xf32>,
    %c0_144 = arith.constant 0 : index
    %c0_145 = arith.constant 0 : index
    %128 = vector.load %arg9[%c0_144, %c0_145] : memref<288x128xf32, #tpu.memory_space<vmem>>, vector<288x128xf32>
    %c1_146 = arith.constant 1 : index
    %c0_147 = arith.constant 0 : index
    %129 = vector.load %arg5[%c1_146, %c0_147] : memref<8x128xf32, #tpu.memory_space<vmem>>, vector<1x128xf32>
    %130 = vector.broadcast %129 : vector<1x128xf32> to vector<288x128xf32>
    %131 = arith.addf %128, %130 : vector<288x128xf32>
    %cst_148 = arith.constant 0.000000e+00 : f32
    %132 = vector.broadcast %cst_148 : f32 to vector<288x128xf32>
    %133 = arith.maximumf %131, %132 : vector<288x128xf32>
    %134 = arith.truncf %133 : vector<288x128xf32> to vector<288x128xbf16>
    %c0_149 = arith.constant 0 : index
    %c0_150 = arith.constant 0 : index
    %c0_151 = arith.constant 0 : index
    %135 = vector.load %arg7[%c0_149, %c0_150, %c0_151] : memref<1x288x128xbf16, #tpu.memory_space<vmem>>, vector<1x288x128xbf16>
    %136 = vector.shape_cast %135 : vector<1x288x128xbf16> to vector<288x128xbf16>
    %137 = vector.shape_cast %134 : vector<288x128xbf16> to vector<1x288x128xbf16>
    tpu.vector_store %arg7[%c0_149, %c0_150, %c0_151], %137 {strides = array<i32>} : memref<1x288x128xbf16, #tpu.memory_space<vmem>>, vector<1x288x128xbf16>,
    return
  }
  func.func @transform_0(%arg0: i32) -> (i32, i32, i32) {
    %c0_i32 = arith.constant 0 : i32
    %c0_i32_0 = arith.constant 0 : i32
    %c0_i32_1 = arith.constant 0 : i32
    return %arg0, %c0_i32, %c0_i32_0 : i32, i32, i32
  }
  func.func @transform_1(%arg0: i32) -> (i32, i32, i32) {
    %c0_i32 = arith.constant 0 : i32
    %c0_i32_0 = arith.constant 0 : i32
    %c0_i32_1 = arith.constant 0 : i32
    %c0_i32_2 = arith.constant 0 : i32
    return %c0_i32, %c0_i32_0, %c0_i32_1 : i32, i32, i32
  }
  func.func @transform_2(%arg0: i32) -> (i32, i32, i32) {
    %c0_i32 = arith.constant 0 : i32
    %c0_i32_0 = arith.constant 0 : i32
    %c0_i32_1 = arith.constant 0 : i32
    %c0_i32_2 = arith.constant 0 : i32
    return %c0_i32, %c0_i32_0, %c0_i32_1 : i32, i32, i32
  }
  func.func @transform_3(%arg0: i32) -> (i32, i32) {
    %c0_i32 = arith.constant 0 : i32
    %c0_i32_0 = arith.constant 0 : i32
    %c0_i32_1 = arith.constant 0 : i32
    return %c0_i32, %c0_i32_0 : i32, i32
  }
  func.func @transform_4(%arg0: i32) -> (i32, i32) {
    %c0_i32 = arith.constant 0 : i32
    %c0_i32_0 = arith.constant 0 : i32
    %c0_i32_1 = arith.constant 0 : i32
    return %c0_i32, %c0_i32_0 : i32, i32
  }
  func.func @transform_5(%arg0: i32) -> (i32, i32) {
    %c0_i32 = arith.constant 0 : i32
    %c0_i32_0 = arith.constant 0 : i32
    %c0_i32_1 = arith.constant 0 : i32
    return %c0_i32, %c0_i32_0 : i32, i32
  }
  func.func @transform_6(%arg0: i32) -> (i32, i32, i32) {
    %c0_i32 = arith.constant 0 : i32
    %c0_i32_0 = arith.constant 0 : i32
    %c0_i32_1 = arith.constant 0 : i32
    return %arg0, %c0_i32, %c0_i32_0 : i32, i32, i32
  }
}

</mosaic_0001>

<llo_original>
// kernel: tpu_custom_call.1
$region0: #{tpu_custom_call.1}
  #allocation0 [shape = 'u32[]', space=smem, size = 0x4, offset = 0x4, fixed_abs, tag = 'smem constant byte address 0x4 - core index']
  #allocation1 [shape = 'u32[72,128]{1,0:T(1,128)}', space=vmem, size = 0x9000, scoped, tag = 'internal scratch']
  #allocation2 [shape = 'bf16[326,128]{1,0:T(8,128)(2,1)}', space=vmem, size = 0x14800, scoped, tag = 'scratch operand']
  #allocation3 [shape = 'f32[288,128]{1,0:T(8,128)}', space=vmem, size = 0x24000, scoped, tag = 'scratch operand']
  %s0 = inlined_call_operand.vmem [shape: bf16[2,326,128], index: 0, kind: input, shape index: {}]
  %s1 = inlined_call_operand.vmem [shape: bf16[9,128,128], index: 1, kind: input, shape index: {}]
  %s2 = inlined_call_operand.hbm [shape: bf16[9,128,128], index: 2, kind: input, shape index: {}]
  %s3 = inlined_call_operand.vmem [shape: bf16[128,128], index: 3, kind: input, shape index: {}]
  %s4 = inlined_call_operand.vmem [shape: f32[8,128], index: 4, kind: input, shape index: {}]
  %s5 = inlined_call_operand.vmem [shape: f32[288,1], index: 5, kind: input, shape index: {}]
  %s6 = inlined_call_operand.hbm [shape: bf16[2,288,128], index: 6, kind: output, shape index: {}]
  %s7 = sld [smem:[#allocation0]]
  $region61: #{tpu_custom_call.1} parent=0
    _
  %s9 = ssub.s32 1, %s7
  %s10 = scalar_select 0, %s9, %s7
  $region1: #{tpu_custom_call.1} parent=0
    #allocation4 [shape = 'u8[294912]{0}', space=vmem, size = 0x48000, scoped, tag = 'input window, operand 2, single buffered']
    #allocation5 [shape = 's32[2]{0}', space=sflag, size = 0x8, scoped, tag = 'scoped memory for tpu_custom_call.1']
    #allocation6 [shape = 's32[2]{0}', space=sflag, size = 0x8, scoped, tag = 'scoped memory for tpu_custom_call.1']
    #allocation7 [shape = 'u8[147456]{0}', space=vmem, size = 0x24000, scoped, tag = 'output window, operand 0']
    %11 = vsyncpa [#allocation5], 0
    %12 = vsyncpa [#allocation6], 0
    %s13 = scalar_lea.sflag [#allocation6], 1
    %14 = vsyncpa %s13, 0
    loop: start=0, step=1, limit=4
    $region2: #{tpu_custom_call.1} parent=1 // loop_pre_header
      _
    $region3: #{tpu_custom_call.1} parent=1 // loop_header
      %s16 = sphi 0, %s20
      %p17 = scmp.ge.s32.totalorder %s16, 4
      %s26 = sphi 0, %s28
      %s29 = sphi 0, %s26
      %s30 = sphi 0, %s29
      %s46 = sphi 0, %s30
      %s50 = sphi 0, %s50
      %s52 = sphi 0, %s50
      %s53 = sphi 0, %s52
      %s67 = sphi 0, %s53
      %s71 = sphi 0, %s71
      %s73 = sphi 0, %s71
      %s74 = sphi 0, %s73
      %s88 = sphi 0, %s74
      %s92 = sphi 0, %s92
      %s94 = sphi 0, %s92
      %s95 = sphi 0, %s94
      %s109 = sphi 0, %s95
      %s113 = sphi 0, %s113
      %s115 = sphi 0, %s113
      %s116 = sphi 0, %s115
      %s130 = sphi 0, %s116
      %s134 = sphi 0, %s134
      %s136 = sphi 0, %s134
      %s137 = sphi 0, %s136
      %s151 = sphi 0, %s137
      %s157 = sphi 0, %s159
      %s160 = sphi 0, %s157
      %s161 = sphi 0, %s160
      %s177 = sphi 0, %s161
    $region4: #{tpu_custom_call.1} parent=1 // loop_header_branch
      %19 = sbr.rel (%p17) target = $region8
    $region5: #{tpu_custom_call.1} parent=1 // loop_body
      %s21 = ssub.s32 %s16, 1
      %s22 = ssub.s32 %s16, 2
      %s23 = sadd.s32 %s16, 1
      %s24 = ssub.s32 %s16, %s23
      %p25 = scmp.eq.s32.totalorder %s24, 0
      %s27 = sadd.s32 %s26, 1
      %s28 = scalar_select %p25, %s26, %s27
      %p31 = pneg %p25
      %p32 = scmp.eq.s32.totalorder %s16, 1
      %p33 = por %p31, %p32
      %p34 = scmp.ne.s32.totalorder %s26, %s29
      %p35 = scmp.eq.s32.totalorder %s16, 0
      %p36 = por %p34, %p35
      %p37 = scmp.ne.s32.totalorder %s26, %s29
      %p38 = scmp.eq.s32.totalorder %s21, 1
      %p39 = por %p37, %p38
      %p40 = scmp.ne.s32.totalorder %s29, %s30
      %p41 = scmp.eq.s32.totalorder %s21, 0
      %p42 = por %p40, %p41
      %p43 = scmp.ne.s32.totalorder %s29, %s30
      %p44 = scmp.eq.s32.totalorder %s22, 1
      %p45 = por %p43, %p44
      %p47 = scmp.ne.s32.totalorder %s30, %s46
      %p48 = scmp.eq.s32.totalorder %s22, 0
      %p49 = por %p47, %p48
      %s51 = sadd.s32 %s50, 1
      %p54 = scmp.eq.s32.totalorder %s16, 1
      %p55 = scmp.ne.s32.totalorder %s50, %s52
      %p56 = scmp.eq.s32.totalorder %s16, 0
      %p57 = por %p55, %p56
      %p58 = scmp.ne.s32.totalorder %s50, %s52
      %p59 = scmp.eq.s32.totalorder %s21, 1
      %p60 = por %p58, %p59
      %p61 = scmp.ne.s32.totalorder %s52, %s53
      %p62 = scmp.eq.s32.totalorder %s21, 0
      %p63 = por %p61, %p62
      %p64 = scmp.ne.s32.totalorder %s52, %s53
      %p65 = scmp.eq.s32.totalorder %s22, 1
      %p66 = por %p64, %p65
      %p68 = scmp.ne.s32.totalorder %s53, %s67
      %p69 = scmp.eq.s32.totalorder %s22, 0
      %p70 = por %p68, %p69
      %s72 = sadd.s32 %s71, 1
      %p75 = scmp.eq.s32.totalorder %s16, 1
      %p76 = scmp.ne.s32.totalorder %s71, %s73
      %p77 = scmp.eq.s32.totalorder %s16, 0
      %p78 = por %p76, %p77
      %p79 = scmp.ne.s32.totalorder %s71, %s73
      %p80 = scmp.eq.s32.totalorder %s21, 1
      %p81 = por %p79, %p80
      %p82 = scmp.ne.s32.totalorder %s73, %s74
      %p83 = scmp.eq.s32.totalorder %s21, 0
      %p84 = por %p82, %p83
      %p85 = scmp.ne.s32.totalorder %s73, %s74
      %p86 = scmp.eq.s32.totalorder %s22, 1
      %p87 = por %p85, %p86
      %p89 = scmp.ne.s32.totalorder %s74, %s88
      %p90 = scmp.eq.s32.totalorder %s22, 0
      %p91 = por %p89, %p90
      %s93 = sadd.s32 %s92, 1
      %p96 = scmp.eq.s32.totalorder %s16, 1
      %p97 = scmp.ne.s32.totalorder %s92, %s94
      %p98 = scmp.eq.s32.totalorder %s16, 0
      %p99 = por %p97, %p98
      %p100 = scmp.ne.s32.totalorder %s92, %s94
      %p101 = scmp.eq.s32.totalorder %s21, 1
      %p102 = por %p100, %p101
      %p103 = scmp.ne.s32.totalorder %s94, %s95
      %p104 = scmp.eq.s32.totalorder %s21, 0
      %p105 = por %p103, %p104
      %p106 = scmp.ne.s32.totalorder %s94, %s95
      %p107 = scmp.eq.s32.totalorder %s22, 1
      %p108 = por %p106, %p107
      %p110 = scmp.ne.s32.totalorder %s95, %s109
      %p111 = scmp.eq.s32.totalorder %s22, 0
      %p112 = por %p110, %p111
      %s114 = sadd.s32 %s113, 1
      %p117 = scmp.eq.s32.totalorder %s16, 1
      %p118 = scmp.ne.s32.totalorder %s113, %s115
      %p119 = scmp.eq.s32.totalorder %s16, 0
      %p120 = por %p118, %p119
      %p121 = scmp.ne.s32.totalorder %s113, %s115
      %p122 = scmp.eq.s32.totalorder %s21, 1
      %p123 = por %p121, %p122
      %p124 = scmp.ne.s32.totalorder %s115, %s116
      %p125 = scmp.eq.s32.totalorder %s21, 0
      %p126 = por %p124, %p125
      %p127 = scmp.ne.s32.totalorder %s115, %s116
      %p128 = scmp.eq.s32.totalorder %s22, 1
      %p129 = por %p127, %p128
      %p131 = scmp.ne.s32.totalorder %s116, %s130
      %p132 = scmp.eq.s32.totalorder %s22, 0
      %p133 = por %p131, %p132
      %s135 = sadd.s32 %s134, 1
      %p138 = scmp.eq.s32.totalorder %s16, 1
      %p139 = scmp.ne.s32.totalorder %s134, %s136
      %p140 = scmp.eq.s32.totalorder %s16, 0
      %p141 = por %p139, %p140
      %p142 = scmp.ne.s32.totalorder %s134, %s136
      %p143 = scmp.eq.s32.totalorder %s21, 1
      %p144 = por %p142, %p143
      %p145 = scmp.ne.s32.totalorder %s136, %s137
      %p146 = scmp.eq.s32.totalorder %s21, 0
      %p147 = por %p145, %p146
      %p148 = scmp.ne.s32.totalorder %s136, %s137
      %p149 = scmp.eq.s32.totalorder %s22, 1
      %p150 = por %p148, %p149
      %p152 = scmp.ne.s32.totalorder %s137, %s151
      %p153 = scmp.eq.s32.totalorder %s22, 0
      %p154 = por %p152, %p153
      %s155 = ssub.s32 %s16, %s23
      %p156 = scmp.eq.s32.totalorder %s155, 0
      %s158 = sadd.s32 %s157, 1
      %s159 = scalar_select %p156, %s157, %s158
      %p162 = pneg %p156
      %p163 = scmp.eq.s32.totalorder %s16, 1
      %p164 = por %p162, %p163
      %p165 = scmp.ne.s32.totalorder %s157, %s160
      %p166 = scmp.eq.s32.totalorder %s16, 0
      %p167 = por %p165, %p166
      %p168 = scmp.ne.s32.totalorder %s157, %s160
      %p169 = scmp.eq.s32.totalorder %s21, 1
      %p170 = por %p168, %p169
      %p171 = scmp.ne.s32.totalorder %s160, %s161
      %p172 = scmp.eq.s32.totalorder %s21, 0
      %p173 = por %p171, %p172
      %p174 = scmp.ne.s32.totalorder %s160, %s161
      %p175 = scmp.eq.s32.totalorder %s22, 1
      %p176 = por %p174, %p175
      %p178 = scmp.ne.s32.totalorder %s161, %s177
      %p179 = scmp.eq.s32.totalorder %s22, 0
      %p180 = por %p178, %p179
      %p181 = scmp.le.s32.totalorder 1, %s16
      %p182 = scmp.lt.s32.totalorder %s16, 3
      %p183 = pnand %p181, %p182
      %p184 = pneg %p183
      // Predicated region
      $region9: #{tpu_custom_call.1} parent=5 // pred_check
        _
      $region10: #{tpu_custom_call.1} parent=5 // pred_check_branch
        %186 = sbr.rel (%p183) target = $region12
      $region11: #{tpu_custom_call.1} parent=5 // pred_region
        %s187 = ssub.s32 %s16, 1
        // Predicated region
        $region13: #{tpu_custom_call.1} parent=11 // pred_check
          %p188 = pneg %p63
        $region14: #{tpu_custom_call.1} parent=11 // pred_check_branch
          %190 = sbr.rel (%p188) target = $region16
        $region15: #{tpu_custom_call.1} parent=11 // pred_region
          _
        $region16: #{tpu_custom_call.1} parent=11 // pred_fallthru
          _
        // Predicated region
        $region17: #{tpu_custom_call.1} parent=11 // pred_check
          %p191 = pneg %p84
        $region18: #{tpu_custom_call.1} parent=11 // pred_check_branch
          %193 = sbr.rel (%p191) target = $region20
        $region19: #{tpu_custom_call.1} parent=11 // pred_region
          %195 = vsyncadd [#allocation5], 0
          %s196 = sshll.u32 %s2, 4
          %s197 = int_to_ptr.hbm [resolvable:$true] %s196
          %s198 = sshll.u32 [#allocation4], 4
          %s199 = int_to_ptr.vmem [resolvable:$true] %s198
          %204 = dma.hbm_to_vmem [thread:$0]  %s197, 9216, %s199, [#allocation5], 64, 64, 4
        $region20: #{tpu_custom_call.1} parent=11 // pred_fallthru
          _
        // Predicated region
        $region21: #{tpu_custom_call.1} parent=11 // pred_check
          %p205 = pneg %p105
        $region22: #{tpu_custom_call.1} parent=11 // pred_check_branch
          %207 = sbr.rel (%p205) target = $region24
        $region23: #{tpu_custom_call.1} parent=11 // pred_region
          _
        $region24: #{tpu_custom_call.1} parent=11 // pred_fallthru
          _
        // Predicated region
        $region25: #{tpu_custom_call.1} parent=11 // pred_check
          %p208 = pneg %p126
        $region26: #{tpu_custom_call.1} parent=11 // pred_check_branch
          %210 = sbr.rel (%p208) target = $region28
        $region27: #{tpu_custom_call.1} parent=11 // pred_region
          _
        $region28: #{tpu_custom_call.1} parent=11 // pred_fallthru
          _
        // Predicated region
        $region29: #{tpu_custom_call.1} parent=11 // pred_check
          %p211 = pneg %p147
        $region30: #{tpu_custom_call.1} parent=11 // pred_check_branch
          %213 = sbr.rel (%p211) target = $region32
        $region31: #{tpu_custom_call.1} parent=11 // pred_region
          _
        $region32: #{tpu_custom_call.1} parent=11 // pred_fallthru
          _
      $region12: #{tpu_custom_call.1} parent=5 // pred_fallthru
        _
      %p214 = scmp.lt.s32.totalorder %s16, 2
      // Predicated region
      $region33: #{tpu_custom_call.1} parent=5 // pred_check
        %p215 = pneg %p214
      $region34: #{tpu_custom_call.1} parent=5 // pred_check_branch
        %217 = sbr.rel (%p215) target = $region36
      $region35: #{tpu_custom_call.1} parent=5 // pred_region
        // Predicated region
        $region37: #{tpu_custom_call.1} parent=35 // pred_check
          %p218 = pneg %p36
        $region38: #{tpu_custom_call.1} parent=35 // pred_check_branch
          %220 = sbr.rel (%p218) target = $region40
        $region39: #{tpu_custom_call.1} parent=35 // pred_region
          %p221 = scmp.lt.s32.totalorder %s16, 1
          %s222 = scalar_select %p221, %s16, 1
          %s223 = smul.addr %s222, 41
          %s224 = smul.addr %s223, 4
          %s225 = scalar_lea.vmem %s0, %s224
        $region40: #{tpu_custom_call.1} parent=35 // pred_fallthru
          _
      $region36: #{tpu_custom_call.1} parent=5 // pred_fallthru
        _
      %p226 = scmp.le.s32.totalorder 1, %s16
      %p227 = scmp.lt.s32.totalorder %s16, 3
      %p228 = pnand %p226, %p227
      %p229 = pneg %p228
      // Predicated region
      $region41: #{tpu_custom_call.1} parent=5 // pred_check
        _
      $region42: #{tpu_custom_call.1} parent=5 // pred_check_branch
        %231 = sbr.rel (%p228) target = $region44
      $region43: #{tpu_custom_call.1} parent=5 // pred_region
        %s232 = ssub.s32 %s16, 1
        // Predicated region
        $region45: #{tpu_custom_call.1} parent=43 // pred_check
          %p233 = pneg %p84
        $region46: #{tpu_custom_call.1} parent=43 // pred_check_branch
          %235 = sbr.rel (%p233) target = $region48
        $region47: #{tpu_custom_call.1} parent=43 // pred_region
          %237 = dma.done [#allocation5], 9216
        $region48: #{tpu_custom_call.1} parent=43 // pred_fallthru
          _
        %p238 = scmp.lt.s32.totalorder %s21, 1
        %s239 = scalar_select %p238, %s21, 1
        %s240 = smul.addr %s239, 41
        %s241 = smul.addr %s240, 4
        %s242 = scalar_lea.vmem %s0, %s241
        %p243 = pneg %p42
        %p244 = pneg %p39
        %p245 = pneg %p63
        %p246 = pneg %p60
        %p247 = pneg %p84
        %p248 = pneg %p81
        %p249 = pneg %p105
        %p250 = pneg %p102
        %p251 = pneg %p126
        %p252 = pneg %p123
        %p253 = pneg %p147
        %p254 = pneg %p144
        %p255 = pneg %p173
        %p256 = pneg %p170
        %s257 = sand.u32 %s160, 1
        %s258 = scalar_lea.sflag [#allocation6], %s257
        %s259 = sand.u32 %s160, 1
        %s260 = smul.addr %s259, 144
        %s261 = scalar_lea.vmem [#allocation7], %s260
        %p262 = scmp.lt.s32.totalorder %s21, 1
        %s263 = scalar_select %p262, %s21, 1
        %s264 = smul.addr %s263, 41
        %s265 = smul.addr %s264, 4
        %s266 = scalar_lea.vmem %s0, %s265
        %v268 = vld [vmem:[%s266] sm:$0xf]
        %v269 = vld [vmem:[%s266 + $0x4] sm:$0xf]
        %v270 = vld [vmem:[%s266 + $0x8] sm:$0xf]
        %v271 = vld [vmem:[%s266 + $0xc] sm:$0xf]
        %v272 = vld [vmem:[%s266 + $0x10] sm:$0xf]
        %v273 = vld [vmem:[%s266 + $0x14] sm:$0xf]
        %v274 = vld [vmem:[%s266 + $0x18] sm:$0xf]
        %v275 = vld [vmem:[%s266 + $0x1c] sm:$0xf]
        %v276 = vld [vmem:[%s266 + $0x20] sm:$0xf]
        %v277 = vld [vmem:[%s266 + $0x24] sm:$0xf]
        %v278 = vld [vmem:[%s266 + $0x28] sm:$0xf]
        %v279 = vld [vmem:[%s266 + $0x2c] sm:$0xf]
        %v280 = vld [vmem:[%s266 + $0x30] sm:$0xf]
        %v281 = vld [vmem:[%s266 + $0x34] sm:$0xf]
        %v282 = vld [vmem:[%s266 + $0x38] sm:$0xf]
        %v283 = vld [vmem:[%s266 + $0x3c] sm:$0xf]
        %v284 = vld [vmem:[%s266 + $0x40] sm:$0xf]
        %v285 = vld [vmem:[%s266 + $0x44] sm:$0xf]
        %v286 = vld [vmem:[%s266 + $0x48] sm:$0xf]
        %v287 = vld [vmem:[%s266 + $0x4c] sm:$0xf]
        %v288 = vld [vmem:[%s266 + $0x50] sm:$0xf]
        %v289 = vld [vmem:[%s266 + $0x54] sm:$0xf]
        %v290 = vld [vmem:[%s266 + $0x58] sm:$0xf]
        %v291 = vld [vmem:[%s266 + $0x5c] sm:$0xf]
        %v292 = vld [vmem:[%s266 + $0x60] sm:$0xf]
        %v293 = vld [vmem:[%s266 + $0x64] sm:$0xf]
        %v294 = vld [vmem:[%s266 + $0x68] sm:$0xf]
        %v295 = vld [vmem:[%s266 + $0x6c] sm:$0xf]
        %v296 = vld [vmem:[%s266 + $0x70] sm:$0xf]
        %v297 = vld [vmem:[%s266 + $0x74] sm:$0xf]
        %v298 = vld [vmem:[%s266 + $0x78] sm:$0xf]
        %v299 = vld [vmem:[%s266 + $0x7c] sm:$0xf]
        %v300 = vld [vmem:[%s266 + $0x80] sm:$0xf]
        %v301 = vld [vmem:[%s266 + $0x84] sm:$0xf]
        %v302 = vld [vmem:[%s266 + $0x88] sm:$0xf]
        %v303 = vld [vmem:[%s266 + $0x8c] sm:$0xf]
        %v304 = vld [vmem:[%s1] sm:$0xf]
        %v305 = vld [vmem:[%s1 + $0x4] sm:$0xf]
        %v306 = vld [vmem:[%s1 + $0x8] sm:$0xf]
        %v307 = vld [vmem:[%s1 + $0xc] sm:$0xf]
        %v308 = vld [vmem:[%s1 + $0x10] sm:$0xf]
        %v309 = vld [vmem:[%s1 + $0x14] sm:$0xf]
        %v310 = vld [vmem:[%s1 + $0x18] sm:$0xf]
        %v311 = vld [vmem:[%s1 + $0x1c] sm:$0xf]
        %v312 = vld [vmem:[%s1 + $0x20] sm:$0xf]
        %v313 = vld [vmem:[%s1 + $0x24] sm:$0xf]
        %v314 = vld [vmem:[%s1 + $0x28] sm:$0xf]
        %v315 = vld [vmem:[%s1 + $0x2c] sm:$0xf]
        %v316 = vld [vmem:[%s1 + $0x30] sm:$0xf]
        %v317 = vld [vmem:[%s1 + $0x34] sm:$0xf]
        %v318 = vld [vmem:[%s1 + $0x38] sm:$0xf]
        %v319 = vld [vmem:[%s1 + $0x3c] sm:$0xf]
        %v320 = vld [vmem:[%s266 + $0x90] sm:$0x1]
        %s321 = scalar_lea.vmem %s1, 64
        %v322 = vld [vmem:[%s321] sm:$0xf]
        %v323 = vld [vmem:[%s321 + $0x4] sm:$0xf]
        %v324 = vld [vmem:[%s321 + $0x8] sm:$0xf]
        %v325 = vld [vmem:[%s321 + $0xc] sm:$0xf]
        %v326 = vld [vmem:[%s321 + $0x10] sm:$0xf]
        %v327 = vld [vmem:[%s321 + $0x14] sm:$0xf]
        %v328 = vld [vmem:[%s321 + $0x18] sm:$0xf]
        %v329 = vld [vmem:[%s321 + $0x1c] sm:$0xf]
        %v330 = vld [vmem:[%s321 + $0x20] sm:$0xf]
        %v331 = vld [vmem:[%s321 + $0x24] sm:$0xf]
        %v332 = vld [vmem:[%s321 + $0x28] sm:$0xf]
        %v333 = vld [vmem:[%s321 + $0x2c] sm:$0xf]
        %v334 = vld [vmem:[%s321 + $0x30] sm:$0xf]
        %v335 = vld [vmem:[%s321 + $0x34] sm:$0xf]
        %v336 = vld [vmem:[%s321 + $0x38] sm:$0xf]
        %v337 = vld [vmem:[%s321 + $0x3c] sm:$0xf]
        %v375 = vunpack.c.l.b16 %v268
        %v376 = vunpack.c.l.b16 %v269
        %v377 = vunpack.c.l.b16 %v270
        %v378 = vunpack.c.l.b16 %v271
        %v379 = vunpack.c.l.b16 %v272
        %v380 = vunpack.c.l.b16 %v273
        %v381 = vunpack.c.l.b16 %v274
        %v382 = vunpack.c.l.b16 %v275
        %v383 = vunpack.c.l.b16 %v276
        %v384 = vunpack.c.l.b16 %v277
        %v385 = vunpack.c.l.b16 %v278
        %v386 = vunpack.c.l.b16 %v279
        %v387 = vunpack.c.l.b16 %v280
        %v388 = vunpack.c.l.b16 %v281
        %v389 = vunpack.c.l.b16 %v282
        %v390 = vunpack.c.l.b16 %v283
        %v391 = vunpack.c.l.b16 %v284
        %v392 = vunpack.c.l.b16 %v285
        %v393 = vunpack.c.l.b16 %v286
        %v394 = vunpack.c.l.b16 %v287
        %v395 = vunpack.c.l.b16 %v288
        %v396 = vunpack.c.l.b16 %v289
        %v397 = vunpack.c.l.b16 %v290
        %v398 = vunpack.c.l.b16 %v291
        %v399 = vunpack.c.l.b16 %v292
        %v400 = vunpack.c.l.b16 %v293
        %v401 = vunpack.c.l.b16 %v294
        %v402 = vunpack.c.l.b16 %v295
        %v403 = vunpack.c.l.b16 %v296
        %v404 = vunpack.c.l.b16 %v297
        %v405 = vunpack.c.l.b16 %v298
        %v406 = vunpack.c.l.b16 %v299
        %v407 = vunpack.c.l.b16 %v300
        %v408 = vunpack.c.l.b16 %v301
        %v409 = vunpack.c.l.b16 %v302
        %v410 = vunpack.c.l.b16 %v303
        %v411 = vunpack.c.l.b16 %v320
        %v412 = vpack.c.b16 %v376, %v375
        %v413 = vpack.c.b16 %v378, %v377
        %v414 = vpack.c.b16 %v380, %v379
        %v415 = vpack.c.b16 %v382, %v381
        %v416 = vpack.c.b16 %v384, %v383
        %v417 = vpack.c.b16 %v386, %v385
        %v418 = vpack.c.b16 %v388, %v387
        %v419 = vpack.c.b16 %v390, %v389
        %v420 = vpack.c.b16 %v392, %v391
        %v421 = vpack.c.b16 %v394, %v393
        %v422 = vpack.c.b16 %v396, %v395
        %v423 = vpack.c.b16 %v398, %v397
        %v424 = vpack.c.b16 %v400, %v399
        %v425 = vpack.c.b16 %v402, %v401
        %v426 = vpack.c.b16 %v404, %v403
        %v427 = vpack.c.b16 %v406, %v405
        %v428 = vpack.c.b16 %v408, %v407
        %v429 = vpack.c.b16 %v410, %v409
        %v430 = vpack.c.b16 %v411, %v411
        %vm431 = vsmask.f32 7424
        %v433 = vshrl.u32 %v412, 16
        %v435 = vshll.u32 %v412, 16
        %v437 = vrot.slane %v435, 1
        %v438 = vor.u32 %v433, %v437
        %v440 = vshll.u32 %v413, 16
        %v442 = vrot.slane %v440, 1
        %v443 = vsel %vm431, %v438, %v442
        %v444 = vshrl.u32 %v413, 16
        %v446 = vor.u32 %v444, %v442
        %v448 = vshll.u32 %v414, 16
        %v450 = vrot.slane %v448, 1
        %v451 = vsel %vm431, %v446, %v450
        %v452 = vshrl.u32 %v414, 16
        %v454 = vor.u32 %v452, %v450
        %v456 = vshll.u32 %v415, 16
        %v458 = vrot.slane %v456, 1
        %v459 = vsel %vm431, %v454, %v458
        %v460 = vshrl.u32 %v415, 16
        %v462 = vor.u32 %v460, %v458
        %v464 = vshll.u32 %v416, 16
        %v466 = vrot.slane %v464, 1
        %v467 = vsel %vm431, %v462, %v466
        %v468 = vshrl.u32 %v416, 16
        %v470 = vor.u32 %v468, %v466
        %v472 = vshll.u32 %v417, 16
        %v474 = vrot.slane %v472, 1
        %v475 = vsel %vm431, %v470, %v474
        %v476 = vshrl.u32 %v417, 16
        %v478 = vor.u32 %v476, %v474
        %v480 = vshll.u32 %v418, 16
        %v482 = vrot.slane %v480, 1
        %v483 = vsel %vm431, %v478, %v482
        %v484 = vshrl.u32 %v418, 16
        %v486 = vor.u32 %v484, %v482
        %v488 = vshll.u32 %v419, 16
        %v490 = vrot.slane %v488, 1
        %v491 = vsel %vm431, %v486, %v490
        %v492 = vshrl.u32 %v419, 16
        %v494 = vor.u32 %v492, %v490
        %v496 = vshll.u32 %v420, 16
        %v498 = vrot.slane %v496, 1
        %v499 = vsel %vm431, %v494, %v498
        %v500 = vshrl.u32 %v420, 16
        %v502 = vor.u32 %v500, %v498
        %v504 = vshll.u32 %v421, 16
        %v506 = vrot.slane %v504, 1
        %v507 = vsel %vm431, %v502, %v506
        %v508 = vshrl.u32 %v421, 16
        %v510 = vor.u32 %v508, %v506
        %v512 = vshll.u32 %v422, 16
        %v514 = vrot.slane %v512, 1
        %v515 = vsel %vm431, %v510, %v514
        %v516 = vshrl.u32 %v422, 16
        %v518 = vor.u32 %v516, %v514
        %v520 = vshll.u32 %v423, 16
        %v522 = vrot.slane %v520, 1
        %v523 = vsel %vm431, %v518, %v522
        %v524 = vshrl.u32 %v423, 16
        %v526 = vor.u32 %v524, %v522
        %v528 = vshll.u32 %v424, 16
        %v530 = vrot.slane %v528, 1
        %v531 = vsel %vm431, %v526, %v530
        %v532 = vshrl.u32 %v424, 16
        %v534 = vor.u32 %v532, %v530
        %v536 = vshll.u32 %v425, 16
        %v538 = vrot.slane %v536, 1
        %v539 = vsel %vm431, %v534, %v538
        %v540 = vshrl.u32 %v425, 16
        %v542 = vor.u32 %v540, %v538
        %v544 = vshll.u32 %v426, 16
        %v546 = vrot.slane %v544, 1
        %v547 = vsel %vm431, %v542, %v546
        %v548 = vshrl.u32 %v426, 16
        %v550 = vor.u32 %v548, %v546
        %v552 = vshll.u32 %v427, 16
        %v554 = vrot.slane %v552, 1
        %v555 = vsel %vm431, %v550, %v554
        %v556 = vshrl.u32 %v427, 16
        %v558 = vor.u32 %v556, %v554
        %v560 = vshll.u32 %v428, 16
        %v562 = vrot.slane %v560, 1
        %v563 = vsel %vm431, %v558, %v562
        %v564 = vshrl.u32 %v428, 16
        %v566 = vor.u32 %v564, %v562
        %v568 = vshll.u32 %v429, 16
        %v570 = vrot.slane %v568, 1
        %v571 = vsel %vm431, %v566, %v570
        %v572 = vshrl.u32 %v429, 16
        %v574 = vor.u32 %v572, %v570
        %v576 = vshll.u32 %v430, 16
        %v578 = vrot.slane %v576, 1
        %v579 = vsel %vm431, %v574, %v578
        %v614 = vunpack.c.l.b16 %v322
        %v615 = vunpack.c.l.b16 %v323
        %v616 = vunpack.c.l.b16 %v324
        %v617 = vunpack.c.l.b16 %v325
        %v618 = vunpack.c.l.b16 %v326
        %v619 = vunpack.c.l.b16 %v327
        %v620 = vunpack.c.l.b16 %v328
        %v621 = vunpack.c.l.b16 %v329
        %v622 = vunpack.c.l.b16 %v330
        %v623 = vunpack.c.l.b16 %v331
        %v624 = vunpack.c.l.b16 %v332
        %v625 = vunpack.c.l.b16 %v333
        %v626 = vunpack.c.l.b16 %v334
        %v627 = vunpack.c.l.b16 %v335
        %v628 = vunpack.c.l.b16 %v336
        %v629 = vunpack.c.l.b16 %v337
        %v630 = vpack.c.b16 %v615, %v614
        %v631 = vpack.c.b16 %v617, %v616
        %v632 = vpack.c.b16 %v619, %v618
        %v633 = vpack.c.b16 %v621, %v620
        %v634 = vpack.c.b16 %v623, %v622
        %v635 = vpack.c.b16 %v625, %v624
        %v636 = vpack.c.b16 %v627, %v626
        %v637 = vpack.c.b16 %v629, %v628
        %646 = vmatpush.bf16.msra.mxu0 %v637
        %647 = vmatpush.bf16.msra.mxu0 %v636
        %648 = vmatpush.bf16.msra.mxu0 %v635
        %649 = vmatpush.bf16.msra.mxu0 %v634
        %650 = vmatpush.bf16.msra.mxu0 %v633
        %651 = vmatpush.bf16.msra.mxu0 %v632
        %652 = vmatpush.bf16.msra.mxu0 %v631
        %653 = vmatpush.bf16.msra.mxu0 %v630
        %654 = vmatmul.bf16.gmra.mxu0 %v443
        %v655 = vpop.f32.mrf.mxu0
        %v656 = vadd.f32 0.0, %v655
        %v657 = vpop.f32.mrf.mxu0
        %v658 = vadd.f32 0.0, %v657
        %659 = vmatmul.bf16.gmra.mxu0 %v451
        %v660 = vpop.f32.mrf.mxu0
        %v661 = vadd.f32 0.0, %v660
        %v662 = vpop.f32.mrf.mxu0
        %v663 = vadd.f32 0.0, %v662
        %664 = vmatmul.bf16.gmra.mxu0 %v459
        %v665 = vpop.f32.mrf.mxu0
        %v666 = vadd.f32 0.0, %v665
        %v667 = vpop.f32.mrf.mxu0
        %v668 = vadd.f32 0.0, %v667
        %669 = vmatmul.bf16.gmra.mxu0 %v467
        %v670 = vpop.f32.mrf.mxu0
        %v671 = vadd.f32 0.0, %v670
        %v672 = vpop.f32.mrf.mxu0
        %v673 = vadd.f32 0.0, %v672
        %674 = vmatmul.bf16.gmra.mxu0 %v475
        %v675 = vpop.f32.mrf.mxu0
        %v676 = vadd.f32 0.0, %v675
        %v677 = vpop.f32.mrf.mxu0
        %v678 = vadd.f32 0.0, %v677
        %679 = vmatmul.bf16.gmra.mxu0 %v483
        %v680 = vpop.f32.mrf.mxu0
        %v681 = vadd.f32 0.0, %v680
        %v682 = vpop.f32.mrf.mxu0
        %v683 = vadd.f32 0.0, %v682
        %684 = vmatmul.bf16.gmra.mxu0 %v491
        %v685 = vpop.f32.mrf.mxu0
        %v686 = vadd.f32 0.0, %v685
        %v687 = vpop.f32.mrf.mxu0
        %v688 = vadd.f32 0.0, %v687
        %689 = vmatmul.bf16.gmra.mxu0 %v499
        %v690 = vpop.f32.mrf.mxu0
        %v691 = vadd.f32 0.0, %v690
        %v692 = vpop.f32.mrf.mxu0
        %v693 = vadd.f32 0.0, %v692
        %694 = vmatmul.bf16.gmra.mxu0 %v507
        %v695 = vpop.f32.mrf.mxu0
        %v696 = vadd.f32 0.0, %v695
        %v697 = vpop.f32.mrf.mxu0
        %v698 = vadd.f32 0.0, %v697
        %699 = vmatmul.bf16.gmra.mxu0 %v515
        %v700 = vpop.f32.mrf.mxu0
        %v701 = vadd.f32 0.0, %v700
        %v702 = vpop.f32.mrf.mxu0
        %v703 = vadd.f32 0.0, %v702
        %704 = vmatmul.bf16.gmra.mxu0 %v523
        %v705 = vpop.f32.mrf.mxu0
        %v706 = vadd.f32 0.0, %v705
        %v707 = vpop.f32.mrf.mxu0
        %v708 = vadd.f32 0.0, %v707
        %709 = vmatmul.bf16.gmra.mxu0 %v531
        %v710 = vpop.f32.mrf.mxu0
        %v711 = vadd.f32 0.0, %v710
        %v712 = vpop.f32.mrf.mxu0
        %v713 = vadd.f32 0.0, %v712
        %714 = vmatmul.bf16.gmra.mxu0 %v539
        %v715 = vpop.f32.mrf.mxu0
        %v716 = vadd.f32 0.0, %v715
        %v717 = vpop.f32.mrf.mxu0
        %v718 = vadd.f32 0.0, %v717
        %719 = vmatmul.bf16.gmra.mxu0 %v547
        %v720 = vpop.f32.mrf.mxu0
        %v721 = vadd.f32 0.0, %v720
        %v722 = vpop.f32.mrf.mxu0
        %v723 = vadd.f32 0.0, %v722
        %724 = vmatmul.bf16.gmra.mxu0 %v555
        %v725 = vpop.f32.mrf.mxu0
        %v726 = vadd.f32 0.0, %v725
        %v727 = vpop.f32.mrf.mxu0
        %v728 = vadd.f32 0.0, %v727
        %729 = vmatmul.bf16.gmra.mxu0 %v563
        %v730 = vpop.f32.mrf.mxu0
        %v731 = vadd.f32 0.0, %v730
        %v732 = vpop.f32.mrf.mxu0
        %v733 = vadd.f32 0.0, %v732
        %734 = vmatmul.bf16.gmra.mxu0 %v571
        %v735 = vpop.f32.mrf.mxu0
        %v736 = vadd.f32 0.0, %v735
        %v737 = vpop.f32.mrf.mxu0
        %v738 = vadd.f32 0.0, %v737
        %739 = vmatmul.bf16.gmra.mxu0 %v579
        %v740 = vpop.f32.mrf.mxu0
        %v741 = vadd.f32 0.0, %v740
        %v742 = vpop.f32.mrf.mxu0
        %v743 = vadd.f32 0.0, %v742
        %744 = vdwg.mxu0
        %v779 = vunpack.c.l.b16 %v304
        %v780 = vunpack.c.l.b16 %v305
        %v781 = vunpack.c.l.b16 %v306
        %v782 = vunpack.c.l.b16 %v307
        %v783 = vunpack.c.l.b16 %v308
        %v784 = vunpack.c.l.b16 %v309
        %v785 = vunpack.c.l.b16 %v310
        %v786 = vunpack.c.l.b16 %v311
        %v787 = vunpack.c.l.b16 %v312
        %v788 = vunpack.c.l.b16 %v313
        %v789 = vunpack.c.l.b16 %v314
        %v790 = vunpack.c.l.b16 %v315
        %v791 = vunpack.c.l.b16 %v316
        %v792 = vunpack.c.l.b16 %v317
        %v793 = vunpack.c.l.b16 %v318
        %v794 = vunpack.c.l.b16 %v319
        %v795 = vpack.c.b16 %v780, %v779
        %v796 = vpack.c.b16 %v782, %v781
        %v797 = vpack.c.b16 %v784, %v783
        %v798 = vpack.c.b16 %v786, %v785
        %v799 = vpack.c.b16 %v788, %v787
        %v800 = vpack.c.b16 %v790, %v789
        %v801 = vpack.c.b16 %v792, %v791
        %v802 = vpack.c.b16 %v794, %v793
        %811 = vmatpush.bf16.msra.mxu0 %v802
        %812 = vmatpush.bf16.msra.mxu0 %v801
        %813 = vmatpush.bf16.msra.mxu0 %v800
        %814 = vmatpush.bf16.msra.mxu0 %v799
        %815 = vmatpush.bf16.msra.mxu0 %v798
        %816 = vmatpush.bf16.msra.mxu0 %v797
        %817 = vmatpush.bf16.msra.mxu0 %v796
        %818 = vmatpush.bf16.msra.mxu0 %v795
        %819 = vmatmul.bf16.gmra.mxu0 %v412
        %v820 = vpop.f32.mrf.mxu0
        %v821 = vadd.f32 %v656, %v820
        %v822 = vpop.f32.mrf.mxu0
        %v823 = vadd.f32 %v658, %v822
        %824 = vmatmul.bf16.gmra.mxu0 %v413
        %v825 = vpop.f32.mrf.mxu0
        %v826 = vadd.f32 %v661, %v825
        %v827 = vpop.f32.mrf.mxu0
        %v828 = vadd.f32 %v663, %v827
        %829 = vmatmul.bf16.gmra.mxu0 %v414
        %v830 = vpop.f32.mrf.mxu0
        %v831 = vadd.f32 %v666, %v830
        %v832 = vpop.f32.mrf.mxu0
        %v833 = vadd.f32 %v668, %v832
        %834 = vmatmul.bf16.gmra.mxu0 %v415
        %v835 = vpop.f32.mrf.mxu0
        %v836 = vadd.f32 %v671, %v835
        %v837 = vpop.f32.mrf.mxu0
        %v838 = vadd.f32 %v673, %v837
        %839 = vmatmul.bf16.gmra.mxu0 %v416
        %v840 = vpop.f32.mrf.mxu0
        %v841 = vadd.f32 %v676, %v840
        %v842 = vpop.f32.mrf.mxu0
        %v843 = vadd.f32 %v678, %v842
        %844 = vmatmul.bf16.gmra.mxu0 %v417
        %v845 = vpop.f32.mrf.mxu0
        %v846 = vadd.f32 %v681, %v845
        %v847 = vpop.f32.mrf.mxu0
        %v848 = vadd.f32 %v683, %v847
        %849 = vmatmul.bf16.gmra.mxu0 %v418
        %v850 = vpop.f32.mrf.mxu0
        %v851 = vadd.f32 %v686, %v850
        %v852 = vpop.f32.mrf.mxu0
        %v853 = vadd.f32 %v688, %v852
        %854 = vmatmul.bf16.gmra.mxu0 %v419
        %v855 = vpop.f32.mrf.mxu0
        %v856 = vadd.f32 %v691, %v855
        %v857 = vpop.f32.mrf.mxu0
        %v858 = vadd.f32 %v693, %v857
        %859 = vmatmul.bf16.gmra.mxu0 %v420
        %v860 = vpop.f32.mrf.mxu0
        %v861 = vadd.f32 %v696, %v860
        %v862 = vpop.f32.mrf.mxu0
        %v863 = vadd.f32 %v698, %v862
        %864 = vmatmul.bf16.gmra.mxu0 %v421
        %v865 = vpop.f32.mrf.mxu0
        %v866 = vadd.f32 %v701, %v865
        %v867 = vpop.f32.mrf.mxu0
        %v868 = vadd.f32 %v703, %v867
        %869 = vmatmul.bf16.gmra.mxu0 %v422
        %v870 = vpop.f32.mrf.mxu0
        %v871 = vadd.f32 %v706, %v870
        %v872 = vpop.f32.mrf.mxu0
        %v873 = vadd.f32 %v708, %v872
        %874 = vmatmul.bf16.gmra.mxu0 %v423
        %v875 = vpop.f32.mrf.mxu0
        %v876 = vadd.f32 %v711, %v875
        %v877 = vpop.f32.mrf.mxu0
        %v878 = vadd.f32 %v713, %v877
        %879 = vmatmul.bf16.gmra.mxu0 %v424
        %v880 = vpop.f32.mrf.mxu0
        %v881 = vadd.f32 %v716, %v880
        %v882 = vpop.f32.mrf.mxu0
        %v883 = vadd.f32 %v718, %v882
        %884 = vmatmul.bf16.gmra.mxu0 %v425
        %v885 = vpop.f32.mrf.mxu0
        %v886 = vadd.f32 %v721, %v885
        %v887 = vpop.f32.mrf.mxu0
        %v888 = vadd.f32 %v723, %v887
        %889 = vmatmul.bf16.gmra.mxu0 %v426
        %v890 = vpop.f32.mrf.mxu0
        %v891 = vadd.f32 %v726, %v890
        %v892 = vpop.f32.mrf.mxu0
        %v893 = vadd.f32 %v728, %v892
        %894 = vmatmul.bf16.gmra.mxu0 %v427
        %v895 = vpop.f32.mrf.mxu0
        %v896 = vadd.f32 %v731, %v895
        %v897 = vpop.f32.mrf.mxu0
        %v898 = vadd.f32 %v733, %v897
        %899 = vmatmul.bf16.gmra.mxu0 %v428
        %v900 = vpop.f32.mrf.mxu0
        %v901 = vadd.f32 %v736, %v900
        %v902 = vpop.f32.mrf.mxu0
        %v903 = vadd.f32 %v738, %v902
        %904 = vmatmul.bf16.gmra.mxu0 %v429
        %v905 = vpop.f32.mrf.mxu0
        %v906 = vadd.f32 %v741, %v905
        %v907 = vpop.f32.mrf.mxu0
        %v908 = vadd.f32 %v743, %v907
        %909 = vdwg.mxu0
        %v910 = vld [vmem:[%s266] sm:$0xe]
        %s911 = scalar_lea.vmem %s1, 128
        %v912 = vld [vmem:[%s911] sm:$0xf]
        %v913 = vld [vmem:[%s911 + $0x4] sm:$0xf]
        %v914 = vld [vmem:[%s911 + $0x8] sm:$0xf]
        %v915 = vld [vmem:[%s911 + $0xc] sm:$0xf]
        %v916 = vld [vmem:[%s911 + $0x10] sm:$0xf]
        %v917 = vld [vmem:[%s911 + $0x14] sm:$0xf]
        %v918 = vld [vmem:[%s911 + $0x18] sm:$0xf]
        %v919 = vld [vmem:[%s911 + $0x1c] sm:$0xf]
        %v920 = vld [vmem:[%s911 + $0x20] sm:$0xf]
        %v921 = vld [vmem:[%s911 + $0x24] sm:$0xf]
        %v922 = vld [vmem:[%s911 + $0x28] sm:$0xf]
        %v923 = vld [vmem:[%s911 + $0x2c] sm:$0xf]
        %v924 = vld [vmem:[%s911 + $0x30] sm:$0xf]
        %v925 = vld [vmem:[%s911 + $0x34] sm:$0xf]
        %v926 = vld [vmem:[%s911 + $0x38] sm:$0xf]
        %v927 = vld [vmem:[%s911 + $0x3c] sm:$0xf]
        %v929 = vunpack.c.l.b16 %v910
        %v930 = vpack.c.b16 %v376, %v929
        %vm931 = vcmask 1046528
        %v932 = vrot.slane %v930, 1
        %v933 = vrot.slane %v413, 1
        %v934 = vsel %vm931, %v932, %v933
        %v935 = vrot.slane %v414, 1
        %v936 = vsel %vm931, %v933, %v935
        %v937 = vrot.slane %v415, 1
        %v938 = vsel %vm931, %v935, %v937
        %v939 = vrot.slane %v416, 1
        %v940 = vsel %vm931, %v937, %v939
        %v941 = vrot.slane %v417, 1
        %v942 = vsel %vm931, %v939, %v941
        %v943 = vrot.slane %v418, 1
        %v944 = vsel %vm931, %v941, %v943
        %v945 = vrot.slane %v419, 1
        %v946 = vsel %vm931, %v943, %v945
        %v947 = vrot.slane %v420, 1
        %v948 = vsel %vm931, %v945, %v947
        %v949 = vrot.slane %v421, 1
        %v950 = vsel %vm931, %v947, %v949
        %v951 = vrot.slane %v422, 1
        %v952 = vsel %vm931, %v949, %v951
        %v953 = vrot.slane %v423, 1
        %v954 = vsel %vm931, %v951, %v953
        %v955 = vrot.slane %v424, 1
        %v956 = vsel %vm931, %v953, %v955
        %v957 = vrot.slane %v425, 1
        %v958 = vsel %vm931, %v955, %v957
        %v959 = vrot.slane %v426, 1
        %v960 = vsel %vm931, %v957, %v959
        %v961 = vrot.slane %v427, 1
        %v962 = vsel %vm931, %v959, %v961
        %v963 = vrot.slane %v428, 1
        %v964 = vsel %vm931, %v961, %v963
        %v965 = vrot.slane %v429, 1
        %v966 = vsel %vm931, %v963, %v965
        %v967 = vrot.slane %v430, 1
        %v968 = vsel %vm931, %v965, %v967
        %v1003 = vunpack.c.l.b16 %v912
        %v1004 = vunpack.c.l.b16 %v913
        %v1005 = vunpack.c.l.b16 %v914
        %v1006 = vunpack.c.l.b16 %v915
        %v1007 = vunpack.c.l.b16 %v916
        %v1008 = vunpack.c.l.b16 %v917
        %v1009 = vunpack.c.l.b16 %v918
        %v1010 = vunpack.c.l.b16 %v919
        %v1011 = vunpack.c.l.b16 %v920
        %v1012 = vunpack.c.l.b16 %v921
        %v1013 = vunpack.c.l.b16 %v922
        %v1014 = vunpack.c.l.b16 %v923
        %v1015 = vunpack.c.l.b16 %v924
        %v1016 = vunpack.c.l.b16 %v925
        %v1017 = vunpack.c.l.b16 %v926
        %v1018 = vunpack.c.l.b16 %v927
        %v1019 = vpack.c.b16 %v1004, %v1003
        %v1020 = vpack.c.b16 %v1006, %v1005
        %v1021 = vpack.c.b16 %v1008, %v1007
        %v1022 = vpack.c.b16 %v1010, %v1009
        %v1023 = vpack.c.b16 %v1012, %v1011
        %v1024 = vpack.c.b16 %v1014, %v1013
        %v1025 = vpack.c.b16 %v1016, %v1015
        %v1026 = vpack.c.b16 %v1018, %v1017
        %1035 = vmatpush.bf16.msra.mxu0 %v1026
        %1036 = vmatpush.bf16.msra.mxu0 %v1025
        %1037 = vmatpush.bf16.msra.mxu0 %v1024
        %1038 = vmatpush.bf16.msra.mxu0 %v1023
        %1039 = vmatpush.bf16.msra.mxu0 %v1022
        %1040 = vmatpush.bf16.msra.mxu0 %v1021
        %1041 = vmatpush.bf16.msra.mxu0 %v1020
        %1042 = vmatpush.bf16.msra.mxu0 %v1019
        %1043 = vmatmul.bf16.gmra.mxu0 %v934
        %v1044 = vpop.f32.mrf.mxu0
        %v1045 = vadd.f32 0.0, %v1044
        %v1046 = vpop.f32.mrf.mxu0
        %v1047 = vadd.f32 0.0, %v1046
        %1048 = vmatmul.bf16.gmra.mxu0 %v936
        %v1049 = vpop.f32.mrf.mxu0
        %v1050 = vadd.f32 0.0, %v1049
        %v1051 = vpop.f32.mrf.mxu0
        %v1052 = vadd.f32 0.0, %v1051
        %1053 = vmatmul.bf16.gmra.mxu0 %v938
        %v1054 = vpop.f32.mrf.mxu0
        %v1055 = vadd.f32 0.0, %v1054
        %v1056 = vpop.f32.mrf.mxu0
        %v1057 = vadd.f32 0.0, %v1056
        %1058 = vmatmul.bf16.gmra.mxu0 %v940
        %v1059 = vpop.f32.mrf.mxu0
        %v1060 = vadd.f32 0.0, %v1059
        %v1061 = vpop.f32.mrf.mxu0
        %v1062 = vadd.f32 0.0, %v1061
        %1063 = vmatmul.bf16.gmra.mxu0 %v942
        %v1064 = vpop.f32.mrf.mxu0
        %v1065 = vadd.f32 0.0, %v1064
        %v1066 = vpop.f32.mrf.mxu0
        %v1067 = vadd.f32 0.0, %v1066
        %1068 = vmatmul.bf16.gmra.mxu0 %v944
        %v1069 = vpop.f32.mrf.mxu0
        %v1070 = vadd.f32 0.0, %v1069
        %v1071 = vpop.f32.mrf.mxu0
        %v1072 = vadd.f32 0.0, %v1071
        %1073 = vmatmul.bf16.gmra.mxu0 %v946
        %v1074 = vpop.f32.mrf.mxu0
        %v1075 = vadd.f32 0.0, %v1074
        %v1076 = vpop.f32.mrf.mxu0
        %v1077 = vadd.f32 0.0, %v1076
        %1078 = vmatmul.bf16.gmra.mxu0 %v948
        %v1079 = vpop.f32.mrf.mxu0
        %v1080 = vadd.f32 0.0, %v1079
        %v1081 = vpop.f32.mrf.mxu0
        %v1082 = vadd.f32 0.0, %v1081
        %1083 = vmatmul.bf16.gmra.mxu0 %v950
        %v1084 = vpop.f32.mrf.mxu0
        %v1085 = vadd.f32 0.0, %v1084
        %v1086 = vpop.f32.mrf.mxu0
        %v1087 = vadd.f32 0.0, %v1086
        %1088 = vmatmul.bf16.gmra.mxu0 %v952
        %v1089 = vpop.f32.mrf.mxu0
        %v1090 = vadd.f32 0.0, %v1089
        %v1091 = vpop.f32.mrf.mxu0
        %v1092 = vadd.f32 0.0, %v1091
        %1093 = vmatmul.bf16.gmra.mxu0 %v954
        %v1094 = vpop.f32.mrf.mxu0
        %v1095 = vadd.f32 0.0, %v1094
        %v1096 = vpop.f32.mrf.mxu0
        %v1097 = vadd.f32 0.0, %v1096
        %1098 = vmatmul.bf16.gmra.mxu0 %v956
        %v1099 = vpop.f32.mrf.mxu0
        %v1100 = vadd.f32 0.0, %v1099
        %v1101 = vpop.f32.mrf.mxu0
        %v1102 = vadd.f32 0.0, %v1101
        %1103 = vmatmul.bf16.gmra.mxu0 %v958
        %v1104 = vpop.f32.mrf.mxu0
        %v1105 = vadd.f32 0.0, %v1104
        %v1106 = vpop.f32.mrf.mxu0
        %v1107 = vadd.f32 0.0, %v1106
        %1108 = vmatmul.bf16.gmra.mxu0 %v960
        %v1109 = vpop.f32.mrf.mxu0
        %v1110 = vadd.f32 0.0, %v1109
        %v1111 = vpop.f32.mrf.mxu0
        %v1112 = vadd.f32 0.0, %v1111
        %1113 = vmatmul.bf16.gmra.mxu0 %v962
        %v1114 = vpop.f32.mrf.mxu0
        %v1115 = vadd.f32 0.0, %v1114
        %v1116 = vpop.f32.mrf.mxu0
        %v1117 = vadd.f32 0.0, %v1116
        %1118 = vmatmul.bf16.gmra.mxu0 %v964
        %v1119 = vpop.f32.mrf.mxu0
        %v1120 = vadd.f32 0.0, %v1119
        %v1121 = vpop.f32.mrf.mxu0
        %v1122 = vadd.f32 0.0, %v1121
        %1123 = vmatmul.bf16.gmra.mxu0 %v966
        %v1124 = vpop.f32.mrf.mxu0
        %v1125 = vadd.f32 0.0, %v1124
        %v1126 = vpop.f32.mrf.mxu0
        %v1127 = vadd.f32 0.0, %v1126
        %1128 = vmatmul.bf16.gmra.mxu0 %v968
        %v1129 = vpop.f32.mrf.mxu0
        %v1130 = vadd.f32 0.0, %v1129
        %v1131 = vpop.f32.mrf.mxu0
        %v1132 = vadd.f32 0.0, %v1131
        %1133 = vdwg.mxu0
        %v1134 = vadd.f32 %v821, %v1045
        %v1135 = vadd.f32 %v823, %v1047
        %v1136 = vadd.f32 %v826, %v1050
        %v1137 = vadd.f32 %v828, %v1052
        %v1138 = vadd.f32 %v831, %v1055
        %v1139 = vadd.f32 %v833, %v1057
        %v1140 = vadd.f32 %v836, %v1060
        %v1141 = vadd.f32 %v838, %v1062
        %v1142 = vadd.f32 %v841, %v1065
        %v1143 = vadd.f32 %v843, %v1067
        %v1144 = vadd.f32 %v846, %v1070
        %v1145 = vadd.f32 %v848, %v1072
        %v1146 = vadd.f32 %v851, %v1075
        %v1147 = vadd.f32 %v853, %v1077
        %v1148 = vadd.f32 %v856, %v1080
        %v1149 = vadd.f32 %v858, %v1082
        %v1150 = vadd.f32 %v861, %v1085
        %v1151 = vadd.f32 %v863, %v1087
        %v1152 = vadd.f32 %v866, %v1090
        %v1153 = vadd.f32 %v868, %v1092
        %v1154 = vadd.f32 %v871, %v1095
        %v1155 = vadd.f32 %v873, %v1097
        %v1156 = vadd.f32 %v876, %v1100
        %v1157 = vadd.f32 %v878, %v1102
        %v1158 = vadd.f32 %v881, %v1105
        %v1159 = vadd.f32 %v883, %v1107
        %v1160 = vadd.f32 %v886, %v1110
        %v1161 = vadd.f32 %v888, %v1112
        %v1162 = vadd.f32 %v891, %v1115
        %v1163 = vadd.f32 %v893, %v1117
        %v1164 = vadd.f32 %v896, %v1120
        %v1165 = vadd.f32 %v898, %v1122
        %v1166 = vadd.f32 %v901, %v1125
        %v1167 = vadd.f32 %v903, %v1127
        %v1168 = vadd.f32 %v906, %v1130
        %v1169 = vadd.f32 %v908, %v1132
        %1170 = vst [vmem:[#allocation3] sm:$0xff] %v1134
        %1171 = vst [vmem:[#allocation3 + $0x8] sm:$0xff] %v1135
        %1172 = vst [vmem:[#allocation3 + $0x10] sm:$0xff] %v1136
        %1173 = vst [vmem:[#allocation3 + $0x18] sm:$0xff] %v1137
        %1174 = vst [vmem:[#allocation3 + $0x20] sm:$0xff] %v1138
        %1175 = vst [vmem:[#allocation3 + $0x28] sm:$0xff] %v1139
        %1176 = vst [vmem:[#allocation3 + $0x30] sm:$0xff] %v1140
        %1177 = vst [vmem:[#allocation3 + $0x38] sm:$0xff] %v1141
        %1178 = vst [vmem:[#allocation3 + $0x40] sm:$0xff] %v1142
        %1179 = vst [vmem:[#allocation3 + $0x48] sm:$0xff] %v1143
        %1180 = vst [vmem:[#allocation3 + $0x50] sm:$0xff] %v1144
        %1181 = vst [vmem:[#allocation3 + $0x58] sm:$0xff] %v1145
        %1182 = vst [vmem:[#allocation3 + $0x60] sm:$0xff] %v1146
        %1183 = vst [vmem:[#allocation3 + $0x68] sm:$0xff] %v1147
        %1184 = vst [vmem:[#allocation3 + $0x70] sm:$0xff] %v1148
        %1185 = vst [vmem:[#allocation3 + $0x78] sm:$0xff] %v1149
        %1186 = vst [vmem:[#allocation3 + $0x80] sm:$0xff] %v1150
        %1187 = vst [vmem:[#allocation3 + $0x88] sm:$0xff] %v1151
        %1188 = vst [vmem:[#allocation3 + $0x90] sm:$0xff] %v1152
        %1189 = vst [vmem:[#allocation3 + $0x98] sm:$0xff] %v1153
        %1190 = vst [vmem:[#allocation3 + $0xa0] sm:$0xff] %v1154
        %1191 = vst [vmem:[#allocation3 + $0xa8] sm:$0xff] %v1155
        %1192 = vst [vmem:[#allocation3 + $0xb0] sm:$0xff] %v1156
        %1193 = vst [vmem:[#allocation3 + $0xb8] sm:$0xff] %v1157
        %1194 = vst [vmem:[#allocation3 + $0xc0] sm:$0xff] %v1158
        %1195 = vst [vmem:[#allocation3 + $0xc8] sm:$0xff] %v1159
        %1196 = vst [vmem:[#allocation3 + $0xd0] sm:$0xff] %v1160
        %1197 = vst [vmem:[#allocation3 + $0xd8] sm:$0xff] %v1161
        %1198 = vst [vmem:[#allocation3 + $0xe0] sm:$0xff] %v1162
        %1199 = vst [vmem:[#allocation3 + $0xe8] sm:$0xff] %v1163
        %1200 = vst [vmem:[#allocation3 + $0xf0] sm:$0xff] %v1164
        %1201 = vst [vmem:[#allocation3 + $0xf8] sm:$0xff] %v1165
        %1202 = vst [vmem:[#allocation3 + $0x100] sm:$0xff] %v1166
        %1203 = vst [vmem:[#allocation3 + $0x108] sm:$0xff] %v1167
        %1204 = vst [vmem:[#allocation3 + $0x110] sm:$0xff] %v1168
        %1205 = vst [vmem:[#allocation3 + $0x118] sm:$0xff] %v1169
        %v1206 = vld [vmem:[%s266 + $0x8] sm:$0xe]
        %v1207 = vld [vmem:[%s266 + $0xc] sm:$0xf]
        %v1208 = vld [vmem:[%s266 + $0x10] sm:$0xf]
        %v1209 = vld [vmem:[%s266 + $0x14] sm:$0xf]
        %v1210 = vld [vmem:[%s266 + $0x18] sm:$0xf]
        %v1211 = vld [vmem:[%s266 + $0x1c] sm:$0xf]
        %v1212 = vld [vmem:[%s266 + $0x20] sm:$0xf]
        %v1213 = vld [vmem:[%s266 + $0x24] sm:$0xf]
        %v1214 = vld [vmem:[%s266 + $0x28] sm:$0xf]
        %v1215 = vld [vmem:[%s266 + $0x2c] sm:$0xf]
        %v1216 = vld [vmem:[%s266 + $0x30] sm:$0xf]
        %v1217 = vld [vmem:[%s266 + $0x34] sm:$0xf]
        %v1218 = vld [vmem:[%s266 + $0x38] sm:$0xf]
        %v1219 = vld [vmem:[%s266 + $0x3c] sm:$0xf]
        %v1220 = vld [vmem:[%s266 + $0x40] sm:$0xf]
        %v1221 = vld [vmem:[%s266 + $0x44] sm:$0xf]
        %v1222 = vld [vmem:[%s266 + $0x48] sm:$0xf]
        %v1223 = vld [vmem:[%s266 + $0x4c] sm:$0xf]
        %v1224 = vld [vmem:[%s266 + $0x50] sm:$0xf]
        %v1225 = vld [vmem:[%s266 + $0x54] sm:$0xf]
        %v1226 = vld [vmem:[%s266 + $0x58] sm:$0xf]
        %v1227 = vld [vmem:[%s266 + $0x5c] sm:$0xf]
        %v1228 = vld [vmem:[%s266 + $0x60] sm:$0xf]
        %v1229 = vld [vmem:[%s266 + $0x64] sm:$0xf]
        %v1230 = vld [vmem:[%s266 + $0x68] sm:$0xf]
        %v1231 = vld [vmem:[%s266 + $0x6c] sm:$0xf]
        %v1232 = vld [vmem:[%s266 + $0x70] sm:$0xf]
        %v1233 = vld [vmem:[%s266 + $0x74] sm:$0xf]
        %v1234 = vld [vmem:[%s266 + $0x78] sm:$0xf]
        %v1235 = vld [vmem:[%s266 + $0x7c] sm:$0xf]
        %v1236 = vld [vmem:[%s266 + $0x80] sm:$0xf]
        %v1237 = vld [vmem:[%s266 + $0x84] sm:$0xf]
        %v1238 = vld [vmem:[%s266 + $0x88] sm:$0xf]
        %v1239 = vld [vmem:[%s266 + $0x8c] sm:$0xf]
        %v1240 = vld [vmem:[%s266 + $0x90] sm:$0xf]
        %v1241 = vld [vmem:[%s266 + $0x94] sm:$0xf]
        %v1242 = vld [vmem:[%s266 + $0x98] sm:$0x1]
        %s1243 = scalar_lea.vmem %s1, 192
        %v1244 = vld [vmem:[%s1243] sm:$0xf]
        %v1245 = vld [vmem:[%s1243 + $0x4] sm:$0xf]
        %v1246 = vld [vmem:[%s1243 + $0x8] sm:$0xf]
        %v1247 = vld [vmem:[%s1243 + $0xc] sm:$0xf]
        %v1248 = vld [vmem:[%s1243 + $0x10] sm:$0xf]
        %v1249 = vld [vmem:[%s1243 + $0x14] sm:$0xf]
        %v1250 = vld [vmem:[%s1243 + $0x18] sm:$0xf]
        %v1251 = vld [vmem:[%s1243 + $0x1c] sm:$0xf]
        %v1252 = vld [vmem:[%s1243 + $0x20] sm:$0xf]
        %v1253 = vld [vmem:[%s1243 + $0x24] sm:$0xf]
        %v1254 = vld [vmem:[%s1243 + $0x28] sm:$0xf]
        %v1255 = vld [vmem:[%s1243 + $0x2c] sm:$0xf]
        %v1256 = vld [vmem:[%s1243 + $0x30] sm:$0xf]
        %v1257 = vld [vmem:[%s1243 + $0x34] sm:$0xf]
        %v1258 = vld [vmem:[%s1243 + $0x38] sm:$0xf]
        %v1259 = vld [vmem:[%s1243 + $0x3c] sm:$0xf]
        %v1260 = vld [vmem:[%s266 + $0x98] sm:$0x3]
        %s1261 = scalar_lea.vmem %s1, 256
        %v1262 = vld [vmem:[%s1261] sm:$0xf]
        %v1263 = vld [vmem:[%s1261 + $0x4] sm:$0xf]
        %v1264 = vld [vmem:[%s1261 + $0x8] sm:$0xf]
        %v1265 = vld [vmem:[%s1261 + $0xc] sm:$0xf]
        %v1266 = vld [vmem:[%s1261 + $0x10] sm:$0xf]
        %v1267 = vld [vmem:[%s1261 + $0x14] sm:$0xf]
        %v1268 = vld [vmem:[%s1261 + $0x18] sm:$0xf]
        %v1269 = vld [vmem:[%s1261 + $0x1c] sm:$0xf]
        %v1270 = vld [vmem:[%s1261 + $0x20] sm:$0xf]
        %v1271 = vld [vmem:[%s1261 + $0x24] sm:$0xf]
        %v1272 = vld [vmem:[%s1261 + $0x28] sm:$0xf]
        %v1273 = vld [vmem:[%s1261 + $0x2c] sm:$0xf]
        %v1274 = vld [vmem:[%s1261 + $0x30] sm:$0xf]
        %v1275 = vld [vmem:[%s1261 + $0x34] sm:$0xf]
        %v1276 = vld [vmem:[%s1261 + $0x38] sm:$0xf]
        %v1277 = vld [vmem:[%s1261 + $0x3c] sm:$0xf]
        %v1315 = vunpack.c.l.b16 %v1206
        %v1316 = vunpack.c.l.b16 %v1207
        %v1317 = vunpack.c.l.b16 %v1208
        %v1318 = vunpack.c.l.b16 %v1209
        %v1319 = vunpack.c.l.b16 %v1210
        %v1320 = vunpack.c.l.b16 %v1211
        %v1321 = vunpack.c.l.b16 %v1212
        %v1322 = vunpack.c.l.b16 %v1213
        %v1323 = vunpack.c.l.b16 %v1214
        %v1324 = vunpack.c.l.b16 %v1215
        %v1325 = vunpack.c.l.b16 %v1216
        %v1326 = vunpack.c.l.b16 %v1217
        %v1327 = vunpack.c.l.b16 %v1218
        %v1328 = vunpack.c.l.b16 %v1219
        %v1329 = vunpack.c.l.b16 %v1220
        %v1330 = vunpack.c.l.b16 %v1221
        %v1331 = vunpack.c.l.b16 %v1222
        %v1332 = vunpack.c.l.b16 %v1223
        %v1333 = vunpack.c.l.b16 %v1224
        %v1334 = vunpack.c.l.b16 %v1225
        %v1335 = vunpack.c.l.b16 %v1226
        %v1336 = vunpack.c.l.b16 %v1227
        %v1337 = vunpack.c.l.b16 %v1228
        %v1338 = vunpack.c.l.b16 %v1229
        %v1339 = vunpack.c.l.b16 %v1230
        %v1340 = vunpack.c.l.b16 %v1231
        %v1341 = vunpack.c.l.b16 %v1232
        %v1342 = vunpack.c.l.b16 %v1233
        %v1343 = vunpack.c.l.b16 %v1234
        %v1344 = vunpack.c.l.b16 %v1235
        %v1345 = vunpack.c.l.b16 %v1236
        %v1346 = vunpack.c.l.b16 %v1237
        %v1347 = vunpack.c.l.b16 %v1238
        %v1348 = vunpack.c.l.b16 %v1239
        %v1349 = vunpack.c.l.b16 %v1240
        %v1350 = vunpack.c.l.b16 %v1241
        %v1351 = vunpack.c.l.b16 %v1260
        %v1352 = vpack.c.b16 %v1316, %v1315
        %v1353 = vpack.c.b16 %v1318, %v1317
        %v1354 = vpack.c.b16 %v1320, %v1319
        %v1355 = vpack.c.b16 %v1322, %v1321
        %v1356 = vpack.c.b16 %v1324, %v1323
        %v1357 = vpack.c.b16 %v1326, %v1325
        %v1358 = vpack.c.b16 %v1328, %v1327
        %v1359 = vpack.c.b16 %v1330, %v1329
        %v1360 = vpack.c.b16 %v1332, %v1331
        %v1361 = vpack.c.b16 %v1334, %v1333
        %v1362 = vpack.c.b16 %v1336, %v1335
        %v1363 = vpack.c.b16 %v1338, %v1337
        %v1364 = vpack.c.b16 %v1340, %v1339
        %v1365 = vpack.c.b16 %v1342, %v1341
        %v1366 = vpack.c.b16 %v1344, %v1343
        %v1367 = vpack.c.b16 %v1346, %v1345
        %v1368 = vpack.c.b16 %v1348, %v1347
        %v1369 = vpack.c.b16 %v1350, %v1349
        %v1370 = vpack.c.b16 %v1351, %v1351
        %vm1371 = vsmask.f32 6400
        %v1373 = vshrl.u32 %v1352, 16
        %v1375 = vrot.slane %v1373, 1
        %v1376 = vshll.u32 %v1352, 16
        %v1378 = vrot.slane %v1376, 2
        %v1379 = vor.u32 %v1375, %v1378
        %v1381 = vshrl.u32 %v1353, 16
        %v1383 = vrot.slane %v1381, 1
        %v1384 = vshll.u32 %v1353, 16
        %v1386 = vrot.slane %v1384, 2
        %v1387 = vor.u32 %v1383, %v1386
        %v1388 = vsel %vm1371, %v1379, %v1387
        %v1390 = vshrl.u32 %v1354, 16
        %v1392 = vrot.slane %v1390, 1
        %v1393 = vshll.u32 %v1354, 16
        %v1395 = vrot.slane %v1393, 2
        %v1396 = vor.u32 %v1392, %v1395
        %v1397 = vsel %vm1371, %v1387, %v1396
        %v1399 = vshrl.u32 %v1355, 16
        %v1401 = vrot.slane %v1399, 1
        %v1402 = vshll.u32 %v1355, 16
        %v1404 = vrot.slane %v1402, 2
        %v1405 = vor.u32 %v1401, %v1404
        %v1406 = vsel %vm1371, %v1396, %v1405
        %v1408 = vshrl.u32 %v1356, 16
        %v1410 = vrot.slane %v1408, 1
        %v1411 = vshll.u32 %v1356, 16
        %v1413 = vrot.slane %v1411, 2
        %v1414 = vor.u32 %v1410, %v1413
        %v1415 = vsel %vm1371, %v1405, %v1414
        %v1417 = vshrl.u32 %v1357, 16
        %v1419 = vrot.slane %v1417, 1
        %v1420 = vshll.u32 %v1357, 16
        %v1422 = vrot.slane %v1420, 2
        %v1423 = vor.u32 %v1419, %v1422
        %v1424 = vsel %vm1371, %v1414, %v1423
        %v1426 = vshrl.u32 %v1358, 16
        %v1428 = vrot.slane %v1426, 1
        %v1429 = vshll.u32 %v1358, 16
        %v1431 = vrot.slane %v1429, 2
        %v1432 = vor.u32 %v1428, %v1431
        %v1433 = vsel %vm1371, %v1423, %v1432
        %v1435 = vshrl.u32 %v1359, 16
        %v1437 = vrot.slane %v1435, 1
        %v1438 = vshll.u32 %v1359, 16
        %v1440 = vrot.slane %v1438, 2
        %v1441 = vor.u32 %v1437, %v1440
        %v1442 = vsel %vm1371, %v1432, %v1441
        %v1444 = vshrl.u32 %v1360, 16
        %v1446 = vrot.slane %v1444, 1
        %v1447 = vshll.u32 %v1360, 16
        %v1449 = vrot.slane %v1447, 2
        %v1450 = vor.u32 %v1446, %v1449
        %v1451 = vsel %vm1371, %v1441, %v1450
        %v1453 = vshrl.u32 %v1361, 16
        %v1455 = vrot.slane %v1453, 1
        %v1456 = vshll.u32 %v1361, 16
        %v1458 = vrot.slane %v1456, 2
        %v1459 = vor.u32 %v1455, %v1458
        %v1460 = vsel %vm1371, %v1450, %v1459
        %v1462 = vshrl.u32 %v1362, 16
        %v1464 = vrot.slane %v1462, 1
        %v1465 = vshll.u32 %v1362, 16
        %v1467 = vrot.slane %v1465, 2
        %v1468 = vor.u32 %v1464, %v1467
        %v1469 = vsel %vm1371, %v1459, %v1468
        %v1471 = vshrl.u32 %v1363, 16
        %v1473 = vrot.slane %v1471, 1
        %v1474 = vshll.u32 %v1363, 16
        %v1476 = vrot.slane %v1474, 2
        %v1477 = vor.u32 %v1473, %v1476
        %v1478 = vsel %vm1371, %v1468, %v1477
        %v1480 = vshrl.u32 %v1364, 16
        %v1482 = vrot.slane %v1480, 1
        %v1483 = vshll.u32 %v1364, 16
        %v1485 = vrot.slane %v1483, 2
        %v1486 = vor.u32 %v1482, %v1485
        %v1487 = vsel %vm1371, %v1477, %v1486
        %v1489 = vshrl.u32 %v1365, 16
        %v1491 = vrot.slane %v1489, 1
        %v1492 = vshll.u32 %v1365, 16
        %v1494 = vrot.slane %v1492, 2
        %v1495 = vor.u32 %v1491, %v1494
        %v1496 = vsel %vm1371, %v1486, %v1495
        %v1498 = vshrl.u32 %v1366, 16
        %v1500 = vrot.slane %v1498, 1
        %v1501 = vshll.u32 %v1366, 16
        %v1503 = vrot.slane %v1501, 2
        %v1504 = vor.u32 %v1500, %v1503
        %v1505 = vsel %vm1371, %v1495, %v1504
        %v1507 = vshrl.u32 %v1367, 16
        %v1509 = vrot.slane %v1507, 1
        %v1510 = vshll.u32 %v1367, 16
        %v1512 = vrot.slane %v1510, 2
        %v1513 = vor.u32 %v1509, %v1512
        %v1514 = vsel %vm1371, %v1504, %v1513
        %v1516 = vshrl.u32 %v1368, 16
        %v1518 = vrot.slane %v1516, 1
        %v1519 = vshll.u32 %v1368, 16
        %v1521 = vrot.slane %v1519, 2
        %v1522 = vor.u32 %v1518, %v1521
        %v1523 = vsel %vm1371, %v1513, %v1522
        %v1525 = vshrl.u32 %v1369, 16
        %v1527 = vrot.slane %v1525, 1
        %v1528 = vshll.u32 %v1369, 16
        %v1530 = vrot.slane %v1528, 2
        %v1531 = vor.u32 %v1527, %v1530
        %v1532 = vsel %vm1371, %v1522, %v1531
        %v1534 = vshrl.u32 %v1370, 16
        %v1536 = vrot.slane %v1534, 1
        %v1537 = vshll.u32 %v1370, 16
        %v1539 = vrot.slane %v1537, 2
        %v1540 = vor.u32 %v1536, %v1539
        %v1541 = vsel %vm1371, %v1531, %v1540
        %v1576 = vunpack.c.l.b16 %v1262
        %v1577 = vunpack.c.l.b16 %v1263
        %v1578 = vunpack.c.l.b16 %v1264
        %v1579 = vunpack.c.l.b16 %v1265
        %v1580 = vunpack.c.l.b16 %v1266
        %v1581 = vunpack.c.l.b16 %v1267
        %v1582 = vunpack.c.l.b16 %v1268
        %v1583 = vunpack.c.l.b16 %v1269
        %v1584 = vunpack.c.l.b16 %v1270
        %v1585 = vunpack.c.l.b16 %v1271
        %v1586 = vunpack.c.l.b16 %v1272
        %v1587 = vunpack.c.l.b16 %v1273
        %v1588 = vunpack.c.l.b16 %v1274
        %v1589 = vunpack.c.l.b16 %v1275
        %v1590 = vunpack.c.l.b16 %v1276
        %v1591 = vunpack.c.l.b16 %v1277
        %v1592 = vpack.c.b16 %v1577, %v1576
        %v1593 = vpack.c.b16 %v1579, %v1578
        %v1594 = vpack.c.b16 %v1581, %v1580
        %v1595 = vpack.c.b16 %v1583, %v1582
        %v1596 = vpack.c.b16 %v1585, %v1584
        %v1597 = vpack.c.b16 %v1587, %v1586
        %v1598 = vpack.c.b16 %v1589, %v1588
        %v1599 = vpack.c.b16 %v1591, %v1590
        %1608 = vmatpush.bf16.msra.mxu0 %v1599
        %1609 = vmatpush.bf16.msra.mxu0 %v1598
        %1610 = vmatpush.bf16.msra.mxu0 %v1597
        %1611 = vmatpush.bf16.msra.mxu0 %v1596
        %1612 = vmatpush.bf16.msra.mxu0 %v1595
        %1613 = vmatpush.bf16.msra.mxu0 %v1594
        %1614 = vmatpush.bf16.msra.mxu0 %v1593
        %1615 = vmatpush.bf16.msra.mxu0 %v1592
        %1616 = vmatmul.bf16.gmra.mxu0 %v1388
        %v1617 = vpop.f32.mrf.mxu0
        %v1618 = vadd.f32 0.0, %v1617
        %v1619 = vpop.f32.mrf.mxu0
        %v1620 = vadd.f32 0.0, %v1619
        %1621 = vmatmul.bf16.gmra.mxu0 %v1397
        %v1622 = vpop.f32.mrf.mxu0
        %v1623 = vadd.f32 0.0, %v1622
        %v1624 = vpop.f32.mrf.mxu0
        %v1625 = vadd.f32 0.0, %v1624
        %1626 = vmatmul.bf16.gmra.mxu0 %v1406
        %v1627 = vpop.f32.mrf.mxu0
        %v1628 = vadd.f32 0.0, %v1627
        %v1629 = vpop.f32.mrf.mxu0
        %v1630 = vadd.f32 0.0, %v1629
        %1631 = vmatmul.bf16.gmra.mxu0 %v1415
        %v1632 = vpop.f32.mrf.mxu0
        %v1633 = vadd.f32 0.0, %v1632
        %v1634 = vpop.f32.mrf.mxu0
        %v1635 = vadd.f32 0.0, %v1634
        %1636 = vmatmul.bf16.gmra.mxu0 %v1424
        %v1637 = vpop.f32.mrf.mxu0
        %v1638 = vadd.f32 0.0, %v1637
        %v1639 = vpop.f32.mrf.mxu0
        %v1640 = vadd.f32 0.0, %v1639
        %1641 = vmatmul.bf16.gmra.mxu0 %v1433
        %v1642 = vpop.f32.mrf.mxu0
        %v1643 = vadd.f32 0.0, %v1642
        %v1644 = vpop.f32.mrf.mxu0
        %v1645 = vadd.f32 0.0, %v1644
        %1646 = vmatmul.bf16.gmra.mxu0 %v1442
        %v1647 = vpop.f32.mrf.mxu0
        %v1648 = vadd.f32 0.0, %v1647
        %v1649 = vpop.f32.mrf.mxu0
        %v1650 = vadd.f32 0.0, %v1649
        %1651 = vmatmul.bf16.gmra.mxu0 %v1451
        %v1652 = vpop.f32.mrf.mxu0
        %v1653 = vadd.f32 0.0, %v1652
        %v1654 = vpop.f32.mrf.mxu0
        %v1655 = vadd.f32 0.0, %v1654
        %1656 = vmatmul.bf16.gmra.mxu0 %v1460
        %v1657 = vpop.f32.mrf.mxu0
        %v1658 = vadd.f32 0.0, %v1657
        %v1659 = vpop.f32.mrf.mxu0
        %v1660 = vadd.f32 0.0, %v1659
        %1661 = vmatmul.bf16.gmra.mxu0 %v1469
        %v1662 = vpop.f32.mrf.mxu0
        %v1663 = vadd.f32 0.0, %v1662
        %v1664 = vpop.f32.mrf.mxu0
        %v1665 = vadd.f32 0.0, %v1664
        %1666 = vmatmul.bf16.gmra.mxu0 %v1478
        %v1667 = vpop.f32.mrf.mxu0
        %v1668 = vadd.f32 0.0, %v1667
        %v1669 = vpop.f32.mrf.mxu0
        %v1670 = vadd.f32 0.0, %v1669
        %1671 = vmatmul.bf16.gmra.mxu0 %v1487
        %v1672 = vpop.f32.mrf.mxu0
        %v1673 = vadd.f32 0.0, %v1672
        %v1674 = vpop.f32.mrf.mxu0
        %v1675 = vadd.f32 0.0, %v1674
        %1676 = vmatmul.bf16.gmra.mxu0 %v1496
        %v1677 = vpop.f32.mrf.mxu0
        %v1678 = vadd.f32 0.0, %v1677
        %v1679 = vpop.f32.mrf.mxu0
        %v1680 = vadd.f32 0.0, %v1679
        %1681 = vmatmul.bf16.gmra.mxu0 %v1505
        %v1682 = vpop.f32.mrf.mxu0
        %v1683 = vadd.f32 0.0, %v1682
        %v1684 = vpop.f32.mrf.mxu0
        %v1685 = vadd.f32 0.0, %v1684
        %1686 = vmatmul.bf16.gmra.mxu0 %v1514
        %v1687 = vpop.f32.mrf.mxu0
        %v1688 = vadd.f32 0.0, %v1687
        %v1689 = vpop.f32.mrf.mxu0
        %v1690 = vadd.f32 0.0, %v1689
        %1691 = vmatmul.bf16.gmra.mxu0 %v1523
        %v1692 = vpop.f32.mrf.mxu0
        %v1693 = vadd.f32 0.0, %v1692
        %v1694 = vpop.f32.mrf.mxu0
        %v1695 = vadd.f32 0.0, %v1694
        %1696 = vmatmul.bf16.gmra.mxu0 %v1532
        %v1697 = vpop.f32.mrf.mxu0
        %v1698 = vadd.f32 0.0, %v1697
        %v1699 = vpop.f32.mrf.mxu0
        %v1700 = vadd.f32 0.0, %v1699
        %1701 = vmatmul.bf16.gmra.mxu0 %v1541
        %v1702 = vpop.f32.mrf.mxu0
        %v1703 = vadd.f32 0.0, %v1702
        %v1704 = vpop.f32.mrf.mxu0
        %v1705 = vadd.f32 0.0, %v1704
        %1706 = vdwg.mxu0
        %v1708 = vunpack.c.l.b16 %v1242
        %v1709 = vpack.c.b16 %v1708, %v1708
        %v1710 = vrot.slane %v1352, 1
        %v1711 = vrot.slane %v1353, 1
        %v1712 = vsel %vm931, %v1710, %v1711
        %v1713 = vrot.slane %v1354, 1
        %v1714 = vsel %vm931, %v1711, %v1713
        %v1715 = vrot.slane %v1355, 1
        %v1716 = vsel %vm931, %v1713, %v1715
        %v1717 = vrot.slane %v1356, 1
        %v1718 = vsel %vm931, %v1715, %v1717
        %v1719 = vrot.slane %v1357, 1
        %v1720 = vsel %vm931, %v1717, %v1719
        %v1721 = vrot.slane %v1358, 1
        %v1722 = vsel %vm931, %v1719, %v1721
        %v1723 = vrot.slane %v1359, 1
        %v1724 = vsel %vm931, %v1721, %v1723
        %v1725 = vrot.slane %v1360, 1
        %v1726 = vsel %vm931, %v1723, %v1725
        %v1727 = vrot.slane %v1361, 1
        %v1728 = vsel %vm931, %v1725, %v1727
        %v1729 = vrot.slane %v1362, 1
        %v1730 = vsel %vm931, %v1727, %v1729
        %v1731 = vrot.slane %v1363, 1
        %v1732 = vsel %vm931, %v1729, %v1731
        %v1733 = vrot.slane %v1364, 1
        %v1734 = vsel %vm931, %v1731, %v1733
        %v1735 = vrot.slane %v1365, 1
        %v1736 = vsel %vm931, %v1733, %v1735
        %v1737 = vrot.slane %v1366, 1
        %v1738 = vsel %vm931, %v1735, %v1737
        %v1739 = vrot.slane %v1367, 1
        %v1740 = vsel %vm931, %v1737, %v1739
        %v1741 = vrot.slane %v1368, 1
        %v1742 = vsel %vm931, %v1739, %v1741
        %v1743 = vrot.slane %v1369, 1
        %v1744 = vsel %vm931, %v1741, %v1743
        %v1745 = vrot.slane %v1709, 1
        %v1746 = vsel %vm931, %v1743, %v1745
        %v1781 = vunpack.c.l.b16 %v1244
        %v1782 = vunpack.c.l.b16 %v1245
        %v1783 = vunpack.c.l.b16 %v1246
        %v1784 = vunpack.c.l.b16 %v1247
        %v1785 = vunpack.c.l.b16 %v1248
        %v1786 = vunpack.c.l.b16 %v1249
        %v1787 = vunpack.c.l.b16 %v1250
        %v1788 = vunpack.c.l.b16 %v1251
        %v1789 = vunpack.c.l.b16 %v1252
        %v1790 = vunpack.c.l.b16 %v1253
        %v1791 = vunpack.c.l.b16 %v1254
        %v1792 = vunpack.c.l.b16 %v1255
        %v1793 = vunpack.c.l.b16 %v1256
        %v1794 = vunpack.c.l.b16 %v1257
        %v1795 = vunpack.c.l.b16 %v1258
        %v1796 = vunpack.c.l.b16 %v1259
        %v1797 = vpack.c.b16 %v1782, %v1781
        %v1798 = vpack.c.b16 %v1784, %v1783
        %v1799 = vpack.c.b16 %v1786, %v1785
        %v1800 = vpack.c.b16 %v1788, %v1787
        %v1801 = vpack.c.b16 %v1790, %v1789
        %v1802 = vpack.c.b16 %v1792, %v1791
        %v1803 = vpack.c.b16 %v1794, %v1793
        %v1804 = vpack.c.b16 %v1796, %v1795
        %1813 = vmatpush.bf16.msra.mxu0 %v1804
        %1814 = vmatpush.bf16.msra.mxu0 %v1803
        %1815 = vmatpush.bf16.msra.mxu0 %v1802
        %1816 = vmatpush.bf16.msra.mxu0 %v1801
        %1817 = vmatpush.bf16.msra.mxu0 %v1800
        %1818 = vmatpush.bf16.msra.mxu0 %v1799
        %1819 = vmatpush.bf16.msra.mxu0 %v1798
        %1820 = vmatpush.bf16.msra.mxu0 %v1797
        %1821 = vmatmul.bf16.gmra.mxu0 %v1712
        %v1822 = vpop.f32.mrf.mxu0
        %v1823 = vadd.f32 %v1618, %v1822
        %v1824 = vpop.f32.mrf.mxu0
        %v1825 = vadd.f32 %v1620, %v1824
        %1826 = vmatmul.bf16.gmra.mxu0 %v1714
        %v1827 = vpop.f32.mrf.mxu0
        %v1828 = vadd.f32 %v1623, %v1827
        %v1829 = vpop.f32.mrf.mxu0
        %v1830 = vadd.f32 %v1625, %v1829
        %1831 = vmatmul.bf16.gmra.mxu0 %v1716
        %v1832 = vpop.f32.mrf.mxu0
        %v1833 = vadd.f32 %v1628, %v1832
        %v1834 = vpop.f32.mrf.mxu0
        %v1835 = vadd.f32 %v1630, %v1834
        %1836 = vmatmul.bf16.gmra.mxu0 %v1718
        %v1837 = vpop.f32.mrf.mxu0
        %v1838 = vadd.f32 %v1633, %v1837
        %v1839 = vpop.f32.mrf.mxu0
        %v1840 = vadd.f32 %v1635, %v1839
        %1841 = vmatmul.bf16.gmra.mxu0 %v1720
        %v1842 = vpop.f32.mrf.mxu0
        %v1843 = vadd.f32 %v1638, %v1842
        %v1844 = vpop.f32.mrf.mxu0
        %v1845 = vadd.f32 %v1640, %v1844
        %1846 = vmatmul.bf16.gmra.mxu0 %v1722
        %v1847 = vpop.f32.mrf.mxu0
        %v1848 = vadd.f32 %v1643, %v1847
        %v1849 = vpop.f32.mrf.mxu0
        %v1850 = vadd.f32 %v1645, %v1849
        %1851 = vmatmul.bf16.gmra.mxu0 %v1724
        %v1852 = vpop.f32.mrf.mxu0
        %v1853 = vadd.f32 %v1648, %v1852
        %v1854 = vpop.f32.mrf.mxu0
        %v1855 = vadd.f32 %v1650, %v1854
        %1856 = vmatmul.bf16.gmra.mxu0 %v1726
        %v1857 = vpop.f32.mrf.mxu0
        %v1858 = vadd.f32 %v1653, %v1857
        %v1859 = vpop.f32.mrf.mxu0
        %v1860 = vadd.f32 %v1655, %v1859
        %1861 = vmatmul.bf16.gmra.mxu0 %v1728
        %v1862 = vpop.f32.mrf.mxu0
        %v1863 = vadd.f32 %v1658, %v1862
        %v1864 = vpop.f32.mrf.mxu0
        %v1865 = vadd.f32 %v1660, %v1864
        %1866 = vmatmul.bf16.gmra.mxu0 %v1730
        %v1867 = vpop.f32.mrf.mxu0
        %v1868 = vadd.f32 %v1663, %v1867
        %v1869 = vpop.f32.mrf.mxu0
        %v1870 = vadd.f32 %v1665, %v1869
        %1871 = vmatmul.bf16.gmra.mxu0 %v1732
        %v1872 = vpop.f32.mrf.mxu0
        %v1873 = vadd.f32 %v1668, %v1872
        %v1874 = vpop.f32.mrf.mxu0
        %v1875 = vadd.f32 %v1670, %v1874
        %1876 = vmatmul.bf16.gmra.mxu0 %v1734
        %v1877 = vpop.f32.mrf.mxu0
        %v1878 = vadd.f32 %v1673, %v1877
        %v1879 = vpop.f32.mrf.mxu0
        %v1880 = vadd.f32 %v1675, %v1879
        %1881 = vmatmul.bf16.gmra.mxu0 %v1736
        %v1882 = vpop.f32.mrf.mxu0
        %v1883 = vadd.f32 %v1678, %v1882
        %v1884 = vpop.f32.mrf.mxu0
        %v1885 = vadd.f32 %v1680, %v1884
        %1886 = vmatmul.bf16.gmra.mxu0 %v1738
        %v1887 = vpop.f32.mrf.mxu0
        %v1888 = vadd.f32 %v1683, %v1887
        %v1889 = vpop.f32.mrf.mxu0
        %v1890 = vadd.f32 %v1685, %v1889
        %1891 = vmatmul.bf16.gmra.mxu0 %v1740
        %v1892 = vpop.f32.mrf.mxu0
        %v1893 = vadd.f32 %v1688, %v1892
        %v1894 = vpop.f32.mrf.mxu0
        %v1895 = vadd.f32 %v1690, %v1894
        %1896 = vmatmul.bf16.gmra.mxu0 %v1742
        %v1897 = vpop.f32.mrf.mxu0
        %v1898 = vadd.f32 %v1693, %v1897
        %v1899 = vpop.f32.mrf.mxu0
        %v1900 = vadd.f32 %v1695, %v1899
        %1901 = vmatmul.bf16.gmra.mxu0 %v1744
        %v1902 = vpop.f32.mrf.mxu0
        %v1903 = vadd.f32 %v1698, %v1902
        %v1904 = vpop.f32.mrf.mxu0
        %v1905 = vadd.f32 %v1700, %v1904
        %1906 = vmatmul.bf16.gmra.mxu0 %v1746
        %v1907 = vpop.f32.mrf.mxu0
        %v1908 = vadd.f32 %v1703, %v1907
        %v1909 = vpop.f32.mrf.mxu0
        %v1910 = vadd.f32 %v1705, %v1909
        %1911 = vdwg.mxu0
        %v1912 = vld [vmem:[%s266 + $0x8] sm:$0xc]
        %s1913 = scalar_lea.vmem %s1, 320
        %v1914 = vld [vmem:[%s1913] sm:$0xf]
        %v1915 = vld [vmem:[%s1913 + $0x4] sm:$0xf]
        %v1916 = vld [vmem:[%s1913 + $0x8] sm:$0xf]
        %v1917 = vld [vmem:[%s1913 + $0xc] sm:$0xf]
        %v1918 = vld [vmem:[%s1913 + $0x10] sm:$0xf]
        %v1919 = vld [vmem:[%s1913 + $0x14] sm:$0xf]
        %v1920 = vld [vmem:[%s1913 + $0x18] sm:$0xf]
        %v1921 = vld [vmem:[%s1913 + $0x1c] sm:$0xf]
        %v1922 = vld [vmem:[%s1913 + $0x20] sm:$0xf]
        %v1923 = vld [vmem:[%s1913 + $0x24] sm:$0xf]
        %v1924 = vld [vmem:[%s1913 + $0x28] sm:$0xf]
        %v1925 = vld [vmem:[%s1913 + $0x2c] sm:$0xf]
        %v1926 = vld [vmem:[%s1913 + $0x30] sm:$0xf]
        %v1927 = vld [vmem:[%s1913 + $0x34] sm:$0xf]
        %v1928 = vld [vmem:[%s1913 + $0x38] sm:$0xf]
        %v1929 = vld [vmem:[%s1913 + $0x3c] sm:$0xf]
        %v1931 = vunpack.c.l.b16 %v1912
        %v1932 = vpack.c.b16 %v1316, %v1931
        %vm1933 = vcmask 1045504
        %v1934 = vrot.slane %v1932, 2
        %v1935 = vrot.slane %v1353, 2
        %v1936 = vsel %vm1933, %v1934, %v1935
        %v1937 = vrot.slane %v1354, 2
        %v1938 = vsel %vm1933, %v1935, %v1937
        %v1939 = vrot.slane %v1355, 2
        %v1940 = vsel %vm1933, %v1937, %v1939
        %v1941 = vrot.slane %v1356, 2
        %v1942 = vsel %vm1933, %v1939, %v1941
        %v1943 = vrot.slane %v1357, 2
        %v1944 = vsel %vm1933, %v1941, %v1943
        %v1945 = vrot.slane %v1358, 2
        %v1946 = vsel %vm1933, %v1943, %v1945
        %v1947 = vrot.slane %v1359, 2
        %v1948 = vsel %vm1933, %v1945, %v1947
        %v1949 = vrot.slane %v1360, 2
        %v1950 = vsel %vm1933, %v1947, %v1949
        %v1951 = vrot.slane %v1361, 2
        %v1952 = vsel %vm1933, %v1949, %v1951
        %v1953 = vrot.slane %v1362, 2
        %v1954 = vsel %vm1933, %v1951, %v1953
        %v1955 = vrot.slane %v1363, 2
        %v1956 = vsel %vm1933, %v1953, %v1955
        %v1957 = vrot.slane %v1364, 2
        %v1958 = vsel %vm1933, %v1955, %v1957
        %v1959 = vrot.slane %v1365, 2
        %v1960 = vsel %vm1933, %v1957, %v1959
        %v1961 = vrot.slane %v1366, 2
        %v1962 = vsel %vm1933, %v1959, %v1961
        %v1963 = vrot.slane %v1367, 2
        %v1964 = vsel %vm1933, %v1961, %v1963
        %v1965 = vrot.slane %v1368, 2
        %v1966 = vsel %vm1933, %v1963, %v1965
        %v1967 = vrot.slane %v1369, 2
        %v1968 = vsel %vm1933, %v1965, %v1967
        %v1969 = vrot.slane %v1370, 2
        %v1970 = vsel %vm1933, %v1967, %v1969
        %v2005 = vunpack.c.l.b16 %v1914
        %v2006 = vunpack.c.l.b16 %v1915
        %v2007 = vunpack.c.l.b16 %v1916
        %v2008 = vunpack.c.l.b16 %v1917
        %v2009 = vunpack.c.l.b16 %v1918
        %v2010 = vunpack.c.l.b16 %v1919
        %v2011 = vunpack.c.l.b16 %v1920
        %v2012 = vunpack.c.l.b16 %v1921
        %v2013 = vunpack.c.l.b16 %v1922
        %v2014 = vunpack.c.l.b16 %v1923
        %v2015 = vunpack.c.l.b16 %v1924
        %v2016 = vunpack.c.l.b16 %v1925
        %v2017 = vunpack.c.l.b16 %v1926
        %v2018 = vunpack.c.l.b16 %v1927
        %v2019 = vunpack.c.l.b16 %v1928
        %v2020 = vunpack.c.l.b16 %v1929
        %v2021 = vpack.c.b16 %v2006, %v2005
        %v2022 = vpack.c.b16 %v2008, %v2007
        %v2023 = vpack.c.b16 %v2010, %v2009
        %v2024 = vpack.c.b16 %v2012, %v2011
        %v2025 = vpack.c.b16 %v2014, %v2013
        %v2026 = vpack.c.b16 %v2016, %v2015
        %v2027 = vpack.c.b16 %v2018, %v2017
        %v2028 = vpack.c.b16 %v2020, %v2019
        %2037 = vmatpush.bf16.msra.mxu0 %v2028
        %2038 = vmatpush.bf16.msra.mxu0 %v2027
        %2039 = vmatpush.bf16.msra.mxu0 %v2026
        %2040 = vmatpush.bf16.msra.mxu0 %v2025
        %2041 = vmatpush.bf16.msra.mxu0 %v2024
        %2042 = vmatpush.bf16.msra.mxu0 %v2023
        %2043 = vmatpush.bf16.msra.mxu0 %v2022
        %2044 = vmatpush.bf16.msra.mxu0 %v2021
        %2045 = vmatmul.bf16.gmra.mxu0 %v1936
        %v2046 = vpop.f32.mrf.mxu0
        %v2047 = vadd.f32 0.0, %v2046
        %v2048 = vpop.f32.mrf.mxu0
        %v2049 = vadd.f32 0.0, %v2048
        %2050 = vmatmul.bf16.gmra.mxu0 %v1938
        %v2051 = vpop.f32.mrf.mxu0
        %v2052 = vadd.f32 0.0, %v2051
        %v2053 = vpop.f32.mrf.mxu0
        %v2054 = vadd.f32 0.0, %v2053
        %2055 = vmatmul.bf16.gmra.mxu0 %v1940
        %v2056 = vpop.f32.mrf.mxu0
        %v2057 = vadd.f32 0.0, %v2056
        %v2058 = vpop.f32.mrf.mxu0
        %v2059 = vadd.f32 0.0, %v2058
        %2060 = vmatmul.bf16.gmra.mxu0 %v1942
        %v2061 = vpop.f32.mrf.mxu0
        %v2062 = vadd.f32 0.0, %v2061
        %v2063 = vpop.f32.mrf.mxu0
        %v2064 = vadd.f32 0.0, %v2063
        %2065 = vmatmul.bf16.gmra.mxu0 %v1944
        %v2066 = vpop.f32.mrf.mxu0
        %v2067 = vadd.f32 0.0, %v2066
        %v2068 = vpop.f32.mrf.mxu0
        %v2069 = vadd.f32 0.0, %v2068
        %2070 = vmatmul.bf16.gmra.mxu0 %v1946
        %v2071 = vpop.f32.mrf.mxu0
        %v2072 = vadd.f32 0.0, %v2071
        %v2073 = vpop.f32.mrf.mxu0
        %v2074 = vadd.f32 0.0, %v2073
        %2075 = vmatmul.bf16.gmra.mxu0 %v1948
        %v2076 = vpop.f32.mrf.mxu0
        %v2077 = vadd.f32 0.0, %v2076
        %v2078 = vpop.f32.mrf.mxu0
        %v2079 = vadd.f32 0.0, %v2078
        %2080 = vmatmul.bf16.gmra.mxu0 %v1950
        %v2081 = vpop.f32.mrf.mxu0
        %v2082 = vadd.f32 0.0, %v2081
        %v2083 = vpop.f32.mrf.mxu0
        %v2084 = vadd.f32 0.0, %v2083
        %2085 = vmatmul.bf16.gmra.mxu0 %v1952
        %v2086 = vpop.f32.mrf.mxu0
        %v2087 = vadd.f32 0.0, %v2086
        %v2088 = vpop.f32.mrf.mxu0
        %v2089 = vadd.f32 0.0, %v2088
        %2090 = vmatmul.bf16.gmra.mxu0 %v1954
        %v2091 = vpop.f32.mrf.mxu0
        %v2092 = vadd.f32 0.0, %v2091
        %v2093 = vpop.f32.mrf.mxu0
        %v2094 = vadd.f32 0.0, %v2093
        %2095 = vmatmul.bf16.gmra.mxu0 %v1956
        %v2096 = vpop.f32.mrf.mxu0
        %v2097 = vadd.f32 0.0, %v2096
        %v2098 = vpop.f32.mrf.mxu0
        %v2099 = vadd.f32 0.0, %v2098
        %2100 = vmatmul.bf16.gmra.mxu0 %v1958
        %v2101 = vpop.f32.mrf.mxu0
        %v2102 = vadd.f32 0.0, %v2101
        %v2103 = vpop.f32.mrf.mxu0
        %v2104 = vadd.f32 0.0, %v2103
        %2105 = vmatmul.bf16.gmra.mxu0 %v1960
        %v2106 = vpop.f32.mrf.mxu0
        %v2107 = vadd.f32 0.0, %v2106
        %v2108 = vpop.f32.mrf.mxu0
        %v2109 = vadd.f32 0.0, %v2108
        %2110 = vmatmul.bf16.gmra.mxu0 %v1962
        %v2111 = vpop.f32.mrf.mxu0
        %v2112 = vadd.f32 0.0, %v2111
        %v2113 = vpop.f32.mrf.mxu0
        %v2114 = vadd.f32 0.0, %v2113
        %2115 = vmatmul.bf16.gmra.mxu0 %v1964
        %v2116 = vpop.f32.mrf.mxu0
        %v2117 = vadd.f32 0.0, %v2116
        %v2118 = vpop.f32.mrf.mxu0
        %v2119 = vadd.f32 0.0, %v2118
        %2120 = vmatmul.bf16.gmra.mxu0 %v1966
        %v2121 = vpop.f32.mrf.mxu0
        %v2122 = vadd.f32 0.0, %v2121
        %v2123 = vpop.f32.mrf.mxu0
        %v2124 = vadd.f32 0.0, %v2123
        %2125 = vmatmul.bf16.gmra.mxu0 %v1968
        %v2126 = vpop.f32.mrf.mxu0
        %v2127 = vadd.f32 0.0, %v2126
        %v2128 = vpop.f32.mrf.mxu0
        %v2129 = vadd.f32 0.0, %v2128
        %2130 = vmatmul.bf16.gmra.mxu0 %v1970
        %v2131 = vpop.f32.mrf.mxu0
        %v2132 = vadd.f32 0.0, %v2131
        %v2133 = vpop.f32.mrf.mxu0
        %v2134 = vadd.f32 0.0, %v2133
        %2135 = vdwg.mxu0
        %v2136 = vadd.f32 %v1823, %v2047
        %v2137 = vadd.f32 %v1825, %v2049
        %v2138 = vadd.f32 %v1828, %v2052
        %v2139 = vadd.f32 %v1830, %v2054
        %v2140 = vadd.f32 %v1833, %v2057
        %v2141 = vadd.f32 %v1835, %v2059
        %v2142 = vadd.f32 %v1838, %v2062
        %v2143 = vadd.f32 %v1840, %v2064
        %v2144 = vadd.f32 %v1843, %v2067
        %v2145 = vadd.f32 %v1845, %v2069
        %v2146 = vadd.f32 %v1848, %v2072
        %v2147 = vadd.f32 %v1850, %v2074
        %v2148 = vadd.f32 %v1853, %v2077
        %v2149 = vadd.f32 %v1855, %v2079
        %v2150 = vadd.f32 %v1858, %v2082
        %v2151 = vadd.f32 %v1860, %v2084
        %v2152 = vadd.f32 %v1863, %v2087
        %v2153 = vadd.f32 %v1865, %v2089
        %v2154 = vadd.f32 %v1868, %v2092
        %v2155 = vadd.f32 %v1870, %v2094
        %v2156 = vadd.f32 %v1873, %v2097
        %v2157 = vadd.f32 %v1875, %v2099
        %v2158 = vadd.f32 %v1878, %v2102
        %v2159 = vadd.f32 %v1880, %v2104
        %v2160 = vadd.f32 %v1883, %v2107
        %v2161 = vadd.f32 %v1885, %v2109
        %v2162 = vadd.f32 %v1888, %v2112
        %v2163 = vadd.f32 %v1890, %v2114
        %v2164 = vadd.f32 %v1893, %v2117
        %v2165 = vadd.f32 %v1895, %v2119
        %v2166 = vadd.f32 %v1898, %v2122
        %v2167 = vadd.f32 %v1900, %v2124
        %v2168 = vadd.f32 %v1903, %v2127
        %v2169 = vadd.f32 %v1905, %v2129
        %v2170 = vadd.f32 %v1908, %v2132
        %v2171 = vadd.f32 %v1910, %v2134
        %v2172 = vld [vmem:[#allocation3] sm:$0xff]
        %v2173 = vld [vmem:[#allocation3 + $0x8] sm:$0xff]
        %v2174 = vld [vmem:[#allocation3 + $0x10] sm:$0xff]
        %v2175 = vld [vmem:[#allocation3 + $0x18] sm:$0xff]
        %v2176 = vld [vmem:[#allocation3 + $0x20] sm:$0xff]
        %v2177 = vld [vmem:[#allocation3 + $0x28] sm:$0xff]
        %v2178 = vld [vmem:[#allocation3 + $0x30] sm:$0xff]
        %v2179 = vld [vmem:[#allocation3 + $0x38] sm:$0xff]
        %v2180 = vld [vmem:[#allocation3 + $0x40] sm:$0xff]
        %v2181 = vld [vmem:[#allocation3 + $0x48] sm:$0xff]
        %v2182 = vld [vmem:[#allocation3 + $0x50] sm:$0xff]
        %v2183 = vld [vmem:[#allocation3 + $0x58] sm:$0xff]
        %v2184 = vld [vmem:[#allocation3 + $0x60] sm:$0xff]
        %v2185 = vld [vmem:[#allocation3 + $0x68] sm:$0xff]
        %v2186 = vld [vmem:[#allocation3 + $0x70] sm:$0xff]
        %v2187 = vld [vmem:[#allocation3 + $0x78] sm:$0xff]
        %v2188 = vld [vmem:[#allocation3 + $0x80] sm:$0xff]
        %v2189 = vld [vmem:[#allocation3 + $0x88] sm:$0xff]
        %v2190 = vld [vmem:[#allocation3 + $0x90] sm:$0xff]
        %v2191 = vld [vmem:[#allocation3 + $0x98] sm:$0xff]
        %v2192 = vld [vmem:[#allocation3 + $0xa0] sm:$0xff]
        %v2193 = vld [vmem:[#allocation3 + $0xa8] sm:$0xff]
        %v2194 = vld [vmem:[#allocation3 + $0xb0] sm:$0xff]
        %v2195 = vld [vmem:[#allocation3 + $0xb8] sm:$0xff]
        %v2196 = vld [vmem:[#allocation3 + $0xc0] sm:$0xff]
        %v2197 = vld [vmem:[#allocation3 + $0xc8] sm:$0xff]
        %v2198 = vld [vmem:[#allocation3 + $0xd0] sm:$0xff]
        %v2199 = vld [vmem:[#allocation3 + $0xd8] sm:$0xff]
        %v2200 = vld [vmem:[#allocation3 + $0xe0] sm:$0xff]
        %v2201 = vld [vmem:[#allocation3 + $0xe8] sm:$0xff]
        %v2202 = vld [vmem:[#allocation3 + $0xf0] sm:$0xff]
        %v2203 = vld [vmem:[#allocation3 + $0xf8] sm:$0xff]
        %v2204 = vld [vmem:[#allocation3 + $0x100] sm:$0xff]
        %v2205 = vld [vmem:[#allocation3 + $0x108] sm:$0xff]
        %v2206 = vld [vmem:[#allocation3 + $0x110] sm:$0xff]
        %v2207 = vld [vmem:[#allocation3 + $0x118] sm:$0xff]
        %v2208 = vadd.f32 %v2172, %v2136
        %v2209 = vadd.f32 %v2173, %v2137
        %v2210 = vadd.f32 %v2174, %v2138
        %v2211 = vadd.f32 %v2175, %v2139
        %v2212 = vadd.f32 %v2176, %v2140
        %v2213 = vadd.f32 %v2177, %v2141
        %v2214 = vadd.f32 %v2178, %v2142
        %v2215 = vadd.f32 %v2179, %v2143
        %v2216 = vadd.f32 %v2180, %v2144
        %v2217 = vadd.f32 %v2181, %v2145
        %v2218 = vadd.f32 %v2182, %v2146
        %v2219 = vadd.f32 %v2183, %v2147
        %v2220 = vadd.f32 %v2184, %v2148
        %v2221 = vadd.f32 %v2185, %v2149
        %v2222 = vadd.f32 %v2186, %v2150
        %v2223 = vadd.f32 %v2187, %v2151
        %v2224 = vadd.f32 %v2188, %v2152
        %v2225 = vadd.f32 %v2189, %v2153
        %v2226 = vadd.f32 %v2190, %v2154
        %v2227 = vadd.f32 %v2191, %v2155
        %v2228 = vadd.f32 %v2192, %v2156
        %v2229 = vadd.f32 %v2193, %v2157
        %v2230 = vadd.f32 %v2194, %v2158
        %v2231 = vadd.f32 %v2195, %v2159
        %v2232 = vadd.f32 %v2196, %v2160
        %v2233 = vadd.f32 %v2197, %v2161
        %v2234 = vadd.f32 %v2198, %v2162
        %v2235 = vadd.f32 %v2199, %v2163
        %v2236 = vadd.f32 %v2200, %v2164
        %v2237 = vadd.f32 %v2201, %v2165
        %v2238 = vadd.f32 %v2202, %v2166
        %v2239 = vadd.f32 %v2203, %v2167
        %v2240 = vadd.f32 %v2204, %v2168
        %v2241 = vadd.f32 %v2205, %v2169
        %v2242 = vadd.f32 %v2206, %v2170
        %v2243 = vadd.f32 %v2207, %v2171
        %2244 = vst [vmem:[#allocation3] sm:$0xff] %v2208
        %2245 = vst [vmem:[#allocation3 + $0x8] sm:$0xff] %v2209
        %2246 = vst [vmem:[#allocation3 + $0x10] sm:$0xff] %v2210
        %2247 = vst [vmem:[#allocation3 + $0x18] sm:$0xff] %v2211
        %2248 = vst [vmem:[#allocation3 + $0x20] sm:$0xff] %v2212
        %2249 = vst [vmem:[#allocation3 + $0x28] sm:$0xff] %v2213
        %2250 = vst [vmem:[#allocation3 + $0x30] sm:$0xff] %v2214
        %2251 = vst [vmem:[#allocation3 + $0x38] sm:$0xff] %v2215
        %2252 = vst [vmem:[#allocation3 + $0x40] sm:$0xff] %v2216
        %2253 = vst [vmem:[#allocation3 + $0x48] sm:$0xff] %v2217
        %2254 = vst [vmem:[#allocation3 + $0x50] sm:$0xff] %v2218
        %2255 = vst [vmem:[#allocation3 + $0x58] sm:$0xff] %v2219
        %2256 = vst [vmem:[#allocation3 + $0x60] sm:$0xff] %v2220
        %2257 = vst [vmem:[#allocation3 + $0x68] sm:$0xff] %v2221
        %2258 = vst [vmem:[#allocation3 + $0x70] sm:$0xff] %v2222
        %2259 = vst [vmem:[#allocation3 + $0x78] sm:$0xff] %v2223
        %2260 = vst [vmem:[#allocation3 + $0x80] sm:$0xff] %v2224
        %2261 = vst [vmem:[#allocation3 + $0x88] sm:$0xff] %v2225
        %2262 = vst [vmem:[#allocation3 + $0x90] sm:$0xff] %v2226
        %2263 = vst [vmem:[#allocation3 + $0x98] sm:$0xff] %v2227
        %2264 = vst [vmem:[#allocation3 + $0xa0] sm:$0xff] %v2228
        %2265 = vst [vmem:[#allocation3 + $0xa8] sm:$0xff] %v2229
        %2266 = vst [vmem:[#allocation3 + $0xb0] sm:$0xff] %v2230
        %2267 = vst [vmem:[#allocation3 + $0xb8] sm:$0xff] %v2231
        %2268 = vst [vmem:[#allocation3 + $0xc0] sm:$0xff] %v2232
        %2269 = vst [vmem:[#allocation3 + $0xc8] sm:$0xff] %v2233
        %2270 = vst [vmem:[#allocation3 + $0xd0] sm:$0xff] %v2234
        %2271 = vst [vmem:[#allocation3 + $0xd8] sm:$0xff] %v2235
        %2272 = vst [vmem:[#allocation3 + $0xe0] sm:$0xff] %v2236
        %2273 = vst [vmem:[#allocation3 + $0xe8] sm:$0xff] %v2237
        %2274 = vst [vmem:[#allocation3 + $0xf0] sm:$0xff] %v2238
        %2275 = vst [vmem:[#allocation3 + $0xf8] sm:$0xff] %v2239
        %2276 = vst [vmem:[#allocation3 + $0x100] sm:$0xff] %v2240
        %2277 = vst [vmem:[#allocation3 + $0x108] sm:$0xff] %v2241
        %2278 = vst [vmem:[#allocation3 + $0x110] sm:$0xff] %v2242
        %2279 = vst [vmem:[#allocation3 + $0x118] sm:$0xff] %v2243
        %v2280 = vld [vmem:[%s266 + $0x10] sm:$0xc]
        %v2281 = vld [vmem:[%s266 + $0x14] sm:$0xf]
        %v2282 = vld [vmem:[%s266 + $0x18] sm:$0xf]
        %v2283 = vld [vmem:[%s266 + $0x1c] sm:$0xf]
        %v2284 = vld [vmem:[%s266 + $0x20] sm:$0xf]
        %v2285 = vld [vmem:[%s266 + $0x24] sm:$0xf]
        %v2286 = vld [vmem:[%s266 + $0x28] sm:$0xf]
        %v2287 = vld [vmem:[%s266 + $0x2c] sm:$0xf]
        %v2288 = vld [vmem:[%s266 + $0x30] sm:$0xf]
        %v2289 = vld [vmem:[%s266 + $0x34] sm:$0xf]
        %v2290 = vld [vmem:[%s266 + $0x38] sm:$0xf]
        %v2291 = vld [vmem:[%s266 + $0x3c] sm:$0xf]
        %v2292 = vld [vmem:[%s266 + $0x40] sm:$0xf]
        %v2293 = vld [vmem:[%s266 + $0x44] sm:$0xf]
        %v2294 = vld [vmem:[%s266 + $0x48] sm:$0xf]
        %v2295 = vld [vmem:[%s266 + $0x4c] sm:$0xf]
        %v2296 = vld [vmem:[%s266 + $0x50] sm:$0xf]
        %v2297 = vld [vmem:[%s266 + $0x54] sm:$0xf]
        %v2298 = vld [vmem:[%s266 + $0x58] sm:$0xf]
        %v2299 = vld [vmem:[%s266 + $0x5c] sm:$0xf]
        %v2300 = vld [vmem:[%s266 + $0x60] sm:$0xf]
        %v2301 = vld [vmem:[%s266 + $0x64] sm:$0xf]
        %v2302 = vld [vmem:[%s266 + $0x68] sm:$0xf]
        %v2303 = vld [vmem:[%s266 + $0x6c] sm:$0xf]
        %v2304 = vld [vmem:[%s266 + $0x70] sm:$0xf]
        %v2305 = vld [vmem:[%s266 + $0x74] sm:$0xf]
        %v2306 = vld [vmem:[%s266 + $0x78] sm:$0xf]
        %v2307 = vld [vmem:[%s266 + $0x7c] sm:$0xf]
        %v2308 = vld [vmem:[%s266 + $0x80] sm:$0xf]
        %v2309 = vld [vmem:[%s266 + $0x84] sm:$0xf]
        %v2310 = vld [vmem:[%s266 + $0x88] sm:$0xf]
        %v2311 = vld [vmem:[%s266 + $0x8c] sm:$0xf]
        %v2312 = vld [vmem:[%s266 + $0x90] sm:$0xf]
        %v2313 = vld [vmem:[%s266 + $0x94] sm:$0xf]
        %v2314 = vld [vmem:[%s266 + $0x98] sm:$0xf]
        %v2315 = vld [vmem:[%s266 + $0x9c] sm:$0xf]
        %v2316 = vld [vmem:[%s266 + $0xa0] sm:$0x3]
        %s2317 = scalar_lea.vmem %s1, 384
        %v2318 = vld [vmem:[%s2317] sm:$0xf]
        %v2319 = vld [vmem:[%s2317 + $0x4] sm:$0xf]
        %v2320 = vld [vmem:[%s2317 + $0x8] sm:$0xf]
        %v2321 = vld [vmem:[%s2317 + $0xc] sm:$0xf]
        %v2322 = vld [vmem:[%s2317 + $0x10] sm:$0xf]
        %v2323 = vld [vmem:[%s2317 + $0x14] sm:$0xf]
        %v2324 = vld [vmem:[%s2317 + $0x18] sm:$0xf]
        %v2325 = vld [vmem:[%s2317 + $0x1c] sm:$0xf]
        %v2326 = vld [vmem:[%s2317 + $0x20] sm:$0xf]
        %v2327 = vld [vmem:[%s2317 + $0x24] sm:$0xf]
        %v2328 = vld [vmem:[%s2317 + $0x28] sm:$0xf]
        %v2329 = vld [vmem:[%s2317 + $0x2c] sm:$0xf]
        %v2330 = vld [vmem:[%s2317 + $0x30] sm:$0xf]
        %v2331 = vld [vmem:[%s2317 + $0x34] sm:$0xf]
        %v2332 = vld [vmem:[%s2317 + $0x38] sm:$0xf]
        %v2333 = vld [vmem:[%s2317 + $0x3c] sm:$0xf]
        %v2334 = vld [vmem:[%s266 + $0xa0] sm:$0x7]
        %s2335 = scalar_lea.vmem %s1, 448
        %v2336 = vld [vmem:[%s2335] sm:$0xf]
        %v2337 = vld [vmem:[%s2335 + $0x4] sm:$0xf]
        %v2338 = vld [vmem:[%s2335 + $0x8] sm:$0xf]
        %v2339 = vld [vmem:[%s2335 + $0xc] sm:$0xf]
        %v2340 = vld [vmem:[%s2335 + $0x10] sm:$0xf]
        %v2341 = vld [vmem:[%s2335 + $0x14] sm:$0xf]
        %v2342 = vld [vmem:[%s2335 + $0x18] sm:$0xf]
        %v2343 = vld [vmem:[%s2335 + $0x1c] sm:$0xf]
        %v2344 = vld [vmem:[%s2335 + $0x20] sm:$0xf]
        %v2345 = vld [vmem:[%s2335 + $0x24] sm:$0xf]
        %v2346 = vld [vmem:[%s2335 + $0x28] sm:$0xf]
        %v2347 = vld [vmem:[%s2335 + $0x2c] sm:$0xf]
        %v2348 = vld [vmem:[%s2335 + $0x30] sm:$0xf]
        %v2349 = vld [vmem:[%s2335 + $0x34] sm:$0xf]
        %v2350 = vld [vmem:[%s2335 + $0x38] sm:$0xf]
        %v2351 = vld [vmem:[%s2335 + $0x3c] sm:$0xf]
        %v2389 = vunpack.c.l.b16 %v2280
        %v2390 = vunpack.c.l.b16 %v2281
        %v2391 = vunpack.c.l.b16 %v2282
        %v2392 = vunpack.c.l.b16 %v2283
        %v2393 = vunpack.c.l.b16 %v2284
        %v2394 = vunpack.c.l.b16 %v2285
        %v2395 = vunpack.c.l.b16 %v2286
        %v2396 = vunpack.c.l.b16 %v2287
        %v2397 = vunpack.c.l.b16 %v2288
        %v2398 = vunpack.c.l.b16 %v2289
        %v2399 = vunpack.c.l.b16 %v2290
        %v2400 = vunpack.c.l.b16 %v2291
        %v2401 = vunpack.c.l.b16 %v2292
        %v2402 = vunpack.c.l.b16 %v2293
        %v2403 = vunpack.c.l.b16 %v2294
        %v2404 = vunpack.c.l.b16 %v2295
        %v2405 = vunpack.c.l.b16 %v2296
        %v2406 = vunpack.c.l.b16 %v2297
        %v2407 = vunpack.c.l.b16 %v2298
        %v2408 = vunpack.c.l.b16 %v2299
        %v2409 = vunpack.c.l.b16 %v2300
        %v2410 = vunpack.c.l.b16 %v2301
        %v2411 = vunpack.c.l.b16 %v2302
        %v2412 = vunpack.c.l.b16 %v2303
        %v2413 = vunpack.c.l.b16 %v2304
        %v2414 = vunpack.c.l.b16 %v2305
        %v2415 = vunpack.c.l.b16 %v2306
        %v2416 = vunpack.c.l.b16 %v2307
        %v2417 = vunpack.c.l.b16 %v2308
        %v2418 = vunpack.c.l.b16 %v2309
        %v2419 = vunpack.c.l.b16 %v2310
        %v2420 = vunpack.c.l.b16 %v2311
        %v2421 = vunpack.c.l.b16 %v2312
        %v2422 = vunpack.c.l.b16 %v2313
        %v2423 = vunpack.c.l.b16 %v2314
        %v2424 = vunpack.c.l.b16 %v2315
        %v2425 = vunpack.c.l.b16 %v2334
        %v2426 = vpack.c.b16 %v2390, %v2389
        %v2427 = vpack.c.b16 %v2392, %v2391
        %v2428 = vpack.c.b16 %v2394, %v2393
        %v2429 = vpack.c.b16 %v2396, %v2395
        %v2430 = vpack.c.b16 %v2398, %v2397
        %v2431 = vpack.c.b16 %v2400, %v2399
        %v2432 = vpack.c.b16 %v2402, %v2401
        %v2433 = vpack.c.b16 %v2404, %v2403
        %v2434 = vpack.c.b16 %v2406, %v2405
        %v2435 = vpack.c.b16 %v2408, %v2407
        %v2436 = vpack.c.b16 %v2410, %v2409
        %v2437 = vpack.c.b16 %v2412, %v2411
        %v2438 = vpack.c.b16 %v2414, %v2413
        %v2439 = vpack.c.b16 %v2416, %v2415
        %v2440 = vpack.c.b16 %v2418, %v2417
        %v2441 = vpack.c.b16 %v2420, %v2419
        %v2442 = vpack.c.b16 %v2422, %v2421
        %v2443 = vpack.c.b16 %v2424, %v2423
        %v2444 = vpack.c.b16 %v2425, %v2425
        %vm2445 = vsmask.f32 5376
        %v2447 = vshrl.u32 %v2426, 16
        %v2449 = vrot.slane %v2447, 2
        %v2450 = vshll.u32 %v2426, 16
        %v2452 = vrot.slane %v2450, 3
        %v2453 = vor.u32 %v2449, %v2452
        %v2455 = vshrl.u32 %v2427, 16
        %v2457 = vrot.slane %v2455, 2
        %v2458 = vshll.u32 %v2427, 16
        %v2460 = vrot.slane %v2458, 3
        %v2461 = vor.u32 %v2457, %v2460
        %v2462 = vsel %vm2445, %v2453, %v2461
        %v2464 = vshrl.u32 %v2428, 16
        %v2466 = vrot.slane %v2464, 2
        %v2467 = vshll.u32 %v2428, 16
        %v2469 = vrot.slane %v2467, 3
        %v2470 = vor.u32 %v2466, %v2469
        %v2471 = vsel %vm2445, %v2461, %v2470
        %v2473 = vshrl.u32 %v2429, 16
        %v2475 = vrot.slane %v2473, 2
        %v2476 = vshll.u32 %v2429, 16
        %v2478 = vrot.slane %v2476, 3
        %v2479 = vor.u32 %v2475, %v2478
        %v2480 = vsel %vm2445, %v2470, %v2479
        %v2482 = vshrl.u32 %v2430, 16
        %v2484 = vrot.slane %v2482, 2
        %v2485 = vshll.u32 %v2430, 16
        %v2487 = vrot.slane %v2485, 3
        %v2488 = vor.u32 %v2484, %v2487
        %v2489 = vsel %vm2445, %v2479, %v2488
        %v2491 = vshrl.u32 %v2431, 16
        %v2493 = vrot.slane %v2491, 2
        %v2494 = vshll.u32 %v2431, 16
        %v2496 = vrot.slane %v2494, 3
        %v2497 = vor.u32 %v2493, %v2496
        %v2498 = vsel %vm2445, %v2488, %v2497
        %v2500 = vshrl.u32 %v2432, 16
        %v2502 = vrot.slane %v2500, 2
        %v2503 = vshll.u32 %v2432, 16
        %v2505 = vrot.slane %v2503, 3
        %v2506 = vor.u32 %v2502, %v2505
        %v2507 = vsel %vm2445, %v2497, %v2506
        %v2509 = vshrl.u32 %v2433, 16
        %v2511 = vrot.slane %v2509, 2
        %v2512 = vshll.u32 %v2433, 16
        %v2514 = vrot.slane %v2512, 3
        %v2515 = vor.u32 %v2511, %v2514
        %v2516 = vsel %vm2445, %v2506, %v2515
        %v2518 = vshrl.u32 %v2434, 16
        %v2520 = vrot.slane %v2518, 2
        %v2521 = vshll.u32 %v2434, 16
        %v2523 = vrot.slane %v2521, 3
        %v2524 = vor.u32 %v2520, %v2523
        %v2525 = vsel %vm2445, %v2515, %v2524
        %v2527 = vshrl.u32 %v2435, 16
        %v2529 = vrot.slane %v2527, 2
        %v2530 = vshll.u32 %v2435, 16
        %v2532 = vrot.slane %v2530, 3
        %v2533 = vor.u32 %v2529, %v2532
        %v2534 = vsel %vm2445, %v2524, %v2533
        %v2536 = vshrl.u32 %v2436, 16
        %v2538 = vrot.slane %v2536, 2
        %v2539 = vshll.u32 %v2436, 16
        %v2541 = vrot.slane %v2539, 3
        %v2542 = vor.u32 %v2538, %v2541
        %v2543 = vsel %vm2445, %v2533, %v2542
        %v2545 = vshrl.u32 %v2437, 16
        %v2547 = vrot.slane %v2545, 2
        %v2548 = vshll.u32 %v2437, 16
        %v2550 = vrot.slane %v2548, 3
        %v2551 = vor.u32 %v2547, %v2550
        %v2552 = vsel %vm2445, %v2542, %v2551
        %v2554 = vshrl.u32 %v2438, 16
        %v2556 = vrot.slane %v2554, 2
        %v2557 = vshll.u32 %v2438, 16
        %v2559 = vrot.slane %v2557, 3
        %v2560 = vor.u32 %v2556, %v2559
        %v2561 = vsel %vm2445, %v2551, %v2560
        %v2563 = vshrl.u32 %v2439, 16
        %v2565 = vrot.slane %v2563, 2
        %v2566 = vshll.u32 %v2439, 16
        %v2568 = vrot.slane %v2566, 3
        %v2569 = vor.u32 %v2565, %v2568
        %v2570 = vsel %vm2445, %v2560, %v2569
        %v2572 = vshrl.u32 %v2440, 16
        %v2574 = vrot.slane %v2572, 2
        %v2575 = vshll.u32 %v2440, 16
        %v2577 = vrot.slane %v2575, 3
        %v2578 = vor.u32 %v2574, %v2577
        %v2579 = vsel %vm2445, %v2569, %v2578
        %v2581 = vshrl.u32 %v2441, 16
        %v2583 = vrot.slane %v2581, 2
        %v2584 = vshll.u32 %v2441, 16
        %v2586 = vrot.slane %v2584, 3
        %v2587 = vor.u32 %v2583, %v2586
        %v2588 = vsel %vm2445, %v2578, %v2587
        %v2590 = vshrl.u32 %v2442, 16
        %v2592 = vrot.slane %v2590, 2
        %v2593 = vshll.u32 %v2442, 16
        %v2595 = vrot.slane %v2593, 3
        %v2596 = vor.u32 %v2592, %v2595
        %v2597 = vsel %vm2445, %v2587, %v2596
        %v2599 = vshrl.u32 %v2443, 16
        %v2601 = vrot.slane %v2599, 2
        %v2602 = vshll.u32 %v2443, 16
        %v2604 = vrot.slane %v2602, 3
        %v2605 = vor.u32 %v2601, %v2604
        %v2606 = vsel %vm2445, %v2596, %v2605
        %v2608 = vshrl.u32 %v2444, 16
        %v2610 = vrot.slane %v2608, 2
        %v2611 = vshll.u32 %v2444, 16
        %v2613 = vrot.slane %v2611, 3
        %v2614 = vor.u32 %v2610, %v2613
        %v2615 = vsel %vm2445, %v2605, %v2614
        %v2650 = vunpack.c.l.b16 %v2336
        %v2651 = vunpack.c.l.b16 %v2337
        %v2652 = vunpack.c.l.b16 %v2338
        %v2653 = vunpack.c.l.b16 %v2339
        %v2654 = vunpack.c.l.b16 %v2340
        %v2655 = vunpack.c.l.b16 %v2341
        %v2656 = vunpack.c.l.b16 %v2342
        %v2657 = vunpack.c.l.b16 %v2343
        %v2658 = vunpack.c.l.b16 %v2344
        %v2659 = vunpack.c.l.b16 %v2345
        %v2660 = vunpack.c.l.b16 %v2346
        %v2661 = vunpack.c.l.b16 %v2347
        %v2662 = vunpack.c.l.b16 %v2348
        %v2663 = vunpack.c.l.b16 %v2349
        %v2664 = vunpack.c.l.b16 %v2350
        %v2665 = vunpack.c.l.b16 %v2351
        %v2666 = vpack.c.b16 %v2651, %v2650
        %v2667 = vpack.c.b16 %v2653, %v2652
        %v2668 = vpack.c.b16 %v2655, %v2654
        %v2669 = vpack.c.b16 %v2657, %v2656
        %v2670 = vpack.c.b16 %v2659, %v2658
        %v2671 = vpack.c.b16 %v2661, %v2660
        %v2672 = vpack.c.b16 %v2663, %v2662
        %v2673 = vpack.c.b16 %v2665, %v2664
        %2682 = vmatpush.bf16.msra.mxu0 %v2673
        %2683 = vmatpush.bf16.msra.mxu0 %v2672
        %2684 = vmatpush.bf16.msra.mxu0 %v2671
        %2685 = vmatpush.bf16.msra.mxu0 %v2670
        %2686 = vmatpush.bf16.msra.mxu0 %v2669
        %2687 = vmatpush.bf16.msra.mxu0 %v2668
        %2688 = vmatpush.bf16.msra.mxu0 %v2667
        %2689 = vmatpush.bf16.msra.mxu0 %v2666
        %2690 = vmatmul.bf16.gmra.mxu0 %v2462
        %v2691 = vpop.f32.mrf.mxu0
        %v2692 = vadd.f32 0.0, %v2691
        %v2693 = vpop.f32.mrf.mxu0
        %v2694 = vadd.f32 0.0, %v2693
        %2695 = vmatmul.bf16.gmra.mxu0 %v2471
        %v2696 = vpop.f32.mrf.mxu0
        %v2697 = vadd.f32 0.0, %v2696
        %v2698 = vpop.f32.mrf.mxu0
        %v2699 = vadd.f32 0.0, %v2698
        %2700 = vmatmul.bf16.gmra.mxu0 %v2480
        %v2701 = vpop.f32.mrf.mxu0
        %v2702 = vadd.f32 0.0, %v2701
        %v2703 = vpop.f32.mrf.mxu0
        %v2704 = vadd.f32 0.0, %v2703
        %2705 = vmatmul.bf16.gmra.mxu0 %v2489
        %v2706 = vpop.f32.mrf.mxu0
        %v2707 = vadd.f32 0.0, %v2706
        %v2708 = vpop.f32.mrf.mxu0
        %v2709 = vadd.f32 0.0, %v2708
        %2710 = vmatmul.bf16.gmra.mxu0 %v2498
        %v2711 = vpop.f32.mrf.mxu0
        %v2712 = vadd.f32 0.0, %v2711
        %v2713 = vpop.f32.mrf.mxu0
        %v2714 = vadd.f32 0.0, %v2713
        %2715 = vmatmul.bf16.gmra.mxu0 %v2507
        %v2716 = vpop.f32.mrf.mxu0
        %v2717 = vadd.f32 0.0, %v2716
        %v2718 = vpop.f32.mrf.mxu0
        %v2719 = vadd.f32 0.0, %v2718
        %2720 = vmatmul.bf16.gmra.mxu0 %v2516
        %v2721 = vpop.f32.mrf.mxu0
        %v2722 = vadd.f32 0.0, %v2721
        %v2723 = vpop.f32.mrf.mxu0
        %v2724 = vadd.f32 0.0, %v2723
        %2725 = vmatmul.bf16.gmra.mxu0 %v2525
        %v2726 = vpop.f32.mrf.mxu0
        %v2727 = vadd.f32 0.0, %v2726
        %v2728 = vpop.f32.mrf.mxu0
        %v2729 = vadd.f32 0.0, %v2728
        %2730 = vmatmul.bf16.gmra.mxu0 %v2534
        %v2731 = vpop.f32.mrf.mxu0
        %v2732 = vadd.f32 0.0, %v2731
        %v2733 = vpop.f32.mrf.mxu0
        %v2734 = vadd.f32 0.0, %v2733
        %2735 = vmatmul.bf16.gmra.mxu0 %v2543
        %v2736 = vpop.f32.mrf.mxu0
        %v2737 = vadd.f32 0.0, %v2736
        %v2738 = vpop.f32.mrf.mxu0
        %v2739 = vadd.f32 0.0, %v2738
        %2740 = vmatmul.bf16.gmra.mxu0 %v2552
        %v2741 = vpop.f32.mrf.mxu0
        %v2742 = vadd.f32 0.0, %v2741
        %v2743 = vpop.f32.mrf.mxu0
        %v2744 = vadd.f32 0.0, %v2743
        %2745 = vmatmul.bf16.gmra.mxu0 %v2561
        %v2746 = vpop.f32.mrf.mxu0
        %v2747 = vadd.f32 0.0, %v2746
        %v2748 = vpop.f32.mrf.mxu0
        %v2749 = vadd.f32 0.0, %v2748
        %2750 = vmatmul.bf16.gmra.mxu0 %v2570
        %v2751 = vpop.f32.mrf.mxu0
        %v2752 = vadd.f32 0.0, %v2751
        %v2753 = vpop.f32.mrf.mxu0
        %v2754 = vadd.f32 0.0, %v2753
        %2755 = vmatmul.bf16.gmra.mxu0 %v2579
        %v2756 = vpop.f32.mrf.mxu0
        %v2757 = vadd.f32 0.0, %v2756
        %v2758 = vpop.f32.mrf.mxu0
        %v2759 = vadd.f32 0.0, %v2758
        %2760 = vmatmul.bf16.gmra.mxu0 %v2588
        %v2761 = vpop.f32.mrf.mxu0
        %v2762 = vadd.f32 0.0, %v2761
        %v2763 = vpop.f32.mrf.mxu0
        %v2764 = vadd.f32 0.0, %v2763
        %2765 = vmatmul.bf16.gmra.mxu0 %v2597
        %v2766 = vpop.f32.mrf.mxu0
        %v2767 = vadd.f32 0.0, %v2766
        %v2768 = vpop.f32.mrf.mxu0
        %v2769 = vadd.f32 0.0, %v2768
        %2770 = vmatmul.bf16.gmra.mxu0 %v2606
        %v2771 = vpop.f32.mrf.mxu0
        %v2772 = vadd.f32 0.0, %v2771
        %v2773 = vpop.f32.mrf.mxu0
        %v2774 = vadd.f32 0.0, %v2773
        %2775 = vmatmul.bf16.gmra.mxu0 %v2615
        %v2776 = vpop.f32.mrf.mxu0
        %v2777 = vadd.f32 0.0, %v2776
        %v2778 = vpop.f32.mrf.mxu0
        %v2779 = vadd.f32 0.0, %v2778
        %2780 = vdwg.mxu0
        %v2782 = vunpack.c.l.b16 %v2316
        %v2783 = vpack.c.b16 %v2782, %v2782
        %v2784 = vrot.slane %v2426, 2
        %v2785 = vrot.slane %v2427, 2
        %v2786 = vsel %vm1933, %v2784, %v2785
        %v2787 = vrot.slane %v2428, 2
        %v2788 = vsel %vm1933, %v2785, %v2787
        %v2789 = vrot.slane %v2429, 2
        %v2790 = vsel %vm1933, %v2787, %v2789
        %v2791 = vrot.slane %v2430, 2
        %v2792 = vsel %vm1933, %v2789, %v2791
        %v2793 = vrot.slane %v2431, 2
        %v2794 = vsel %vm1933, %v2791, %v2793
        %v2795 = vrot.slane %v2432, 2
        %v2796 = vsel %vm1933, %v2793, %v2795
        %v2797 = vrot.slane %v2433, 2
        %v2798 = vsel %vm1933, %v2795, %v2797
        %v2799 = vrot.slane %v2434, 2
        %v2800 = vsel %vm1933, %v2797, %v2799
        %v2801 = vrot.slane %v2435, 2
        %v2802 = vsel %vm1933, %v2799, %v2801
        %v2803 = vrot.slane %v2436, 2
        %v2804 = vsel %vm1933, %v2801, %v2803
        %v2805 = vrot.slane %v2437, 2
        %v2806 = vsel %vm1933, %v2803, %v2805
        %v2807 = vrot.slane %v2438, 2
        %v2808 = vsel %vm1933, %v2805, %v2807
        %v2809 = vrot.slane %v2439, 2
        %v2810 = vsel %vm1933, %v2807, %v2809
        %v2811 = vrot.slane %v2440, 2
        %v2812 = vsel %vm1933, %v2809, %v2811
        %v2813 = vrot.slane %v2441, 2
        %v2814 = vsel %vm1933, %v2811, %v2813
        %v2815 = vrot.slane %v2442, 2
        %v2816 = vsel %vm1933, %v2813, %v2815
        %v2817 = vrot.slane %v2443, 2
        %v2818 = vsel %vm1933, %v2815, %v2817
        %v2819 = vrot.slane %v2783, 2
        %v2820 = vsel %vm1933, %v2817, %v2819
        %v2855 = vunpack.c.l.b16 %v2318
        %v2856 = vunpack.c.l.b16 %v2319
        %v2857 = vunpack.c.l.b16 %v2320
        %v2858 = vunpack.c.l.b16 %v2321
        %v2859 = vunpack.c.l.b16 %v2322
        %v2860 = vunpack.c.l.b16 %v2323
        %v2861 = vunpack.c.l.b16 %v2324
        %v2862 = vunpack.c.l.b16 %v2325
        %v2863 = vunpack.c.l.b16 %v2326
        %v2864 = vunpack.c.l.b16 %v2327
        %v2865 = vunpack.c.l.b16 %v2328
        %v2866 = vunpack.c.l.b16 %v2329
        %v2867 = vunpack.c.l.b16 %v2330
        %v2868 = vunpack.c.l.b16 %v2331
        %v2869 = vunpack.c.l.b16 %v2332
        %v2870 = vunpack.c.l.b16 %v2333
        %v2871 = vpack.c.b16 %v2856, %v2855
        %v2872 = vpack.c.b16 %v2858, %v2857
        %v2873 = vpack.c.b16 %v2860, %v2859
        %v2874 = vpack.c.b16 %v2862, %v2861
        %v2875 = vpack.c.b16 %v2864, %v2863
        %v2876 = vpack.c.b16 %v2866, %v2865
        %v2877 = vpack.c.b16 %v2868, %v2867
        %v2878 = vpack.c.b16 %v2870, %v2869
        %2887 = vmatpush.bf16.msra.mxu0 %v2878
        %2888 = vmatpush.bf16.msra.mxu0 %v2877
        %2889 = vmatpush.bf16.msra.mxu0 %v2876
        %2890 = vmatpush.bf16.msra.mxu0 %v2875
        %2891 = vmatpush.bf16.msra.mxu0 %v2874
        %2892 = vmatpush.bf16.msra.mxu0 %v2873
        %2893 = vmatpush.bf16.msra.mxu0 %v2872
        %2894 = vmatpush.bf16.msra.mxu0 %v2871
        %2895 = vmatmul.bf16.gmra.mxu0 %v2786
        %v2896 = vpop.f32.mrf.mxu0
        %v2897 = vadd.f32 %v2692, %v2896
        %v2898 = vpop.f32.mrf.mxu0
        %v2899 = vadd.f32 %v2694, %v2898
        %2900 = vmatmul.bf16.gmra.mxu0 %v2788
        %v2901 = vpop.f32.mrf.mxu0
        %v2902 = vadd.f32 %v2697, %v2901
        %v2903 = vpop.f32.mrf.mxu0
        %v2904 = vadd.f32 %v2699, %v2903
        %2905 = vmatmul.bf16.gmra.mxu0 %v2790
        %v2906 = vpop.f32.mrf.mxu0
        %v2907 = vadd.f32 %v2702, %v2906
        %v2908 = vpop.f32.mrf.mxu0
        %v2909 = vadd.f32 %v2704, %v2908
        %2910 = vmatmul.bf16.gmra.mxu0 %v2792
        %v2911 = vpop.f32.mrf.mxu0
        %v2912 = vadd.f32 %v2707, %v2911
        %v2913 = vpop.f32.mrf.mxu0
        %v2914 = vadd.f32 %v2709, %v2913
        %2915 = vmatmul.bf16.gmra.mxu0 %v2794
        %v2916 = vpop.f32.mrf.mxu0
        %v2917 = vadd.f32 %v2712, %v2916
        %v2918 = vpop.f32.mrf.mxu0
        %v2919 = vadd.f32 %v2714, %v2918
        %2920 = vmatmul.bf16.gmra.mxu0 %v2796
        %v2921 = vpop.f32.mrf.mxu0
        %v2922 = vadd.f32 %v2717, %v2921
        %v2923 = vpop.f32.mrf.mxu0
        %v2924 = vadd.f32 %v2719, %v2923
        %2925 = vmatmul.bf16.gmra.mxu0 %v2798
        %v2926 = vpop.f32.mrf.mxu0
        %v2927 = vadd.f32 %v2722, %v2926
        %v2928 = vpop.f32.mrf.mxu0
        %v2929 = vadd.f32 %v2724, %v2928
        %2930 = vmatmul.bf16.gmra.mxu0 %v2800
        %v2931 = vpop.f32.mrf.mxu0
        %v2932 = vadd.f32 %v2727, %v2931
        %v2933 = vpop.f32.mrf.mxu0
        %v2934 = vadd.f32 %v2729, %v2933
        %2935 = vmatmul.bf16.gmra.mxu0 %v2802
        %v2936 = vpop.f32.mrf.mxu0
        %v2937 = vadd.f32 %v2732, %v2936
        %v2938 = vpop.f32.mrf.mxu0
        %v2939 = vadd.f32 %v2734, %v2938
        %2940 = vmatmul.bf16.gmra.mxu0 %v2804
        %v2941 = vpop.f32.mrf.mxu0
        %v2942 = vadd.f32 %v2737, %v2941
        %v2943 = vpop.f32.mrf.mxu0
        %v2944 = vadd.f32 %v2739, %v2943
        %2945 = vmatmul.bf16.gmra.mxu0 %v2806
        %v2946 = vpop.f32.mrf.mxu0
        %v2947 = vadd.f32 %v2742, %v2946
        %v2948 = vpop.f32.mrf.mxu0
        %v2949 = vadd.f32 %v2744, %v2948
        %2950 = vmatmul.bf16.gmra.mxu0 %v2808
        %v2951 = vpop.f32.mrf.mxu0
        %v2952 = vadd.f32 %v2747, %v2951
        %v2953 = vpop.f32.mrf.mxu0
        %v2954 = vadd.f32 %v2749, %v2953
        %2955 = vmatmul.bf16.gmra.mxu0 %v2810
        %v2956 = vpop.f32.mrf.mxu0
        %v2957 = vadd.f32 %v2752, %v2956
        %v2958 = vpop.f32.mrf.mxu0
        %v2959 = vadd.f32 %v2754, %v2958
        %2960 = vmatmul.bf16.gmra.mxu0 %v2812
        %v2961 = vpop.f32.mrf.mxu0
        %v2962 = vadd.f32 %v2757, %v2961
        %v2963 = vpop.f32.mrf.mxu0
        %v2964 = vadd.f32 %v2759, %v2963
        %2965 = vmatmul.bf16.gmra.mxu0 %v2814
        %v2966 = vpop.f32.mrf.mxu0
        %v2967 = vadd.f32 %v2762, %v2966
        %v2968 = vpop.f32.mrf.mxu0
        %v2969 = vadd.f32 %v2764, %v2968
        %2970 = vmatmul.bf16.gmra.mxu0 %v2816
        %v2971 = vpop.f32.mrf.mxu0
        %v2972 = vadd.f32 %v2767, %v2971
        %v2973 = vpop.f32.mrf.mxu0
        %v2974 = vadd.f32 %v2769, %v2973
        %2975 = vmatmul.bf16.gmra.mxu0 %v2818
        %v2976 = vpop.f32.mrf.mxu0
        %v2977 = vadd.f32 %v2772, %v2976
        %v2978 = vpop.f32.mrf.mxu0
        %v2979 = vadd.f32 %v2774, %v2978
        %2980 = vmatmul.bf16.gmra.mxu0 %v2820
        %v2981 = vpop.f32.mrf.mxu0
        %v2982 = vadd.f32 %v2777, %v2981
        %v2983 = vpop.f32.mrf.mxu0
        %v2984 = vadd.f32 %v2779, %v2983
        %2985 = vdwg.mxu0
        %v2986 = vld [vmem:[%s266 + $0x10] sm:$0x8]
        %s2987 = scalar_lea.vmem %s1, 512
        %v2988 = vld [vmem:[%s2987] sm:$0xf]
        %v2989 = vld [vmem:[%s2987 + $0x4] sm:$0xf]
        %v2990 = vld [vmem:[%s2987 + $0x8] sm:$0xf]
        %v2991 = vld [vmem:[%s2987 + $0xc] sm:$0xf]
        %v2992 = vld [vmem:[%s2987 + $0x10] sm:$0xf]
        %v2993 = vld [vmem:[%s2987 + $0x14] sm:$0xf]
        %v2994 = vld [vmem:[%s2987 + $0x18] sm:$0xf]
        %v2995 = vld [vmem:[%s2987 + $0x1c] sm:$0xf]
        %v2996 = vld [vmem:[%s2987 + $0x20] sm:$0xf]
        %v2997 = vld [vmem:[%s2987 + $0x24] sm:$0xf]
        %v2998 = vld [vmem:[%s2987 + $0x28] sm:$0xf]
        %v2999 = vld [vmem:[%s2987 + $0x2c] sm:$0xf]
        %v3000 = vld [vmem:[%s2987 + $0x30] sm:$0xf]
        %v3001 = vld [vmem:[%s2987 + $0x34] sm:$0xf]
        %v3002 = vld [vmem:[%s2987 + $0x38] sm:$0xf]
        %v3003 = vld [vmem:[%s2987 + $0x3c] sm:$0xf]
        %v3005 = vunpack.c.l.b16 %v2986
        %v3006 = vpack.c.b16 %v2390, %v3005
        %vm3007 = vcmask 1044480
        %v3008 = vrot.slane %v3006, 3
        %v3009 = vrot.slane %v2427, 3
        %v3010 = vsel %vm3007, %v3008, %v3009
        %v3011 = vrot.slane %v2428, 3
        %v3012 = vsel %vm3007, %v3009, %v3011
        %v3013 = vrot.slane %v2429, 3
        %v3014 = vsel %vm3007, %v3011, %v3013
        %v3015 = vrot.slane %v2430, 3
        %v3016 = vsel %vm3007, %v3013, %v3015
        %v3017 = vrot.slane %v2431, 3
        %v3018 = vsel %vm3007, %v3015, %v3017
        %v3019 = vrot.slane %v2432, 3
        %v3020 = vsel %vm3007, %v3017, %v3019
        %v3021 = vrot.slane %v2433, 3
        %v3022 = vsel %vm3007, %v3019, %v3021
        %v3023 = vrot.slane %v2434, 3
        %v3024 = vsel %vm3007, %v3021, %v3023
        %v3025 = vrot.slane %v2435, 3
        %v3026 = vsel %vm3007, %v3023, %v3025
        %v3027 = vrot.slane %v2436, 3
        %v3028 = vsel %vm3007, %v3025, %v3027
        %v3029 = vrot.slane %v2437, 3
        %v3030 = vsel %vm3007, %v3027, %v3029
        %v3031 = vrot.slane %v2438, 3
        %v3032 = vsel %vm3007, %v3029, %v3031
        %v3033 = vrot.slane %v2439, 3
        %v3034 = vsel %vm3007, %v3031, %v3033
        %v3035 = vrot.slane %v2440, 3
        %v3036 = vsel %vm3007, %v3033, %v3035
        %v3037 = vrot.slane %v2441, 3
        %v3038 = vsel %vm3007, %v3035, %v3037
        %v3039 = vrot.slane %v2442, 3
        %v3040 = vsel %vm3007, %v3037, %v3039
        %v3041 = vrot.slane %v2443, 3
        %v3042 = vsel %vm3007, %v3039, %v3041
        %v3043 = vrot.slane %v2444, 3
        %v3044 = vsel %vm3007, %v3041, %v3043
        %v3079 = vunpack.c.l.b16 %v2988
        %v3080 = vunpack.c.l.b16 %v2989
        %v3081 = vunpack.c.l.b16 %v2990
        %v3082 = vunpack.c.l.b16 %v2991
        %v3083 = vunpack.c.l.b16 %v2992
        %v3084 = vunpack.c.l.b16 %v2993
        %v3085 = vunpack.c.l.b16 %v2994
        %v3086 = vunpack.c.l.b16 %v2995
        %v3087 = vunpack.c.l.b16 %v2996
        %v3088 = vunpack.c.l.b16 %v2997
        %v3089 = vunpack.c.l.b16 %v2998
        %v3090 = vunpack.c.l.b16 %v2999
        %v3091 = vunpack.c.l.b16 %v3000
        %v3092 = vunpack.c.l.b16 %v3001
        %v3093 = vunpack.c.l.b16 %v3002
        %v3094 = vunpack.c.l.b16 %v3003
        %v3095 = vpack.c.b16 %v3080, %v3079
        %v3096 = vpack.c.b16 %v3082, %v3081
        %v3097 = vpack.c.b16 %v3084, %v3083
        %v3098 = vpack.c.b16 %v3086, %v3085
        %v3099 = vpack.c.b16 %v3088, %v3087
        %v3100 = vpack.c.b16 %v3090, %v3089
        %v3101 = vpack.c.b16 %v3092, %v3091
        %v3102 = vpack.c.b16 %v3094, %v3093
        %3111 = vmatpush.bf16.msra.mxu0 %v3102
        %3112 = vmatpush.bf16.msra.mxu0 %v3101
        %3113 = vmatpush.bf16.msra.mxu0 %v3100
        %3114 = vmatpush.bf16.msra.mxu0 %v3099
        %3115 = vmatpush.bf16.msra.mxu0 %v3098
        %3116 = vmatpush.bf16.msra.mxu0 %v3097
        %3117 = vmatpush.bf16.msra.mxu0 %v3096
        %3118 = vmatpush.bf16.msra.mxu0 %v3095
        %3119 = vmatmul.bf16.gmra.mxu0 %v3010
        %v3120 = vpop.f32.mrf.mxu0
        %v3121 = vadd.f32 0.0, %v3120
        %v3122 = vpop.f32.mrf.mxu0
        %v3123 = vadd.f32 0.0, %v3122
        %3124 = vmatmul.bf16.gmra.mxu0 %v3012
        %v3125 = vpop.f32.mrf.mxu0
        %v3126 = vadd.f32 0.0, %v3125
        %v3127 = vpop.f32.mrf.mxu0
        %v3128 = vadd.f32 0.0, %v3127
        %3129 = vmatmul.bf16.gmra.mxu0 %v3014
        %v3130 = vpop.f32.mrf.mxu0
        %v3131 = vadd.f32 0.0, %v3130
        %v3132 = vpop.f32.mrf.mxu0
        %v3133 = vadd.f32 0.0, %v3132
        %3134 = vmatmul.bf16.gmra.mxu0 %v3016
        %v3135 = vpop.f32.mrf.mxu0
        %v3136 = vadd.f32 0.0, %v3135
        %v3137 = vpop.f32.mrf.mxu0
        %v3138 = vadd.f32 0.0, %v3137
        %3139 = vmatmul.bf16.gmra.mxu0 %v3018
        %v3140 = vpop.f32.mrf.mxu0
        %v3141 = vadd.f32 0.0, %v3140
        %v3142 = vpop.f32.mrf.mxu0
        %v3143 = vadd.f32 0.0, %v3142
        %3144 = vmatmul.bf16.gmra.mxu0 %v3020
        %v3145 = vpop.f32.mrf.mxu0
        %v3146 = vadd.f32 0.0, %v3145
        %v3147 = vpop.f32.mrf.mxu0
        %v3148 = vadd.f32 0.0, %v3147
        %3149 = vmatmul.bf16.gmra.mxu0 %v3022
        %v3150 = vpop.f32.mrf.mxu0
        %v3151 = vadd.f32 0.0, %v3150
        %v3152 = vpop.f32.mrf.mxu0
        %v3153 = vadd.f32 0.0, %v3152
        %3154 = vmatmul.bf16.gmra.mxu0 %v3024
        %v3155 = vpop.f32.mrf.mxu0
        %v3156 = vadd.f32 0.0, %v3155
        %v3157 = vpop.f32.mrf.mxu0
        %v3158 = vadd.f32 0.0, %v3157
        %3159 = vmatmul.bf16.gmra.mxu0 %v3026
        %v3160 = vpop.f32.mrf.mxu0
        %v3161 = vadd.f32 0.0, %v3160
        %v3162 = vpop.f32.mrf.mxu0
        %v3163 = vadd.f32 0.0, %v3162
        %3164 = vmatmul.bf16.gmra.mxu0 %v3028
        %v3165 = vpop.f32.mrf.mxu0
        %v3166 = vadd.f32 0.0, %v3165
        %v3167 = vpop.f32.mrf.mxu0
        %v3168 = vadd.f32 0.0, %v3167
        %3169 = vmatmul.bf16.gmra.mxu0 %v3030
        %v3170 = vpop.f32.mrf.mxu0
        %v3171 = vadd.f32 0.0, %v3170
        %v3172 = vpop.f32.mrf.mxu0
        %v3173 = vadd.f32 0.0, %v3172
        %3174 = vmatmul.bf16.gmra.mxu0 %v3032
        %v3175 = vpop.f32.mrf.mxu0
        %v3176 = vadd.f32 0.0, %v3175
        %v3177 = vpop.f32.mrf.mxu0
        %v3178 = vadd.f32 0.0, %v3177
        %3179 = vmatmul.bf16.gmra.mxu0 %v3034
        %v3180 = vpop.f32.mrf.mxu0
        %v3181 = vadd.f32 0.0, %v3180
        %v3182 = vpop.f32.mrf.mxu0
        %v3183 = vadd.f32 0.0, %v3182
        %3184 = vmatmul.bf16.gmra.mxu0 %v3036
        %v3185 = vpop.f32.mrf.mxu0
        %v3186 = vadd.f32 0.0, %v3185
        %v3187 = vpop.f32.mrf.mxu0
        %v3188 = vadd.f32 0.0, %v3187
        %3189 = vmatmul.bf16.gmra.mxu0 %v3038
        %v3190 = vpop.f32.mrf.mxu0
        %v3191 = vadd.f32 0.0, %v3190
        %v3192 = vpop.f32.mrf.mxu0
        %v3193 = vadd.f32 0.0, %v3192
        %3194 = vmatmul.bf16.gmra.mxu0 %v3040
        %v3195 = vpop.f32.mrf.mxu0
        %v3196 = vadd.f32 0.0, %v3195
        %v3197 = vpop.f32.mrf.mxu0
        %v3198 = vadd.f32 0.0, %v3197
        %3199 = vmatmul.bf16.gmra.mxu0 %v3042
        %v3200 = vpop.f32.mrf.mxu0
        %v3201 = vadd.f32 0.0, %v3200
        %v3202 = vpop.f32.mrf.mxu0
        %v3203 = vadd.f32 0.0, %v3202
        %3204 = vmatmul.bf16.gmra.mxu0 %v3044
        %v3205 = vpop.f32.mrf.mxu0
        %v3206 = vadd.f32 0.0, %v3205
        %v3207 = vpop.f32.mrf.mxu0
        %v3208 = vadd.f32 0.0, %v3207
        %3209 = vdwg.mxu0
        %v3210 = vadd.f32 %v2897, %v3121
        %v3211 = vadd.f32 %v2899, %v3123
        %v3212 = vadd.f32 %v2902, %v3126
        %v3213 = vadd.f32 %v2904, %v3128
        %v3214 = vadd.f32 %v2907, %v3131
        %v3215 = vadd.f32 %v2909, %v3133
        %v3216 = vadd.f32 %v2912, %v3136
        %v3217 = vadd.f32 %v2914, %v3138
        %v3218 = vadd.f32 %v2917, %v3141
        %v3219 = vadd.f32 %v2919, %v3143
        %v3220 = vadd.f32 %v2922, %v3146
        %v3221 = vadd.f32 %v2924, %v3148
        %v3222 = vadd.f32 %v2927, %v3151
        %v3223 = vadd.f32 %v2929, %v3153
        %v3224 = vadd.f32 %v2932, %v3156
        %v3225 = vadd.f32 %v2934, %v3158
        %v3226 = vadd.f32 %v2937, %v3161
        %v3227 = vadd.f32 %v2939, %v3163
        %v3228 = vadd.f32 %v2942, %v3166
        %v3229 = vadd.f32 %v2944, %v3168
        %v3230 = vadd.f32 %v2947, %v3171
        %v3231 = vadd.f32 %v2949, %v3173
        %v3232 = vadd.f32 %v2952, %v3176
        %v3233 = vadd.f32 %v2954, %v3178
        %v3234 = vadd.f32 %v2957, %v3181
        %v3235 = vadd.f32 %v2959, %v3183
        %v3236 = vadd.f32 %v2962, %v3186
        %v3237 = vadd.f32 %v2964, %v3188
        %v3238 = vadd.f32 %v2967, %v3191
        %v3239 = vadd.f32 %v2969, %v3193
        %v3240 = vadd.f32 %v2972, %v3196
        %v3241 = vadd.f32 %v2974, %v3198
        %v3242 = vadd.f32 %v2977, %v3201
        %v3243 = vadd.f32 %v2979, %v3203
        %v3244 = vadd.f32 %v2982, %v3206
        %v3245 = vadd.f32 %v2984, %v3208
        %v3246 = vld [vmem:[#allocation3] sm:$0xff]
        %v3247 = vld [vmem:[#allocation3 + $0x8] sm:$0xff]
        %v3248 = vld [vmem:[#allocation3 + $0x10] sm:$0xff]
        %v3249 = vld [vmem:[#allocation3 + $0x18] sm:$0xff]
        %v3250 = vld [vmem:[#allocation3 + $0x20] sm:$0xff]
        %v3251 = vld [vmem:[#allocation3 + $0x28] sm:$0xff]
        %v3252 = vld [vmem:[#allocation3 + $0x30] sm:$0xff]
        %v3253 = vld [vmem:[#allocation3 + $0x38] sm:$0xff]
        %v3254 = vld [vmem:[#allocation3 + $0x40] sm:$0xff]
        %v3255 = vld [vmem:[#allocation3 + $0x48] sm:$0xff]
        %v3256 = vld [vmem:[#allocation3 + $0x50] sm:$0xff]
        %v3257 = vld [vmem:[#allocation3 + $0x58] sm:$0xff]
        %v3258 = vld [vmem:[#allocation3 + $0x60] sm:$0xff]
        %v3259 = vld [vmem:[#allocation3 + $0x68] sm:$0xff]
        %v3260 = vld [vmem:[#allocation3 + $0x70] sm:$0xff]
        %v3261 = vld [vmem:[#allocation3 + $0x78] sm:$0xff]
        %v3262 = vld [vmem:[#allocation3 + $0x80] sm:$0xff]
        %v3263 = vld [vmem:[#allocation3 + $0x88] sm:$0xff]
        %v3264 = vld [vmem:[#allocation3 + $0x90] sm:$0xff]
        %v3265 = vld [vmem:[#allocation3 + $0x98] sm:$0xff]
        %v3266 = vld [vmem:[#allocation3 + $0xa0] sm:$0xff]
        %v3267 = vld [vmem:[#allocation3 + $0xa8] sm:$0xff]
        %v3268 = vld [vmem:[#allocation3 + $0xb0] sm:$0xff]
        %v3269 = vld [vmem:[#allocation3 + $0xb8] sm:$0xff]
        %v3270 = vld [vmem:[#allocation3 + $0xc0] sm:$0xff]
        %v3271 = vld [vmem:[#allocation3 + $0xc8] sm:$0xff]
        %v3272 = vld [vmem:[#allocation3 + $0xd0] sm:$0xff]
        %v3273 = vld [vmem:[#allocation3 + $0xd8] sm:$0xff]
        %v3274 = vld [vmem:[#allocation3 + $0xe0] sm:$0xff]
        %v3275 = vld [vmem:[#allocation3 + $0xe8] sm:$0xff]
        %v3276 = vld [vmem:[#allocation3 + $0xf0] sm:$0xff]
        %v3277 = vld [vmem:[#allocation3 + $0xf8] sm:$0xff]
        %v3278 = vld [vmem:[#allocation3 + $0x100] sm:$0xff]
        %v3279 = vld [vmem:[#allocation3 + $0x108] sm:$0xff]
        %v3280 = vld [vmem:[#allocation3 + $0x110] sm:$0xff]
        %v3281 = vld [vmem:[#allocation3 + $0x118] sm:$0xff]
        %v3282 = vadd.f32 %v3246, %v3210
        %v3283 = vadd.f32 %v3247, %v3211
        %v3284 = vadd.f32 %v3248, %v3212
        %v3285 = vadd.f32 %v3249, %v3213
        %v3286 = vadd.f32 %v3250, %v3214
        %v3287 = vadd.f32 %v3251, %v3215
        %v3288 = vadd.f32 %v3252, %v3216
        %v3289 = vadd.f32 %v3253, %v3217
        %v3290 = vadd.f32 %v3254, %v3218
        %v3291 = vadd.f32 %v3255, %v3219
        %v3292 = vadd.f32 %v3256, %v3220
        %v3293 = vadd.f32 %v3257, %v3221
        %v3294 = vadd.f32 %v3258, %v3222
        %v3295 = vadd.f32 %v3259, %v3223
        %v3296 = vadd.f32 %v3260, %v3224
        %v3297 = vadd.f32 %v3261, %v3225
        %v3298 = vadd.f32 %v3262, %v3226
        %v3299 = vadd.f32 %v3263, %v3227
        %v3300 = vadd.f32 %v3264, %v3228
        %v3301 = vadd.f32 %v3265, %v3229
        %v3302 = vadd.f32 %v3266, %v3230
        %v3303 = vadd.f32 %v3267, %v3231
        %v3304 = vadd.f32 %v3268, %v3232
        %v3305 = vadd.f32 %v3269, %v3233
        %v3306 = vadd.f32 %v3270, %v3234
        %v3307 = vadd.f32 %v3271, %v3235
        %v3308 = vadd.f32 %v3272, %v3236
        %v3309 = vadd.f32 %v3273, %v3237
        %v3310 = vadd.f32 %v3274, %v3238
        %v3311 = vadd.f32 %v3275, %v3239
        %v3312 = vadd.f32 %v3276, %v3240
        %v3313 = vadd.f32 %v3277, %v3241
        %v3314 = vadd.f32 %v3278, %v3242
        %v3315 = vadd.f32 %v3279, %v3243
        %v3316 = vadd.f32 %v3280, %v3244
        %v3317 = vadd.f32 %v3281, %v3245
        %3318 = vst [vmem:[#allocation3] sm:$0xff] %v3282
        %3319 = vst [vmem:[#allocation3 + $0x8] sm:$0xff] %v3283
        %3320 = vst [vmem:[#allocation3 + $0x10] sm:$0xff] %v3284
        %3321 = vst [vmem:[#allocation3 + $0x18] sm:$0xff] %v3285
        %3322 = vst [vmem:[#allocation3 + $0x20] sm:$0xff] %v3286
        %3323 = vst [vmem:[#allocation3 + $0x28] sm:$0xff] %v3287
        %3324 = vst [vmem:[#allocation3 + $0x30] sm:$0xff] %v3288
        %3325 = vst [vmem:[#allocation3 + $0x38] sm:$0xff] %v3289
        %3326 = vst [vmem:[#allocation3 + $0x40] sm:$0xff] %v3290
        %3327 = vst [vmem:[#allocation3 + $0x48] sm:$0xff] %v3291
        %3328 = vst [vmem:[#allocation3 + $0x50] sm:$0xff] %v3292
        %3329 = vst [vmem:[#allocation3 + $0x58] sm:$0xff] %v3293
        %3330 = vst [vmem:[#allocation3 + $0x60] sm:$0xff] %v3294
        %3331 = vst [vmem:[#allocation3 + $0x68] sm:$0xff] %v3295
        %3332 = vst [vmem:[#allocation3 + $0x70] sm:$0xff] %v3296
        %3333 = vst [vmem:[#allocation3 + $0x78] sm:$0xff] %v3297
        %3334 = vst [vmem:[#allocation3 + $0x80] sm:$0xff] %v3298
        %3335 = vst [vmem:[#allocation3 + $0x88] sm:$0xff] %v3299
        %3336 = vst [vmem:[#allocation3 + $0x90] sm:$0xff] %v3300
        %3337 = vst [vmem:[#allocation3 + $0x98] sm:$0xff] %v3301
        %3338 = vst [vmem:[#allocation3 + $0xa0] sm:$0xff] %v3302
        %3339 = vst [vmem:[#allocation3 + $0xa8] sm:$0xff] %v3303
        %3340 = vst [vmem:[#allocation3 + $0xb0] sm:$0xff] %v3304
        %3341 = vst [vmem:[#allocation3 + $0xb8] sm:$0xff] %v3305
        %3342 = vst [vmem:[#allocation3 + $0xc0] sm:$0xff] %v3306
        %3343 = vst [vmem:[#allocation3 + $0xc8] sm:$0xff] %v3307
        %3344 = vst [vmem:[#allocation3 + $0xd0] sm:$0xff] %v3308
        %3345 = vst [vmem:[#allocation3 + $0xd8] sm:$0xff] %v3309
        %3346 = vst [vmem:[#allocation3 + $0xe0] sm:$0xff] %v3310
        %3347 = vst [vmem:[#allocation3 + $0xe8] sm:$0xff] %v3311
        %3348 = vst [vmem:[#allocation3 + $0xf0] sm:$0xff] %v3312
        %3349 = vst [vmem:[#allocation3 + $0xf8] sm:$0xff] %v3313
        %3350 = vst [vmem:[#allocation3 + $0x100] sm:$0xff] %v3314
        %3351 = vst [vmem:[#allocation3 + $0x108] sm:$0xff] %v3315
        %3352 = vst [vmem:[#allocation3 + $0x110] sm:$0xff] %v3316
        %3353 = vst [vmem:[#allocation3 + $0x118] sm:$0xff] %v3317
        %v3354 = vld [vmem:[#allocation3] sm:$0xff]
        %v3355 = vld [vmem:[#allocation3 + $0x8] sm:$0xff]
        %v3356 = vld [vmem:[#allocation3 + $0x10] sm:$0xff]
        %v3357 = vld [vmem:[#allocation3 + $0x18] sm:$0xff]
        %v3358 = vld [vmem:[#allocation3 + $0x20] sm:$0xff]
        %v3359 = vld [vmem:[#allocation3 + $0x28] sm:$0xff]
        %v3360 = vld [vmem:[#allocation3 + $0x30] sm:$0xff]
        %v3361 = vld [vmem:[#allocation3 + $0x38] sm:$0xff]
        %v3362 = vld [vmem:[#allocation3 + $0x40] sm:$0xff]
        %v3363 = vld [vmem:[#allocation3 + $0x48] sm:$0xff]
        %v3364 = vld [vmem:[#allocation3 + $0x50] sm:$0xff]
        %v3365 = vld [vmem:[#allocation3 + $0x58] sm:$0xff]
        %v3366 = vld [vmem:[#allocation3 + $0x60] sm:$0xff]
        %v3367 = vld [vmem:[#allocation3 + $0x68] sm:$0xff]
        %v3368 = vld [vmem:[#allocation3 + $0x70] sm:$0xff]
        %v3369 = vld [vmem:[#allocation3 + $0x78] sm:$0xff]
        %v3370 = vld [vmem:[#allocation3 + $0x80] sm:$0xff]
        %v3371 = vld [vmem:[#allocation3 + $0x88] sm:$0xff]
        %v3372 = vld [vmem:[#allocation3 + $0x90] sm:$0xff]
        %v3373 = vld [vmem:[#allocation3 + $0x98] sm:$0xff]
        %v3374 = vld [vmem:[#allocation3 + $0xa0] sm:$0xff]
        %v3375 = vld [vmem:[#allocation3 + $0xa8] sm:$0xff]
        %v3376 = vld [vmem:[#allocation3 + $0xb0] sm:$0xff]
        %v3377 = vld [vmem:[#allocation3 + $0xb8] sm:$0xff]
        %v3378 = vld [vmem:[#allocation3 + $0xc0] sm:$0xff]
        %v3379 = vld [vmem:[#allocation3 + $0xc8] sm:$0xff]
        %v3380 = vld [vmem:[#allocation3 + $0xd0] sm:$0xff]
        %v3381 = vld [vmem:[#allocation3 + $0xd8] sm:$0xff]
        %v3382 = vld [vmem:[#allocation3 + $0xe0] sm:$0xff]
        %v3383 = vld [vmem:[#allocation3 + $0xe8] sm:$0xff]
        %v3384 = vld [vmem:[#allocation3 + $0xf0] sm:$0xff]
        %v3385 = vld [vmem:[#allocation3 + $0xf8] sm:$0xff]
        %v3386 = vld [vmem:[#allocation3 + $0x100] sm:$0xff]
        %v3387 = vld [vmem:[#allocation3 + $0x108] sm:$0xff]
        %v3388 = vld [vmem:[#allocation3 + $0x110] sm:$0xff]
        %v3389 = vld [vmem:[#allocation3 + $0x118] sm:$0xff]
        %v3390 = vld [vmem:[%s4] sm:$0x1]
        %v3391 = vperm.slane %v3390, 0
        %v3392 = vadd.f32 %v3354, %v3391
        %v3393 = vadd.f32 %v3355, %v3391
        %v3394 = vadd.f32 %v3356, %v3391
        %v3395 = vadd.f32 %v3357, %v3391
        %v3396 = vadd.f32 %v3358, %v3391
        %v3397 = vadd.f32 %v3359, %v3391
        %v3398 = vadd.f32 %v3360, %v3391
        %v3399 = vadd.f32 %v3361, %v3391
        %v3400 = vadd.f32 %v3362, %v3391
        %v3401 = vadd.f32 %v3363, %v3391
        %v3402 = vadd.f32 %v3364, %v3391
        %v3403 = vadd.f32 %v3365, %v3391
        %v3404 = vadd.f32 %v3366, %v3391
        %v3405 = vadd.f32 %v3367, %v3391
        %v3406 = vadd.f32 %v3368, %v3391
        %v3407 = vadd.f32 %v3369, %v3391
        %v3408 = vadd.f32 %v3370, %v3391
        %v3409 = vadd.f32 %v3371, %v3391
        %v3410 = vadd.f32 %v3372, %v3391
        %v3411 = vadd.f32 %v3373, %v3391
        %v3412 = vadd.f32 %v3374, %v3391
        %v3413 = vadd.f32 %v3375, %v3391
        %v3414 = vadd.f32 %v3376, %v3391
        %v3415 = vadd.f32 %v3377, %v3391
        %v3416 = vadd.f32 %v3378, %v3391
        %v3417 = vadd.f32 %v3379, %v3391
        %v3418 = vadd.f32 %v3380, %v3391
        %v3419 = vadd.f32 %v3381, %v3391
        %v3420 = vadd.f32 %v3382, %v3391
        %v3421 = vadd.f32 %v3383, %v3391
        %v3422 = vadd.f32 %v3384, %v3391
        %v3423 = vadd.f32 %v3385, %v3391
        %v3424 = vadd.f32 %v3386, %v3391
        %v3425 = vadd.f32 %v3387, %v3391
        %v3426 = vadd.f32 %v3388, %v3391
        %v3427 = vadd.f32 %v3389, %v3391
        %v3428 = vmax.f32 %v3392, 0.0
        %v3429 = vmax.f32 %v3393, 0.0
        %v3430 = vmax.f32 %v3394, 0.0
        %v3431 = vmax.f32 %v3395, 0.0
        %v3432 = vmax.f32 %v3396, 0.0
        %v3433 = vmax.f32 %v3397, 0.0
        %v3434 = vmax.f32 %v3398, 0.0
        %v3435 = vmax.f32 %v3399, 0.0
        %v3436 = vmax.f32 %v3400, 0.0
        %v3437 = vmax.f32 %v3401, 0.0
        %v3438 = vmax.f32 %v3402, 0.0
        %v3439 = vmax.f32 %v3403, 0.0
        %v3440 = vmax.f32 %v3404, 0.0
        %v3441 = vmax.f32 %v3405, 0.0
        %v3442 = vmax.f32 %v3406, 0.0
        %v3443 = vmax.f32 %v3407, 0.0
        %v3444 = vmax.f32 %v3408, 0.0
        %v3445 = vmax.f32 %v3409, 0.0
        %v3446 = vmax.f32 %v3410, 0.0
        %v3447 = vmax.f32 %v3411, 0.0
        %v3448 = vmax.f32 %v3412, 0.0
        %v3449 = vmax.f32 %v3413, 0.0
        %v3450 = vmax.f32 %v3414, 0.0
        %v3451 = vmax.f32 %v3415, 0.0
        %v3452 = vmax.f32 %v3416, 0.0
        %v3453 = vmax.f32 %v3417, 0.0
        %v3454 = vmax.f32 %v3418, 0.0
        %v3455 = vmax.f32 %v3419, 0.0
        %v3456 = vmax.f32 %v3420, 0.0
        %v3457 = vmax.f32 %v3421, 0.0
        %v3458 = vmax.f32 %v3422, 0.0
        %v3459 = vmax.f32 %v3423, 0.0
        %v3460 = vmax.f32 %v3424, 0.0
        %v3461 = vmax.f32 %v3425, 0.0
        %v3462 = vmax.f32 %v3426, 0.0
        %v3463 = vmax.f32 %v3427, 0.0
        %v3464 = vld [vmem:[%s5] sm:$0xff]
        %v3465 = vld [vmem:[%s5 + $0x8] sm:$0xff]
        %v3466 = vld [vmem:[%s5 + $0x10] sm:$0xff]
        %v3467 = vld [vmem:[%s5 + $0x18] sm:$0xff]
        %v3468 = vld [vmem:[%s5 + $0x20] sm:$0xff]
        %v3469 = vld [vmem:[%s5 + $0x28] sm:$0xff]
        %v3470 = vld [vmem:[%s5 + $0x30] sm:$0xff]
        %v3471 = vld [vmem:[%s5 + $0x38] sm:$0xff]
        %v3472 = vld [vmem:[%s5 + $0x40] sm:$0xff]
        %v3473 = vld [vmem:[%s5 + $0x48] sm:$0xff]
        %v3474 = vld [vmem:[%s5 + $0x50] sm:$0xff]
        %v3475 = vld [vmem:[%s5 + $0x58] sm:$0xff]
        %v3476 = vld [vmem:[%s5 + $0x60] sm:$0xff]
        %v3477 = vld [vmem:[%s5 + $0x68] sm:$0xff]
        %v3478 = vld [vmem:[%s5 + $0x70] sm:$0xff]
        %v3479 = vld [vmem:[%s5 + $0x78] sm:$0xff]
        %v3480 = vld [vmem:[%s5 + $0x80] sm:$0xff]
        %v3481 = vld [vmem:[%s5 + $0x88] sm:$0xff]
        %v3482 = vld [vmem:[%s5 + $0x90] sm:$0xff]
        %v3483 = vld [vmem:[%s5 + $0x98] sm:$0xff]
        %v3484 = vld [vmem:[%s5 + $0xa0] sm:$0xff]
        %v3485 = vld [vmem:[%s5 + $0xa8] sm:$0xff]
        %v3486 = vld [vmem:[%s5 + $0xb0] sm:$0xff]
        %v3487 = vld [vmem:[%s5 + $0xb8] sm:$0xff]
        %v3488 = vld [vmem:[%s5 + $0xc0] sm:$0xff]
        %v3489 = vld [vmem:[%s5 + $0xc8] sm:$0xff]
        %v3490 = vld [vmem:[%s5 + $0xd0] sm:$0xff]
        %v3491 = vld [vmem:[%s5 + $0xd8] sm:$0xff]
        %v3492 = vld [vmem:[%s5 + $0xe0] sm:$0xff]
        %v3493 = vld [vmem:[%s5 + $0xe8] sm:$0xff]
        %v3494 = vld [vmem:[%s5 + $0xf0] sm:$0xff]
        %v3495 = vld [vmem:[%s5 + $0xf8] sm:$0xff]
        %v3496 = vld [vmem:[%s5 + $0x100] sm:$0xff]
        %v3497 = vld [vmem:[%s5 + $0x108] sm:$0xff]
        %v3498 = vld [vmem:[%s5 + $0x110] sm:$0xff]
        %v3499 = vld [vmem:[%s5 + $0x118] sm:$0xff]
        %3501 = vset.pattern.permute.xlu0 0
        %3502 = vperm.xlu0 %3501, %v3464
        %v3503 = vpop.permute.xlu0 %3502
        %3506 = vset.pattern.permute.xlu0 0
        %3507 = vperm.xlu0 %3506, %v3465
        %v3508 = vpop.permute.xlu0 %3507
        %3511 = vset.pattern.permute.xlu0 0
        %3512 = vperm.xlu0 %3511, %v3466
        %v3513 = vpop.permute.xlu0 %3512
        %3516 = vset.pattern.permute.xlu0 0
        %3517 = vperm.xlu0 %3516, %v3467
        %v3518 = vpop.permute.xlu0 %3517
        %3521 = vset.pattern.permute.xlu0 0
        %3522 = vperm.xlu0 %3521, %v3468
        %v3523 = vpop.permute.xlu0 %3522
        %3526 = vset.pattern.permute.xlu0 0
        %3527 = vperm.xlu0 %3526, %v3469
        %v3528 = vpop.permute.xlu0 %3527
        %3531 = vset.pattern.permute.xlu0 0
        %3532 = vperm.xlu0 %3531, %v3470
        %v3533 = vpop.permute.xlu0 %3532
        %3536 = vset.pattern.permute.xlu0 0
        %3537 = vperm.xlu0 %3536, %v3471
        %v3538 = vpop.permute.xlu0 %3537
        %3541 = vset.pattern.permute.xlu0 0
        %3542 = vperm.xlu0 %3541, %v3472
        %v3543 = vpop.permute.xlu0 %3542
        %3546 = vset.pattern.permute.xlu0 0
        %3547 = vperm.xlu0 %3546, %v3473
        %v3548 = vpop.permute.xlu0 %3547
        %3551 = vset.pattern.permute.xlu0 0
        %3552 = vperm.xlu0 %3551, %v3474
        %v3553 = vpop.permute.xlu0 %3552
        %3556 = vset.pattern.permute.xlu0 0
        %3557 = vperm.xlu0 %3556, %v3475
        %v3558 = vpop.permute.xlu0 %3557
        %3561 = vset.pattern.permute.xlu0 0
        %3562 = vperm.xlu0 %3561, %v3476
        %v3563 = vpop.permute.xlu0 %3562
        %3566 = vset.pattern.permute.xlu0 0
        %3567 = vperm.xlu0 %3566, %v3477
        %v3568 = vpop.permute.xlu0 %3567
        %3571 = vset.pattern.permute.xlu0 0
        %3572 = vperm.xlu0 %3571, %v3478
        %v3573 = vpop.permute.xlu0 %3572
        %3576 = vset.pattern.permute.xlu0 0
        %3577 = vperm.xlu0 %3576, %v3479
        %v3578 = vpop.permute.xlu0 %3577
        %3581 = vset.pattern.permute.xlu0 0
        %3582 = vperm.xlu0 %3581, %v3480
        %v3583 = vpop.permute.xlu0 %3582
        %3586 = vset.pattern.permute.xlu0 0
        %3587 = vperm.xlu0 %3586, %v3481
        %v3588 = vpop.permute.xlu0 %3587
        %3591 = vset.pattern.permute.xlu0 0
        %3592 = vperm.xlu0 %3591, %v3482
        %v3593 = vpop.permute.xlu0 %3592
        %3596 = vset.pattern.permute.xlu0 0
        %3597 = vperm.xlu0 %3596, %v3483
        %v3598 = vpop.permute.xlu0 %3597
        %3601 = vset.pattern.permute.xlu0 0
        %3602 = vperm.xlu0 %3601, %v3484
        %v3603 = vpop.permute.xlu0 %3602
        %3606 = vset.pattern.permute.xlu0 0
        %3607 = vperm.xlu0 %3606, %v3485
        %v3608 = vpop.permute.xlu0 %3607
        %3611 = vset.pattern.permute.xlu0 0
        %3612 = vperm.xlu0 %3611, %v3486
        %v3613 = vpop.permute.xlu0 %3612
        %3616 = vset.pattern.permute.xlu0 0
        %3617 = vperm.xlu0 %3616, %v3487
        %v3618 = vpop.permute.xlu0 %3617
        %3621 = vset.pattern.permute.xlu0 0
        %3622 = vperm.xlu0 %3621, %v3488
        %v3623 = vpop.permute.xlu0 %3622
        %3626 = vset.pattern.permute.xlu0 0
        %3627 = vperm.xlu0 %3626, %v3489
        %v3628 = vpop.permute.xlu0 %3627
        %3631 = vset.pattern.permute.xlu0 0
        %3632 = vperm.xlu0 %3631, %v3490
        %v3633 = vpop.permute.xlu0 %3632
        %3636 = vset.pattern.permute.xlu0 0
        %3637 = vperm.xlu0 %3636, %v3491
        %v3638 = vpop.permute.xlu0 %3637
        %3641 = vset.pattern.permute.xlu0 0
        %3642 = vperm.xlu0 %3641, %v3492
        %v3643 = vpop.permute.xlu0 %3642
        %3646 = vset.pattern.permute.xlu0 0
        %3647 = vperm.xlu0 %3646, %v3493
        %v3648 = vpop.permute.xlu0 %3647
        %3651 = vset.pattern.permute.xlu0 0
        %3652 = vperm.xlu0 %3651, %v3494
        %v3653 = vpop.permute.xlu0 %3652
        %3656 = vset.pattern.permute.xlu0 0
        %3657 = vperm.xlu0 %3656, %v3495
        %v3658 = vpop.permute.xlu0 %3657
        %3661 = vset.pattern.permute.xlu0 0
        %3662 = vperm.xlu0 %3661, %v3496
        %v3663 = vpop.permute.xlu0 %3662
        %3666 = vset.pattern.permute.xlu0 0
        %3667 = vperm.xlu0 %3666, %v3497
        %v3668 = vpop.permute.xlu0 %3667
        %3671 = vset.pattern.permute.xlu0 0
        %3672 = vperm.xlu0 %3671, %v3498
        %v3673 = vpop.permute.xlu0 %3672
        %3676 = vset.pattern.permute.xlu0 0
        %3677 = vperm.xlu0 %3676, %v3499
        %v3678 = vpop.permute.xlu0 %3677
        %v3680 = vmul.f32 %v3428, %v3503
        %v3681 = vmul.f32 %v3429, %v3508
        %v3682 = vmul.f32 %v3430, %v3513
        %v3683 = vmul.f32 %v3431, %v3518
        %v3684 = vmul.f32 %v3432, %v3523
        %v3685 = vmul.f32 %v3433, %v3528
        %v3686 = vmul.f32 %v3434, %v3533
        %v3687 = vmul.f32 %v3435, %v3538
        %v3688 = vmul.f32 %v3436, %v3543
        %v3689 = vmul.f32 %v3437, %v3548
        %v3690 = vmul.f32 %v3438, %v3553
        %v3691 = vmul.f32 %v3439, %v3558
        %v3692 = vmul.f32 %v3440, %v3563
        %v3693 = vmul.f32 %v3441, %v3568
        %v3694 = vmul.f32 %v3442, %v3573
        %v3695 = vmul.f32 %v3443, %v3578
        %v3696 = vmul.f32 %v3444, %v3583
        %v3697 = vmul.f32 %v3445, %v3588
        %v3698 = vmul.f32 %v3446, %v3593
        %v3699 = vmul.f32 %v3447, %v3598
        %v3700 = vmul.f32 %v3448, %v3603
        %v3701 = vmul.f32 %v3449, %v3608
        %v3702 = vmul.f32 %v3450, %v3613
        %v3703 = vmul.f32 %v3451, %v3618
        %v3704 = vmul.f32 %v3452, %v3623
        %v3705 = vmul.f32 %v3453, %v3628
        %v3706 = vmul.f32 %v3454, %v3633
        %v3707 = vmul.f32 %v3455, %v3638
        %v3708 = vmul.f32 %v3456, %v3643
        %v3709 = vmul.f32 %v3457, %v3648
        %v3710 = vmul.f32 %v3458, %v3653
        %v3711 = vmul.f32 %v3459, %v3658
        %v3712 = vmul.f32 %v3460, %v3663
        %v3713 = vmul.f32 %v3461, %v3668
        %v3714 = vmul.f32 %v3462, %v3673
        %v3715 = vmul.f32 %v3463, %v3678
        %3716 = vst [vmem:[#allocation2] sm:$0xf] 0
        %3717 = vst [vmem:[#allocation2 + $0x4] sm:$0xf] 0
        %vm3718 = vcmask 1041408
        %vm3719 = vsmask.f32 1280
        %vm3720 = vmand %vm3718, %vm3719
        %v3721 = vld [vmem:[#allocation2 + $0x8] sm:$0x3]
        %v3722 = vsel %vm3720, 0, %v3721
        %3723 = vst [vmem:[#allocation2 + $0x8] sm:$0x3] %v3722
        %vm3724 = vcmask 1043457
        %vm3725 = vsmask.f32 7942
        %vm3726 = vmand %vm3724, %vm3725
        %v3727 = vld [vmem:[#allocation2 + $0x98] sm:$0xe]
        %v3728 = vsel %vm3726, 0, %v3727
        %3729 = vst [vmem:[#allocation2 + $0x98] sm:$0xe] %v3728
        %3730 = vst [vmem:[#allocation2 + $0x9c] sm:$0xf] 0
        %3731 = vst [vmem:[#allocation2 + $0xa0] sm:$0x7] 0
        %v3732 = vpack.c.bf16 %v3680, %v3680
        %v3733 = vpack.c.bf16 %v3681, %v3681
        %v3734 = vpack.c.bf16 %v3682, %v3682
        %v3735 = vpack.c.bf16 %v3683, %v3683
        %v3736 = vpack.c.bf16 %v3684, %v3684
        %v3737 = vpack.c.bf16 %v3685, %v3685
        %v3738 = vpack.c.bf16 %v3686, %v3686
        %v3739 = vpack.c.bf16 %v3687, %v3687
        %v3740 = vpack.c.bf16 %v3688, %v3688
        %v3741 = vpack.c.bf16 %v3689, %v3689
        %v3742 = vpack.c.bf16 %v3690, %v3690
        %v3743 = vpack.c.bf16 %v3691, %v3691
        %v3744 = vpack.c.bf16 %v3692, %v3692
        %v3745 = vpack.c.bf16 %v3693, %v3693
        %v3746 = vpack.c.bf16 %v3694, %v3694
        %v3747 = vpack.c.bf16 %v3695, %v3695
        %v3748 = vpack.c.bf16 %v3696, %v3696
        %v3749 = vpack.c.bf16 %v3697, %v3697
        %v3750 = vpack.c.bf16 %v3698, %v3698
        %v3751 = vpack.c.bf16 %v3699, %v3699
        %v3752 = vpack.c.bf16 %v3700, %v3700
        %v3753 = vpack.c.bf16 %v3701, %v3701
        %v3754 = vpack.c.bf16 %v3702, %v3702
        %v3755 = vpack.c.bf16 %v3703, %v3703
        %v3756 = vpack.c.bf16 %v3704, %v3704
        %v3757 = vpack.c.bf16 %v3705, %v3705
        %v3758 = vpack.c.bf16 %v3706, %v3706
        %v3759 = vpack.c.bf16 %v3707, %v3707
        %v3760 = vpack.c.bf16 %v3708, %v3708
        %v3761 = vpack.c.bf16 %v3709, %v3709
        %v3762 = vpack.c.bf16 %v3710, %v3710
        %v3763 = vpack.c.bf16 %v3711, %v3711
        %v3764 = vpack.c.bf16 %v3712, %v3712
        %v3765 = vpack.c.bf16 %v3713, %v3713
        %v3766 = vpack.c.bf16 %v3714, %v3714
        %v3767 = vpack.c.bf16 %v3715, %v3715
        %vm3768 = vsmask.f32 5392
        %vm3769 = vmor %vm3719, %vm3768
        %v3771 = vshrl.u32 %v3732, 16
        %v3773 = vrot.slane %v3771, 6
        %v3774 = vshll.u32 %v3732, 16
        %v3776 = vrot.slane %v3774, 7
        %v3777 = vor.u32 %v3773, %v3776
        %v3778 = vrot.slane %v3777, 4
        %v3780 = vshrl.u32 %v3733, 16
        %v3782 = vrot.slane %v3780, 6
        %v3783 = vshll.u32 %v3733, 16
        %v3785 = vrot.slane %v3783, 7
        %v3786 = vor.u32 %v3782, %v3785
        %v3787 = vsel %vm3769, %v3778, %v3786
        %v3788 = vrot.slane %v3786, 4
        %v3790 = vshrl.u32 %v3734, 16
        %v3792 = vrot.slane %v3790, 6
        %v3793 = vshll.u32 %v3734, 16
        %v3795 = vrot.slane %v3793, 7
        %v3796 = vor.u32 %v3792, %v3795
        %v3797 = vsel %vm3769, %v3788, %v3796
        %v3798 = vrot.slane %v3796, 4
        %v3800 = vshrl.u32 %v3735, 16
        %v3802 = vrot.slane %v3800, 6
        %v3803 = vshll.u32 %v3735, 16
        %v3805 = vrot.slane %v3803, 7
        %v3806 = vor.u32 %v3802, %v3805
        %v3807 = vsel %vm3769, %v3798, %v3806
        %v3808 = vrot.slane %v3806, 4
        %v3810 = vshrl.u32 %v3736, 16
        %v3812 = vrot.slane %v3810, 6
        %v3813 = vshll.u32 %v3736, 16
        %v3815 = vrot.slane %v3813, 7
        %v3816 = vor.u32 %v3812, %v3815
        %v3817 = vsel %vm3769, %v3808, %v3816
        %v3818 = vrot.slane %v3816, 4
        %v3820 = vshrl.u32 %v3737, 16
        %v3822 = vrot.slane %v3820, 6
        %v3823 = vshll.u32 %v3737, 16
        %v3825 = vrot.slane %v3823, 7
        %v3826 = vor.u32 %v3822, %v3825
        %v3827 = vsel %vm3769, %v3818, %v3826
        %v3828 = vrot.slane %v3826, 4
        %v3830 = vshrl.u32 %v3738, 16
        %v3832 = vrot.slane %v3830, 6
        %v3833 = vshll.u32 %v3738, 16
        %v3835 = vrot.slane %v3833, 7
        %v3836 = vor.u32 %v3832, %v3835
        %v3837 = vsel %vm3769, %v3828, %v3836
        %v3838 = vrot.slane %v3836, 4
        %v3840 = vshrl.u32 %v3739, 16
        %v3842 = vrot.slane %v3840, 6
        %v3843 = vshll.u32 %v3739, 16
        %v3845 = vrot.slane %v3843, 7
        %v3846 = vor.u32 %v3842, %v3845
        %v3847 = vsel %vm3769, %v3838, %v3846
        %v3848 = vrot.slane %v3846, 4
        %v3850 = vshrl.u32 %v3740, 16
        %v3852 = vrot.slane %v3850, 6
        %v3853 = vshll.u32 %v3740, 16
        %v3855 = vrot.slane %v3853, 7
        %v3856 = vor.u32 %v3852, %v3855
        %v3857 = vsel %vm3769, %v3848, %v3856
        %v3858 = vrot.slane %v3856, 4
        %v3860 = vshrl.u32 %v3741, 16
        %v3862 = vrot.slane %v3860, 6
        %v3863 = vshll.u32 %v3741, 16
        %v3865 = vrot.slane %v3863, 7
        %v3866 = vor.u32 %v3862, %v3865
        %v3867 = vsel %vm3769, %v3858, %v3866
        %v3868 = vrot.slane %v3866, 4
        %v3870 = vshrl.u32 %v3742, 16
        %v3872 = vrot.slane %v3870, 6
        %v3873 = vshll.u32 %v3742, 16
        %v3875 = vrot.slane %v3873, 7
        %v3876 = vor.u32 %v3872, %v3875
        %v3877 = vsel %vm3769, %v3868, %v3876
        %v3878 = vrot.slane %v3876, 4
        %v3880 = vshrl.u32 %v3743, 16
        %v3882 = vrot.slane %v3880, 6
        %v3883 = vshll.u32 %v3743, 16
        %v3885 = vrot.slane %v3883, 7
        %v3886 = vor.u32 %v3882, %v3885
        %v3887 = vsel %vm3769, %v3878, %v3886
        %v3888 = vrot.slane %v3886, 4
        %v3890 = vshrl.u32 %v3744, 16
        %v3892 = vrot.slane %v3890, 6
        %v3893 = vshll.u32 %v3744, 16
        %v3895 = vrot.slane %v3893, 7
        %v3896 = vor.u32 %v3892, %v3895
        %v3897 = vsel %vm3769, %v3888, %v3896
        %v3898 = vrot.slane %v3896, 4
        %v3900 = vshrl.u32 %v3745, 16
        %v3902 = vrot.slane %v3900, 6
        %v3903 = vshll.u32 %v3745, 16
        %v3905 = vrot.slane %v3903, 7
        %v3906 = vor.u32 %v3902, %v3905
        %v3907 = vsel %vm3769, %v3898, %v3906
        %v3908 = vrot.slane %v3906, 4
        %v3910 = vshrl.u32 %v3746, 16
        %v3912 = vrot.slane %v3910, 6
        %v3913 = vshll.u32 %v3746, 16
        %v3915 = vrot.slane %v3913, 7
        %v3916 = vor.u32 %v3912, %v3915
        %v3917 = vsel %vm3769, %v3908, %v3916
        %v3918 = vrot.slane %v3916, 4
        %v3920 = vshrl.u32 %v3747, 16
        %v3922 = vrot.slane %v3920, 6
        %v3923 = vshll.u32 %v3747, 16
        %v3925 = vrot.slane %v3923, 7
        %v3926 = vor.u32 %v3922, %v3925
        %v3927 = vsel %vm3769, %v3918, %v3926
        %v3928 = vrot.slane %v3926, 4
        %v3930 = vshrl.u32 %v3748, 16
        %v3932 = vrot.slane %v3930, 6
        %v3933 = vshll.u32 %v3748, 16
        %v3935 = vrot.slane %v3933, 7
        %v3936 = vor.u32 %v3932, %v3935
        %v3937 = vsel %vm3769, %v3928, %v3936
        %v3938 = vrot.slane %v3936, 4
        %v3940 = vshrl.u32 %v3749, 16
        %v3942 = vrot.slane %v3940, 6
        %v3943 = vshll.u32 %v3749, 16
        %v3945 = vrot.slane %v3943, 7
        %v3946 = vor.u32 %v3942, %v3945
        %v3947 = vsel %vm3769, %v3938, %v3946
        %v3948 = vrot.slane %v3946, 4
        %v3950 = vshrl.u32 %v3750, 16
        %v3952 = vrot.slane %v3950, 6
        %v3953 = vshll.u32 %v3750, 16
        %v3955 = vrot.slane %v3953, 7
        %v3956 = vor.u32 %v3952, %v3955
        %v3957 = vsel %vm3769, %v3948, %v3956
        %v3958 = vrot.slane %v3956, 4
        %v3960 = vshrl.u32 %v3751, 16
        %v3962 = vrot.slane %v3960, 6
        %v3963 = vshll.u32 %v3751, 16
        %v3965 = vrot.slane %v3963, 7
        %v3966 = vor.u32 %v3962, %v3965
        %v3967 = vsel %vm3769, %v3958, %v3966
        %v3968 = vrot.slane %v3966, 4
        %v3970 = vshrl.u32 %v3752, 16
        %v3972 = vrot.slane %v3970, 6
        %v3973 = vshll.u32 %v3752, 16
        %v3975 = vrot.slane %v3973, 7
        %v3976 = vor.u32 %v3972, %v3975
        %v3977 = vsel %vm3769, %v3968, %v3976
        %v3978 = vrot.slane %v3976, 4
        %v3980 = vshrl.u32 %v3753, 16
        %v3982 = vrot.slane %v3980, 6
        %v3983 = vshll.u32 %v3753, 16
        %v3985 = vrot.slane %v3983, 7
        %v3986 = vor.u32 %v3982, %v3985
        %v3987 = vsel %vm3769, %v3978, %v3986
        %v3988 = vrot.slane %v3986, 4
        %v3990 = vshrl.u32 %v3754, 16
        %v3992 = vrot.slane %v3990, 6
        %v3993 = vshll.u32 %v3754, 16
        %v3995 = vrot.slane %v3993, 7
        %v3996 = vor.u32 %v3992, %v3995
        %v3997 = vsel %vm3769, %v3988, %v3996
        %v3998 = vrot.slane %v3996, 4
        %v4000 = vshrl.u32 %v3755, 16
        %v4002 = vrot.slane %v4000, 6
        %v4003 = vshll.u32 %v3755, 16
        %v4005 = vrot.slane %v4003, 7
        %v4006 = vor.u32 %v4002, %v4005
        %v4007 = vsel %vm3769, %v3998, %v4006
        %v4008 = vrot.slane %v4006, 4
        %v4010 = vshrl.u32 %v3756, 16
        %v4012 = vrot.slane %v4010, 6
        %v4013 = vshll.u32 %v3756, 16
        %v4015 = vrot.slane %v4013, 7
        %v4016 = vor.u32 %v4012, %v4015
        %v4017 = vsel %vm3769, %v4008, %v4016
        %v4018 = vrot.slane %v4016, 4
        %v4020 = vshrl.u32 %v3757, 16
        %v4022 = vrot.slane %v4020, 6
        %v4023 = vshll.u32 %v3757, 16
        %v4025 = vrot.slane %v4023, 7
        %v4026 = vor.u32 %v4022, %v4025
        %v4027 = vsel %vm3769, %v4018, %v4026
        %v4028 = vrot.slane %v4026, 4
        %v4030 = vshrl.u32 %v3758, 16
        %v4032 = vrot.slane %v4030, 6
        %v4033 = vshll.u32 %v3758, 16
        %v4035 = vrot.slane %v4033, 7
        %v4036 = vor.u32 %v4032, %v4035
        %v4037 = vsel %vm3769, %v4028, %v4036
        %v4038 = vrot.slane %v4036, 4
        %v4040 = vshrl.u32 %v3759, 16
        %v4042 = vrot.slane %v4040, 6
        %v4043 = vshll.u32 %v3759, 16
        %v4045 = vrot.slane %v4043, 7
        %v4046 = vor.u32 %v4042, %v4045
        %v4047 = vsel %vm3769, %v4038, %v4046
        %v4048 = vrot.slane %v4046, 4
        %v4050 = vshrl.u32 %v3760, 16
        %v4052 = vrot.slane %v4050, 6
        %v4053 = vshll.u32 %v3760, 16
        %v4055 = vrot.slane %v4053, 7
        %v4056 = vor.u32 %v4052, %v4055
        %v4057 = vsel %vm3769, %v4048, %v4056
        %v4058 = vrot.slane %v4056, 4
        %v4060 = vshrl.u32 %v3761, 16
        %v4062 = vrot.slane %v4060, 6
        %v4063 = vshll.u32 %v3761, 16
        %v4065 = vrot.slane %v4063, 7
        %v4066 = vor.u32 %v4062, %v4065
        %v4067 = vsel %vm3769, %v4058, %v4066
        %v4068 = vrot.slane %v4066, 4
        %v4070 = vshrl.u32 %v3762, 16
        %v4072 = vrot.slane %v4070, 6
        %v4073 = vshll.u32 %v3762, 16
        %v4075 = vrot.slane %v4073, 7
        %v4076 = vor.u32 %v4072, %v4075
        %v4077 = vsel %vm3769, %v4068, %v4076
        %v4078 = vrot.slane %v4076, 4
        %v4080 = vshrl.u32 %v3763, 16
        %v4082 = vrot.slane %v4080, 6
        %v4083 = vshll.u32 %v3763, 16
        %v4085 = vrot.slane %v4083, 7
        %v4086 = vor.u32 %v4082, %v4085
        %v4087 = vsel %vm3769, %v4078, %v4086
        %v4088 = vrot.slane %v4086, 4
        %v4090 = vshrl.u32 %v3764, 16
        %v4092 = vrot.slane %v4090, 6
        %v4093 = vshll.u32 %v3764, 16
        %v4095 = vrot.slane %v4093, 7
        %v4096 = vor.u32 %v4092, %v4095
        %v4097 = vsel %vm3769, %v4088, %v4096
        %v4098 = vrot.slane %v4096, 4
        %v4100 = vshrl.u32 %v3765, 16
        %v4102 = vrot.slane %v4100, 6
        %v4103 = vshll.u32 %v3765, 16
        %v4105 = vrot.slane %v4103, 7
        %v4106 = vor.u32 %v4102, %v4105
        %v4107 = vsel %vm3769, %v4098, %v4106
        %v4108 = vrot.slane %v4106, 4
        %v4110 = vshrl.u32 %v3766, 16
        %v4112 = vrot.slane %v4110, 6
        %v4113 = vshll.u32 %v3766, 16
        %v4115 = vrot.slane %v4113, 7
        %v4116 = vor.u32 %v4112, %v4115
        %v4117 = vsel %vm3769, %v4108, %v4116
        %v4118 = vrot.slane %v4116, 4
        %v4120 = vshrl.u32 %v3767, 16
        %v4122 = vrot.slane %v4120, 6
        %v4123 = vshll.u32 %v3767, 16
        %v4125 = vrot.slane %v4123, 7
        %v4126 = vor.u32 %v4122, %v4125
        %v4127 = vsel %vm3769, %v4118, %v4126
        %v4128 = vrot.slane %v4126, 4
        %v4166 = vld [vmem:[#allocation2 + $0x8] sm:$0xe]
        %v4167 = vsel %vm3726, %v3777, %v4166
        %4168 = vst [vmem:[#allocation2 + $0x8] sm:$0xe] %v4167
        %4169 = vst [vmem:[#allocation2 + $0xc] sm:$0xf] %v3787
        %4170 = vst [vmem:[#allocation2 + $0x10] sm:$0xf] %v3797
        %4171 = vst [vmem:[#allocation2 + $0x14] sm:$0xf] %v3807
        %4172 = vst [vmem:[#allocation2 + $0x18] sm:$0xf] %v3817
        %4173 = vst [vmem:[#allocation2 + $0x1c] sm:$0xf] %v3827
        %4174 = vst [vmem:[#allocation2 + $0x20] sm:$0xf] %v3837
        %4175 = vst [vmem:[#allocation2 + $0x24] sm:$0xf] %v3847
        %4176 = vst [vmem:[#allocation2 + $0x28] sm:$0xf] %v3857
        %4177 = vst [vmem:[#allocation2 + $0x2c] sm:$0xf] %v3867
        %4178 = vst [vmem:[#allocation2 + $0x30] sm:$0xf] %v3877
        %4179 = vst [vmem:[#allocation2 + $0x34] sm:$0xf] %v3887
        %4180 = vst [vmem:[#allocation2 + $0x38] sm:$0xf] %v3897
        %4181 = vst [vmem:[#allocation2 + $0x3c] sm:$0xf] %v3907
        %4182 = vst [vmem:[#allocation2 + $0x40] sm:$0xf] %v3917
        %4183 = vst [vmem:[#allocation2 + $0x44] sm:$0xf] %v3927
        %4184 = vst [vmem:[#allocation2 + $0x48] sm:$0xf] %v3937
        %4185 = vst [vmem:[#allocation2 + $0x4c] sm:$0xf] %v3947
        %4186 = vst [vmem:[#allocation2 + $0x50] sm:$0xf] %v3957
        %4187 = vst [vmem:[#allocation2 + $0x54] sm:$0xf] %v3967
        %4188 = vst [vmem:[#allocation2 + $0x58] sm:$0xf] %v3977
        %4189 = vst [vmem:[#allocation2 + $0x5c] sm:$0xf] %v3987
        %4190 = vst [vmem:[#allocation2 + $0x60] sm:$0xf] %v3997
        %4191 = vst [vmem:[#allocation2 + $0x64] sm:$0xf] %v4007
        %4192 = vst [vmem:[#allocation2 + $0x68] sm:$0xf] %v4017
        %4193 = vst [vmem:[#allocation2 + $0x6c] sm:$0xf] %v4027
        %4194 = vst [vmem:[#allocation2 + $0x70] sm:$0xf] %v4037
        %4195 = vst [vmem:[#allocation2 + $0x74] sm:$0xf] %v4047
        %4196 = vst [vmem:[#allocation2 + $0x78] sm:$0xf] %v4057
        %4197 = vst [vmem:[#allocation2 + $0x7c] sm:$0xf] %v4067
        %4198 = vst [vmem:[#allocation2 + $0x80] sm:$0xf] %v4077
        %4199 = vst [vmem:[#allocation2 + $0x84] sm:$0xf] %v4087
        %4200 = vst [vmem:[#allocation2 + $0x88] sm:$0xf] %v4097
        %4201 = vst [vmem:[#allocation2 + $0x8c] sm:$0xf] %v4107
        %4202 = vst [vmem:[#allocation2 + $0x90] sm:$0xf] %v4117
        %4203 = vst [vmem:[#allocation2 + $0x94] sm:$0xf] %v4127
        %v4204 = vld [vmem:[#allocation2 + $0x98] sm:$0x3]
        %v4205 = vsel %vm3720, %v4128, %v4204
        %4206 = vst [vmem:[#allocation2 + $0x98] sm:$0x3] %v4205
        %v4207 = vld [vmem:[#allocation2] sm:$0xf]
        %v4208 = vld [vmem:[#allocation2 + $0x4] sm:$0xf]
        %v4209 = vld [vmem:[#allocation2 + $0x8] sm:$0xf]
        %v4210 = vld [vmem:[#allocation2 + $0xc] sm:$0xf]
        %v4211 = vld [vmem:[#allocation2 + $0x10] sm:$0xf]
        %v4212 = vld [vmem:[#allocation2 + $0x14] sm:$0xf]
        %v4213 = vld [vmem:[#allocation2 + $0x18] sm:$0xf]
        %v4214 = vld [vmem:[#allocation2 + $0x1c] sm:$0xf]
        %v4215 = vld [vmem:[#allocation2 + $0x20] sm:$0xf]
        %v4216 = vld [vmem:[#allocation2 + $0x24] sm:$0xf]
        %v4217 = vld [vmem:[#allocation2 + $0x28] sm:$0xf]
        %v4218 = vld [vmem:[#allocation2 + $0x2c] sm:$0xf]
        %v4219 = vld [vmem:[#allocation2 + $0x30] sm:$0xf]
        %v4220 = vld [vmem:[#allocation2 + $0x34] sm:$0xf]
        %v4221 = vld [vmem:[#allocation2 + $0x38] sm:$0xf]
        %v4222 = vld [vmem:[#allocation2 + $0x3c] sm:$0xf]
        %v4223 = vld [vmem:[#allocation2 + $0x40] sm:$0xf]
        %v4224 = vld [vmem:[#allocation2 + $0x44] sm:$0xf]
        %v4225 = vld [vmem:[#allocation2 + $0x48] sm:$0xf]
        %v4226 = vld [vmem:[#allocation2 + $0x4c] sm:$0xf]
        %v4227 = vld [vmem:[#allocation2 + $0x50] sm:$0xf]
        %v4228 = vld [vmem:[#allocation2 + $0x54] sm:$0xf]
        %v4229 = vld [vmem:[#allocation2 + $0x58] sm:$0xf]
        %v4230 = vld [vmem:[#allocation2 + $0x5c] sm:$0xf]
        %v4231 = vld [vmem:[#allocation2 + $0x60] sm:$0xf]
        %v4232 = vld [vmem:[#allocation2 + $0x64] sm:$0xf]
        %v4233 = vld [vmem:[#allocation2 + $0x68] sm:$0xf]
        %v4234 = vld [vmem:[#allocation2 + $0x6c] sm:$0xf]
        %v4235 = vld [vmem:[#allocation2 + $0x70] sm:$0xf]
        %v4236 = vld [vmem:[#allocation2 + $0x74] sm:$0xf]
        %v4237 = vld [vmem:[#allocation2 + $0x78] sm:$0xf]
        %v4238 = vld [vmem:[#allocation2 + $0x7c] sm:$0xf]
        %v4239 = vld [vmem:[#allocation2 + $0x80] sm:$0xf]
        %v4240 = vld [vmem:[#allocation2 + $0x84] sm:$0xf]
        %v4241 = vld [vmem:[#allocation2 + $0x88] sm:$0xf]
        %v4242 = vld [vmem:[#allocation2 + $0x8c] sm:$0xf]
        %v4243 = vld [vmem:[#allocation4] sm:$0xf]
        %v4244 = vld [vmem:[#allocation4 + $0x4] sm:$0xf]
        %v4245 = vld [vmem:[#allocation4 + $0x8] sm:$0xf]
        %v4246 = vld [vmem:[#allocation4 + $0xc] sm:$0xf]
        %v4247 = vld [vmem:[#allocation4 + $0x10] sm:$0xf]
        %v4248 = vld [vmem:[#allocation4 + $0x14] sm:$0xf]
        %v4249 = vld [vmem:[#allocation4 + $0x18] sm:$0xf]
        %v4250 = vld [vmem:[#allocation4 + $0x1c] sm:$0xf]
        %v4251 = vld [vmem:[#allocation4 + $0x20] sm:$0xf]
        %v4252 = vld [vmem:[#allocation4 + $0x24] sm:$0xf]
        %v4253 = vld [vmem:[#allocation4 + $0x28] sm:$0xf]
        %v4254 = vld [vmem:[#allocation4 + $0x2c] sm:$0xf]
        %v4255 = vld [vmem:[#allocation4 + $0x30] sm:$0xf]
        %v4256 = vld [vmem:[#allocation4 + $0x34] sm:$0xf]
        %v4257 = vld [vmem:[#allocation4 + $0x38] sm:$0xf]
        %v4258 = vld [vmem:[#allocation4 + $0x3c] sm:$0xf]
        %v4259 = vld [vmem:[#allocation2 + $0x90] sm:$0x1]
        %s4260 = scalar_lea.vmem [#allocation4], 64
        %v4261 = vld [vmem:[%s4260] sm:$0xf]
        %v4262 = vld [vmem:[%s4260 + $0x4] sm:$0xf]
        %v4263 = vld [vmem:[%s4260 + $0x8] sm:$0xf]
        %v4264 = vld [vmem:[%s4260 + $0xc] sm:$0xf]
        %v4265 = vld [vmem:[%s4260 + $0x10] sm:$0xf]
        %v4266 = vld [vmem:[%s4260 + $0x14] sm:$0xf]
        %v4267 = vld [vmem:[%s4260 + $0x18] sm:$0xf]
        %v4268 = vld [vmem:[%s4260 + $0x1c] sm:$0xf]
        %v4269 = vld [vmem:[%s4260 + $0x20] sm:$0xf]
        %v4270 = vld [vmem:[%s4260 + $0x24] sm:$0xf]
        %v4271 = vld [vmem:[%s4260 + $0x28] sm:$0xf]
        %v4272 = vld [vmem:[%s4260 + $0x2c] sm:$0xf]
        %v4273 = vld [vmem:[%s4260 + $0x30] sm:$0xf]
        %v4274 = vld [vmem:[%s4260 + $0x34] sm:$0xf]
        %v4275 = vld [vmem:[%s4260 + $0x38] sm:$0xf]
        %v4276 = vld [vmem:[%s4260 + $0x3c] sm:$0xf]
        %v4314 = vunpack.c.l.b16 %v4207
        %v4315 = vunpack.c.l.b16 %v4208
        %v4316 = vunpack.c.l.b16 %v4209
        %v4317 = vunpack.c.l.b16 %v4210
        %v4318 = vunpack.c.l.b16 %v4211
        %v4319 = vunpack.c.l.b16 %v4212
        %v4320 = vunpack.c.l.b16 %v4213
        %v4321 = vunpack.c.l.b16 %v4214
        %v4322 = vunpack.c.l.b16 %v4215
        %v4323 = vunpack.c.l.b16 %v4216
        %v4324 = vunpack.c.l.b16 %v4217
        %v4325 = vunpack.c.l.b16 %v4218
        %v4326 = vunpack.c.l.b16 %v4219
        %v4327 = vunpack.c.l.b16 %v4220
        %v4328 = vunpack.c.l.b16 %v4221
        %v4329 = vunpack.c.l.b16 %v4222
        %v4330 = vunpack.c.l.b16 %v4223
        %v4331 = vunpack.c.l.b16 %v4224
        %v4332 = vunpack.c.l.b16 %v4225
        %v4333 = vunpack.c.l.b16 %v4226
        %v4334 = vunpack.c.l.b16 %v4227
        %v4335 = vunpack.c.l.b16 %v4228
        %v4336 = vunpack.c.l.b16 %v4229
        %v4337 = vunpack.c.l.b16 %v4230
        %v4338 = vunpack.c.l.b16 %v4231
        %v4339 = vunpack.c.l.b16 %v4232
        %v4340 = vunpack.c.l.b16 %v4233
        %v4341 = vunpack.c.l.b16 %v4234
        %v4342 = vunpack.c.l.b16 %v4235
        %v4343 = vunpack.c.l.b16 %v4236
        %v4344 = vunpack.c.l.b16 %v4237
        %v4345 = vunpack.c.l.b16 %v4238
        %v4346 = vunpack.c.l.b16 %v4239
        %v4347 = vunpack.c.l.b16 %v4240
        %v4348 = vunpack.c.l.b16 %v4241
        %v4349 = vunpack.c.l.b16 %v4242
        %v4350 = vunpack.c.l.b16 %v4259
        %v4351 = vpack.c.b16 %v4315, %v4314
        %v4352 = vpack.c.b16 %v4317, %v4316
        %v4353 = vpack.c.b16 %v4319, %v4318
        %v4354 = vpack.c.b16 %v4321, %v4320
        %v4355 = vpack.c.b16 %v4323, %v4322
        %v4356 = vpack.c.b16 %v4325, %v4324
        %v4357 = vpack.c.b16 %v4327, %v4326
        %v4358 = vpack.c.b16 %v4329, %v4328
        %v4359 = vpack.c.b16 %v4331, %v4330
        %v4360 = vpack.c.b16 %v4333, %v4332
        %v4361 = vpack.c.b16 %v4335, %v4334
        %v4362 = vpack.c.b16 %v4337, %v4336
        %v4363 = vpack.c.b16 %v4339, %v4338
        %v4364 = vpack.c.b16 %v4341, %v4340
        %v4365 = vpack.c.b16 %v4343, %v4342
        %v4366 = vpack.c.b16 %v4345, %v4344
        %v4367 = vpack.c.b16 %v4347, %v4346
        %v4368 = vpack.c.b16 %v4349, %v4348
        %v4369 = vpack.c.b16 %v4350, %v4350
        %v4371 = vshrl.u32 %v4351, 16
        %v4373 = vshll.u32 %v4351, 16
        %v4375 = vrot.slane %v4373, 1
        %v4376 = vor.u32 %v4371, %v4375
        %v4378 = vshll.u32 %v4352, 16
        %v4380 = vrot.slane %v4378, 1
        %v4381 = vsel %vm431, %v4376, %v4380
        %v4382 = vshrl.u32 %v4352, 16
        %v4384 = vor.u32 %v4382, %v4380
        %v4386 = vshll.u32 %v4353, 16
        %v4388 = vrot.slane %v4386, 1
        %v4389 = vsel %vm431, %v4384, %v4388
        %v4390 = vshrl.u32 %v4353, 16
        %v4392 = vor.u32 %v4390, %v4388
        %v4394 = vshll.u32 %v4354, 16
        %v4396 = vrot.slane %v4394, 1
        %v4397 = vsel %vm431, %v4392, %v4396
        %v4398 = vshrl.u32 %v4354, 16
        %v4400 = vor.u32 %v4398, %v4396
        %v4402 = vshll.u32 %v4355, 16
        %v4404 = vrot.slane %v4402, 1
        %v4405 = vsel %vm431, %v4400, %v4404
        %v4406 = vshrl.u32 %v4355, 16
        %v4408 = vor.u32 %v4406, %v4404
        %v4410 = vshll.u32 %v4356, 16
        %v4412 = vrot.slane %v4410, 1
        %v4413 = vsel %vm431, %v4408, %v4412
        %v4414 = vshrl.u32 %v4356, 16
        %v4416 = vor.u32 %v4414, %v4412
        %v4418 = vshll.u32 %v4357, 16
        %v4420 = vrot.slane %v4418, 1
        %v4421 = vsel %vm431, %v4416, %v4420
        %v4422 = vshrl.u32 %v4357, 16
        %v4424 = vor.u32 %v4422, %v4420
        %v4426 = vshll.u32 %v4358, 16
        %v4428 = vrot.slane %v4426, 1
        %v4429 = vsel %vm431, %v4424, %v4428
        %v4430 = vshrl.u32 %v4358, 16
        %v4432 = vor.u32 %v4430, %v4428
        %v4434 = vshll.u32 %v4359, 16
        %v4436 = vrot.slane %v4434, 1
        %v4437 = vsel %vm431, %v4432, %v4436
        %v4438 = vshrl.u32 %v4359, 16
        %v4440 = vor.u32 %v4438, %v4436
        %v4442 = vshll.u32 %v4360, 16
        %v4444 = vrot.slane %v4442, 1
        %v4445 = vsel %vm431, %v4440, %v4444
        %v4446 = vshrl.u32 %v4360, 16
        %v4448 = vor.u32 %v4446, %v4444
        %v4450 = vshll.u32 %v4361, 16
        %v4452 = vrot.slane %v4450, 1
        %v4453 = vsel %vm431, %v4448, %v4452
        %v4454 = vshrl.u32 %v4361, 16
        %v4456 = vor.u32 %v4454, %v4452
        %v4458 = vshll.u32 %v4362, 16
        %v4460 = vrot.slane %v4458, 1
        %v4461 = vsel %vm431, %v4456, %v4460
        %v4462 = vshrl.u32 %v4362, 16
        %v4464 = vor.u32 %v4462, %v4460
        %v4466 = vshll.u32 %v4363, 16
        %v4468 = vrot.slane %v4466, 1
        %v4469 = vsel %vm431, %v4464, %v4468
        %v4470 = vshrl.u32 %v4363, 16
        %v4472 = vor.u32 %v4470, %v4468
        %v4474 = vshll.u32 %v4364, 16
        %v4476 = vrot.slane %v4474, 1
        %v4477 = vsel %vm431, %v4472, %v4476
        %v4478 = vshrl.u32 %v4364, 16
        %v4480 = vor.u32 %v4478, %v4476
        %v4482 = vshll.u32 %v4365, 16
        %v4484 = vrot.slane %v4482, 1
        %v4485 = vsel %vm431, %v4480, %v4484
        %v4486 = vshrl.u32 %v4365, 16
        %v4488 = vor.u32 %v4486, %v4484
        %v4490 = vshll.u32 %v4366, 16
        %v4492 = vrot.slane %v4490, 1
        %v4493 = vsel %vm431, %v4488, %v4492
        %v4494 = vshrl.u32 %v4366, 16
        %v4496 = vor.u32 %v4494, %v4492
        %v4498 = vshll.u32 %v4367, 16
        %v4500 = vrot.slane %v4498, 1
        %v4501 = vsel %vm431, %v4496, %v4500
        %v4502 = vshrl.u32 %v4367, 16
        %v4504 = vor.u32 %v4502, %v4500
        %v4506 = vshll.u32 %v4368, 16
        %v4508 = vrot.slane %v4506, 1
        %v4509 = vsel %vm431, %v4504, %v4508
        %v4510 = vshrl.u32 %v4368, 16
        %v4512 = vor.u32 %v4510, %v4508
        %v4514 = vshll.u32 %v4369, 16
        %v4516 = vrot.slane %v4514, 1
        %v4517 = vsel %vm431, %v4512, %v4516
        %v4552 = vunpack.c.l.b16 %v4261
        %v4553 = vunpack.c.l.b16 %v4262
        %v4554 = vunpack.c.l.b16 %v4263
        %v4555 = vunpack.c.l.b16 %v4264
        %v4556 = vunpack.c.l.b16 %v4265
        %v4557 = vunpack.c.l.b16 %v4266
        %v4558 = vunpack.c.l.b16 %v4267
        %v4559 = vunpack.c.l.b16 %v4268
        %v4560 = vunpack.c.l.b16 %v4269
        %v4561 = vunpack.c.l.b16 %v4270
        %v4562 = vunpack.c.l.b16 %v4271
        %v4563 = vunpack.c.l.b16 %v4272
        %v4564 = vunpack.c.l.b16 %v4273
        %v4565 = vunpack.c.l.b16 %v4274
        %v4566 = vunpack.c.l.b16 %v4275
        %v4567 = vunpack.c.l.b16 %v4276
        %v4568 = vpack.c.b16 %v4553, %v4552
        %v4569 = vpack.c.b16 %v4555, %v4554
        %v4570 = vpack.c.b16 %v4557, %v4556
        %v4571 = vpack.c.b16 %v4559, %v4558
        %v4572 = vpack.c.b16 %v4561, %v4560
        %v4573 = vpack.c.b16 %v4563, %v4562
        %v4574 = vpack.c.b16 %v4565, %v4564
        %v4575 = vpack.c.b16 %v4567, %v4566
        %4584 = vmatpush.bf16.msra.mxu0 %v4575
        %4585 = vmatpush.bf16.msra.mxu0 %v4574
        %4586 = vmatpush.bf16.msra.mxu0 %v4573
        %4587 = vmatpush.bf16.msra.mxu0 %v4572
        %4588 = vmatpush.bf16.msra.mxu0 %v4571
        %4589 = vmatpush.bf16.msra.mxu0 %v4570
        %4590 = vmatpush.bf16.msra.mxu0 %v4569
        %4591 = vmatpush.bf16.msra.mxu0 %v4568
        %4592 = vmatmul.bf16.gmra.mxu0 %v4381
        %v4593 = vpop.f32.mrf.mxu0
        %v4594 = vadd.f32 0.0, %v4593
        %v4595 = vpop.f32.mrf.mxu0
        %v4596 = vadd.f32 0.0, %v4595
        %4597 = vmatmul.bf16.gmra.mxu0 %v4389
        %v4598 = vpop.f32.mrf.mxu0
        %v4599 = vadd.f32 0.0, %v4598
        %v4600 = vpop.f32.mrf.mxu0
        %v4601 = vadd.f32 0.0, %v4600
        %4602 = vmatmul.bf16.gmra.mxu0 %v4397
        %v4603 = vpop.f32.mrf.mxu0
        %v4604 = vadd.f32 0.0, %v4603
        %v4605 = vpop.f32.mrf.mxu0
        %v4606 = vadd.f32 0.0, %v4605
        %4607 = vmatmul.bf16.gmra.mxu0 %v4405
        %v4608 = vpop.f32.mrf.mxu0
        %v4609 = vadd.f32 0.0, %v4608
        %v4610 = vpop.f32.mrf.mxu0
        %v4611 = vadd.f32 0.0, %v4610
        %4612 = vmatmul.bf16.gmra.mxu0 %v4413
        %v4613 = vpop.f32.mrf.mxu0
        %v4614 = vadd.f32 0.0, %v4613
        %v4615 = vpop.f32.mrf.mxu0
        %v4616 = vadd.f32 0.0, %v4615
        %4617 = vmatmul.bf16.gmra.mxu0 %v4421
        %v4618 = vpop.f32.mrf.mxu0
        %v4619 = vadd.f32 0.0, %v4618
        %v4620 = vpop.f32.mrf.mxu0
        %v4621 = vadd.f32 0.0, %v4620
        %4622 = vmatmul.bf16.gmra.mxu0 %v4429
        %v4623 = vpop.f32.mrf.mxu0
        %v4624 = vadd.f32 0.0, %v4623
        %v4625 = vpop.f32.mrf.mxu0
        %v4626 = vadd.f32 0.0, %v4625
        %4627 = vmatmul.bf16.gmra.mxu0 %v4437
        %v4628 = vpop.f32.mrf.mxu0
        %v4629 = vadd.f32 0.0, %v4628
        %v4630 = vpop.f32.mrf.mxu0
        %v4631 = vadd.f32 0.0, %v4630
        %4632 = vmatmul.bf16.gmra.mxu0 %v4445
        %v4633 = vpop.f32.mrf.mxu0
        %v4634 = vadd.f32 0.0, %v4633
        %v4635 = vpop.f32.mrf.mxu0
        %v4636 = vadd.f32 0.0, %v4635
        %4637 = vmatmul.bf16.gmra.mxu0 %v4453
        %v4638 = vpop.f32.mrf.mxu0
        %v4639 = vadd.f32 0.0, %v4638
        %v4640 = vpop.f32.mrf.mxu0
        %v4641 = vadd.f32 0.0, %v4640
        %4642 = vmatmul.bf16.gmra.mxu0 %v4461
        %v4643 = vpop.f32.mrf.mxu0
        %v4644 = vadd.f32 0.0, %v4643
        %v4645 = vpop.f32.mrf.mxu0
        %v4646 = vadd.f32 0.0, %v4645
        %4647 = vmatmul.bf16.gmra.mxu0 %v4469
        %v4648 = vpop.f32.mrf.mxu0
        %v4649 = vadd.f32 0.0, %v4648
        %v4650 = vpop.f32.mrf.mxu0
        %v4651 = vadd.f32 0.0, %v4650
        %4652 = vmatmul.bf16.gmra.mxu0 %v4477
        %v4653 = vpop.f32.mrf.mxu0
        %v4654 = vadd.f32 0.0, %v4653
        %v4655 = vpop.f32.mrf.mxu0
        %v4656 = vadd.f32 0.0, %v4655
        %4657 = vmatmul.bf16.gmra.mxu0 %v4485
        %v4658 = vpop.f32.mrf.mxu0
        %v4659 = vadd.f32 0.0, %v4658
        %v4660 = vpop.f32.mrf.mxu0
        %v4661 = vadd.f32 0.0, %v4660
        %4662 = vmatmul.bf16.gmra.mxu0 %v4493
        %v4663 = vpop.f32.mrf.mxu0
        %v4664 = vadd.f32 0.0, %v4663
        %v4665 = vpop.f32.mrf.mxu0
        %v4666 = vadd.f32 0.0, %v4665
        %4667 = vmatmul.bf16.gmra.mxu0 %v4501
        %v4668 = vpop.f32.mrf.mxu0
        %v4669 = vadd.f32 0.0, %v4668
        %v4670 = vpop.f32.mrf.mxu0
        %v4671 = vadd.f32 0.0, %v4670
        %4672 = vmatmul.bf16.gmra.mxu0 %v4509
        %v4673 = vpop.f32.mrf.mxu0
        %v4674 = vadd.f32 0.0, %v4673
        %v4675 = vpop.f32.mrf.mxu0
        %v4676 = vadd.f32 0.0, %v4675
        %4677 = vmatmul.bf16.gmra.mxu0 %v4517
        %v4678 = vpop.f32.mrf.mxu0
        %v4679 = vadd.f32 0.0, %v4678
        %v4680 = vpop.f32.mrf.mxu0
        %v4681 = vadd.f32 0.0, %v4680
        %4682 = vdwg.mxu0
        %v4717 = vunpack.c.l.b16 %v4243
        %v4718 = vunpack.c.l.b16 %v4244
        %v4719 = vunpack.c.l.b16 %v4245
        %v4720 = vunpack.c.l.b16 %v4246
        %v4721 = vunpack.c.l.b16 %v4247
        %v4722 = vunpack.c.l.b16 %v4248
        %v4723 = vunpack.c.l.b16 %v4249
        %v4724 = vunpack.c.l.b16 %v4250
        %v4725 = vunpack.c.l.b16 %v4251
        %v4726 = vunpack.c.l.b16 %v4252
        %v4727 = vunpack.c.l.b16 %v4253
        %v4728 = vunpack.c.l.b16 %v4254
        %v4729 = vunpack.c.l.b16 %v4255
        %v4730 = vunpack.c.l.b16 %v4256
        %v4731 = vunpack.c.l.b16 %v4257
        %v4732 = vunpack.c.l.b16 %v4258
        %v4733 = vpack.c.b16 %v4718, %v4717
        %v4734 = vpack.c.b16 %v4720, %v4719
        %v4735 = vpack.c.b16 %v4722, %v4721
        %v4736 = vpack.c.b16 %v4724, %v4723
        %v4737 = vpack.c.b16 %v4726, %v4725
        %v4738 = vpack.c.b16 %v4728, %v4727
        %v4739 = vpack.c.b16 %v4730, %v4729
        %v4740 = vpack.c.b16 %v4732, %v4731
        %4749 = vmatpush.bf16.msra.mxu0 %v4740
        %4750 = vmatpush.bf16.msra.mxu0 %v4739
        %4751 = vmatpush.bf16.msra.mxu0 %v4738
        %4752 = vmatpush.bf16.msra.mxu0 %v4737
        %4753 = vmatpush.bf16.msra.mxu0 %v4736
        %4754 = vmatpush.bf16.msra.mxu0 %v4735
        %4755 = vmatpush.bf16.msra.mxu0 %v4734
        %4756 = vmatpush.bf16.msra.mxu0 %v4733
        %4757 = vmatmul.bf16.gmra.mxu0 %v4351
        %v4758 = vpop.f32.mrf.mxu0
        %v4759 = vadd.f32 %v4594, %v4758
        %v4760 = vpop.f32.mrf.mxu0
        %v4761 = vadd.f32 %v4596, %v4760
        %4762 = vmatmul.bf16.gmra.mxu0 %v4352
        %v4763 = vpop.f32.mrf.mxu0
        %v4764 = vadd.f32 %v4599, %v4763
        %v4765 = vpop.f32.mrf.mxu0
        %v4766 = vadd.f32 %v4601, %v4765
        %4767 = vmatmul.bf16.gmra.mxu0 %v4353
        %v4768 = vpop.f32.mrf.mxu0
        %v4769 = vadd.f32 %v4604, %v4768
        %v4770 = vpop.f32.mrf.mxu0
        %v4771 = vadd.f32 %v4606, %v4770
        %4772 = vmatmul.bf16.gmra.mxu0 %v4354
        %v4773 = vpop.f32.mrf.mxu0
        %v4774 = vadd.f32 %v4609, %v4773
        %v4775 = vpop.f32.mrf.mxu0
        %v4776 = vadd.f32 %v4611, %v4775
        %4777 = vmatmul.bf16.gmra.mxu0 %v4355
        %v4778 = vpop.f32.mrf.mxu0
        %v4779 = vadd.f32 %v4614, %v4778
        %v4780 = vpop.f32.mrf.mxu0
        %v4781 = vadd.f32 %v4616, %v4780
        %4782 = vmatmul.bf16.gmra.mxu0 %v4356
        %v4783 = vpop.f32.mrf.mxu0
        %v4784 = vadd.f32 %v4619, %v4783
        %v4785 = vpop.f32.mrf.mxu0
        %v4786 = vadd.f32 %v4621, %v4785
        %4787 = vmatmul.bf16.gmra.mxu0 %v4357
        %v4788 = vpop.f32.mrf.mxu0
        %v4789 = vadd.f32 %v4624, %v4788
        %v4790 = vpop.f32.mrf.mxu0
        %v4791 = vadd.f32 %v4626, %v4790
        %4792 = vmatmul.bf16.gmra.mxu0 %v4358
        %v4793 = vpop.f32.mrf.mxu0
        %v4794 = vadd.f32 %v4629, %v4793
        %v4795 = vpop.f32.mrf.mxu0
        %v4796 = vadd.f32 %v4631, %v4795
        %4797 = vmatmul.bf16.gmra.mxu0 %v4359
        %v4798 = vpop.f32.mrf.mxu0
        %v4799 = vadd.f32 %v4634, %v4798
        %v4800 = vpop.f32.mrf.mxu0
        %v4801 = vadd.f32 %v4636, %v4800
        %4802 = vmatmul.bf16.gmra.mxu0 %v4360
        %v4803 = vpop.f32.mrf.mxu0
        %v4804 = vadd.f32 %v4639, %v4803
        %v4805 = vpop.f32.mrf.mxu0
        %v4806 = vadd.f32 %v4641, %v4805
        %4807 = vmatmul.bf16.gmra.mxu0 %v4361
        %v4808 = vpop.f32.mrf.mxu0
        %v4809 = vadd.f32 %v4644, %v4808
        %v4810 = vpop.f32.mrf.mxu0
        %v4811 = vadd.f32 %v4646, %v4810
        %4812 = vmatmul.bf16.gmra.mxu0 %v4362
        %v4813 = vpop.f32.mrf.mxu0
        %v4814 = vadd.f32 %v4649, %v4813
        %v4815 = vpop.f32.mrf.mxu0
        %v4816 = vadd.f32 %v4651, %v4815
        %4817 = vmatmul.bf16.gmra.mxu0 %v4363
        %v4818 = vpop.f32.mrf.mxu0
        %v4819 = vadd.f32 %v4654, %v4818
        %v4820 = vpop.f32.mrf.mxu0
        %v4821 = vadd.f32 %v4656, %v4820
        %4822 = vmatmul.bf16.gmra.mxu0 %v4364
        %v4823 = vpop.f32.mrf.mxu0
        %v4824 = vadd.f32 %v4659, %v4823
        %v4825 = vpop.f32.mrf.mxu0
        %v4826 = vadd.f32 %v4661, %v4825
        %4827 = vmatmul.bf16.gmra.mxu0 %v4365
        %v4828 = vpop.f32.mrf.mxu0
        %v4829 = vadd.f32 %v4664, %v4828
        %v4830 = vpop.f32.mrf.mxu0
        %v4831 = vadd.f32 %v4666, %v4830
        %4832 = vmatmul.bf16.gmra.mxu0 %v4366
        %v4833 = vpop.f32.mrf.mxu0
        %v4834 = vadd.f32 %v4669, %v4833
        %v4835 = vpop.f32.mrf.mxu0
        %v4836 = vadd.f32 %v4671, %v4835
        %4837 = vmatmul.bf16.gmra.mxu0 %v4367
        %v4838 = vpop.f32.mrf.mxu0
        %v4839 = vadd.f32 %v4674, %v4838
        %v4840 = vpop.f32.mrf.mxu0
        %v4841 = vadd.f32 %v4676, %v4840
        %4842 = vmatmul.bf16.gmra.mxu0 %v4368
        %v4843 = vpop.f32.mrf.mxu0
        %v4844 = vadd.f32 %v4679, %v4843
        %v4845 = vpop.f32.mrf.mxu0
        %v4846 = vadd.f32 %v4681, %v4845
        %4847 = vdwg.mxu0
        %v4848 = vld [vmem:[#allocation2] sm:$0xe]
        %s4849 = scalar_lea.vmem [#allocation4], 128
        %v4850 = vld [vmem:[%s4849] sm:$0xf]
        %v4851 = vld [vmem:[%s4849 + $0x4] sm:$0xf]
        %v4852 = vld [vmem:[%s4849 + $0x8] sm:$0xf]
        %v4853 = vld [vmem:[%s4849 + $0xc] sm:$0xf]
        %v4854 = vld [vmem:[%s4849 + $0x10] sm:$0xf]
        %v4855 = vld [vmem:[%s4849 + $0x14] sm:$0xf]
        %v4856 = vld [vmem:[%s4849 + $0x18] sm:$0xf]
        %v4857 = vld [vmem:[%s4849 + $0x1c] sm:$0xf]
        %v4858 = vld [vmem:[%s4849 + $0x20] sm:$0xf]
        %v4859 = vld [vmem:[%s4849 + $0x24] sm:$0xf]
        %v4860 = vld [vmem:[%s4849 + $0x28] sm:$0xf]
        %v4861 = vld [vmem:[%s4849 + $0x2c] sm:$0xf]
        %v4862 = vld [vmem:[%s4849 + $0x30] sm:$0xf]
        %v4863 = vld [vmem:[%s4849 + $0x34] sm:$0xf]
        %v4864 = vld [vmem:[%s4849 + $0x38] sm:$0xf]
        %v4865 = vld [vmem:[%s4849 + $0x3c] sm:$0xf]
        %v4867 = vunpack.c.l.b16 %v4848
        %v4868 = vpack.c.b16 %v4315, %v4867
        %v4869 = vrot.slane %v4868, 1
        %v4870 = vrot.slane %v4352, 1
        %v4871 = vsel %vm931, %v4869, %v4870
        %v4872 = vrot.slane %v4353, 1
        %v4873 = vsel %vm931, %v4870, %v4872
        %v4874 = vrot.slane %v4354, 1
        %v4875 = vsel %vm931, %v4872, %v4874
        %v4876 = vrot.slane %v4355, 1
        %v4877 = vsel %vm931, %v4874, %v4876
        %v4878 = vrot.slane %v4356, 1
        %v4879 = vsel %vm931, %v4876, %v4878
        %v4880 = vrot.slane %v4357, 1
        %v4881 = vsel %vm931, %v4878, %v4880
        %v4882 = vrot.slane %v4358, 1
        %v4883 = vsel %vm931, %v4880, %v4882
        %v4884 = vrot.slane %v4359, 1
        %v4885 = vsel %vm931, %v4882, %v4884
        %v4886 = vrot.slane %v4360, 1
        %v4887 = vsel %vm931, %v4884, %v4886
        %v4888 = vrot.slane %v4361, 1
        %v4889 = vsel %vm931, %v4886, %v4888
        %v4890 = vrot.slane %v4362, 1
        %v4891 = vsel %vm931, %v4888, %v4890
        %v4892 = vrot.slane %v4363, 1
        %v4893 = vsel %vm931, %v4890, %v4892
        %v4894 = vrot.slane %v4364, 1
        %v4895 = vsel %vm931, %v4892, %v4894
        %v4896 = vrot.slane %v4365, 1
        %v4897 = vsel %vm931, %v4894, %v4896
        %v4898 = vrot.slane %v4366, 1
        %v4899 = vsel %vm931, %v4896, %v4898
        %v4900 = vrot.slane %v4367, 1
        %v4901 = vsel %vm931, %v4898, %v4900
        %v4902 = vrot.slane %v4368, 1
        %v4903 = vsel %vm931, %v4900, %v4902
        %v4904 = vrot.slane %v4369, 1
        %v4905 = vsel %vm931, %v4902, %v4904
        %v4940 = vunpack.c.l.b16 %v4850
        %v4941 = vunpack.c.l.b16 %v4851
        %v4942 = vunpack.c.l.b16 %v4852
        %v4943 = vunpack.c.l.b16 %v4853
        %v4944 = vunpack.c.l.b16 %v4854
        %v4945 = vunpack.c.l.b16 %v4855
        %v4946 = vunpack.c.l.b16 %v4856
        %v4947 = vunpack.c.l.b16 %v4857
        %v4948 = vunpack.c.l.b16 %v4858
        %v4949 = vunpack.c.l.b16 %v4859
        %v4950 = vunpack.c.l.b16 %v4860
        %v4951 = vunpack.c.l.b16 %v4861
        %v4952 = vunpack.c.l.b16 %v4862
        %v4953 = vunpack.c.l.b16 %v4863
        %v4954 = vunpack.c.l.b16 %v4864
        %v4955 = vunpack.c.l.b16 %v4865
        %v4956 = vpack.c.b16 %v4941, %v4940
        %v4957 = vpack.c.b16 %v4943, %v4942
        %v4958 = vpack.c.b16 %v4945, %v4944
        %v4959 = vpack.c.b16 %v4947, %v4946
        %v4960 = vpack.c.b16 %v4949, %v4948
        %v4961 = vpack.c.b16 %v4951, %v4950
        %v4962 = vpack.c.b16 %v4953, %v4952
        %v4963 = vpack.c.b16 %v4955, %v4954
        %4972 = vmatpush.bf16.msra.mxu0 %v4963
        %4973 = vmatpush.bf16.msra.mxu0 %v4962
        %4974 = vmatpush.bf16.msra.mxu0 %v4961
        %4975 = vmatpush.bf16.msra.mxu0 %v4960
        %4976 = vmatpush.bf16.msra.mxu0 %v4959
        %4977 = vmatpush.bf16.msra.mxu0 %v4958
        %4978 = vmatpush.bf16.msra.mxu0 %v4957
        %4979 = vmatpush.bf16.msra.mxu0 %v4956
        %4980 = vmatmul.bf16.gmra.mxu0 %v4871
        %v4981 = vpop.f32.mrf.mxu0
        %v4982 = vadd.f32 0.0, %v4981
        %v4983 = vpop.f32.mrf.mxu0
        %v4984 = vadd.f32 0.0, %v4983
        %4985 = vmatmul.bf16.gmra.mxu0 %v4873
        %v4986 = vpop.f32.mrf.mxu0
        %v4987 = vadd.f32 0.0, %v4986
        %v4988 = vpop.f32.mrf.mxu0
        %v4989 = vadd.f32 0.0, %v4988
        %4990 = vmatmul.bf16.gmra.mxu0 %v4875
        %v4991 = vpop.f32.mrf.mxu0
        %v4992 = vadd.f32 0.0, %v4991
        %v4993 = vpop.f32.mrf.mxu0
        %v4994 = vadd.f32 0.0, %v4993
        %4995 = vmatmul.bf16.gmra.mxu0 %v4877
        %v4996 = vpop.f32.mrf.mxu0
        %v4997 = vadd.f32 0.0, %v4996
        %v4998 = vpop.f32.mrf.mxu0
        %v4999 = vadd.f32 0.0, %v4998
        %5000 = vmatmul.bf16.gmra.mxu0 %v4879
        %v5001 = vpop.f32.mrf.mxu0
        %v5002 = vadd.f32 0.0, %v5001
        %v5003 = vpop.f32.mrf.mxu0
        %v5004 = vadd.f32 0.0, %v5003
        %5005 = vmatmul.bf16.gmra.mxu0 %v4881
        %v5006 = vpop.f32.mrf.mxu0
        %v5007 = vadd.f32 0.0, %v5006
        %v5008 = vpop.f32.mrf.mxu0
        %v5009 = vadd.f32 0.0, %v5008
        %5010 = vmatmul.bf16.gmra.mxu0 %v4883
        %v5011 = vpop.f32.mrf.mxu0
        %v5012 = vadd.f32 0.0, %v5011
        %v5013 = vpop.f32.mrf.mxu0
        %v5014 = vadd.f32 0.0, %v5013
        %5015 = vmatmul.bf16.gmra.mxu0 %v4885
        %v5016 = vpop.f32.mrf.mxu0
        %v5017 = vadd.f32 0.0, %v5016
        %v5018 = vpop.f32.mrf.mxu0
        %v5019 = vadd.f32 0.0, %v5018
        %5020 = vmatmul.bf16.gmra.mxu0 %v4887
        %v5021 = vpop.f32.mrf.mxu0
        %v5022 = vadd.f32 0.0, %v5021
        %v5023 = vpop.f32.mrf.mxu0
        %v5024 = vadd.f32 0.0, %v5023
        %5025 = vmatmul.bf16.gmra.mxu0 %v4889
        %v5026 = vpop.f32.mrf.mxu0
        %v5027 = vadd.f32 0.0, %v5026
        %v5028 = vpop.f32.mrf.mxu0
        %v5029 = vadd.f32 0.0, %v5028
        %5030 = vmatmul.bf16.gmra.mxu0 %v4891
        %v5031 = vpop.f32.mrf.mxu0
        %v5032 = vadd.f32 0.0, %v5031
        %v5033 = vpop.f32.mrf.mxu0
        %v5034 = vadd.f32 0.0, %v5033
        %5035 = vmatmul.bf16.gmra.mxu0 %v4893
        %v5036 = vpop.f32.mrf.mxu0
        %v5037 = vadd.f32 0.0, %v5036
        %v5038 = vpop.f32.mrf.mxu0
        %v5039 = vadd.f32 0.0, %v5038
        %5040 = vmatmul.bf16.gmra.mxu0 %v4895
        %v5041 = vpop.f32.mrf.mxu0
        %v5042 = vadd.f32 0.0, %v5041
        %v5043 = vpop.f32.mrf.mxu0
        %v5044 = vadd.f32 0.0, %v5043
        %5045 = vmatmul.bf16.gmra.mxu0 %v4897
        %v5046 = vpop.f32.mrf.mxu0
        %v5047 = vadd.f32 0.0, %v5046
        %v5048 = vpop.f32.mrf.mxu0
        %v5049 = vadd.f32 0.0, %v5048
        %5050 = vmatmul.bf16.gmra.mxu0 %v4899
        %v5051 = vpop.f32.mrf.mxu0
        %v5052 = vadd.f32 0.0, %v5051
        %v5053 = vpop.f32.mrf.mxu0
        %v5054 = vadd.f32 0.0, %v5053
        %5055 = vmatmul.bf16.gmra.mxu0 %v4901
        %v5056 = vpop.f32.mrf.mxu0
        %v5057 = vadd.f32 0.0, %v5056
        %v5058 = vpop.f32.mrf.mxu0
        %v5059 = vadd.f32 0.0, %v5058
        %5060 = vmatmul.bf16.gmra.mxu0 %v4903
        %v5061 = vpop.f32.mrf.mxu0
        %v5062 = vadd.f32 0.0, %v5061
        %v5063 = vpop.f32.mrf.mxu0
        %v5064 = vadd.f32 0.0, %v5063
        %5065 = vmatmul.bf16.gmra.mxu0 %v4905
        %v5066 = vpop.f32.mrf.mxu0
        %v5067 = vadd.f32 0.0, %v5066
        %v5068 = vpop.f32.mrf.mxu0
        %v5069 = vadd.f32 0.0, %v5068
        %5070 = vdwg.mxu0
        %v5071 = vadd.f32 %v4759, %v4982
        %v5072 = vadd.f32 %v4761, %v4984
        %v5073 = vadd.f32 %v4764, %v4987
        %v5074 = vadd.f32 %v4766, %v4989
        %v5075 = vadd.f32 %v4769, %v4992
        %v5076 = vadd.f32 %v4771, %v4994
        %v5077 = vadd.f32 %v4774, %v4997
        %v5078 = vadd.f32 %v4776, %v4999
        %v5079 = vadd.f32 %v4779, %v5002
        %v5080 = vadd.f32 %v4781, %v5004
        %v5081 = vadd.f32 %v4784, %v5007
        %v5082 = vadd.f32 %v4786, %v5009
        %v5083 = vadd.f32 %v4789, %v5012
        %v5084 = vadd.f32 %v4791, %v5014
        %v5085 = vadd.f32 %v4794, %v5017
        %v5086 = vadd.f32 %v4796, %v5019
        %v5087 = vadd.f32 %v4799, %v5022
        %v5088 = vadd.f32 %v4801, %v5024
        %v5089 = vadd.f32 %v4804, %v5027
        %v5090 = vadd.f32 %v4806, %v5029
        %v5091 = vadd.f32 %v4809, %v5032
        %v5092 = vadd.f32 %v4811, %v5034
        %v5093 = vadd.f32 %v4814, %v5037
        %v5094 = vadd.f32 %v4816, %v5039
        %v5095 = vadd.f32 %v4819, %v5042
        %v5096 = vadd.f32 %v4821, %v5044
        %v5097 = vadd.f32 %v4824, %v5047
        %v5098 = vadd.f32 %v4826, %v5049
        %v5099 = vadd.f32 %v4829, %v5052
        %v5100 = vadd.f32 %v4831, %v5054
        %v5101 = vadd.f32 %v4834, %v5057
        %v5102 = vadd.f32 %v4836, %v5059
        %v5103 = vadd.f32 %v4839, %v5062
        %v5104 = vadd.f32 %v4841, %v5064
        %v5105 = vadd.f32 %v4844, %v5067
        %v5106 = vadd.f32 %v4846, %v5069
        %5107 = vst [vmem:[#allocation3] sm:$0xff] %v5071
        %5108 = vst [vmem:[#allocation3 + $0x8] sm:$0xff] %v5072
        %5109 = vst [vmem:[#allocation3 + $0x10] sm:$0xff] %v5073
        %5110 = vst [vmem:[#allocation3 + $0x18] sm:$0xff] %v5074
        %5111 = vst [vmem:[#allocation3 + $0x20] sm:$0xff] %v5075
        %5112 = vst [vmem:[#allocation3 + $0x28] sm:$0xff] %v5076
        %5113 = vst [vmem:[#allocation3 + $0x30] sm:$0xff] %v5077
        %5114 = vst [vmem:[#allocation3 + $0x38] sm:$0xff] %v5078
        %5115 = vst [vmem:[#allocation3 + $0x40] sm:$0xff] %v5079
        %5116 = vst [vmem:[#allocation3 + $0x48] sm:$0xff] %v5080
        %5117 = vst [vmem:[#allocation3 + $0x50] sm:$0xff] %v5081
        %5118 = vst [vmem:[#allocation3 + $0x58] sm:$0xff] %v5082
        %5119 = vst [vmem:[#allocation3 + $0x60] sm:$0xff] %v5083
        %5120 = vst [vmem:[#allocation3 + $0x68] sm:$0xff] %v5084
        %5121 = vst [vmem:[#allocation3 + $0x70] sm:$0xff] %v5085
        %5122 = vst [vmem:[#allocation3 + $0x78] sm:$0xff] %v5086
        %5123 = vst [vmem:[#allocation3 + $0x80] sm:$0xff] %v5087
        %5124 = vst [vmem:[#allocation3 + $0x88] sm:$0xff] %v5088
        %5125 = vst [vmem:[#allocation3 + $0x90] sm:$0xff] %v5089
        %5126 = vst [vmem:[#allocation3 + $0x98] sm:$0xff] %v5090
        %5127 = vst [vmem:[#allocation3 + $0xa0] sm:$0xff] %v5091
        %5128 = vst [vmem:[#allocation3 + $0xa8] sm:$0xff] %v5092
        %5129 = vst [vmem:[#allocation3 + $0xb0] sm:$0xff] %v5093
        %5130 = vst [vmem:[#allocation3 + $0xb8] sm:$0xff] %v5094
        %5131 = vst [vmem:[#allocation3 + $0xc0] sm:$0xff] %v5095
        %5132 = vst [vmem:[#allocation3 + $0xc8] sm:$0xff] %v5096
        %5133 = vst [vmem:[#allocation3 + $0xd0] sm:$0xff] %v5097
        %5134 = vst [vmem:[#allocation3 + $0xd8] sm:$0xff] %v5098
        %5135 = vst [vmem:[#allocation3 + $0xe0] sm:$0xff] %v5099
        %5136 = vst [vmem:[#allocation3 + $0xe8] sm:$0xff] %v5100
        %5137 = vst [vmem:[#allocation3 + $0xf0] sm:$0xff] %v5101
        %5138 = vst [vmem:[#allocation3 + $0xf8] sm:$0xff] %v5102
        %5139 = vst [vmem:[#allocation3 + $0x100] sm:$0xff] %v5103
        %5140 = vst [vmem:[#allocation3 + $0x108] sm:$0xff] %v5104
        %5141 = vst [vmem:[#allocation3 + $0x110] sm:$0xff] %v5105
        %5142 = vst [vmem:[#allocation3 + $0x118] sm:$0xff] %v5106
        %v5143 = vld [vmem:[#allocation2 + $0x8] sm:$0xe]
        %v5144 = vld [vmem:[#allocation2 + $0xc] sm:$0xf]
        %v5145 = vld [vmem:[#allocation2 + $0x10] sm:$0xf]
        %v5146 = vld [vmem:[#allocation2 + $0x14] sm:$0xf]
        %v5147 = vld [vmem:[#allocation2 + $0x18] sm:$0xf]
        %v5148 = vld [vmem:[#allocation2 + $0x1c] sm:$0xf]
        %v5149 = vld [vmem:[#allocation2 + $0x20] sm:$0xf]
        %v5150 = vld [vmem:[#allocation2 + $0x24] sm:$0xf]
        %v5151 = vld [vmem:[#allocation2 + $0x28] sm:$0xf]
        %v5152 = vld [vmem:[#allocation2 + $0x2c] sm:$0xf]
        %v5153 = vld [vmem:[#allocation2 + $0x30] sm:$0xf]
        %v5154 = vld [vmem:[#allocation2 + $0x34] sm:$0xf]
        %v5155 = vld [vmem:[#allocation2 + $0x38] sm:$0xf]
        %v5156 = vld [vmem:[#allocation2 + $0x3c] sm:$0xf]
        %v5157 = vld [vmem:[#allocation2 + $0x40] sm:$0xf]
        %v5158 = vld [vmem:[#allocation2 + $0x44] sm:$0xf]
        %v5159 = vld [vmem:[#allocation2 + $0x48] sm:$0xf]
        %v5160 = vld [vmem:[#allocation2 + $0x4c] sm:$0xf]
        %v5161 = vld [vmem:[#allocation2 + $0x50] sm:$0xf]
        %v5162 = vld [vmem:[#allocation2 + $0x54] sm:$0xf]
        %v5163 = vld [vmem:[#allocation2 + $0x58] sm:$0xf]
        %v5164 = vld [vmem:[#allocation2 + $0x5c] sm:$0xf]
        %v5165 = vld [vmem:[#allocation2 + $0x60] sm:$0xf]
        %v5166 = vld [vmem:[#allocation2 + $0x64] sm:$0xf]
        %v5167 = vld [vmem:[#allocation2 + $0x68] sm:$0xf]
        %v5168 = vld [vmem:[#allocation2 + $0x6c] sm:$0xf]
        %v5169 = vld [vmem:[#allocation2 + $0x70] sm:$0xf]
        %v5170 = vld [vmem:[#allocation2 + $0x74] sm:$0xf]
        %v5171 = vld [vmem:[#allocation2 + $0x78] sm:$0xf]
        %v5172 = vld [vmem:[#allocation2 + $0x7c] sm:$0xf]
        %v5173 = vld [vmem:[#allocation2 + $0x80] sm:$0xf]
        %v5174 = vld [vmem:[#allocation2 + $0x84] sm:$0xf]
        %v5175 = vld [vmem:[#allocation2 + $0x88] sm:$0xf]
        %v5176 = vld [vmem:[#allocation2 + $0x8c] sm:$0xf]
        %v5177 = vld [vmem:[#allocation2 + $0x90] sm:$0xf]
        %v5178 = vld [vmem:[#allocation2 + $0x94] sm:$0xf]
        %v5179 = vld [vmem:[#allocation2 + $0x98] sm:$0x1]
        %s5180 = scalar_lea.vmem [#allocation4], 192
        %v5181 = vld [vmem:[%s5180] sm:$0xf]
        %v5182 = vld [vmem:[%s5180 + $0x4] sm:$0xf]
        %v5183 = vld [vmem:[%s5180 + $0x8] sm:$0xf]
        %v5184 = vld [vmem:[%s5180 + $0xc] sm:$0xf]
        %v5185 = vld [vmem:[%s5180 + $0x10] sm:$0xf]
        %v5186 = vld [vmem:[%s5180 + $0x14] sm:$0xf]
        %v5187 = vld [vmem:[%s5180 + $0x18] sm:$0xf]
        %v5188 = vld [vmem:[%s5180 + $0x1c] sm:$0xf]
        %v5189 = vld [vmem:[%s5180 + $0x20] sm:$0xf]
        %v5190 = vld [vmem:[%s5180 + $0x24] sm:$0xf]
        %v5191 = vld [vmem:[%s5180 + $0x28] sm:$0xf]
        %v5192 = vld [vmem:[%s5180 + $0x2c] sm:$0xf]
        %v5193 = vld [vmem:[%s5180 + $0x30] sm:$0xf]
        %v5194 = vld [vmem:[%s5180 + $0x34] sm:$0xf]
        %v5195 = vld [vmem:[%s5180 + $0x38] sm:$0xf]
        %v5196 = vld [vmem:[%s5180 + $0x3c] sm:$0xf]
        %v5197 = vld [vmem:[#allocation2 + $0x98] sm:$0x3]
        %s5198 = scalar_lea.vmem [#allocation4], 256
        %v5199 = vld [vmem:[%s5198] sm:$0xf]
        %v5200 = vld [vmem:[%s5198 + $0x4] sm:$0xf]
        %v5201 = vld [vmem:[%s5198 + $0x8] sm:$0xf]
        %v5202 = vld [vmem:[%s5198 + $0xc] sm:$0xf]
        %v5203 = vld [vmem:[%s5198 + $0x10] sm:$0xf]
        %v5204 = vld [vmem:[%s5198 + $0x14] sm:$0xf]
        %v5205 = vld [vmem:[%s5198 + $0x18] sm:$0xf]
        %v5206 = vld [vmem:[%s5198 + $0x1c] sm:$0xf]
        %v5207 = vld [vmem:[%s5198 + $0x20] sm:$0xf]
        %v5208 = vld [vmem:[%s5198 + $0x24] sm:$0xf]
        %v5209 = vld [vmem:[%s5198 + $0x28] sm:$0xf]
        %v5210 = vld [vmem:[%s5198 + $0x2c] sm:$0xf]
        %v5211 = vld [vmem:[%s5198 + $0x30] sm:$0xf]
        %v5212 = vld [vmem:[%s5198 + $0x34] sm:$0xf]
        %v5213 = vld [vmem:[%s5198 + $0x38] sm:$0xf]
        %v5214 = vld [vmem:[%s5198 + $0x3c] sm:$0xf]
        %v5252 = vunpack.c.l.b16 %v5143
        %v5253 = vunpack.c.l.b16 %v5144
        %v5254 = vunpack.c.l.b16 %v5145
        %v5255 = vunpack.c.l.b16 %v5146
        %v5256 = vunpack.c.l.b16 %v5147
        %v5257 = vunpack.c.l.b16 %v5148
        %v5258 = vunpack.c.l.b16 %v5149
        %v5259 = vunpack.c.l.b16 %v5150
        %v5260 = vunpack.c.l.b16 %v5151
        %v5261 = vunpack.c.l.b16 %v5152
        %v5262 = vunpack.c.l.b16 %v5153
        %v5263 = vunpack.c.l.b16 %v5154
        %v5264 = vunpack.c.l.b16 %v5155
        %v5265 = vunpack.c.l.b16 %v5156
        %v5266 = vunpack.c.l.b16 %v5157
        %v5267 = vunpack.c.l.b16 %v5158
        %v5268 = vunpack.c.l.b16 %v5159
        %v5269 = vunpack.c.l.b16 %v5160
        %v5270 = vunpack.c.l.b16 %v5161
        %v5271 = vunpack.c.l.b16 %v5162
        %v5272 = vunpack.c.l.b16 %v5163
        %v5273 = vunpack.c.l.b16 %v5164
        %v5274 = vunpack.c.l.b16 %v5165
        %v5275 = vunpack.c.l.b16 %v5166
        %v5276 = vunpack.c.l.b16 %v5167
        %v5277 = vunpack.c.l.b16 %v5168
        %v5278 = vunpack.c.l.b16 %v5169
        %v5279 = vunpack.c.l.b16 %v5170
        %v5280 = vunpack.c.l.b16 %v5171
        %v5281 = vunpack.c.l.b16 %v5172
        %v5282 = vunpack.c.l.b16 %v5173
        %v5283 = vunpack.c.l.b16 %v5174
        %v5284 = vunpack.c.l.b16 %v5175
        %v5285 = vunpack.c.l.b16 %v5176
        %v5286 = vunpack.c.l.b16 %v5177
        %v5287 = vunpack.c.l.b16 %v5178
        %v5288 = vunpack.c.l.b16 %v5197
        %v5289 = vpack.c.b16 %v5253, %v5252
        %v5290 = vpack.c.b16 %v5255, %v5254
        %v5291 = vpack.c.b16 %v5257, %v5256
        %v5292 = vpack.c.b16 %v5259, %v5258
        %v5293 = vpack.c.b16 %v5261, %v5260
        %v5294 = vpack.c.b16 %v5263, %v5262
        %v5295 = vpack.c.b16 %v5265, %v5264
        %v5296 = vpack.c.b16 %v5267, %v5266
        %v5297 = vpack.c.b16 %v5269, %v5268
        %v5298 = vpack.c.b16 %v5271, %v5270
        %v5299 = vpack.c.b16 %v5273, %v5272
        %v5300 = vpack.c.b16 %v5275, %v5274
        %v5301 = vpack.c.b16 %v5277, %v5276
        %v5302 = vpack.c.b16 %v5279, %v5278
        %v5303 = vpack.c.b16 %v5281, %v5280
        %v5304 = vpack.c.b16 %v5283, %v5282
        %v5305 = vpack.c.b16 %v5285, %v5284
        %v5306 = vpack.c.b16 %v5287, %v5286
        %v5307 = vpack.c.b16 %v5288, %v5288
        %v5309 = vshrl.u32 %v5289, 16
        %v5311 = vrot.slane %v5309, 1
        %v5312 = vshll.u32 %v5289, 16
        %v5314 = vrot.slane %v5312, 2
        %v5315 = vor.u32 %v5311, %v5314
        %v5317 = vshrl.u32 %v5290, 16
        %v5319 = vrot.slane %v5317, 1
        %v5320 = vshll.u32 %v5290, 16
        %v5322 = vrot.slane %v5320, 2
        %v5323 = vor.u32 %v5319, %v5322
        %v5324 = vsel %vm1371, %v5315, %v5323
        %v5326 = vshrl.u32 %v5291, 16
        %v5328 = vrot.slane %v5326, 1
        %v5329 = vshll.u32 %v5291, 16
        %v5331 = vrot.slane %v5329, 2
        %v5332 = vor.u32 %v5328, %v5331
        %v5333 = vsel %vm1371, %v5323, %v5332
        %v5335 = vshrl.u32 %v5292, 16
        %v5337 = vrot.slane %v5335, 1
        %v5338 = vshll.u32 %v5292, 16
        %v5340 = vrot.slane %v5338, 2
        %v5341 = vor.u32 %v5337, %v5340
        %v5342 = vsel %vm1371, %v5332, %v5341
        %v5344 = vshrl.u32 %v5293, 16
        %v5346 = vrot.slane %v5344, 1
        %v5347 = vshll.u32 %v5293, 16
        %v5349 = vrot.slane %v5347, 2
        %v5350 = vor.u32 %v5346, %v5349
        %v5351 = vsel %vm1371, %v5341, %v5350
        %v5353 = vshrl.u32 %v5294, 16
        %v5355 = vrot.slane %v5353, 1
        %v5356 = vshll.u32 %v5294, 16
        %v5358 = vrot.slane %v5356, 2
        %v5359 = vor.u32 %v5355, %v5358
        %v5360 = vsel %vm1371, %v5350, %v5359
        %v5362 = vshrl.u32 %v5295, 16
        %v5364 = vrot.slane %v5362, 1
        %v5365 = vshll.u32 %v5295, 16
        %v5367 = vrot.slane %v5365, 2
        %v5368 = vor.u32 %v5364, %v5367
        %v5369 = vsel %vm1371, %v5359, %v5368
        %v5371 = vshrl.u32 %v5296, 16
        %v5373 = vrot.slane %v5371, 1
        %v5374 = vshll.u32 %v5296, 16
        %v5376 = vrot.slane %v5374, 2
        %v5377 = vor.u32 %v5373, %v5376
        %v5378 = vsel %vm1371, %v5368, %v5377
        %v5380 = vshrl.u32 %v5297, 16
        %v5382 = vrot.slane %v5380, 1
        %v5383 = vshll.u32 %v5297, 16
        %v5385 = vrot.slane %v5383, 2
        %v5386 = vor.u32 %v5382, %v5385
        %v5387 = vsel %vm1371, %v5377, %v5386
        %v5389 = vshrl.u32 %v5298, 16
        %v5391 = vrot.slane %v5389, 1
        %v5392 = vshll.u32 %v5298, 16
        %v5394 = vrot.slane %v5392, 2
        %v5395 = vor.u32 %v5391, %v5394
        %v5396 = vsel %vm1371, %v5386, %v5395
        %v5398 = vshrl.u32 %v5299, 16
        %v5400 = vrot.slane %v5398, 1
        %v5401 = vshll.u32 %v5299, 16
        %v5403 = vrot.slane %v5401, 2
        %v5404 = vor.u32 %v5400, %v5403
        %v5405 = vsel %vm1371, %v5395, %v5404
        %v5407 = vshrl.u32 %v5300, 16
        %v5409 = vrot.slane %v5407, 1
        %v5410 = vshll.u32 %v5300, 16
        %v5412 = vrot.slane %v5410, 2
        %v5413 = vor.u32 %v5409, %v5412
        %v5414 = vsel %vm1371, %v5404, %v5413
        %v5416 = vshrl.u32 %v5301, 16
        %v5418 = vrot.slane %v5416, 1
        %v5419 = vshll.u32 %v5301, 16
        %v5421 = vrot.slane %v5419, 2
        %v5422 = vor.u32 %v5418, %v5421
        %v5423 = vsel %vm1371, %v5413, %v5422
        %v5425 = vshrl.u32 %v5302, 16
        %v5427 = vrot.slane %v5425, 1
        %v5428 = vshll.u32 %v5302, 16
        %v5430 = vrot.slane %v5428, 2
        %v5431 = vor.u32 %v5427, %v5430
        %v5432 = vsel %vm1371, %v5422, %v5431
        %v5434 = vshrl.u32 %v5303, 16
        %v5436 = vrot.slane %v5434, 1
        %v5437 = vshll.u32 %v5303, 16
        %v5439 = vrot.slane %v5437, 2
        %v5440 = vor.u32 %v5436, %v5439
        %v5441 = vsel %vm1371, %v5431, %v5440
        %v5443 = vshrl.u32 %v5304, 16
        %v5445 = vrot.slane %v5443, 1
        %v5446 = vshll.u32 %v5304, 16
        %v5448 = vrot.slane %v5446, 2
        %v5449 = vor.u32 %v5445, %v5448
        %v5450 = vsel %vm1371, %v5440, %v5449
        %v5452 = vshrl.u32 %v5305, 16
        %v5454 = vrot.slane %v5452, 1
        %v5455 = vshll.u32 %v5305, 16
        %v5457 = vrot.slane %v5455, 2
        %v5458 = vor.u32 %v5454, %v5457
        %v5459 = vsel %vm1371, %v5449, %v5458
        %v5461 = vshrl.u32 %v5306, 16
        %v5463 = vrot.slane %v5461, 1
        %v5464 = vshll.u32 %v5306, 16
        %v5466 = vrot.slane %v5464, 2
        %v5467 = vor.u32 %v5463, %v5466
        %v5468 = vsel %vm1371, %v5458, %v5467
        %v5470 = vshrl.u32 %v5307, 16
        %v5472 = vrot.slane %v5470, 1
        %v5473 = vshll.u32 %v5307, 16
        %v5475 = vrot.slane %v5473, 2
        %v5476 = vor.u32 %v5472, %v5475
        %v5477 = vsel %vm1371, %v5467, %v5476
        %v5512 = vunpack.c.l.b16 %v5199
        %v5513 = vunpack.c.l.b16 %v5200
        %v5514 = vunpack.c.l.b16 %v5201
        %v5515 = vunpack.c.l.b16 %v5202
        %v5516 = vunpack.c.l.b16 %v5203
        %v5517 = vunpack.c.l.b16 %v5204
        %v5518 = vunpack.c.l.b16 %v5205
        %v5519 = vunpack.c.l.b16 %v5206
        %v5520 = vunpack.c.l.b16 %v5207
        %v5521 = vunpack.c.l.b16 %v5208
        %v5522 = vunpack.c.l.b16 %v5209
        %v5523 = vunpack.c.l.b16 %v5210
        %v5524 = vunpack.c.l.b16 %v5211
        %v5525 = vunpack.c.l.b16 %v5212
        %v5526 = vunpack.c.l.b16 %v5213
        %v5527 = vunpack.c.l.b16 %v5214
        %v5528 = vpack.c.b16 %v5513, %v5512
        %v5529 = vpack.c.b16 %v5515, %v5514
        %v5530 = vpack.c.b16 %v5517, %v5516
        %v5531 = vpack.c.b16 %v5519, %v5518
        %v5532 = vpack.c.b16 %v5521, %v5520
        %v5533 = vpack.c.b16 %v5523, %v5522
        %v5534 = vpack.c.b16 %v5525, %v5524
        %v5535 = vpack.c.b16 %v5527, %v5526
        %5544 = vmatpush.bf16.msra.mxu0 %v5535
        %5545 = vmatpush.bf16.msra.mxu0 %v5534
        %5546 = vmatpush.bf16.msra.mxu0 %v5533
        %5547 = vmatpush.bf16.msra.mxu0 %v5532
        %5548 = vmatpush.bf16.msra.mxu0 %v5531
        %5549 = vmatpush.bf16.msra.mxu0 %v5530
        %5550 = vmatpush.bf16.msra.mxu0 %v5529
        %5551 = vmatpush.bf16.msra.mxu0 %v5528
        %5552 = vmatmul.bf16.gmra.mxu0 %v5324
        %v5553 = vpop.f32.mrf.mxu0
        %v5554 = vadd.f32 0.0, %v5553
        %v5555 = vpop.f32.mrf.mxu0
        %v5556 = vadd.f32 0.0, %v5555
        %5557 = vmatmul.bf16.gmra.mxu0 %v5333
        %v5558 = vpop.f32.mrf.mxu0
        %v5559 = vadd.f32 0.0, %v5558
        %v5560 = vpop.f32.mrf.mxu0
        %v5561 = vadd.f32 0.0, %v5560
        %5562 = vmatmul.bf16.gmra.mxu0 %v5342
        %v5563 = vpop.f32.mrf.mxu0
        %v5564 = vadd.f32 0.0, %v5563
        %v5565 = vpop.f32.mrf.mxu0
        %v5566 = vadd.f32 0.0, %v5565
        %5567 = vmatmul.bf16.gmra.mxu0 %v5351
        %v5568 = vpop.f32.mrf.mxu0
        %v5569 = vadd.f32 0.0, %v5568
        %v5570 = vpop.f32.mrf.mxu0
        %v5571 = vadd.f32 0.0, %v5570
        %5572 = vmatmul.bf16.gmra.mxu0 %v5360
        %v5573 = vpop.f32.mrf.mxu0
        %v5574 = vadd.f32 0.0, %v5573
        %v5575 = vpop.f32.mrf.mxu0
        %v5576 = vadd.f32 0.0, %v5575
        %5577 = vmatmul.bf16.gmra.mxu0 %v5369
        %v5578 = vpop.f32.mrf.mxu0
        %v5579 = vadd.f32 0.0, %v5578
        %v5580 = vpop.f32.mrf.mxu0
        %v5581 = vadd.f32 0.0, %v5580
        %5582 = vmatmul.bf16.gmra.mxu0 %v5378
        %v5583 = vpop.f32.mrf.mxu0
        %v5584 = vadd.f32 0.0, %v5583
        %v5585 = vpop.f32.mrf.mxu0
        %v5586 = vadd.f32 0.0, %v5585
        %5587 = vmatmul.bf16.gmra.mxu0 %v5387
        %v5588 = vpop.f32.mrf.mxu0
        %v5589 = vadd.f32 0.0, %v5588
        %v5590 = vpop.f32.mrf.mxu0
        %v5591 = vadd.f32 0.0, %v5590
        %5592 = vmatmul.bf16.gmra.mxu0 %v5396
        %v5593 = vpop.f32.mrf.mxu0
        %v5594 = vadd.f32 0.0, %v5593
        %v5595 = vpop.f32.mrf.mxu0
        %v5596 = vadd.f32 0.0, %v5595
        %5597 = vmatmul.bf16.gmra.mxu0 %v5405
        %v5598 = vpop.f32.mrf.mxu0
        %v5599 = vadd.f32 0.0, %v5598
        %v5600 = vpop.f32.mrf.mxu0
        %v5601 = vadd.f32 0.0, %v5600
        %5602 = vmatmul.bf16.gmra.mxu0 %v5414
        %v5603 = vpop.f32.mrf.mxu0
        %v5604 = vadd.f32 0.0, %v5603
        %v5605 = vpop.f32.mrf.mxu0
        %v5606 = vadd.f32 0.0, %v5605
        %5607 = vmatmul.bf16.gmra.mxu0 %v5423
        %v5608 = vpop.f32.mrf.mxu0
        %v5609 = vadd.f32 0.0, %v5608
        %v5610 = vpop.f32.mrf.mxu0
        %v5611 = vadd.f32 0.0, %v5610
        %5612 = vmatmul.bf16.gmra.mxu0 %v5432
        %v5613 = vpop.f32.mrf.mxu0
        %v5614 = vadd.f32 0.0, %v5613
        %v5615 = vpop.f32.mrf.mxu0
        %v5616 = vadd.f32 0.0, %v5615
        %5617 = vmatmul.bf16.gmra.mxu0 %v5441
        %v5618 = vpop.f32.mrf.mxu0
        %v5619 = vadd.f32 0.0, %v5618
        %v5620 = vpop.f32.mrf.mxu0
        %v5621 = vadd.f32 0.0, %v5620
        %5622 = vmatmul.bf16.gmra.mxu0 %v5450
        %v5623 = vpop.f32.mrf.mxu0
        %v5624 = vadd.f32 0.0, %v5623
        %v5625 = vpop.f32.mrf.mxu0
        %v5626 = vadd.f32 0.0, %v5625
        %5627 = vmatmul.bf16.gmra.mxu0 %v5459
        %v5628 = vpop.f32.mrf.mxu0
        %v5629 = vadd.f32 0.0, %v5628
        %v5630 = vpop.f32.mrf.mxu0
        %v5631 = vadd.f32 0.0, %v5630
        %5632 = vmatmul.bf16.gmra.mxu0 %v5468
        %v5633 = vpop.f32.mrf.mxu0
        %v5634 = vadd.f32 0.0, %v5633
        %v5635 = vpop.f32.mrf.mxu0
        %v5636 = vadd.f32 0.0, %v5635
        %5637 = vmatmul.bf16.gmra.mxu0 %v5477
        %v5638 = vpop.f32.mrf.mxu0
        %v5639 = vadd.f32 0.0, %v5638
        %v5640 = vpop.f32.mrf.mxu0
        %v5641 = vadd.f32 0.0, %v5640
        %5642 = vdwg.mxu0
        %v5644 = vunpack.c.l.b16 %v5179
        %v5645 = vpack.c.b16 %v5644, %v5644
        %v5646 = vrot.slane %v5289, 1
        %v5647 = vrot.slane %v5290, 1
        %v5648 = vsel %vm931, %v5646, %v5647
        %v5649 = vrot.slane %v5291, 1
        %v5650 = vsel %vm931, %v5647, %v5649
        %v5651 = vrot.slane %v5292, 1
        %v5652 = vsel %vm931, %v5649, %v5651
        %v5653 = vrot.slane %v5293, 1
        %v5654 = vsel %vm931, %v5651, %v5653
        %v5655 = vrot.slane %v5294, 1
        %v5656 = vsel %vm931, %v5653, %v5655
        %v5657 = vrot.slane %v5295, 1
        %v5658 = vsel %vm931, %v5655, %v5657
        %v5659 = vrot.slane %v5296, 1
        %v5660 = vsel %vm931, %v5657, %v5659
        %v5661 = vrot.slane %v5297, 1
        %v5662 = vsel %vm931, %v5659, %v5661
        %v5663 = vrot.slane %v5298, 1
        %v5664 = vsel %vm931, %v5661, %v5663
        %v5665 = vrot.slane %v5299, 1
        %v5666 = vsel %vm931, %v5663, %v5665
        %v5667 = vrot.slane %v5300, 1
        %v5668 = vsel %vm931, %v5665, %v5667
        %v5669 = vrot.slane %v5301, 1
        %v5670 = vsel %vm931, %v5667, %v5669
        %v5671 = vrot.slane %v5302, 1
        %v5672 = vsel %vm931, %v5669, %v5671
        %v5673 = vrot.slane %v5303, 1
        %v5674 = vsel %vm931, %v5671, %v5673
        %v5675 = vrot.slane %v5304, 1
        %v5676 = vsel %vm931, %v5673, %v5675
        %v5677 = vrot.slane %v5305, 1
        %v5678 = vsel %vm931, %v5675, %v5677
        %v5679 = vrot.slane %v5306, 1
        %v5680 = vsel %vm931, %v5677, %v5679
        %v5681 = vrot.slane %v5645, 1
        %v5682 = vsel %vm931, %v5679, %v5681
        %v5717 = vunpack.c.l.b16 %v5181
        %v5718 = vunpack.c.l.b16 %v5182
        %v5719 = vunpack.c.l.b16 %v5183
        %v5720 = vunpack.c.l.b16 %v5184
        %v5721 = vunpack.c.l.b16 %v5185
        %v5722 = vunpack.c.l.b16 %v5186
        %v5723 = vunpack.c.l.b16 %v5187
        %v5724 = vunpack.c.l.b16 %v5188
        %v5725 = vunpack.c.l.b16 %v5189
        %v5726 = vunpack.c.l.b16 %v5190
        %v5727 = vunpack.c.l.b16 %v5191
        %v5728 = vunpack.c.l.b16 %v5192
        %v5729 = vunpack.c.l.b16 %v5193
        %v5730 = vunpack.c.l.b16 %v5194
        %v5731 = vunpack.c.l.b16 %v5195
        %v5732 = vunpack.c.l.b16 %v5196
        %v5733 = vpack.c.b16 %v5718, %v5717
        %v5734 = vpack.c.b16 %v5720, %v5719
        %v5735 = vpack.c.b16 %v5722, %v5721
        %v5736 = vpack.c.b16 %v5724, %v5723
        %v5737 = vpack.c.b16 %v5726, %v5725
        %v5738 = vpack.c.b16 %v5728, %v5727
        %v5739 = vpack.c.b16 %v5730, %v5729
        %v5740 = vpack.c.b16 %v5732, %v5731
        %5749 = vmatpush.bf16.msra.mxu0 %v5740
        %5750 = vmatpush.bf16.msra.mxu0 %v5739
        %5751 = vmatpush.bf16.msra.mxu0 %v5738
        %5752 = vmatpush.bf16.msra.mxu0 %v5737
        %5753 = vmatpush.bf16.msra.mxu0 %v5736
        %5754 = vmatpush.bf16.msra.mxu0 %v5735
        %5755 = vmatpush.bf16.msra.mxu0 %v5734
        %5756 = vmatpush.bf16.msra.mxu0 %v5733
        %5757 = vmatmul.bf16.gmra.mxu0 %v5648
        %v5758 = vpop.f32.mrf.mxu0
        %v5759 = vadd.f32 %v5554, %v5758
        %v5760 = vpop.f32.mrf.mxu0
        %v5761 = vadd.f32 %v5556, %v5760
        %5762 = vmatmul.bf16.gmra.mxu0 %v5650
        %v5763 = vpop.f32.mrf.mxu0
        %v5764 = vadd.f32 %v5559, %v5763
        %v5765 = vpop.f32.mrf.mxu0
        %v5766 = vadd.f32 %v5561, %v5765
        %5767 = vmatmul.bf16.gmra.mxu0 %v5652
        %v5768 = vpop.f32.mrf.mxu0
        %v5769 = vadd.f32 %v5564, %v5768
        %v5770 = vpop.f32.mrf.mxu0
        %v5771 = vadd.f32 %v5566, %v5770
        %5772 = vmatmul.bf16.gmra.mxu0 %v5654
        %v5773 = vpop.f32.mrf.mxu0
        %v5774 = vadd.f32 %v5569, %v5773
        %v5775 = vpop.f32.mrf.mxu0
        %v5776 = vadd.f32 %v5571, %v5775
        %5777 = vmatmul.bf16.gmra.mxu0 %v5656
        %v5778 = vpop.f32.mrf.mxu0
        %v5779 = vadd.f32 %v5574, %v5778
        %v5780 = vpop.f32.mrf.mxu0
        %v5781 = vadd.f32 %v5576, %v5780
        %5782 = vmatmul.bf16.gmra.mxu0 %v5658
        %v5783 = vpop.f32.mrf.mxu0
        %v5784 = vadd.f32 %v5579, %v5783
        %v5785 = vpop.f32.mrf.mxu0
        %v5786 = vadd.f32 %v5581, %v5785
        %5787 = vmatmul.bf16.gmra.mxu0 %v5660
        %v5788 = vpop.f32.mrf.mxu0
        %v5789 = vadd.f32 %v5584, %v5788
        %v5790 = vpop.f32.mrf.mxu0
        %v5791 = vadd.f32 %v5586, %v5790
        %5792 = vmatmul.bf16.gmra.mxu0 %v5662
        %v5793 = vpop.f32.mrf.mxu0
        %v5794 = vadd.f32 %v5589, %v5793
        %v5795 = vpop.f32.mrf.mxu0
        %v5796 = vadd.f32 %v5591, %v5795
        %5797 = vmatmul.bf16.gmra.mxu0 %v5664
        %v5798 = vpop.f32.mrf.mxu0
        %v5799 = vadd.f32 %v5594, %v5798
        %v5800 = vpop.f32.mrf.mxu0
        %v5801 = vadd.f32 %v5596, %v5800
        %5802 = vmatmul.bf16.gmra.mxu0 %v5666
        %v5803 = vpop.f32.mrf.mxu0
        %v5804 = vadd.f32 %v5599, %v5803
        %v5805 = vpop.f32.mrf.mxu0
        %v5806 = vadd.f32 %v5601, %v5805
        %5807 = vmatmul.bf16.gmra.mxu0 %v5668
        %v5808 = vpop.f32.mrf.mxu0
        %v5809 = vadd.f32 %v5604, %v5808
        %v5810 = vpop.f32.mrf.mxu0
        %v5811 = vadd.f32 %v5606, %v5810
        %5812 = vmatmul.bf16.gmra.mxu0 %v5670
        %v5813 = vpop.f32.mrf.mxu0
        %v5814 = vadd.f32 %v5609, %v5813
        %v5815 = vpop.f32.mrf.mxu0
        %v5816 = vadd.f32 %v5611, %v5815
        %5817 = vmatmul.bf16.gmra.mxu0 %v5672
        %v5818 = vpop.f32.mrf.mxu0
        %v5819 = vadd.f32 %v5614, %v5818
        %v5820 = vpop.f32.mrf.mxu0
        %v5821 = vadd.f32 %v5616, %v5820
        %5822 = vmatmul.bf16.gmra.mxu0 %v5674
        %v5823 = vpop.f32.mrf.mxu0
        %v5824 = vadd.f32 %v5619, %v5823
        %v5825 = vpop.f32.mrf.mxu0
        %v5826 = vadd.f32 %v5621, %v5825
        %5827 = vmatmul.bf16.gmra.mxu0 %v5676
        %v5828 = vpop.f32.mrf.mxu0
        %v5829 = vadd.f32 %v5624, %v5828
        %v5830 = vpop.f32.mrf.mxu0
        %v5831 = vadd.f32 %v5626, %v5830
        %5832 = vmatmul.bf16.gmra.mxu0 %v5678
        %v5833 = vpop.f32.mrf.mxu0
        %v5834 = vadd.f32 %v5629, %v5833
        %v5835 = vpop.f32.mrf.mxu0
        %v5836 = vadd.f32 %v5631, %v5835
        %5837 = vmatmul.bf16.gmra.mxu0 %v5680
        %v5838 = vpop.f32.mrf.mxu0
        %v5839 = vadd.f32 %v5634, %v5838
        %v5840 = vpop.f32.mrf.mxu0
        %v5841 = vadd.f32 %v5636, %v5840
        %5842 = vmatmul.bf16.gmra.mxu0 %v5682
        %v5843 = vpop.f32.mrf.mxu0
        %v5844 = vadd.f32 %v5639, %v5843
        %v5845 = vpop.f32.mrf.mxu0
        %v5846 = vadd.f32 %v5641, %v5845
        %5847 = vdwg.mxu0
        %v5848 = vld [vmem:[#allocation2 + $0x8] sm:$0xc]
        %s5849 = scalar_lea.vmem [#allocation4], 320
        %v5850 = vld [vmem:[%s5849] sm:$0xf]
        %v5851 = vld [vmem:[%s5849 + $0x4] sm:$0xf]
        %v5852 = vld [vmem:[%s5849 + $0x8] sm:$0xf]
        %v5853 = vld [vmem:[%s5849 + $0xc] sm:$0xf]
        %v5854 = vld [vmem:[%s5849 + $0x10] sm:$0xf]
        %v5855 = vld [vmem:[%s5849 + $0x14] sm:$0xf]
        %v5856 = vld [vmem:[%s5849 + $0x18] sm:$0xf]
        %v5857 = vld [vmem:[%s5849 + $0x1c] sm:$0xf]
        %v5858 = vld [vmem:[%s5849 + $0x20] sm:$0xf]
        %v5859 = vld [vmem:[%s5849 + $0x24] sm:$0xf]
        %v5860 = vld [vmem:[%s5849 + $0x28] sm:$0xf]
        %v5861 = vld [vmem:[%s5849 + $0x2c] sm:$0xf]
        %v5862 = vld [vmem:[%s5849 + $0x30] sm:$0xf]
        %v5863 = vld [vmem:[%s5849 + $0x34] sm:$0xf]
        %v5864 = vld [vmem:[%s5849 + $0x38] sm:$0xf]
        %v5865 = vld [vmem:[%s5849 + $0x3c] sm:$0xf]
        %v5867 = vunpack.c.l.b16 %v5848
        %v5868 = vpack.c.b16 %v5253, %v5867
        %v5869 = vrot.slane %v5868, 2
        %v5870 = vrot.slane %v5290, 2
        %v5871 = vsel %vm1933, %v5869, %v5870
        %v5872 = vrot.slane %v5291, 2
        %v5873 = vsel %vm1933, %v5870, %v5872
        %v5874 = vrot.slane %v5292, 2
        %v5875 = vsel %vm1933, %v5872, %v5874
        %v5876 = vrot.slane %v5293, 2
        %v5877 = vsel %vm1933, %v5874, %v5876
        %v5878 = vrot.slane %v5294, 2
        %v5879 = vsel %vm1933, %v5876, %v5878
        %v5880 = vrot.slane %v5295, 2
        %v5881 = vsel %vm1933, %v5878, %v5880
        %v5882 = vrot.slane %v5296, 2
        %v5883 = vsel %vm1933, %v5880, %v5882
        %v5884 = vrot.slane %v5297, 2
        %v5885 = vsel %vm1933, %v5882, %v5884
        %v5886 = vrot.slane %v5298, 2
        %v5887 = vsel %vm1933, %v5884, %v5886
        %v5888 = vrot.slane %v5299, 2
        %v5889 = vsel %vm1933, %v5886, %v5888
        %v5890 = vrot.slane %v5300, 2
        %v5891 = vsel %vm1933, %v5888, %v5890
        %v5892 = vrot.slane %v5301, 2
        %v5893 = vsel %vm1933, %v5890, %v5892
        %v5894 = vrot.slane %v5302, 2
        %v5895 = vsel %vm1933, %v5892, %v5894
        %v5896 = vrot.slane %v5303, 2
        %v5897 = vsel %vm1933, %v5894, %v5896
        %v5898 = vrot.slane %v5304, 2
        %v5899 = vsel %vm1933, %v5896, %v5898
        %v5900 = vrot.slane %v5305, 2
        %v5901 = vsel %vm1933, %v5898, %v5900
        %v5902 = vrot.slane %v5306, 2
        %v5903 = vsel %vm1933, %v5900, %v5902
        %v5904 = vrot.slane %v5307, 2
        %v5905 = vsel %vm1933, %v5902, %v5904
        %v5940 = vunpack.c.l.b16 %v5850
        %v5941 = vunpack.c.l.b16 %v5851
        %v5942 = vunpack.c.l.b16 %v5852
        %v5943 = vunpack.c.l.b16 %v5853
        %v5944 = vunpack.c.l.b16 %v5854
        %v5945 = vunpack.c.l.b16 %v5855
        %v5946 = vunpack.c.l.b16 %v5856
        %v5947 = vunpack.c.l.b16 %v5857
        %v5948 = vunpack.c.l.b16 %v5858
        %v5949 = vunpack.c.l.b16 %v5859
        %v5950 = vunpack.c.l.b16 %v5860
        %v5951 = vunpack.c.l.b16 %v5861
        %v5952 = vunpack.c.l.b16 %v5862
        %v5953 = vunpack.c.l.b16 %v5863
        %v5954 = vunpack.c.l.b16 %v5864
        %v5955 = vunpack.c.l.b16 %v5865
        %v5956 = vpack.c.b16 %v5941, %v5940
        %v5957 = vpack.c.b16 %v5943, %v5942
        %v5958 = vpack.c.b16 %v5945, %v5944
        %v5959 = vpack.c.b16 %v5947, %v5946
        %v5960 = vpack.c.b16 %v5949, %v5948
        %v5961 = vpack.c.b16 %v5951, %v5950
        %v5962 = vpack.c.b16 %v5953, %v5952
        %v5963 = vpack.c.b16 %v5955, %v5954
        %5972 = vmatpush.bf16.msra.mxu0 %v5963
        %5973 = vmatpush.bf16.msra.mxu0 %v5962
        %5974 = vmatpush.bf16.msra.mxu0 %v5961
        %5975 = vmatpush.bf16.msra.mxu0 %v5960
        %5976 = vmatpush.bf16.msra.mxu0 %v5959
        %5977 = vmatpush.bf16.msra.mxu0 %v5958
        %5978 = vmatpush.bf16.msra.mxu0 %v5957
        %5979 = vmatpush.bf16.msra.mxu0 %v5956
        %5980 = vmatmul.bf16.gmra.mxu0 %v5871
        %v5981 = vpop.f32.mrf.mxu0
        %v5982 = vadd.f32 0.0, %v5981
        %v5983 = vpop.f32.mrf.mxu0
        %v5984 = vadd.f32 0.0, %v5983
        %5985 = vmatmul.bf16.gmra.mxu0 %v5873
        %v5986 = vpop.f32.mrf.mxu0
        %v5987 = vadd.f32 0.0, %v5986
        %v5988 = vpop.f32.mrf.mxu0
        %v5989 = vadd.f32 0.0, %v5988
        %5990 = vmatmul.bf16.gmra.mxu0 %v5875
        %v5991 = vpop.f32.mrf.mxu0
        %v5992 = vadd.f32 0.0, %v5991
        %v5993 = vpop.f32.mrf.mxu0
        %v5994 = vadd.f32 0.0, %v5993
        %5995 = vmatmul.bf16.gmra.mxu0 %v5877
        %v5996 = vpop.f32.mrf.mxu0
        %v5997 = vadd.f32 0.0, %v5996
        %v5998 = vpop.f32.mrf.mxu0
        %v5999 = vadd.f32 0.0, %v5998
        %6000 = vmatmul.bf16.gmra.mxu0 %v5879
        %v6001 = vpop.f32.mrf.mxu0
        %v6002 = vadd.f32 0.0, %v6001
        %v6003 = vpop.f32.mrf.mxu0
        %v6004 = vadd.f32 0.0, %v6003
        %6005 = vmatmul.bf16.gmra.mxu0 %v5881
        %v6006 = vpop.f32.mrf.mxu0
        %v6007 = vadd.f32 0.0, %v6006
        %v6008 = vpop.f32.mrf.mxu0
        %v6009 = vadd.f32 0.0, %v6008
        %6010 = vmatmul.bf16.gmra.mxu0 %v5883
        %v6011 = vpop.f32.mrf.mxu0
        %v6012 = vadd.f32 0.0, %v6011
        %v6013 = vpop.f32.mrf.mxu0
        %v6014 = vadd.f32 0.0, %v6013
        %6015 = vmatmul.bf16.gmra.mxu0 %v5885
        %v6016 = vpop.f32.mrf.mxu0
        %v6017 = vadd.f32 0.0, %v6016
        %v6018 = vpop.f32.mrf.mxu0
        %v6019 = vadd.f32 0.0, %v6018
        %6020 = vmatmul.bf16.gmra.mxu0 %v5887
        %v6021 = vpop.f32.mrf.mxu0
        %v6022 = vadd.f32 0.0, %v6021
        %v6023 = vpop.f32.mrf.mxu0
        %v6024 = vadd.f32 0.0, %v6023
        %6025 = vmatmul.bf16.gmra.mxu0 %v5889
        %v6026 = vpop.f32.mrf.mxu0
        %v6027 = vadd.f32 0.0, %v6026
        %v6028 = vpop.f32.mrf.mxu0
        %v6029 = vadd.f32 0.0, %v6028
        %6030 = vmatmul.bf16.gmra.mxu0 %v5891
        %v6031 = vpop.f32.mrf.mxu0
        %v6032 = vadd.f32 0.0, %v6031
        %v6033 = vpop.f32.mrf.mxu0
        %v6034 = vadd.f32 0.0, %v6033
        %6035 = vmatmul.bf16.gmra.mxu0 %v5893
        %v6036 = vpop.f32.mrf.mxu0
        %v6037 = vadd.f32 0.0, %v6036
        %v6038 = vpop.f32.mrf.mxu0
        %v6039 = vadd.f32 0.0, %v6038
        %6040 = vmatmul.bf16.gmra.mxu0 %v5895
        %v6041 = vpop.f32.mrf.mxu0
        %v6042 = vadd.f32 0.0, %v6041
        %v6043 = vpop.f32.mrf.mxu0
        %v6044 = vadd.f32 0.0, %v6043
        %6045 = vmatmul.bf16.gmra.mxu0 %v5897
        %v6046 = vpop.f32.mrf.mxu0
        %v6047 = vadd.f32 0.0, %v6046
        %v6048 = vpop.f32.mrf.mxu0
        %v6049 = vadd.f32 0.0, %v6048
        %6050 = vmatmul.bf16.gmra.mxu0 %v5899
        %v6051 = vpop.f32.mrf.mxu0
        %v6052 = vadd.f32 0.0, %v6051
        %v6053 = vpop.f32.mrf.mxu0
        %v6054 = vadd.f32 0.0, %v6053
        %6055 = vmatmul.bf16.gmra.mxu0 %v5901
        %v6056 = vpop.f32.mrf.mxu0
        %v6057 = vadd.f32 0.0, %v6056
        %v6058 = vpop.f32.mrf.mxu0
        %v6059 = vadd.f32 0.0, %v6058
        %6060 = vmatmul.bf16.gmra.mxu0 %v5903
        %v6061 = vpop.f32.mrf.mxu0
        %v6062 = vadd.f32 0.0, %v6061
        %v6063 = vpop.f32.mrf.mxu0
        %v6064 = vadd.f32 0.0, %v6063
        %6065 = vmatmul.bf16.gmra.mxu0 %v5905
        %v6066 = vpop.f32.mrf.mxu0
        %v6067 = vadd.f32 0.0, %v6066
        %v6068 = vpop.f32.mrf.mxu0
        %v6069 = vadd.f32 0.0, %v6068
        %6070 = vdwg.mxu0
        %v6071 = vadd.f32 %v5759, %v5982
        %v6072 = vadd.f32 %v5761, %v5984
        %v6073 = vadd.f32 %v5764, %v5987
        %v6074 = vadd.f32 %v5766, %v5989
        %v6075 = vadd.f32 %v5769, %v5992
        %v6076 = vadd.f32 %v5771, %v5994
        %v6077 = vadd.f32 %v5774, %v5997
        %v6078 = vadd.f32 %v5776, %v5999
        %v6079 = vadd.f32 %v5779, %v6002
        %v6080 = vadd.f32 %v5781, %v6004
        %v6081 = vadd.f32 %v5784, %v6007
        %v6082 = vadd.f32 %v5786, %v6009
        %v6083 = vadd.f32 %v5789, %v6012
        %v6084 = vadd.f32 %v5791, %v6014
        %v6085 = vadd.f32 %v5794, %v6017
        %v6086 = vadd.f32 %v5796, %v6019
        %v6087 = vadd.f32 %v5799, %v6022
        %v6088 = vadd.f32 %v5801, %v6024
        %v6089 = vadd.f32 %v5804, %v6027
        %v6090 = vadd.f32 %v5806, %v6029
        %v6091 = vadd.f32 %v5809, %v6032
        %v6092 = vadd.f32 %v5811, %v6034
        %v6093 = vadd.f32 %v5814, %v6037
        %v6094 = vadd.f32 %v5816, %v6039
        %v6095 = vadd.f32 %v5819, %v6042
        %v6096 = vadd.f32 %v5821, %v6044
        %v6097 = vadd.f32 %v5824, %v6047
        %v6098 = vadd.f32 %v5826, %v6049
        %v6099 = vadd.f32 %v5829, %v6052
        %v6100 = vadd.f32 %v5831, %v6054
        %v6101 = vadd.f32 %v5834, %v6057
        %v6102 = vadd.f32 %v5836, %v6059
        %v6103 = vadd.f32 %v5839, %v6062
        %v6104 = vadd.f32 %v5841, %v6064
        %v6105 = vadd.f32 %v5844, %v6067
        %v6106 = vadd.f32 %v5846, %v6069
        %v6107 = vld [vmem:[#allocation3] sm:$0xff]
        %v6108 = vld [vmem:[#allocation3 + $0x8] sm:$0xff]
        %v6109 = vld [vmem:[#allocation3 + $0x10] sm:$0xff]
        %v6110 = vld [vmem:[#allocation3 + $0x18] sm:$0xff]
        %v6111 = vld [vmem:[#allocation3 + $0x20] sm:$0xff]
        %v6112 = vld [vmem:[#allocation3 + $0x28] sm:$0xff]
        %v6113 = vld [vmem:[#allocation3 + $0x30] sm:$0xff]
        %v6114 = vld [vmem:[#allocation3 + $0x38] sm:$0xff]
        %v6115 = vld [vmem:[#allocation3 + $0x40] sm:$0xff]
        %v6116 = vld [vmem:[#allocation3 + $0x48] sm:$0xff]
        %v6117 = vld [vmem:[#allocation3 + $0x50] sm:$0xff]
        %v6118 = vld [vmem:[#allocation3 + $0x58] sm:$0xff]
        %v6119 = vld [vmem:[#allocation3 + $0x60] sm:$0xff]
        %v6120 = vld [vmem:[#allocation3 + $0x68] sm:$0xff]
        %v6121 = vld [vmem:[#allocation3 + $0x70] sm:$0xff]
        %v6122 = vld [vmem:[#allocation3 + $0x78] sm:$0xff]
        %v6123 = vld [vmem:[#allocation3 + $0x80] sm:$0xff]
        %v6124 = vld [vmem:[#allocation3 + $0x88] sm:$0xff]
        %v6125 = vld [vmem:[#allocation3 + $0x90] sm:$0xff]
        %v6126 = vld [vmem:[#allocation3 + $0x98] sm:$0xff]
        %v6127 = vld [vmem:[#allocation3 + $0xa0] sm:$0xff]
        %v6128 = vld [vmem:[#allocation3 + $0xa8] sm:$0xff]
        %v6129 = vld [vmem:[#allocation3 + $0xb0] sm:$0xff]
        %v6130 = vld [vmem:[#allocation3 + $0xb8] sm:$0xff]
        %v6131 = vld [vmem:[#allocation3 + $0xc0] sm:$0xff]
        %v6132 = vld [vmem:[#allocation3 + $0xc8] sm:$0xff]
        %v6133 = vld [vmem:[#allocation3 + $0xd0] sm:$0xff]
        %v6134 = vld [vmem:[#allocation3 + $0xd8] sm:$0xff]
        %v6135 = vld [vmem:[#allocation3 + $0xe0] sm:$0xff]
        %v6136 = vld [vmem:[#allocation3 + $0xe8] sm:$0xff]
        %v6137 = vld [vmem:[#allocation3 + $0xf0] sm:$0xff]
        %v6138 = vld [vmem:[#allocation3 + $0xf8] sm:$0xff]
        %v6139 = vld [vmem:[#allocation3 + $0x100] sm:$0xff]
        %v6140 = vld [vmem:[#allocation3 + $0x108] sm:$0xff]
        %v6141 = vld [vmem:[#allocation3 + $0x110] sm:$0xff]
        %v6142 = vld [vmem:[#allocation3 + $0x118] sm:$0xff]
        %v6143 = vadd.f32 %v6107, %v6071
        %v6144 = vadd.f32 %v6108, %v6072
        %v6145 = vadd.f32 %v6109, %v6073
        %v6146 = vadd.f32 %v6110, %v6074
        %v6147 = vadd.f32 %v6111, %v6075
        %v6148 = vadd.f32 %v6112, %v6076
        %v6149 = vadd.f32 %v6113, %v6077
        %v6150 = vadd.f32 %v6114, %v6078
        %v6151 = vadd.f32 %v6115, %v6079
        %v6152 = vadd.f32 %v6116, %v6080
        %v6153 = vadd.f32 %v6117, %v6081
        %v6154 = vadd.f32 %v6118, %v6082
        %v6155 = vadd.f32 %v6119, %v6083
        %v6156 = vadd.f32 %v6120, %v6084
        %v6157 = vadd.f32 %v6121, %v6085
        %v6158 = vadd.f32 %v6122, %v6086
        %v6159 = vadd.f32 %v6123, %v6087
        %v6160 = vadd.f32 %v6124, %v6088
        %v6161 = vadd.f32 %v6125, %v6089
        %v6162 = vadd.f32 %v6126, %v6090
        %v6163 = vadd.f32 %v6127, %v6091
        %v6164 = vadd.f32 %v6128, %v6092
        %v6165 = vadd.f32 %v6129, %v6093
        %v6166 = vadd.f32 %v6130, %v6094
        %v6167 = vadd.f32 %v6131, %v6095
        %v6168 = vadd.f32 %v6132, %v6096
        %v6169 = vadd.f32 %v6133, %v6097
        %v6170 = vadd.f32 %v6134, %v6098
        %v6171 = vadd.f32 %v6135, %v6099
        %v6172 = vadd.f32 %v6136, %v6100
        %v6173 = vadd.f32 %v6137, %v6101
        %v6174 = vadd.f32 %v6138, %v6102
        %v6175 = vadd.f32 %v6139, %v6103
        %v6176 = vadd.f32 %v6140, %v6104
        %v6177 = vadd.f32 %v6141, %v6105
        %v6178 = vadd.f32 %v6142, %v6106
        %6179 = vst [vmem:[#allocation3] sm:$0xff] %v6143
        %6180 = vst [vmem:[#allocation3 + $0x8] sm:$0xff] %v6144
        %6181 = vst [vmem:[#allocation3 + $0x10] sm:$0xff] %v6145
        %6182 = vst [vmem:[#allocation3 + $0x18] sm:$0xff] %v6146
        %6183 = vst [vmem:[#allocation3 + $0x20] sm:$0xff] %v6147
        %6184 = vst [vmem:[#allocation3 + $0x28] sm:$0xff] %v6148
        %6185 = vst [vmem:[#allocation3 + $0x30] sm:$0xff] %v6149
        %6186 = vst [vmem:[#allocation3 + $0x38] sm:$0xff] %v6150
        %6187 = vst [vmem:[#allocation3 + $0x40] sm:$0xff] %v6151
        %6188 = vst [vmem:[#allocation3 + $0x48] sm:$0xff] %v6152
        %6189 = vst [vmem:[#allocation3 + $0x50] sm:$0xff] %v6153
        %6190 = vst [vmem:[#allocation3 + $0x58] sm:$0xff] %v6154
        %6191 = vst [vmem:[#allocation3 + $0x60] sm:$0xff] %v6155
        %6192 = vst [vmem:[#allocation3 + $0x68] sm:$0xff] %v6156
        %6193 = vst [vmem:[#allocation3 + $0x70] sm:$0xff] %v6157
        %6194 = vst [vmem:[#allocation3 + $0x78] sm:$0xff] %v6158
        %6195 = vst [vmem:[#allocation3 + $0x80] sm:$0xff] %v6159
        %6196 = vst [vmem:[#allocation3 + $0x88] sm:$0xff] %v6160
        %6197 = vst [vmem:[#allocation3 + $0x90] sm:$0xff] %v6161
        %6198 = vst [vmem:[#allocation3 + $0x98] sm:$0xff] %v6162
        %6199 = vst [vmem:[#allocation3 + $0xa0] sm:$0xff] %v6163
        %6200 = vst [vmem:[#allocation3 + $0xa8] sm:$0xff] %v6164
        %6201 = vst [vmem:[#allocation3 + $0xb0] sm:$0xff] %v6165
        %6202 = vst [vmem:[#allocation3 + $0xb8] sm:$0xff] %v6166
        %6203 = vst [vmem:[#allocation3 + $0xc0] sm:$0xff] %v6167
        %6204 = vst [vmem:[#allocation3 + $0xc8] sm:$0xff] %v6168
        %6205 = vst [vmem:[#allocation3 + $0xd0] sm:$0xff] %v6169
        %6206 = vst [vmem:[#allocation3 + $0xd8] sm:$0xff] %v6170
        %6207 = vst [vmem:[#allocation3 + $0xe0] sm:$0xff] %v6171
        %6208 = vst [vmem:[#allocation3 + $0xe8] sm:$0xff] %v6172
        %6209 = vst [vmem:[#allocation3 + $0xf0] sm:$0xff] %v6173
        %6210 = vst [vmem:[#allocation3 + $0xf8] sm:$0xff] %v6174
        %6211 = vst [vmem:[#allocation3 + $0x100] sm:$0xff] %v6175
        %6212 = vst [vmem:[#allocation3 + $0x108] sm:$0xff] %v6176
        %6213 = vst [vmem:[#allocation3 + $0x110] sm:$0xff] %v6177
        %6214 = vst [vmem:[#allocation3 + $0x118] sm:$0xff] %v6178
        %v6215 = vld [vmem:[#allocation2 + $0x10] sm:$0xc]
        %v6216 = vld [vmem:[#allocation2 + $0x14] sm:$0xf]
        %v6217 = vld [vmem:[#allocation2 + $0x18] sm:$0xf]
        %v6218 = vld [vmem:[#allocation2 + $0x1c] sm:$0xf]
        %v6219 = vld [vmem:[#allocation2 + $0x20] sm:$0xf]
        %v6220 = vld [vmem:[#allocation2 + $0x24] sm:$0xf]
        %v6221 = vld [vmem:[#allocation2 + $0x28] sm:$0xf]
        %v6222 = vld [vmem:[#allocation2 + $0x2c] sm:$0xf]
        %v6223 = vld [vmem:[#allocation2 + $0x30] sm:$0xf]
        %v6224 = vld [vmem:[#allocation2 + $0x34] sm:$0xf]
        %v6225 = vld [vmem:[#allocation2 + $0x38] sm:$0xf]
        %v6226 = vld [vmem:[#allocation2 + $0x3c] sm:$0xf]
        %v6227 = vld [vmem:[#allocation2 + $0x40] sm:$0xf]
        %v6228 = vld [vmem:[#allocation2 + $0x44] sm:$0xf]
        %v6229 = vld [vmem:[#allocation2 + $0x48] sm:$0xf]
        %v6230 = vld [vmem:[#allocation2 + $0x4c] sm:$0xf]
        %v6231 = vld [vmem:[#allocation2 + $0x50] sm:$0xf]
        %v6232 = vld [vmem:[#allocation2 + $0x54] sm:$0xf]
        %v6233 = vld [vmem:[#allocation2 + $0x58] sm:$0xf]
        %v6234 = vld [vmem:[#allocation2 + $0x5c] sm:$0xf]
        %v6235 = vld [vmem:[#allocation2 + $0x60] sm:$0xf]
        %v6236 = vld [vmem:[#allocation2 + $0x64] sm:$0xf]
        %v6237 = vld [vmem:[#allocation2 + $0x68] sm:$0xf]
        %v6238 = vld [vmem:[#allocation2 + $0x6c] sm:$0xf]
        %v6239 = vld [vmem:[#allocation2 + $0x70] sm:$0xf]
        %v6240 = vld [vmem:[#allocation2 + $0x74] sm:$0xf]
        %v6241 = vld [vmem:[#allocation2 + $0x78] sm:$0xf]
        %v6242 = vld [vmem:[#allocation2 + $0x7c] sm:$0xf]
        %v6243 = vld [vmem:[#allocation2 + $0x80] sm:$0xf]
        %v6244 = vld [vmem:[#allocation2 + $0x84] sm:$0xf]
        %v6245 = vld [vmem:[#allocation2 + $0x88] sm:$0xf]
        %v6246 = vld [vmem:[#allocation2 + $0x8c] sm:$0xf]
        %v6247 = vld [vmem:[#allocation2 + $0x90] sm:$0xf]
        %v6248 = vld [vmem:[#allocation2 + $0x94] sm:$0xf]
        %v6249 = vld [vmem:[#allocation2 + $0x98] sm:$0xf]
        %v6250 = vld [vmem:[#allocation2 + $0x9c] sm:$0xf]
        %v6251 = vld [vmem:[#allocation2 + $0xa0] sm:$0x3]
        %s6252 = scalar_lea.vmem [#allocation4], 384
        %v6253 = vld [vmem:[%s6252] sm:$0xf]
        %v6254 = vld [vmem:[%s6252 + $0x4] sm:$0xf]
        %v6255 = vld [vmem:[%s6252 + $0x8] sm:$0xf]
        %v6256 = vld [vmem:[%s6252 + $0xc] sm:$0xf]
        %v6257 = vld [vmem:[%s6252 + $0x10] sm:$0xf]
        %v6258 = vld [vmem:[%s6252 + $0x14] sm:$0xf]
        %v6259 = vld [vmem:[%s6252 + $0x18] sm:$0xf]
        %v6260 = vld [vmem:[%s6252 + $0x1c] sm:$0xf]
        %v6261 = vld [vmem:[%s6252 + $0x20] sm:$0xf]
        %v6262 = vld [vmem:[%s6252 + $0x24] sm:$0xf]
        %v6263 = vld [vmem:[%s6252 + $0x28] sm:$0xf]
        %v6264 = vld [vmem:[%s6252 + $0x2c] sm:$0xf]
        %v6265 = vld [vmem:[%s6252 + $0x30] sm:$0xf]
        %v6266 = vld [vmem:[%s6252 + $0x34] sm:$0xf]
        %v6267 = vld [vmem:[%s6252 + $0x38] sm:$0xf]
        %v6268 = vld [vmem:[%s6252 + $0x3c] sm:$0xf]
        %v6269 = vld [vmem:[#allocation2 + $0xa0] sm:$0x7]
        %s6270 = scalar_lea.vmem [#allocation4], 448
        %v6271 = vld [vmem:[%s6270] sm:$0xf]
        %v6272 = vld [vmem:[%s6270 + $0x4] sm:$0xf]
        %v6273 = vld [vmem:[%s6270 + $0x8] sm:$0xf]
        %v6274 = vld [vmem:[%s6270 + $0xc] sm:$0xf]
        %v6275 = vld [vmem:[%s6270 + $0x10] sm:$0xf]
        %v6276 = vld [vmem:[%s6270 + $0x14] sm:$0xf]
        %v6277 = vld [vmem:[%s6270 + $0x18] sm:$0xf]
        %v6278 = vld [vmem:[%s6270 + $0x1c] sm:$0xf]
        %v6279 = vld [vmem:[%s6270 + $0x20] sm:$0xf]
        %v6280 = vld [vmem:[%s6270 + $0x24] sm:$0xf]
        %v6281 = vld [vmem:[%s6270 + $0x28] sm:$0xf]
        %v6282 = vld [vmem:[%s6270 + $0x2c] sm:$0xf]
        %v6283 = vld [vmem:[%s6270 + $0x30] sm:$0xf]
        %v6284 = vld [vmem:[%s6270 + $0x34] sm:$0xf]
        %v6285 = vld [vmem:[%s6270 + $0x38] sm:$0xf]
        %v6286 = vld [vmem:[%s6270 + $0x3c] sm:$0xf]
        %v6324 = vunpack.c.l.b16 %v6215
        %v6325 = vunpack.c.l.b16 %v6216
        %v6326 = vunpack.c.l.b16 %v6217
        %v6327 = vunpack.c.l.b16 %v6218
        %v6328 = vunpack.c.l.b16 %v6219
        %v6329 = vunpack.c.l.b16 %v6220
        %v6330 = vunpack.c.l.b16 %v6221
        %v6331 = vunpack.c.l.b16 %v6222
        %v6332 = vunpack.c.l.b16 %v6223
        %v6333 = vunpack.c.l.b16 %v6224
        %v6334 = vunpack.c.l.b16 %v6225
        %v6335 = vunpack.c.l.b16 %v6226
        %v6336 = vunpack.c.l.b16 %v6227
        %v6337 = vunpack.c.l.b16 %v6228
        %v6338 = vunpack.c.l.b16 %v6229
        %v6339 = vunpack.c.l.b16 %v6230
        %v6340 = vunpack.c.l.b16 %v6231
        %v6341 = vunpack.c.l.b16 %v6232
        %v6342 = vunpack.c.l.b16 %v6233
        %v6343 = vunpack.c.l.b16 %v6234
        %v6344 = vunpack.c.l.b16 %v6235
        %v6345 = vunpack.c.l.b16 %v6236
        %v6346 = vunpack.c.l.b16 %v6237
        %v6347 = vunpack.c.l.b16 %v6238
        %v6348 = vunpack.c.l.b16 %v6239
        %v6349 = vunpack.c.l.b16 %v6240
        %v6350 = vunpack.c.l.b16 %v6241
        %v6351 = vunpack.c.l.b16 %v6242
        %v6352 = vunpack.c.l.b16 %v6243
        %v6353 = vunpack.c.l.b16 %v6244
        %v6354 = vunpack.c.l.b16 %v6245
        %v6355 = vunpack.c.l.b16 %v6246
        %v6356 = vunpack.c.l.b16 %v6247
        %v6357 = vunpack.c.l.b16 %v6248
        %v6358 = vunpack.c.l.b16 %v6249
        %v6359 = vunpack.c.l.b16 %v6250
        %v6360 = vunpack.c.l.b16 %v6269
        %v6361 = vpack.c.b16 %v6325, %v6324
        %v6362 = vpack.c.b16 %v6327, %v6326
        %v6363 = vpack.c.b16 %v6329, %v6328
        %v6364 = vpack.c.b16 %v6331, %v6330
        %v6365 = vpack.c.b16 %v6333, %v6332
        %v6366 = vpack.c.b16 %v6335, %v6334
        %v6367 = vpack.c.b16 %v6337, %v6336
        %v6368 = vpack.c.b16 %v6339, %v6338
        %v6369 = vpack.c.b16 %v6341, %v6340
        %v6370 = vpack.c.b16 %v6343, %v6342
        %v6371 = vpack.c.b16 %v6345, %v6344
        %v6372 = vpack.c.b16 %v6347, %v6346
        %v6373 = vpack.c.b16 %v6349, %v6348
        %v6374 = vpack.c.b16 %v6351, %v6350
        %v6375 = vpack.c.b16 %v6353, %v6352
        %v6376 = vpack.c.b16 %v6355, %v6354
        %v6377 = vpack.c.b16 %v6357, %v6356
        %v6378 = vpack.c.b16 %v6359, %v6358
        %v6379 = vpack.c.b16 %v6360, %v6360
        %v6381 = vshrl.u32 %v6361, 16
        %v6383 = vrot.slane %v6381, 2
        %v6384 = vshll.u32 %v6361, 16
        %v6386 = vrot.slane %v6384, 3
        %v6387 = vor.u32 %v6383, %v6386
        %v6389 = vshrl.u32 %v6362, 16
        %v6391 = vrot.slane %v6389, 2
        %v6392 = vshll.u32 %v6362, 16
        %v6394 = vrot.slane %v6392, 3
        %v6395 = vor.u32 %v6391, %v6394
        %v6396 = vsel %vm2445, %v6387, %v6395
        %v6398 = vshrl.u32 %v6363, 16
        %v6400 = vrot.slane %v6398, 2
        %v6401 = vshll.u32 %v6363, 16
        %v6403 = vrot.slane %v6401, 3
        %v6404 = vor.u32 %v6400, %v6403
        %v6405 = vsel %vm2445, %v6395, %v6404
        %v6407 = vshrl.u32 %v6364, 16
        %v6409 = vrot.slane %v6407, 2
        %v6410 = vshll.u32 %v6364, 16
        %v6412 = vrot.slane %v6410, 3
        %v6413 = vor.u32 %v6409, %v6412
        %v6414 = vsel %vm2445, %v6404, %v6413
        %v6416 = vshrl.u32 %v6365, 16
        %v6418 = vrot.slane %v6416, 2
        %v6419 = vshll.u32 %v6365, 16
        %v6421 = vrot.slane %v6419, 3
        %v6422 = vor.u32 %v6418, %v6421
        %v6423 = vsel %vm2445, %v6413, %v6422
        %v6425 = vshrl.u32 %v6366, 16
        %v6427 = vrot.slane %v6425, 2
        %v6428 = vshll.u32 %v6366, 16
        %v6430 = vrot.slane %v6428, 3
        %v6431 = vor.u32 %v6427, %v6430
        %v6432 = vsel %vm2445, %v6422, %v6431
        %v6434 = vshrl.u32 %v6367, 16
        %v6436 = vrot.slane %v6434, 2
        %v6437 = vshll.u32 %v6367, 16
        %v6439 = vrot.slane %v6437, 3
        %v6440 = vor.u32 %v6436, %v6439
        %v6441 = vsel %vm2445, %v6431, %v6440
        %v6443 = vshrl.u32 %v6368, 16
        %v6445 = vrot.slane %v6443, 2
        %v6446 = vshll.u32 %v6368, 16
        %v6448 = vrot.slane %v6446, 3
        %v6449 = vor.u32 %v6445, %v6448
        %v6450 = vsel %vm2445, %v6440, %v6449
        %v6452 = vshrl.u32 %v6369, 16
        %v6454 = vrot.slane %v6452, 2
        %v6455 = vshll.u32 %v6369, 16
        %v6457 = vrot.slane %v6455, 3
        %v6458 = vor.u32 %v6454, %v6457
        %v6459 = vsel %vm2445, %v6449, %v6458
        %v6461 = vshrl.u32 %v6370, 16
        %v6463 = vrot.slane %v6461, 2
        %v6464 = vshll.u32 %v6370, 16
        %v6466 = vrot.slane %v6464, 3
        %v6467 = vor.u32 %v6463, %v6466
        %v6468 = vsel %vm2445, %v6458, %v6467
        %v6470 = vshrl.u32 %v6371, 16
        %v6472 = vrot.slane %v6470, 2
        %v6473 = vshll.u32 %v6371, 16
        %v6475 = vrot.slane %v6473, 3
        %v6476 = vor.u32 %v6472, %v6475
        %v6477 = vsel %vm2445, %v6467, %v6476
        %v6479 = vshrl.u32 %v6372, 16
        %v6481 = vrot.slane %v6479, 2
        %v6482 = vshll.u32 %v6372, 16
        %v6484 = vrot.slane %v6482, 3
        %v6485 = vor.u32 %v6481, %v6484
        %v6486 = vsel %vm2445, %v6476, %v6485
        %v6488 = vshrl.u32 %v6373, 16
        %v6490 = vrot.slane %v6488, 2
        %v6491 = vshll.u32 %v6373, 16
        %v6493 = vrot.slane %v6491, 3
        %v6494 = vor.u32 %v6490, %v6493
        %v6495 = vsel %vm2445, %v6485, %v6494
        %v6497 = vshrl.u32 %v6374, 16
        %v6499 = vrot.slane %v6497, 2
        %v6500 = vshll.u32 %v6374, 16
        %v6502 = vrot.slane %v6500, 3
        %v6503 = vor.u32 %v6499, %v6502
        %v6504 = vsel %vm2445, %v6494, %v6503
        %v6506 = vshrl.u32 %v6375, 16
        %v6508 = vrot.slane %v6506, 2
        %v6509 = vshll.u32 %v6375, 16
        %v6511 = vrot.slane %v6509, 3
        %v6512 = vor.u32 %v6508, %v6511
        %v6513 = vsel %vm2445, %v6503, %v6512
        %v6515 = vshrl.u32 %v6376, 16
        %v6517 = vrot.slane %v6515, 2
        %v6518 = vshll.u32 %v6376, 16
        %v6520 = vrot.slane %v6518, 3
        %v6521 = vor.u32 %v6517, %v6520
        %v6522 = vsel %vm2445, %v6512, %v6521
        %v6524 = vshrl.u32 %v6377, 16
        %v6526 = vrot.slane %v6524, 2
        %v6527 = vshll.u32 %v6377, 16
        %v6529 = vrot.slane %v6527, 3
        %v6530 = vor.u32 %v6526, %v6529
        %v6531 = vsel %vm2445, %v6521, %v6530
        %v6533 = vshrl.u32 %v6378, 16
        %v6535 = vrot.slane %v6533, 2
        %v6536 = vshll.u32 %v6378, 16
        %v6538 = vrot.slane %v6536, 3
        %v6539 = vor.u32 %v6535, %v6538
        %v6540 = vsel %vm2445, %v6530, %v6539
        %v6542 = vshrl.u32 %v6379, 16
        %v6544 = vrot.slane %v6542, 2
        %v6545 = vshll.u32 %v6379, 16
        %v6547 = vrot.slane %v6545, 3
        %v6548 = vor.u32 %v6544, %v6547
        %v6549 = vsel %vm2445, %v6539, %v6548
        %v6584 = vunpack.c.l.b16 %v6271
        %v6585 = vunpack.c.l.b16 %v6272
        %v6586 = vunpack.c.l.b16 %v6273
        %v6587 = vunpack.c.l.b16 %v6274
        %v6588 = vunpack.c.l.b16 %v6275
        %v6589 = vunpack.c.l.b16 %v6276
        %v6590 = vunpack.c.l.b16 %v6277
        %v6591 = vunpack.c.l.b16 %v6278
        %v6592 = vunpack.c.l.b16 %v6279
        %v6593 = vunpack.c.l.b16 %v6280
        %v6594 = vunpack.c.l.b16 %v6281
        %v6595 = vunpack.c.l.b16 %v6282
        %v6596 = vunpack.c.l.b16 %v6283
        %v6597 = vunpack.c.l.b16 %v6284
        %v6598 = vunpack.c.l.b16 %v6285
        %v6599 = vunpack.c.l.b16 %v6286
        %v6600 = vpack.c.b16 %v6585, %v6584
        %v6601 = vpack.c.b16 %v6587, %v6586
        %v6602 = vpack.c.b16 %v6589, %v6588
        %v6603 = vpack.c.b16 %v6591, %v6590
        %v6604 = vpack.c.b16 %v6593, %v6592
        %v6605 = vpack.c.b16 %v6595, %v6594
        %v6606 = vpack.c.b16 %v6597, %v6596
        %v6607 = vpack.c.b16 %v6599, %v6598
        %6616 = vmatpush.bf16.msra.mxu0 %v6607
        %6617 = vmatpush.bf16.msra.mxu0 %v6606
        %6618 = vmatpush.bf16.msra.mxu0 %v6605
        %6619 = vmatpush.bf16.msra.mxu0 %v6604
        %6620 = vmatpush.bf16.msra.mxu0 %v6603
        %6621 = vmatpush.bf16.msra.mxu0 %v6602
        %6622 = vmatpush.bf16.msra.mxu0 %v6601
        %6623 = vmatpush.bf16.msra.mxu0 %v6600
        %6624 = vmatmul.bf16.gmra.mxu0 %v6396
        %v6625 = vpop.f32.mrf.mxu0
        %v6626 = vadd.f32 0.0, %v6625
        %v6627 = vpop.f32.mrf.mxu0
        %v6628 = vadd.f32 0.0, %v6627
        %6629 = vmatmul.bf16.gmra.mxu0 %v6405
        %v6630 = vpop.f32.mrf.mxu0
        %v6631 = vadd.f32 0.0, %v6630
        %v6632 = vpop.f32.mrf.mxu0
        %v6633 = vadd.f32 0.0, %v6632
        %6634 = vmatmul.bf16.gmra.mxu0 %v6414
        %v6635 = vpop.f32.mrf.mxu0
        %v6636 = vadd.f32 0.0, %v6635
        %v6637 = vpop.f32.mrf.mxu0
        %v6638 = vadd.f32 0.0, %v6637
        %6639 = vmatmul.bf16.gmra.mxu0 %v6423
        %v6640 = vpop.f32.mrf.mxu0
        %v6641 = vadd.f32 0.0, %v6640
        %v6642 = vpop.f32.mrf.mxu0
        %v6643 = vadd.f32 0.0, %v6642
        %6644 = vmatmul.bf16.gmra.mxu0 %v6432
        %v6645 = vpop.f32.mrf.mxu0
        %v6646 = vadd.f32 0.0, %v6645
        %v6647 = vpop.f32.mrf.mxu0
        %v6648 = vadd.f32 0.0, %v6647
        %6649 = vmatmul.bf16.gmra.mxu0 %v6441
        %v6650 = vpop.f32.mrf.mxu0
        %v6651 = vadd.f32 0.0, %v6650
        %v6652 = vpop.f32.mrf.mxu0
        %v6653 = vadd.f32 0.0, %v6652
        %6654 = vmatmul.bf16.gmra.mxu0 %v6450
        %v6655 = vpop.f32.mrf.mxu0
        %v6656 = vadd.f32 0.0, %v6655
        %v6657 = vpop.f32.mrf.mxu0
        %v6658 = vadd.f32 0.0, %v6657
        %6659 = vmatmul.bf16.gmra.mxu0 %v6459
        %v6660 = vpop.f32.mrf.mxu0
        %v6661 = vadd.f32 0.0, %v6660
        %v6662 = vpop.f32.mrf.mxu0
        %v6663 = vadd.f32 0.0, %v6662
        %6664 = vmatmul.bf16.gmra.mxu0 %v6468
        %v6665 = vpop.f32.mrf.mxu0
        %v6666 = vadd.f32 0.0, %v6665
        %v6667 = vpop.f32.mrf.mxu0
        %v6668 = vadd.f32 0.0, %v6667
        %6669 = vmatmul.bf16.gmra.mxu0 %v6477
        %v6670 = vpop.f32.mrf.mxu0
        %v6671 = vadd.f32 0.0, %v6670
        %v6672 = vpop.f32.mrf.mxu0
        %v6673 = vadd.f32 0.0, %v6672
        %6674 = vmatmul.bf16.gmra.mxu0 %v6486
        %v6675 = vpop.f32.mrf.mxu0
        %v6676 = vadd.f32 0.0, %v6675
        %v6677 = vpop.f32.mrf.mxu0
        %v6678 = vadd.f32 0.0, %v6677
        %6679 = vmatmul.bf16.gmra.mxu0 %v6495
        %v6680 = vpop.f32.mrf.mxu0
        %v6681 = vadd.f32 0.0, %v6680
        %v6682 = vpop.f32.mrf.mxu0
        %v6683 = vadd.f32 0.0, %v6682
        %6684 = vmatmul.bf16.gmra.mxu0 %v6504
        %v6685 = vpop.f32.mrf.mxu0
        %v6686 = vadd.f32 0.0, %v6685
        %v6687 = vpop.f32.mrf.mxu0
        %v6688 = vadd.f32 0.0, %v6687
        %6689 = vmatmul.bf16.gmra.mxu0 %v6513
        %v6690 = vpop.f32.mrf.mxu0
        %v6691 = vadd.f32 0.0, %v6690
        %v6692 = vpop.f32.mrf.mxu0
        %v6693 = vadd.f32 0.0, %v6692
        %6694 = vmatmul.bf16.gmra.mxu0 %v6522
        %v6695 = vpop.f32.mrf.mxu0
        %v6696 = vadd.f32 0.0, %v6695
        %v6697 = vpop.f32.mrf.mxu0
        %v6698 = vadd.f32 0.0, %v6697
        %6699 = vmatmul.bf16.gmra.mxu0 %v6531
        %v6700 = vpop.f32.mrf.mxu0
        %v6701 = vadd.f32 0.0, %v6700
        %v6702 = vpop.f32.mrf.mxu0
        %v6703 = vadd.f32 0.0, %v6702
        %6704 = vmatmul.bf16.gmra.mxu0 %v6540
        %v6705 = vpop.f32.mrf.mxu0
        %v6706 = vadd.f32 0.0, %v6705
        %v6707 = vpop.f32.mrf.mxu0
        %v6708 = vadd.f32 0.0, %v6707
        %6709 = vmatmul.bf16.gmra.mxu0 %v6549
        %v6710 = vpop.f32.mrf.mxu0
        %v6711 = vadd.f32 0.0, %v6710
        %v6712 = vpop.f32.mrf.mxu0
        %v6713 = vadd.f32 0.0, %v6712
        %6714 = vdwg.mxu0
        %v6716 = vunpack.c.l.b16 %v6251
        %v6717 = vpack.c.b16 %v6716, %v6716
        %v6718 = vrot.slane %v6361, 2
        %v6719 = vrot.slane %v6362, 2
        %v6720 = vsel %vm1933, %v6718, %v6719
        %v6721 = vrot.slane %v6363, 2
        %v6722 = vsel %vm1933, %v6719, %v6721
        %v6723 = vrot.slane %v6364, 2
        %v6724 = vsel %vm1933, %v6721, %v6723
        %v6725 = vrot.slane %v6365, 2
        %v6726 = vsel %vm1933, %v6723, %v6725
        %v6727 = vrot.slane %v6366, 2
        %v6728 = vsel %vm1933, %v6725, %v6727
        %v6729 = vrot.slane %v6367, 2
        %v6730 = vsel %vm1933, %v6727, %v6729
        %v6731 = vrot.slane %v6368, 2
        %v6732 = vsel %vm1933, %v6729, %v6731
        %v6733 = vrot.slane %v6369, 2
        %v6734 = vsel %vm1933, %v6731, %v6733
        %v6735 = vrot.slane %v6370, 2
        %v6736 = vsel %vm1933, %v6733, %v6735
        %v6737 = vrot.slane %v6371, 2
        %v6738 = vsel %vm1933, %v6735, %v6737
        %v6739 = vrot.slane %v6372, 2
        %v6740 = vsel %vm1933, %v6737, %v6739
        %v6741 = vrot.slane %v6373, 2
        %v6742 = vsel %vm1933, %v6739, %v6741
        %v6743 = vrot.slane %v6374, 2
        %v6744 = vsel %vm1933, %v6741, %v6743
        %v6745 = vrot.slane %v6375, 2
        %v6746 = vsel %vm1933, %v6743, %v6745
        %v6747 = vrot.slane %v6376, 2
        %v6748 = vsel %vm1933, %v6745, %v6747
        %v6749 = vrot.slane %v6377, 2
        %v6750 = vsel %vm1933, %v6747, %v6749
        %v6751 = vrot.slane %v6378, 2
        %v6752 = vsel %vm1933, %v6749, %v6751
        %v6753 = vrot.slane %v6717, 2
        %v6754 = vsel %vm1933, %v6751, %v6753
        %v6789 = vunpack.c.l.b16 %v6253
        %v6790 = vunpack.c.l.b16 %v6254
        %v6791 = vunpack.c.l.b16 %v6255
        %v6792 = vunpack.c.l.b16 %v6256
        %v6793 = vunpack.c.l.b16 %v6257
        %v6794 = vunpack.c.l.b16 %v6258
        %v6795 = vunpack.c.l.b16 %v6259
        %v6796 = vunpack.c.l.b16 %v6260
        %v6797 = vunpack.c.l.b16 %v6261
        %v6798 = vunpack.c.l.b16 %v6262
        %v6799 = vunpack.c.l.b16 %v6263
        %v6800 = vunpack.c.l.b16 %v6264
        %v6801 = vunpack.c.l.b16 %v6265
        %v6802 = vunpack.c.l.b16 %v6266
        %v6803 = vunpack.c.l.b16 %v6267
        %v6804 = vunpack.c.l.b16 %v6268
        %v6805 = vpack.c.b16 %v6790, %v6789
        %v6806 = vpack.c.b16 %v6792, %v6791
        %v6807 = vpack.c.b16 %v6794, %v6793
        %v6808 = vpack.c.b16 %v6796, %v6795
        %v6809 = vpack.c.b16 %v6798, %v6797
        %v6810 = vpack.c.b16 %v6800, %v6799
        %v6811 = vpack.c.b16 %v6802, %v6801
        %v6812 = vpack.c.b16 %v6804, %v6803
        %6821 = vmatpush.bf16.msra.mxu0 %v6812
        %6822 = vmatpush.bf16.msra.mxu0 %v6811
        %6823 = vmatpush.bf16.msra.mxu0 %v6810
        %6824 = vmatpush.bf16.msra.mxu0 %v6809
        %6825 = vmatpush.bf16.msra.mxu0 %v6808
        %6826 = vmatpush.bf16.msra.mxu0 %v6807
        %6827 = vmatpush.bf16.msra.mxu0 %v6806
        %6828 = vmatpush.bf16.msra.mxu0 %v6805
        %6829 = vmatmul.bf16.gmra.mxu0 %v6720
        %v6830 = vpop.f32.mrf.mxu0
        %v6831 = vadd.f32 %v6626, %v6830
        %v6832 = vpop.f32.mrf.mxu0
        %v6833 = vadd.f32 %v6628, %v6832
        %6834 = vmatmul.bf16.gmra.mxu0 %v6722
        %v6835 = vpop.f32.mrf.mxu0
        %v6836 = vadd.f32 %v6631, %v6835
        %v6837 = vpop.f32.mrf.mxu0
        %v6838 = vadd.f32 %v6633, %v6837
        %6839 = vmatmul.bf16.gmra.mxu0 %v6724
        %v6840 = vpop.f32.mrf.mxu0
        %v6841 = vadd.f32 %v6636, %v6840
        %v6842 = vpop.f32.mrf.mxu0
        %v6843 = vadd.f32 %v6638, %v6842
        %6844 = vmatmul.bf16.gmra.mxu0 %v6726
        %v6845 = vpop.f32.mrf.mxu0
        %v6846 = vadd.f32 %v6641, %v6845
        %v6847 = vpop.f32.mrf.mxu0
        %v6848 = vadd.f32 %v6643, %v6847
        %6849 = vmatmul.bf16.gmra.mxu0 %v6728
        %v6850 = vpop.f32.mrf.mxu0
        %v6851 = vadd.f32 %v6646, %v6850
        %v6852 = vpop.f32.mrf.mxu0
        %v6853 = vadd.f32 %v6648, %v6852
        %6854 = vmatmul.bf16.gmra.mxu0 %v6730
        %v6855 = vpop.f32.mrf.mxu0
        %v6856 = vadd.f32 %v6651, %v6855
        %v6857 = vpop.f32.mrf.mxu0
        %v6858 = vadd.f32 %v6653, %v6857
        %6859 = vmatmul.bf16.gmra.mxu0 %v6732
        %v6860 = vpop.f32.mrf.mxu0
        %v6861 = vadd.f32 %v6656, %v6860
        %v6862 = vpop.f32.mrf.mxu0
        %v6863 = vadd.f32 %v6658, %v6862
        %6864 = vmatmul.bf16.gmra.mxu0 %v6734
        %v6865 = vpop.f32.mrf.mxu0
        %v6866 = vadd.f32 %v6661, %v6865
        %v6867 = vpop.f32.mrf.mxu0
        %v6868 = vadd.f32 %v6663, %v6867
        %6869 = vmatmul.bf16.gmra.mxu0 %v6736
        %v6870 = vpop.f32.mrf.mxu0
        %v6871 = vadd.f32 %v6666, %v6870
        %v6872 = vpop.f32.mrf.mxu0
        %v6873 = vadd.f32 %v6668, %v6872
        %6874 = vmatmul.bf16.gmra.mxu0 %v6738
        %v6875 = vpop.f32.mrf.mxu0
        %v6876 = vadd.f32 %v6671, %v6875
        %v6877 = vpop.f32.mrf.mxu0
        %v6878 = vadd.f32 %v6673, %v6877
        %6879 = vmatmul.bf16.gmra.mxu0 %v6740
        %v6880 = vpop.f32.mrf.mxu0
        %v6881 = vadd.f32 %v6676, %v6880
        %v6882 = vpop.f32.mrf.mxu0
        %v6883 = vadd.f32 %v6678, %v6882
        %6884 = vmatmul.bf16.gmra.mxu0 %v6742
        %v6885 = vpop.f32.mrf.mxu0
        %v6886 = vadd.f32 %v6681, %v6885
        %v6887 = vpop.f32.mrf.mxu0
        %v6888 = vadd.f32 %v6683, %v6887
        %6889 = vmatmul.bf16.gmra.mxu0 %v6744
        %v6890 = vpop.f32.mrf.mxu0
        %v6891 = vadd.f32 %v6686, %v6890
        %v6892 = vpop.f32.mrf.mxu0
        %v6893 = vadd.f32 %v6688, %v6892
        %6894 = vmatmul.bf16.gmra.mxu0 %v6746
        %v6895 = vpop.f32.mrf.mxu0
        %v6896 = vadd.f32 %v6691, %v6895
        %v6897 = vpop.f32.mrf.mxu0
        %v6898 = vadd.f32 %v6693, %v6897
        %6899 = vmatmul.bf16.gmra.mxu0 %v6748
        %v6900 = vpop.f32.mrf.mxu0
        %v6901 = vadd.f32 %v6696, %v6900
        %v6902 = vpop.f32.mrf.mxu0
        %v6903 = vadd.f32 %v6698, %v6902
        %6904 = vmatmul.bf16.gmra.mxu0 %v6750
        %v6905 = vpop.f32.mrf.mxu0
        %v6906 = vadd.f32 %v6701, %v6905
        %v6907 = vpop.f32.mrf.mxu0
        %v6908 = vadd.f32 %v6703, %v6907
        %6909 = vmatmul.bf16.gmra.mxu0 %v6752
        %v6910 = vpop.f32.mrf.mxu0
        %v6911 = vadd.f32 %v6706, %v6910
        %v6912 = vpop.f32.mrf.mxu0
        %v6913 = vadd.f32 %v6708, %v6912
        %6914 = vmatmul.bf16.gmra.mxu0 %v6754
        %v6915 = vpop.f32.mrf.mxu0
        %v6916 = vadd.f32 %v6711, %v6915
        %v6917 = vpop.f32.mrf.mxu0
        %v6918 = vadd.f32 %v6713, %v6917
        %6919 = vdwg.mxu0
        %v6920 = vld [vmem:[#allocation2 + $0x10] sm:$0x8]
        %s6921 = scalar_lea.vmem [#allocation4], 512
        %v6922 = vld [vmem:[%s6921] sm:$0xf]
        %v6923 = vld [vmem:[%s6921 + $0x4] sm:$0xf]
        %v6924 = vld [vmem:[%s6921 + $0x8] sm:$0xf]
        %v6925 = vld [vmem:[%s6921 + $0xc] sm:$0xf]
        %v6926 = vld [vmem:[%s6921 + $0x10] sm:$0xf]
        %v6927 = vld [vmem:[%s6921 + $0x14] sm:$0xf]
        %v6928 = vld [vmem:[%s6921 + $0x18] sm:$0xf]
        %v6929 = vld [vmem:[%s6921 + $0x1c] sm:$0xf]
        %v6930 = vld [vmem:[%s6921 + $0x20] sm:$0xf]
        %v6931 = vld [vmem:[%s6921 + $0x24] sm:$0xf]
        %v6932 = vld [vmem:[%s6921 + $0x28] sm:$0xf]
        %v6933 = vld [vmem:[%s6921 + $0x2c] sm:$0xf]
        %v6934 = vld [vmem:[%s6921 + $0x30] sm:$0xf]
        %v6935 = vld [vmem:[%s6921 + $0x34] sm:$0xf]
        %v6936 = vld [vmem:[%s6921 + $0x38] sm:$0xf]
        %v6937 = vld [vmem:[%s6921 + $0x3c] sm:$0xf]
        %v6939 = vunpack.c.l.b16 %v6920
        %v6940 = vpack.c.b16 %v6325, %v6939
        %v6941 = vrot.slane %v6940, 3
        %v6942 = vrot.slane %v6362, 3
        %v6943 = vsel %vm3007, %v6941, %v6942
        %v6944 = vrot.slane %v6363, 3
        %v6945 = vsel %vm3007, %v6942, %v6944
        %v6946 = vrot.slane %v6364, 3
        %v6947 = vsel %vm3007, %v6944, %v6946
        %v6948 = vrot.slane %v6365, 3
        %v6949 = vsel %vm3007, %v6946, %v6948
        %v6950 = vrot.slane %v6366, 3
        %v6951 = vsel %vm3007, %v6948, %v6950
        %v6952 = vrot.slane %v6367, 3
        %v6953 = vsel %vm3007, %v6950, %v6952
        %v6954 = vrot.slane %v6368, 3
        %v6955 = vsel %vm3007, %v6952, %v6954
        %v6956 = vrot.slane %v6369, 3
        %v6957 = vsel %vm3007, %v6954, %v6956
        %v6958 = vrot.slane %v6370, 3
        %v6959 = vsel %vm3007, %v6956, %v6958
        %v6960 = vrot.slane %v6371, 3
        %v6961 = vsel %vm3007, %v6958, %v6960
        %v6962 = vrot.slane %v6372, 3
        %v6963 = vsel %vm3007, %v6960, %v6962
        %v6964 = vrot.slane %v6373, 3
        %v6965 = vsel %vm3007, %v6962, %v6964
        %v6966 = vrot.slane %v6374, 3
        %v6967 = vsel %vm3007, %v6964, %v6966
        %v6968 = vrot.slane %v6375, 3
        %v6969 = vsel %vm3007, %v6966, %v6968
        %v6970 = vrot.slane %v6376, 3
        %v6971 = vsel %vm3007, %v6968, %v6970
        %v6972 = vrot.slane %v6377, 3
        %v6973 = vsel %vm3007, %v6970, %v6972
        %v6974 = vrot.slane %v6378, 3
        %v6975 = vsel %vm3007, %v6972, %v6974
        %v6976 = vrot.slane %v6379, 3
        %v6977 = vsel %vm3007, %v6974, %v6976
        %v7012 = vunpack.c.l.b16 %v6922
        %v7013 = vunpack.c.l.b16 %v6923
        %v7014 = vunpack.c.l.b16 %v6924
        %v7015 = vunpack.c.l.b16 %v6925
        %v7016 = vunpack.c.l.b16 %v6926
        %v7017 = vunpack.c.l.b16 %v6927
        %v7018 = vunpack.c.l.b16 %v6928
        %v7019 = vunpack.c.l.b16 %v6929
        %v7020 = vunpack.c.l.b16 %v6930
        %v7021 = vunpack.c.l.b16 %v6931
        %v7022 = vunpack.c.l.b16 %v6932
        %v7023 = vunpack.c.l.b16 %v6933
        %v7024 = vunpack.c.l.b16 %v6934
        %v7025 = vunpack.c.l.b16 %v6935
        %v7026 = vunpack.c.l.b16 %v6936
        %v7027 = vunpack.c.l.b16 %v6937
        %v7028 = vpack.c.b16 %v7013, %v7012
        %v7029 = vpack.c.b16 %v7015, %v7014
        %v7030 = vpack.c.b16 %v7017, %v7016
        %v7031 = vpack.c.b16 %v7019, %v7018
        %v7032 = vpack.c.b16 %v7021, %v7020
        %v7033 = vpack.c.b16 %v7023, %v7022
        %v7034 = vpack.c.b16 %v7025, %v7024
        %v7035 = vpack.c.b16 %v7027, %v7026
        %7044 = vmatpush.bf16.msra.mxu0 %v7035
        %7045 = vmatpush.bf16.msra.mxu0 %v7034
        %7046 = vmatpush.bf16.msra.mxu0 %v7033
        %7047 = vmatpush.bf16.msra.mxu0 %v7032
        %7048 = vmatpush.bf16.msra.mxu0 %v7031
        %7049 = vmatpush.bf16.msra.mxu0 %v7030
        %7050 = vmatpush.bf16.msra.mxu0 %v7029
        %7051 = vmatpush.bf16.msra.mxu0 %v7028
        %7052 = vmatmul.bf16.gmra.mxu0 %v6943
        %v7053 = vpop.f32.mrf.mxu0
        %v7054 = vadd.f32 0.0, %v7053
        %v7055 = vpop.f32.mrf.mxu0
        %v7056 = vadd.f32 0.0, %v7055
        %7057 = vmatmul.bf16.gmra.mxu0 %v6945
        %v7058 = vpop.f32.mrf.mxu0
        %v7059 = vadd.f32 0.0, %v7058
        %v7060 = vpop.f32.mrf.mxu0
        %v7061 = vadd.f32 0.0, %v7060
        %7062 = vmatmul.bf16.gmra.mxu0 %v6947
        %v7063 = vpop.f32.mrf.mxu0
        %v7064 = vadd.f32 0.0, %v7063
        %v7065 = vpop.f32.mrf.mxu0
        %v7066 = vadd.f32 0.0, %v7065
        %7067 = vmatmul.bf16.gmra.mxu0 %v6949
        %v7068 = vpop.f32.mrf.mxu0
        %v7069 = vadd.f32 0.0, %v7068
        %v7070 = vpop.f32.mrf.mxu0
        %v7071 = vadd.f32 0.0, %v7070
        %7072 = vmatmul.bf16.gmra.mxu0 %v6951
        %v7073 = vpop.f32.mrf.mxu0
        %v7074 = vadd.f32 0.0, %v7073
        %v7075 = vpop.f32.mrf.mxu0
        %v7076 = vadd.f32 0.0, %v7075
        %7077 = vmatmul.bf16.gmra.mxu0 %v6953
        %v7078 = vpop.f32.mrf.mxu0
        %v7079 = vadd.f32 0.0, %v7078
        %v7080 = vpop.f32.mrf.mxu0
        %v7081 = vadd.f32 0.0, %v7080
        %7082 = vmatmul.bf16.gmra.mxu0 %v6955
        %v7083 = vpop.f32.mrf.mxu0
        %v7084 = vadd.f32 0.0, %v7083
        %v7085 = vpop.f32.mrf.mxu0
        %v7086 = vadd.f32 0.0, %v7085
        %7087 = vmatmul.bf16.gmra.mxu0 %v6957
        %v7088 = vpop.f32.mrf.mxu0
        %v7089 = vadd.f32 0.0, %v7088
        %v7090 = vpop.f32.mrf.mxu0
        %v7091 = vadd.f32 0.0, %v7090
        %7092 = vmatmul.bf16.gmra.mxu0 %v6959
        %v7093 = vpop.f32.mrf.mxu0
        %v7094 = vadd.f32 0.0, %v7093
        %v7095 = vpop.f32.mrf.mxu0
        %v7096 = vadd.f32 0.0, %v7095
        %7097 = vmatmul.bf16.gmra.mxu0 %v6961
        %v7098 = vpop.f32.mrf.mxu0
        %v7099 = vadd.f32 0.0, %v7098
        %v7100 = vpop.f32.mrf.mxu0
        %v7101 = vadd.f32 0.0, %v7100
        %7102 = vmatmul.bf16.gmra.mxu0 %v6963
        %v7103 = vpop.f32.mrf.mxu0
        %v7104 = vadd.f32 0.0, %v7103
        %v7105 = vpop.f32.mrf.mxu0
        %v7106 = vadd.f32 0.0, %v7105
        %7107 = vmatmul.bf16.gmra.mxu0 %v6965
        %v7108 = vpop.f32.mrf.mxu0
        %v7109 = vadd.f32 0.0, %v7108
        %v7110 = vpop.f32.mrf.mxu0
        %v7111 = vadd.f32 0.0, %v7110
        %7112 = vmatmul.bf16.gmra.mxu0 %v6967
        %v7113 = vpop.f32.mrf.mxu0
        %v7114 = vadd.f32 0.0, %v7113
        %v7115 = vpop.f32.mrf.mxu0
        %v7116 = vadd.f32 0.0, %v7115
        %7117 = vmatmul.bf16.gmra.mxu0 %v6969
        %v7118 = vpop.f32.mrf.mxu0
        %v7119 = vadd.f32 0.0, %v7118
        %v7120 = vpop.f32.mrf.mxu0
        %v7121 = vadd.f32 0.0, %v7120
        %7122 = vmatmul.bf16.gmra.mxu0 %v6971
        %v7123 = vpop.f32.mrf.mxu0
        %v7124 = vadd.f32 0.0, %v7123
        %v7125 = vpop.f32.mrf.mxu0
        %v7126 = vadd.f32 0.0, %v7125
        %7127 = vmatmul.bf16.gmra.mxu0 %v6973
        %v7128 = vpop.f32.mrf.mxu0
        %v7129 = vadd.f32 0.0, %v7128
        %v7130 = vpop.f32.mrf.mxu0
        %v7131 = vadd.f32 0.0, %v7130
        %7132 = vmatmul.bf16.gmra.mxu0 %v6975
        %v7133 = vpop.f32.mrf.mxu0
        %v7134 = vadd.f32 0.0, %v7133
        %v7135 = vpop.f32.mrf.mxu0
        %v7136 = vadd.f32 0.0, %v7135
        %7137 = vmatmul.bf16.gmra.mxu0 %v6977
        %v7138 = vpop.f32.mrf.mxu0
        %v7139 = vadd.f32 0.0, %v7138
        %v7140 = vpop.f32.mrf.mxu0
        %v7141 = vadd.f32 0.0, %v7140
        %7142 = vdwg.mxu0
        %v7143 = vadd.f32 %v6831, %v7054
        %v7144 = vadd.f32 %v6833, %v7056
        %v7145 = vadd.f32 %v6836, %v7059
        %v7146 = vadd.f32 %v6838, %v7061
        %v7147 = vadd.f32 %v6841, %v7064
        %v7148 = vadd.f32 %v6843, %v7066
        %v7149 = vadd.f32 %v6846, %v7069
        %v7150 = vadd.f32 %v6848, %v7071
        %v7151 = vadd.f32 %v6851, %v7074
        %v7152 = vadd.f32 %v6853, %v7076
        %v7153 = vadd.f32 %v6856, %v7079
        %v7154 = vadd.f32 %v6858, %v7081
        %v7155 = vadd.f32 %v6861, %v7084
        %v7156 = vadd.f32 %v6863, %v7086
        %v7157 = vadd.f32 %v6866, %v7089
        %v7158 = vadd.f32 %v6868, %v7091
        %v7159 = vadd.f32 %v6871, %v7094
        %v7160 = vadd.f32 %v6873, %v7096
        %v7161 = vadd.f32 %v6876, %v7099
        %v7162 = vadd.f32 %v6878, %v7101
        %v7163 = vadd.f32 %v6881, %v7104
        %v7164 = vadd.f32 %v6883, %v7106
        %v7165 = vadd.f32 %v6886, %v7109
        %v7166 = vadd.f32 %v6888, %v7111
        %v7167 = vadd.f32 %v6891, %v7114
        %v7168 = vadd.f32 %v6893, %v7116
        %v7169 = vadd.f32 %v6896, %v7119
        %v7170 = vadd.f32 %v6898, %v7121
        %v7171 = vadd.f32 %v6901, %v7124
        %v7172 = vadd.f32 %v6903, %v7126
        %v7173 = vadd.f32 %v6906, %v7129
        %v7174 = vadd.f32 %v6908, %v7131
        %v7175 = vadd.f32 %v6911, %v7134
        %v7176 = vadd.f32 %v6913, %v7136
        %v7177 = vadd.f32 %v6916, %v7139
        %v7178 = vadd.f32 %v6918, %v7141
        %v7179 = vld [vmem:[#allocation3] sm:$0xff]
        %v7180 = vld [vmem:[#allocation3 + $0x8] sm:$0xff]
        %v7181 = vld [vmem:[#allocation3 + $0x10] sm:$0xff]
        %v7182 = vld [vmem:[#allocation3 + $0x18] sm:$0xff]
        %v7183 = vld [vmem:[#allocation3 + $0x20] sm:$0xff]
        %v7184 = vld [vmem:[#allocation3 + $0x28] sm:$0xff]
        %v7185 = vld [vmem:[#allocation3 + $0x30] sm:$0xff]
        %v7186 = vld [vmem:[#allocation3 + $0x38] sm:$0xff]
        %v7187 = vld [vmem:[#allocation3 + $0x40] sm:$0xff]
        %v7188 = vld [vmem:[#allocation3 + $0x48] sm:$0xff]
        %v7189 = vld [vmem:[#allocation3 + $0x50] sm:$0xff]
        %v7190 = vld [vmem:[#allocation3 + $0x58] sm:$0xff]
        %v7191 = vld [vmem:[#allocation3 + $0x60] sm:$0xff]
        %v7192 = vld [vmem:[#allocation3 + $0x68] sm:$0xff]
        %v7193 = vld [vmem:[#allocation3 + $0x70] sm:$0xff]
        %v7194 = vld [vmem:[#allocation3 + $0x78] sm:$0xff]
        %v7195 = vld [vmem:[#allocation3 + $0x80] sm:$0xff]
        %v7196 = vld [vmem:[#allocation3 + $0x88] sm:$0xff]
        %v7197 = vld [vmem:[#allocation3 + $0x90] sm:$0xff]
        %v7198 = vld [vmem:[#allocation3 + $0x98] sm:$0xff]
        %v7199 = vld [vmem:[#allocation3 + $0xa0] sm:$0xff]
        %v7200 = vld [vmem:[#allocation3 + $0xa8] sm:$0xff]
        %v7201 = vld [vmem:[#allocation3 + $0xb0] sm:$0xff]
        %v7202 = vld [vmem:[#allocation3 + $0xb8] sm:$0xff]
        %v7203 = vld [vmem:[#allocation3 + $0xc0] sm:$0xff]
        %v7204 = vld [vmem:[#allocation3 + $0xc8] sm:$0xff]
        %v7205 = vld [vmem:[#allocation3 + $0xd0] sm:$0xff]
        %v7206 = vld [vmem:[#allocation3 + $0xd8] sm:$0xff]
        %v7207 = vld [vmem:[#allocation3 + $0xe0] sm:$0xff]
        %v7208 = vld [vmem:[#allocation3 + $0xe8] sm:$0xff]
        %v7209 = vld [vmem:[#allocation3 + $0xf0] sm:$0xff]
        %v7210 = vld [vmem:[#allocation3 + $0xf8] sm:$0xff]
        %v7211 = vld [vmem:[#allocation3 + $0x100] sm:$0xff]
        %v7212 = vld [vmem:[#allocation3 + $0x108] sm:$0xff]
        %v7213 = vld [vmem:[#allocation3 + $0x110] sm:$0xff]
        %v7214 = vld [vmem:[#allocation3 + $0x118] sm:$0xff]
        %v7215 = vadd.f32 %v7179, %v7143
        %v7216 = vadd.f32 %v7180, %v7144
        %v7217 = vadd.f32 %v7181, %v7145
        %v7218 = vadd.f32 %v7182, %v7146
        %v7219 = vadd.f32 %v7183, %v7147
        %v7220 = vadd.f32 %v7184, %v7148
        %v7221 = vadd.f32 %v7185, %v7149
        %v7222 = vadd.f32 %v7186, %v7150
        %v7223 = vadd.f32 %v7187, %v7151
        %v7224 = vadd.f32 %v7188, %v7152
        %v7225 = vadd.f32 %v7189, %v7153
        %v7226 = vadd.f32 %v7190, %v7154
        %v7227 = vadd.f32 %v7191, %v7155
        %v7228 = vadd.f32 %v7192, %v7156
        %v7229 = vadd.f32 %v7193, %v7157
        %v7230 = vadd.f32 %v7194, %v7158
        %v7231 = vadd.f32 %v7195, %v7159
        %v7232 = vadd.f32 %v7196, %v7160
        %v7233 = vadd.f32 %v7197, %v7161
        %v7234 = vadd.f32 %v7198, %v7162
        %v7235 = vadd.f32 %v7199, %v7163
        %v7236 = vadd.f32 %v7200, %v7164
        %v7237 = vadd.f32 %v7201, %v7165
        %v7238 = vadd.f32 %v7202, %v7166
        %v7239 = vadd.f32 %v7203, %v7167
        %v7240 = vadd.f32 %v7204, %v7168
        %v7241 = vadd.f32 %v7205, %v7169
        %v7242 = vadd.f32 %v7206, %v7170
        %v7243 = vadd.f32 %v7207, %v7171
        %v7244 = vadd.f32 %v7208, %v7172
        %v7245 = vadd.f32 %v7209, %v7173
        %v7246 = vadd.f32 %v7210, %v7174
        %v7247 = vadd.f32 %v7211, %v7175
        %v7248 = vadd.f32 %v7212, %v7176
        %v7249 = vadd.f32 %v7213, %v7177
        %v7250 = vadd.f32 %v7214, %v7178
        %7251 = vst [vmem:[#allocation3] sm:$0xff] %v7215
        %7252 = vst [vmem:[#allocation3 + $0x8] sm:$0xff] %v7216
        %7253 = vst [vmem:[#allocation3 + $0x10] sm:$0xff] %v7217
        %7254 = vst [vmem:[#allocation3 + $0x18] sm:$0xff] %v7218
        %7255 = vst [vmem:[#allocation3 + $0x20] sm:$0xff] %v7219
        %7256 = vst [vmem:[#allocation3 + $0x28] sm:$0xff] %v7220
        %7257 = vst [vmem:[#allocation3 + $0x30] sm:$0xff] %v7221
        %7258 = vst [vmem:[#allocation3 + $0x38] sm:$0xff] %v7222
        %7259 = vst [vmem:[#allocation3 + $0x40] sm:$0xff] %v7223
        %7260 = vst [vmem:[#allocation3 + $0x48] sm:$0xff] %v7224
        %7261 = vst [vmem:[#allocation3 + $0x50] sm:$0xff] %v7225
        %7262 = vst [vmem:[#allocation3 + $0x58] sm:$0xff] %v7226
        %7263 = vst [vmem:[#allocation3 + $0x60] sm:$0xff] %v7227
        %7264 = vst [vmem:[#allocation3 + $0x68] sm:$0xff] %v7228
        %7265 = vst [vmem:[#allocation3 + $0x70] sm:$0xff] %v7229
        %7266 = vst [vmem:[#allocation3 + $0x78] sm:$0xff] %v7230
        %7267 = vst [vmem:[#allocation3 + $0x80] sm:$0xff] %v7231
        %7268 = vst [vmem:[#allocation3 + $0x88] sm:$0xff] %v7232
        %7269 = vst [vmem:[#allocation3 + $0x90] sm:$0xff] %v7233
        %7270 = vst [vmem:[#allocation3 + $0x98] sm:$0xff] %v7234
        %7271 = vst [vmem:[#allocation3 + $0xa0] sm:$0xff] %v7235
        %7272 = vst [vmem:[#allocation3 + $0xa8] sm:$0xff] %v7236
        %7273 = vst [vmem:[#allocation3 + $0xb0] sm:$0xff] %v7237
        %7274 = vst [vmem:[#allocation3 + $0xb8] sm:$0xff] %v7238
        %7275 = vst [vmem:[#allocation3 + $0xc0] sm:$0xff] %v7239
        %7276 = vst [vmem:[#allocation3 + $0xc8] sm:$0xff] %v7240
        %7277 = vst [vmem:[#allocation3 + $0xd0] sm:$0xff] %v7241
        %7278 = vst [vmem:[#allocation3 + $0xd8] sm:$0xff] %v7242
        %7279 = vst [vmem:[#allocation3 + $0xe0] sm:$0xff] %v7243
        %7280 = vst [vmem:[#allocation3 + $0xe8] sm:$0xff] %v7244
        %7281 = vst [vmem:[#allocation3 + $0xf0] sm:$0xff] %v7245
        %7282 = vst [vmem:[#allocation3 + $0xf8] sm:$0xff] %v7246
        %7283 = vst [vmem:[#allocation3 + $0x100] sm:$0xff] %v7247
        %7284 = vst [vmem:[#allocation3 + $0x108] sm:$0xff] %v7248
        %7285 = vst [vmem:[#allocation3 + $0x110] sm:$0xff] %v7249
        %7286 = vst [vmem:[#allocation3 + $0x118] sm:$0xff] %v7250
        %v7287 = vld [vmem:[%s266 + $0x8] sm:$0xe]
        %v7288 = vld [vmem:[%s266 + $0xc] sm:$0xf]
        %v7289 = vld [vmem:[%s266 + $0x10] sm:$0xf]
        %v7290 = vld [vmem:[%s266 + $0x14] sm:$0xf]
        %v7291 = vld [vmem:[%s266 + $0x18] sm:$0xf]
        %v7292 = vld [vmem:[%s266 + $0x1c] sm:$0xf]
        %v7293 = vld [vmem:[%s266 + $0x20] sm:$0xf]
        %v7294 = vld [vmem:[%s266 + $0x24] sm:$0xf]
        %v7295 = vld [vmem:[%s266 + $0x28] sm:$0xf]
        %v7296 = vld [vmem:[%s266 + $0x2c] sm:$0xf]
        %v7297 = vld [vmem:[%s266 + $0x30] sm:$0xf]
        %v7298 = vld [vmem:[%s266 + $0x34] sm:$0xf]
        %v7299 = vld [vmem:[%s266 + $0x38] sm:$0xf]
        %v7300 = vld [vmem:[%s266 + $0x3c] sm:$0xf]
        %v7301 = vld [vmem:[%s266 + $0x40] sm:$0xf]
        %v7302 = vld [vmem:[%s266 + $0x44] sm:$0xf]
        %v7303 = vld [vmem:[%s266 + $0x48] sm:$0xf]
        %v7304 = vld [vmem:[%s266 + $0x4c] sm:$0xf]
        %v7305 = vld [vmem:[%s266 + $0x50] sm:$0xf]
        %v7306 = vld [vmem:[%s266 + $0x54] sm:$0xf]
        %v7307 = vld [vmem:[%s266 + $0x58] sm:$0xf]
        %v7308 = vld [vmem:[%s266 + $0x5c] sm:$0xf]
        %v7309 = vld [vmem:[%s266 + $0x60] sm:$0xf]
        %v7310 = vld [vmem:[%s266 + $0x64] sm:$0xf]
        %v7311 = vld [vmem:[%s266 + $0x68] sm:$0xf]
        %v7312 = vld [vmem:[%s266 + $0x6c] sm:$0xf]
        %v7313 = vld [vmem:[%s266 + $0x70] sm:$0xf]
        %v7314 = vld [vmem:[%s266 + $0x74] sm:$0xf]
        %v7315 = vld [vmem:[%s266 + $0x78] sm:$0xf]
        %v7316 = vld [vmem:[%s266 + $0x7c] sm:$0xf]
        %v7317 = vld [vmem:[%s266 + $0x80] sm:$0xf]
        %v7318 = vld [vmem:[%s266 + $0x84] sm:$0xf]
        %v7319 = vld [vmem:[%s266 + $0x88] sm:$0xf]
        %v7320 = vld [vmem:[%s266 + $0x8c] sm:$0xf]
        %v7321 = vld [vmem:[%s266 + $0x90] sm:$0xf]
        %v7322 = vld [vmem:[%s266 + $0x94] sm:$0xf]
        %v7323 = vld [vmem:[%s266 + $0x98] sm:$0x3]
        %v7324 = vld [vmem:[#allocation3] sm:$0xff]
        %v7325 = vld [vmem:[#allocation3 + $0x8] sm:$0xff]
        %v7326 = vld [vmem:[#allocation3 + $0x10] sm:$0xff]
        %v7327 = vld [vmem:[#allocation3 + $0x18] sm:$0xff]
        %v7328 = vld [vmem:[#allocation3 + $0x20] sm:$0xff]
        %v7329 = vld [vmem:[#allocation3 + $0x28] sm:$0xff]
        %v7330 = vld [vmem:[#allocation3 + $0x30] sm:$0xff]
        %v7331 = vld [vmem:[#allocation3 + $0x38] sm:$0xff]
        %v7332 = vld [vmem:[#allocation3 + $0x40] sm:$0xff]
        %v7333 = vld [vmem:[#allocation3 + $0x48] sm:$0xff]
        %v7334 = vld [vmem:[#allocation3 + $0x50] sm:$0xff]
        %v7335 = vld [vmem:[#allocation3 + $0x58] sm:$0xff]
        %v7336 = vld [vmem:[#allocation3 + $0x60] sm:$0xff]
        %v7337 = vld [vmem:[#allocation3 + $0x68] sm:$0xff]
        %v7338 = vld [vmem:[#allocation3 + $0x70] sm:$0xff]
        %v7339 = vld [vmem:[#allocation3 + $0x78] sm:$0xff]
        %v7340 = vld [vmem:[#allocation3 + $0x80] sm:$0xff]
        %v7341 = vld [vmem:[#allocation3 + $0x88] sm:$0xff]
        %v7342 = vld [vmem:[#allocation3 + $0x90] sm:$0xff]
        %v7343 = vld [vmem:[#allocation3 + $0x98] sm:$0xff]
        %v7344 = vld [vmem:[#allocation3 + $0xa0] sm:$0xff]
        %v7345 = vld [vmem:[#allocation3 + $0xa8] sm:$0xff]
        %v7346 = vld [vmem:[#allocation3 + $0xb0] sm:$0xff]
        %v7347 = vld [vmem:[#allocation3 + $0xb8] sm:$0xff]
        %v7348 = vld [vmem:[#allocation3 + $0xc0] sm:$0xff]
        %v7349 = vld [vmem:[#allocation3 + $0xc8] sm:$0xff]
        %v7350 = vld [vmem:[#allocation3 + $0xd0] sm:$0xff]
        %v7351 = vld [vmem:[#allocation3 + $0xd8] sm:$0xff]
        %v7352 = vld [vmem:[#allocation3 + $0xe0] sm:$0xff]
        %v7353 = vld [vmem:[#allocation3 + $0xe8] sm:$0xff]
        %v7354 = vld [vmem:[#allocation3 + $0xf0] sm:$0xff]
        %v7355 = vld [vmem:[#allocation3 + $0xf8] sm:$0xff]
        %v7356 = vld [vmem:[#allocation3 + $0x100] sm:$0xff]
        %v7357 = vld [vmem:[#allocation3 + $0x108] sm:$0xff]
        %v7358 = vld [vmem:[#allocation3 + $0x110] sm:$0xff]
        %v7359 = vld [vmem:[#allocation3 + $0x118] sm:$0xff]
        %v7360 = vld [vmem:[%s3] sm:$0xf]
        %v7361 = vld [vmem:[%s3 + $0x4] sm:$0xf]
        %v7362 = vld [vmem:[%s3 + $0x8] sm:$0xf]
        %v7363 = vld [vmem:[%s3 + $0xc] sm:$0xf]
        %v7364 = vld [vmem:[%s3 + $0x10] sm:$0xf]
        %v7365 = vld [vmem:[%s3 + $0x14] sm:$0xf]
        %v7366 = vld [vmem:[%s3 + $0x18] sm:$0xf]
        %v7367 = vld [vmem:[%s3 + $0x1c] sm:$0xf]
        %v7368 = vld [vmem:[%s3 + $0x20] sm:$0xf]
        %v7369 = vld [vmem:[%s3 + $0x24] sm:$0xf]
        %v7370 = vld [vmem:[%s3 + $0x28] sm:$0xf]
        %v7371 = vld [vmem:[%s3 + $0x2c] sm:$0xf]
        %v7372 = vld [vmem:[%s3 + $0x30] sm:$0xf]
        %v7373 = vld [vmem:[%s3 + $0x34] sm:$0xf]
        %v7374 = vld [vmem:[%s3 + $0x38] sm:$0xf]
        %v7375 = vld [vmem:[%s3 + $0x3c] sm:$0xf]
        %v7413 = vunpack.c.l.b16 %v7287
        %v7414 = vunpack.c.l.b16 %v7288
        %v7415 = vunpack.c.l.b16 %v7289
        %v7416 = vunpack.c.l.b16 %v7290
        %v7417 = vunpack.c.l.b16 %v7291
        %v7418 = vunpack.c.l.b16 %v7292
        %v7419 = vunpack.c.l.b16 %v7293
        %v7420 = vunpack.c.l.b16 %v7294
        %v7421 = vunpack.c.l.b16 %v7295
        %v7422 = vunpack.c.l.b16 %v7296
        %v7423 = vunpack.c.l.b16 %v7297
        %v7424 = vunpack.c.l.b16 %v7298
        %v7425 = vunpack.c.l.b16 %v7299
        %v7426 = vunpack.c.l.b16 %v7300
        %v7427 = vunpack.c.l.b16 %v7301
        %v7428 = vunpack.c.l.b16 %v7302
        %v7429 = vunpack.c.l.b16 %v7303
        %v7430 = vunpack.c.l.b16 %v7304
        %v7431 = vunpack.c.l.b16 %v7305
        %v7432 = vunpack.c.l.b16 %v7306
        %v7433 = vunpack.c.l.b16 %v7307
        %v7434 = vunpack.c.l.b16 %v7308
        %v7435 = vunpack.c.l.b16 %v7309
        %v7436 = vunpack.c.l.b16 %v7310
        %v7437 = vunpack.c.l.b16 %v7311
        %v7438 = vunpack.c.l.b16 %v7312
        %v7439 = vunpack.c.l.b16 %v7313
        %v7440 = vunpack.c.l.b16 %v7314
        %v7441 = vunpack.c.l.b16 %v7315
        %v7442 = vunpack.c.l.b16 %v7316
        %v7443 = vunpack.c.l.b16 %v7317
        %v7444 = vunpack.c.l.b16 %v7318
        %v7445 = vunpack.c.l.b16 %v7319
        %v7446 = vunpack.c.l.b16 %v7320
        %v7447 = vunpack.c.l.b16 %v7321
        %v7448 = vunpack.c.l.b16 %v7322
        %v7449 = vunpack.c.l.b16 %v7323
        %v7450 = vpack.c.b16 %v7414, %v7413
        %v7451 = vpack.c.b16 %v7416, %v7415
        %v7452 = vpack.c.b16 %v7418, %v7417
        %v7453 = vpack.c.b16 %v7420, %v7419
        %v7454 = vpack.c.b16 %v7422, %v7421
        %v7455 = vpack.c.b16 %v7424, %v7423
        %v7456 = vpack.c.b16 %v7426, %v7425
        %v7457 = vpack.c.b16 %v7428, %v7427
        %v7458 = vpack.c.b16 %v7430, %v7429
        %v7459 = vpack.c.b16 %v7432, %v7431
        %v7460 = vpack.c.b16 %v7434, %v7433
        %v7461 = vpack.c.b16 %v7436, %v7435
        %v7462 = vpack.c.b16 %v7438, %v7437
        %v7463 = vpack.c.b16 %v7440, %v7439
        %v7464 = vpack.c.b16 %v7442, %v7441
        %v7465 = vpack.c.b16 %v7444, %v7443
        %v7466 = vpack.c.b16 %v7446, %v7445
        %v7467 = vpack.c.b16 %v7448, %v7447
        %v7468 = vpack.c.b16 %v7449, %v7449
        %v7470 = vshrl.u32 %v7450, 16
        %v7472 = vrot.slane %v7470, 1
        %v7473 = vshll.u32 %v7450, 16
        %v7475 = vrot.slane %v7473, 2
        %v7476 = vor.u32 %v7472, %v7475
        %v7478 = vshrl.u32 %v7451, 16
        %v7480 = vrot.slane %v7478, 1
        %v7481 = vshll.u32 %v7451, 16
        %v7483 = vrot.slane %v7481, 2
        %v7484 = vor.u32 %v7480, %v7483
        %v7485 = vsel %vm1371, %v7476, %v7484
        %v7487 = vshrl.u32 %v7452, 16
        %v7489 = vrot.slane %v7487, 1
        %v7490 = vshll.u32 %v7452, 16
        %v7492 = vrot.slane %v7490, 2
        %v7493 = vor.u32 %v7489, %v7492
        %v7494 = vsel %vm1371, %v7484, %v7493
        %v7496 = vshrl.u32 %v7453, 16
        %v7498 = vrot.slane %v7496, 1
        %v7499 = vshll.u32 %v7453, 16
        %v7501 = vrot.slane %v7499, 2
        %v7502 = vor.u32 %v7498, %v7501
        %v7503 = vsel %vm1371, %v7493, %v7502
        %v7505 = vshrl.u32 %v7454, 16
        %v7507 = vrot.slane %v7505, 1
        %v7508 = vshll.u32 %v7454, 16
        %v7510 = vrot.slane %v7508, 2
        %v7511 = vor.u32 %v7507, %v7510
        %v7512 = vsel %vm1371, %v7502, %v7511
        %v7514 = vshrl.u32 %v7455, 16
        %v7516 = vrot.slane %v7514, 1
        %v7517 = vshll.u32 %v7455, 16
        %v7519 = vrot.slane %v7517, 2
        %v7520 = vor.u32 %v7516, %v7519
        %v7521 = vsel %vm1371, %v7511, %v7520
        %v7523 = vshrl.u32 %v7456, 16
        %v7525 = vrot.slane %v7523, 1
        %v7526 = vshll.u32 %v7456, 16
        %v7528 = vrot.slane %v7526, 2
        %v7529 = vor.u32 %v7525, %v7528
        %v7530 = vsel %vm1371, %v7520, %v7529
        %v7532 = vshrl.u32 %v7457, 16
        %v7534 = vrot.slane %v7532, 1
        %v7535 = vshll.u32 %v7457, 16
        %v7537 = vrot.slane %v7535, 2
        %v7538 = vor.u32 %v7534, %v7537
        %v7539 = vsel %vm1371, %v7529, %v7538
        %v7541 = vshrl.u32 %v7458, 16
        %v7543 = vrot.slane %v7541, 1
        %v7544 = vshll.u32 %v7458, 16
        %v7546 = vrot.slane %v7544, 2
        %v7547 = vor.u32 %v7543, %v7546
        %v7548 = vsel %vm1371, %v7538, %v7547
        %v7550 = vshrl.u32 %v7459, 16
        %v7552 = vrot.slane %v7550, 1
        %v7553 = vshll.u32 %v7459, 16
        %v7555 = vrot.slane %v7553, 2
        %v7556 = vor.u32 %v7552, %v7555
        %v7557 = vsel %vm1371, %v7547, %v7556
        %v7559 = vshrl.u32 %v7460, 16
        %v7561 = vrot.slane %v7559, 1
        %v7562 = vshll.u32 %v7460, 16
        %v7564 = vrot.slane %v7562, 2
        %v7565 = vor.u32 %v7561, %v7564
        %v7566 = vsel %vm1371, %v7556, %v7565
        %v7568 = vshrl.u32 %v7461, 16
        %v7570 = vrot.slane %v7568, 1
        %v7571 = vshll.u32 %v7461, 16
        %v7573 = vrot.slane %v7571, 2
        %v7574 = vor.u32 %v7570, %v7573
        %v7575 = vsel %vm1371, %v7565, %v7574
        %v7577 = vshrl.u32 %v7462, 16
        %v7579 = vrot.slane %v7577, 1
        %v7580 = vshll.u32 %v7462, 16
        %v7582 = vrot.slane %v7580, 2
        %v7583 = vor.u32 %v7579, %v7582
        %v7584 = vsel %vm1371, %v7574, %v7583
        %v7586 = vshrl.u32 %v7463, 16
        %v7588 = vrot.slane %v7586, 1
        %v7589 = vshll.u32 %v7463, 16
        %v7591 = vrot.slane %v7589, 2
        %v7592 = vor.u32 %v7588, %v7591
        %v7593 = vsel %vm1371, %v7583, %v7592
        %v7595 = vshrl.u32 %v7464, 16
        %v7597 = vrot.slane %v7595, 1
        %v7598 = vshll.u32 %v7464, 16
        %v7600 = vrot.slane %v7598, 2
        %v7601 = vor.u32 %v7597, %v7600
        %v7602 = vsel %vm1371, %v7592, %v7601
        %v7604 = vshrl.u32 %v7465, 16
        %v7606 = vrot.slane %v7604, 1
        %v7607 = vshll.u32 %v7465, 16
        %v7609 = vrot.slane %v7607, 2
        %v7610 = vor.u32 %v7606, %v7609
        %v7611 = vsel %vm1371, %v7601, %v7610
        %v7613 = vshrl.u32 %v7466, 16
        %v7615 = vrot.slane %v7613, 1
        %v7616 = vshll.u32 %v7466, 16
        %v7618 = vrot.slane %v7616, 2
        %v7619 = vor.u32 %v7615, %v7618
        %v7620 = vsel %vm1371, %v7610, %v7619
        %v7622 = vshrl.u32 %v7467, 16
        %v7624 = vrot.slane %v7622, 1
        %v7625 = vshll.u32 %v7467, 16
        %v7627 = vrot.slane %v7625, 2
        %v7628 = vor.u32 %v7624, %v7627
        %v7629 = vsel %vm1371, %v7619, %v7628
        %v7631 = vshrl.u32 %v7468, 16
        %v7633 = vrot.slane %v7631, 1
        %v7634 = vshll.u32 %v7468, 16
        %v7636 = vrot.slane %v7634, 2
        %v7637 = vor.u32 %v7633, %v7636
        %v7638 = vsel %vm1371, %v7628, %v7637
        %v7673 = vunpack.c.l.b16 %v7360
        %v7674 = vunpack.c.l.b16 %v7361
        %v7675 = vunpack.c.l.b16 %v7362
        %v7676 = vunpack.c.l.b16 %v7363
        %v7677 = vunpack.c.l.b16 %v7364
        %v7678 = vunpack.c.l.b16 %v7365
        %v7679 = vunpack.c.l.b16 %v7366
        %v7680 = vunpack.c.l.b16 %v7367
        %v7681 = vunpack.c.l.b16 %v7368
        %v7682 = vunpack.c.l.b16 %v7369
        %v7683 = vunpack.c.l.b16 %v7370
        %v7684 = vunpack.c.l.b16 %v7371
        %v7685 = vunpack.c.l.b16 %v7372
        %v7686 = vunpack.c.l.b16 %v7373
        %v7687 = vunpack.c.l.b16 %v7374
        %v7688 = vunpack.c.l.b16 %v7375
        %v7689 = vpack.c.b16 %v7674, %v7673
        %v7690 = vpack.c.b16 %v7676, %v7675
        %v7691 = vpack.c.b16 %v7678, %v7677
        %v7692 = vpack.c.b16 %v7680, %v7679
        %v7693 = vpack.c.b16 %v7682, %v7681
        %v7694 = vpack.c.b16 %v7684, %v7683
        %v7695 = vpack.c.b16 %v7686, %v7685
        %v7696 = vpack.c.b16 %v7688, %v7687
        %7705 = vmatpush.bf16.msra.mxu0 %v7696
        %7706 = vmatpush.bf16.msra.mxu0 %v7695
        %7707 = vmatpush.bf16.msra.mxu0 %v7694
        %7708 = vmatpush.bf16.msra.mxu0 %v7693
        %7709 = vmatpush.bf16.msra.mxu0 %v7692
        %7710 = vmatpush.bf16.msra.mxu0 %v7691
        %7711 = vmatpush.bf16.msra.mxu0 %v7690
        %7712 = vmatpush.bf16.msra.mxu0 %v7689
        %7713 = vmatmul.bf16.gmra.mxu0 %v7485
        %v7714 = vpop.f32.mrf.mxu0
        %v7715 = vadd.f32 0.0, %v7714
        %v7716 = vpop.f32.mrf.mxu0
        %v7717 = vadd.f32 0.0, %v7716
        %7718 = vmatmul.bf16.gmra.mxu0 %v7494
        %v7719 = vpop.f32.mrf.mxu0
        %v7720 = vadd.f32 0.0, %v7719
        %v7721 = vpop.f32.mrf.mxu0
        %v7722 = vadd.f32 0.0, %v7721
        %7723 = vmatmul.bf16.gmra.mxu0 %v7503
        %v7724 = vpop.f32.mrf.mxu0
        %v7725 = vadd.f32 0.0, %v7724
        %v7726 = vpop.f32.mrf.mxu0
        %v7727 = vadd.f32 0.0, %v7726
        %7728 = vmatmul.bf16.gmra.mxu0 %v7512
        %v7729 = vpop.f32.mrf.mxu0
        %v7730 = vadd.f32 0.0, %v7729
        %v7731 = vpop.f32.mrf.mxu0
        %v7732 = vadd.f32 0.0, %v7731
        %7733 = vmatmul.bf16.gmra.mxu0 %v7521
        %v7734 = vpop.f32.mrf.mxu0
        %v7735 = vadd.f32 0.0, %v7734
        %v7736 = vpop.f32.mrf.mxu0
        %v7737 = vadd.f32 0.0, %v7736
        %7738 = vmatmul.bf16.gmra.mxu0 %v7530
        %v7739 = vpop.f32.mrf.mxu0
        %v7740 = vadd.f32 0.0, %v7739
        %v7741 = vpop.f32.mrf.mxu0
        %v7742 = vadd.f32 0.0, %v7741
        %7743 = vmatmul.bf16.gmra.mxu0 %v7539
        %v7744 = vpop.f32.mrf.mxu0
        %v7745 = vadd.f32 0.0, %v7744
        %v7746 = vpop.f32.mrf.mxu0
        %v7747 = vadd.f32 0.0, %v7746
        %7748 = vmatmul.bf16.gmra.mxu0 %v7548
        %v7749 = vpop.f32.mrf.mxu0
        %v7750 = vadd.f32 0.0, %v7749
        %v7751 = vpop.f32.mrf.mxu0
        %v7752 = vadd.f32 0.0, %v7751
        %7753 = vmatmul.bf16.gmra.mxu0 %v7557
        %v7754 = vpop.f32.mrf.mxu0
        %v7755 = vadd.f32 0.0, %v7754
        %v7756 = vpop.f32.mrf.mxu0
        %v7757 = vadd.f32 0.0, %v7756
        %7758 = vmatmul.bf16.gmra.mxu0 %v7566
        %v7759 = vpop.f32.mrf.mxu0
        %v7760 = vadd.f32 0.0, %v7759
        %v7761 = vpop.f32.mrf.mxu0
        %v7762 = vadd.f32 0.0, %v7761
        %7763 = vmatmul.bf16.gmra.mxu0 %v7575
        %v7764 = vpop.f32.mrf.mxu0
        %v7765 = vadd.f32 0.0, %v7764
        %v7766 = vpop.f32.mrf.mxu0
        %v7767 = vadd.f32 0.0, %v7766
        %7768 = vmatmul.bf16.gmra.mxu0 %v7584
        %v7769 = vpop.f32.mrf.mxu0
        %v7770 = vadd.f32 0.0, %v7769
        %v7771 = vpop.f32.mrf.mxu0
        %v7772 = vadd.f32 0.0, %v7771
        %7773 = vmatmul.bf16.gmra.mxu0 %v7593
        %v7774 = vpop.f32.mrf.mxu0
        %v7775 = vadd.f32 0.0, %v7774
        %v7776 = vpop.f32.mrf.mxu0
        %v7777 = vadd.f32 0.0, %v7776
        %7778 = vmatmul.bf16.gmra.mxu0 %v7602
        %v7779 = vpop.f32.mrf.mxu0
        %v7780 = vadd.f32 0.0, %v7779
        %v7781 = vpop.f32.mrf.mxu0
        %v7782 = vadd.f32 0.0, %v7781
        %7783 = vmatmul.bf16.gmra.mxu0 %v7611
        %v7784 = vpop.f32.mrf.mxu0
        %v7785 = vadd.f32 0.0, %v7784
        %v7786 = vpop.f32.mrf.mxu0
        %v7787 = vadd.f32 0.0, %v7786
        %7788 = vmatmul.bf16.gmra.mxu0 %v7620
        %v7789 = vpop.f32.mrf.mxu0
        %v7790 = vadd.f32 0.0, %v7789
        %v7791 = vpop.f32.mrf.mxu0
        %v7792 = vadd.f32 0.0, %v7791
        %7793 = vmatmul.bf16.gmra.mxu0 %v7629
        %v7794 = vpop.f32.mrf.mxu0
        %v7795 = vadd.f32 0.0, %v7794
        %v7796 = vpop.f32.mrf.mxu0
        %v7797 = vadd.f32 0.0, %v7796
        %7798 = vmatmul.bf16.gmra.mxu0 %v7638
        %v7799 = vpop.f32.mrf.mxu0
        %v7800 = vadd.f32 0.0, %v7799
        %v7801 = vpop.f32.mrf.mxu0
        %v7802 = vadd.f32 0.0, %v7801
        %7803 = vdwg.mxu0
        %v7804 = vadd.f32 %v7324, %v7715
        %v7805 = vadd.f32 %v7325, %v7717
        %v7806 = vadd.f32 %v7326, %v7720
        %v7807 = vadd.f32 %v7327, %v7722
        %v7808 = vadd.f32 %v7328, %v7725
        %v7809 = vadd.f32 %v7329, %v7727
        %v7810 = vadd.f32 %v7330, %v7730
        %v7811 = vadd.f32 %v7331, %v7732
        %v7812 = vadd.f32 %v7332, %v7735
        %v7813 = vadd.f32 %v7333, %v7737
        %v7814 = vadd.f32 %v7334, %v7740
        %v7815 = vadd.f32 %v7335, %v7742
        %v7816 = vadd.f32 %v7336, %v7745
        %v7817 = vadd.f32 %v7337, %v7747
        %v7818 = vadd.f32 %v7338, %v7750
        %v7819 = vadd.f32 %v7339, %v7752
        %v7820 = vadd.f32 %v7340, %v7755
        %v7821 = vadd.f32 %v7341, %v7757
        %v7822 = vadd.f32 %v7342, %v7760
        %v7823 = vadd.f32 %v7343, %v7762
        %v7824 = vadd.f32 %v7344, %v7765
        %v7825 = vadd.f32 %v7345, %v7767
        %v7826 = vadd.f32 %v7346, %v7770
        %v7827 = vadd.f32 %v7347, %v7772
        %v7828 = vadd.f32 %v7348, %v7775
        %v7829 = vadd.f32 %v7349, %v7777
        %v7830 = vadd.f32 %v7350, %v7780
        %v7831 = vadd.f32 %v7351, %v7782
        %v7832 = vadd.f32 %v7352, %v7785
        %v7833 = vadd.f32 %v7353, %v7787
        %v7834 = vadd.f32 %v7354, %v7790
        %v7835 = vadd.f32 %v7355, %v7792
        %v7836 = vadd.f32 %v7356, %v7795
        %v7837 = vadd.f32 %v7357, %v7797
        %v7838 = vadd.f32 %v7358, %v7800
        %v7839 = vadd.f32 %v7359, %v7802
        %7840 = vst [vmem:[#allocation3] sm:$0xff] %v7804
        %7841 = vst [vmem:[#allocation3 + $0x8] sm:$0xff] %v7805
        %7842 = vst [vmem:[#allocation3 + $0x10] sm:$0xff] %v7806
        %7843 = vst [vmem:[#allocation3 + $0x18] sm:$0xff] %v7807
        %7844 = vst [vmem:[#allocation3 + $0x20] sm:$0xff] %v7808
        %7845 = vst [vmem:[#allocation3 + $0x28] sm:$0xff] %v7809
        %7846 = vst [vmem:[#allocation3 + $0x30] sm:$0xff] %v7810
        %7847 = vst [vmem:[#allocation3 + $0x38] sm:$0xff] %v7811
        %7848 = vst [vmem:[#allocation3 + $0x40] sm:$0xff] %v7812
        %7849 = vst [vmem:[#allocation3 + $0x48] sm:$0xff] %v7813
        %7850 = vst [vmem:[#allocation3 + $0x50] sm:$0xff] %v7814
        %7851 = vst [vmem:[#allocation3 + $0x58] sm:$0xff] %v7815
        %7852 = vst [vmem:[#allocation3 + $0x60] sm:$0xff] %v7816
        %7853 = vst [vmem:[#allocation3 + $0x68] sm:$0xff] %v7817
        %7854 = vst [vmem:[#allocation3 + $0x70] sm:$0xff] %v7818
        %7855 = vst [vmem:[#allocation3 + $0x78] sm:$0xff] %v7819
        %7856 = vst [vmem:[#allocation3 + $0x80] sm:$0xff] %v7820
        %7857 = vst [vmem:[#allocation3 + $0x88] sm:$0xff] %v7821
        %7858 = vst [vmem:[#allocation3 + $0x90] sm:$0xff] %v7822
        %7859 = vst [vmem:[#allocation3 + $0x98] sm:$0xff] %v7823
        %7860 = vst [vmem:[#allocation3 + $0xa0] sm:$0xff] %v7824
        %7861 = vst [vmem:[#allocation3 + $0xa8] sm:$0xff] %v7825
        %7862 = vst [vmem:[#allocation3 + $0xb0] sm:$0xff] %v7826
        %7863 = vst [vmem:[#allocation3 + $0xb8] sm:$0xff] %v7827
        %7864 = vst [vmem:[#allocation3 + $0xc0] sm:$0xff] %v7828
        %7865 = vst [vmem:[#allocation3 + $0xc8] sm:$0xff] %v7829
        %7866 = vst [vmem:[#allocation3 + $0xd0] sm:$0xff] %v7830
        %7867 = vst [vmem:[#allocation3 + $0xd8] sm:$0xff] %v7831
        %7868 = vst [vmem:[#allocation3 + $0xe0] sm:$0xff] %v7832
        %7869 = vst [vmem:[#allocation3 + $0xe8] sm:$0xff] %v7833
        %7870 = vst [vmem:[#allocation3 + $0xf0] sm:$0xff] %v7834
        %7871 = vst [vmem:[#allocation3 + $0xf8] sm:$0xff] %v7835
        %7872 = vst [vmem:[#allocation3 + $0x100] sm:$0xff] %v7836
        %7873 = vst [vmem:[#allocation3 + $0x108] sm:$0xff] %v7837
        %7874 = vst [vmem:[#allocation3 + $0x110] sm:$0xff] %v7838
        %7875 = vst [vmem:[#allocation3 + $0x118] sm:$0xff] %v7839
        %v7876 = vld [vmem:[#allocation3] sm:$0xff]
        %v7877 = vld [vmem:[#allocation3 + $0x8] sm:$0xff]
        %v7878 = vld [vmem:[#allocation3 + $0x10] sm:$0xff]
        %v7879 = vld [vmem:[#allocation3 + $0x18] sm:$0xff]
        %v7880 = vld [vmem:[#allocation3 + $0x20] sm:$0xff]
        %v7881 = vld [vmem:[#allocation3 + $0x28] sm:$0xff]
        %v7882 = vld [vmem:[#allocation3 + $0x30] sm:$0xff]
        %v7883 = vld [vmem:[#allocation3 + $0x38] sm:$0xff]
        %v7884 = vld [vmem:[#allocation3 + $0x40] sm:$0xff]
        %v7885 = vld [vmem:[#allocation3 + $0x48] sm:$0xff]
        %v7886 = vld [vmem:[#allocation3 + $0x50] sm:$0xff]
        %v7887 = vld [vmem:[#allocation3 + $0x58] sm:$0xff]
        %v7888 = vld [vmem:[#allocation3 + $0x60] sm:$0xff]
        %v7889 = vld [vmem:[#allocation3 + $0x68] sm:$0xff]
        %v7890 = vld [vmem:[#allocation3 + $0x70] sm:$0xff]
        %v7891 = vld [vmem:[#allocation3 + $0x78] sm:$0xff]
        %v7892 = vld [vmem:[#allocation3 + $0x80] sm:$0xff]
        %v7893 = vld [vmem:[#allocation3 + $0x88] sm:$0xff]
        %v7894 = vld [vmem:[#allocation3 + $0x90] sm:$0xff]
        %v7895 = vld [vmem:[#allocation3 + $0x98] sm:$0xff]
        %v7896 = vld [vmem:[#allocation3 + $0xa0] sm:$0xff]
        %v7897 = vld [vmem:[#allocation3 + $0xa8] sm:$0xff]
        %v7898 = vld [vmem:[#allocation3 + $0xb0] sm:$0xff]
        %v7899 = vld [vmem:[#allocation3 + $0xb8] sm:$0xff]
        %v7900 = vld [vmem:[#allocation3 + $0xc0] sm:$0xff]
        %v7901 = vld [vmem:[#allocation3 + $0xc8] sm:$0xff]
        %v7902 = vld [vmem:[#allocation3 + $0xd0] sm:$0xff]
        %v7903 = vld [vmem:[#allocation3 + $0xd8] sm:$0xff]
        %v7904 = vld [vmem:[#allocation3 + $0xe0] sm:$0xff]
        %v7905 = vld [vmem:[#allocation3 + $0xe8] sm:$0xff]
        %v7906 = vld [vmem:[#allocation3 + $0xf0] sm:$0xff]
        %v7907 = vld [vmem:[#allocation3 + $0xf8] sm:$0xff]
        %v7908 = vld [vmem:[#allocation3 + $0x100] sm:$0xff]
        %v7909 = vld [vmem:[#allocation3 + $0x108] sm:$0xff]
        %v7910 = vld [vmem:[#allocation3 + $0x110] sm:$0xff]
        %v7911 = vld [vmem:[#allocation3 + $0x118] sm:$0xff]
        %v7912 = vld [vmem:[%s4 + $0x1] sm:$0x1]
        %v7913 = vperm.slane %v7912, 0
        %v7914 = vadd.f32 %v7876, %v7913
        %v7915 = vadd.f32 %v7877, %v7913
        %v7916 = vadd.f32 %v7878, %v7913
        %v7917 = vadd.f32 %v7879, %v7913
        %v7918 = vadd.f32 %v7880, %v7913
        %v7919 = vadd.f32 %v7881, %v7913
        %v7920 = vadd.f32 %v7882, %v7913
        %v7921 = vadd.f32 %v7883, %v7913
        %v7922 = vadd.f32 %v7884, %v7913
        %v7923 = vadd.f32 %v7885, %v7913
        %v7924 = vadd.f32 %v7886, %v7913
        %v7925 = vadd.f32 %v7887, %v7913
        %v7926 = vadd.f32 %v7888, %v7913
        %v7927 = vadd.f32 %v7889, %v7913
        %v7928 = vadd.f32 %v7890, %v7913
        %v7929 = vadd.f32 %v7891, %v7913
        %v7930 = vadd.f32 %v7892, %v7913
        %v7931 = vadd.f32 %v7893, %v7913
        %v7932 = vadd.f32 %v7894, %v7913
        %v7933 = vadd.f32 %v7895, %v7913
        %v7934 = vadd.f32 %v7896, %v7913
        %v7935 = vadd.f32 %v7897, %v7913
        %v7936 = vadd.f32 %v7898, %v7913
        %v7937 = vadd.f32 %v7899, %v7913
        %v7938 = vadd.f32 %v7900, %v7913
        %v7939 = vadd.f32 %v7901, %v7913
        %v7940 = vadd.f32 %v7902, %v7913
        %v7941 = vadd.f32 %v7903, %v7913
        %v7942 = vadd.f32 %v7904, %v7913
        %v7943 = vadd.f32 %v7905, %v7913
        %v7944 = vadd.f32 %v7906, %v7913
        %v7945 = vadd.f32 %v7907, %v7913
        %v7946 = vadd.f32 %v7908, %v7913
        %v7947 = vadd.f32 %v7909, %v7913
        %v7948 = vadd.f32 %v7910, %v7913
        %v7949 = vadd.f32 %v7911, %v7913
        %v7950 = vmax.f32 %v7914, 0.0
        %v7951 = vmax.f32 %v7915, 0.0
        %v7952 = vmax.f32 %v7916, 0.0
        %v7953 = vmax.f32 %v7917, 0.0
        %v7954 = vmax.f32 %v7918, 0.0
        %v7955 = vmax.f32 %v7919, 0.0
        %v7956 = vmax.f32 %v7920, 0.0
        %v7957 = vmax.f32 %v7921, 0.0
        %v7958 = vmax.f32 %v7922, 0.0
        %v7959 = vmax.f32 %v7923, 0.0
        %v7960 = vmax.f32 %v7924, 0.0
        %v7961 = vmax.f32 %v7925, 0.0
        %v7962 = vmax.f32 %v7926, 0.0
        %v7963 = vmax.f32 %v7927, 0.0
        %v7964 = vmax.f32 %v7928, 0.0
        %v7965 = vmax.f32 %v7929, 0.0
        %v7966 = vmax.f32 %v7930, 0.0
        %v7967 = vmax.f32 %v7931, 0.0
        %v7968 = vmax.f32 %v7932, 0.0
        %v7969 = vmax.f32 %v7933, 0.0
        %v7970 = vmax.f32 %v7934, 0.0
        %v7971 = vmax.f32 %v7935, 0.0
        %v7972 = vmax.f32 %v7936, 0.0
        %v7973 = vmax.f32 %v7937, 0.0
        %v7974 = vmax.f32 %v7938, 0.0
        %v7975 = vmax.f32 %v7939, 0.0
        %v7976 = vmax.f32 %v7940, 0.0
        %v7977 = vmax.f32 %v7941, 0.0
        %v7978 = vmax.f32 %v7942, 0.0
        %v7979 = vmax.f32 %v7943, 0.0
        %v7980 = vmax.f32 %v7944, 0.0
        %v7981 = vmax.f32 %v7945, 0.0
        %v7982 = vmax.f32 %v7946, 0.0
        %v7983 = vmax.f32 %v7947, 0.0
        %v7984 = vmax.f32 %v7948, 0.0
        %v7985 = vmax.f32 %v7949, 0.0
        %v7986 = vpack.c.bf16 %v7950, %v7950
        %v7987 = vpack.c.bf16 %v7951, %v7951
        %v7988 = vpack.c.bf16 %v7952, %v7952
        %v7989 = vpack.c.bf16 %v7953, %v7953
        %v7990 = vpack.c.bf16 %v7954, %v7954
        %v7991 = vpack.c.bf16 %v7955, %v7955
        %v7992 = vpack.c.bf16 %v7956, %v7956
        %v7993 = vpack.c.bf16 %v7957, %v7957
        %v7994 = vpack.c.bf16 %v7958, %v7958
        %v7995 = vpack.c.bf16 %v7959, %v7959
        %v7996 = vpack.c.bf16 %v7960, %v7960
        %v7997 = vpack.c.bf16 %v7961, %v7961
        %v7998 = vpack.c.bf16 %v7962, %v7962
        %v7999 = vpack.c.bf16 %v7963, %v7963
        %v8000 = vpack.c.bf16 %v7964, %v7964
        %v8001 = vpack.c.bf16 %v7965, %v7965
        %v8002 = vpack.c.bf16 %v7966, %v7966
        %v8003 = vpack.c.bf16 %v7967, %v7967
        %v8004 = vpack.c.bf16 %v7968, %v7968
        %v8005 = vpack.c.bf16 %v7969, %v7969
        %v8006 = vpack.c.bf16 %v7970, %v7970
        %v8007 = vpack.c.bf16 %v7971, %v7971
        %v8008 = vpack.c.bf16 %v7972, %v7972
        %v8009 = vpack.c.bf16 %v7973, %v7973
        %v8010 = vpack.c.bf16 %v7974, %v7974
        %v8011 = vpack.c.bf16 %v7975, %v7975
        %v8012 = vpack.c.bf16 %v7976, %v7976
        %v8013 = vpack.c.bf16 %v7977, %v7977
        %v8014 = vpack.c.bf16 %v7978, %v7978
        %v8015 = vpack.c.bf16 %v7979, %v7979
        %v8016 = vpack.c.bf16 %v7980, %v7980
        %v8017 = vpack.c.bf16 %v7981, %v7981
        %v8018 = vpack.c.bf16 %v7982, %v7982
        %v8019 = vpack.c.bf16 %v7983, %v7983
        %v8020 = vpack.c.bf16 %v7984, %v7984
        %v8021 = vpack.c.bf16 %v7985, %v7985
        %8022 = vst [vmem:[%s261] sm:$0xf] %v7986
        %8023 = vst [vmem:[%s261 + $0x4] sm:$0xf] %v7987
        %8024 = vst [vmem:[%s261 + $0x8] sm:$0xf] %v7988
        %8025 = vst [vmem:[%s261 + $0xc] sm:$0xf] %v7989
        %8026 = vst [vmem:[%s261 + $0x10] sm:$0xf] %v7990
        %8027 = vst [vmem:[%s261 + $0x14] sm:$0xf] %v7991
        %8028 = vst [vmem:[%s261 + $0x18] sm:$0xf] %v7992
        %8029 = vst [vmem:[%s261 + $0x1c] sm:$0xf] %v7993
        %8030 = vst [vmem:[%s261 + $0x20] sm:$0xf] %v7994
        %8031 = vst [vmem:[%s261 + $0x24] sm:$0xf] %v7995
        %8032 = vst [vmem:[%s261 + $0x28] sm:$0xf] %v7996
        %8033 = vst [vmem:[%s261 + $0x2c] sm:$0xf] %v7997
        %8034 = vst [vmem:[%s261 + $0x30] sm:$0xf] %v7998
        %8035 = vst [vmem:[%s261 + $0x34] sm:$0xf] %v7999
        %8036 = vst [vmem:[%s261 + $0x38] sm:$0xf] %v8000
        %8037 = vst [vmem:[%s261 + $0x3c] sm:$0xf] %v8001
        %8038 = vst [vmem:[%s261 + $0x40] sm:$0xf] %v8002
        %8039 = vst [vmem:[%s261 + $0x44] sm:$0xf] %v8003
        %8040 = vst [vmem:[%s261 + $0x48] sm:$0xf] %v8004
        %8041 = vst [vmem:[%s261 + $0x4c] sm:$0xf] %v8005
        %8042 = vst [vmem:[%s261 + $0x50] sm:$0xf] %v8006
        %8043 = vst [vmem:[%s261 + $0x54] sm:$0xf] %v8007
        %8044 = vst [vmem:[%s261 + $0x58] sm:$0xf] %v8008
        %8045 = vst [vmem:[%s261 + $0x5c] sm:$0xf] %v8009
        %8046 = vst [vmem:[%s261 + $0x60] sm:$0xf] %v8010
        %8047 = vst [vmem:[%s261 + $0x64] sm:$0xf] %v8011
        %8048 = vst [vmem:[%s261 + $0x68] sm:$0xf] %v8012
        %8049 = vst [vmem:[%s261 + $0x6c] sm:$0xf] %v8013
        %8050 = vst [vmem:[%s261 + $0x70] sm:$0xf] %v8014
        %8051 = vst [vmem:[%s261 + $0x74] sm:$0xf] %v8015
        %8052 = vst [vmem:[%s261 + $0x78] sm:$0xf] %v8016
        %8053 = vst [vmem:[%s261 + $0x7c] sm:$0xf] %v8017
        %8054 = vst [vmem:[%s261 + $0x80] sm:$0xf] %v8018
        %8055 = vst [vmem:[%s261 + $0x84] sm:$0xf] %v8019
        %8056 = vst [vmem:[%s261 + $0x88] sm:$0xf] %v8020
        %8057 = vst [vmem:[%s261 + $0x8c] sm:$0xf] %v8021
        %s8058 = sand.u32 %s160, 1
        %s8059 = scalar_lea.sflag [#allocation6], %s8058
        %s8060 = sand.u32 %s160, 1
        %s8061 = smul.addr %s8060, 144
        %s8062 = scalar_lea.vmem [#allocation7], %s8061
        // Predicated region
        $region49: #{tpu_custom_call.1} parent=43 // pred_check
          %p8063 = pneg %p170
        $region50: #{tpu_custom_call.1} parent=43 // pred_check_branch
          %8065 = sbr.rel (%p8063) target = $region52
        $region51: #{tpu_custom_call.1} parent=43 // pred_region
          %8067 = vsyncadd %s8059, 0
          %s8068 = smul.addr %s21, 36
          %s8069 = smul.addr %s8068, 4
          %s8070 = scalar_lea.hbm %s6, %s8069
          %s8071 = sshll.u32 %s8062, 4
          %s8072 = int_to_ptr.vmem [resolvable:$true] %s8071
          %s8073 = sshll.u32 %s8070, 4
          %s8074 = int_to_ptr.hbm [resolvable:$true] %s8073
          %8079 = dma.vmem_to_hbm [thread:$0]  %s8072, 2304, %s8074, %s8059, 64, 64, 4
        $region52: #{tpu_custom_call.1} parent=43 // pred_fallthru
          _
      $region44: #{tpu_custom_call.1} parent=5 // pred_fallthru
        _
      %p8080 = scmp.le.s32.totalorder 2, %s16
      // Predicated region
      $region53: #{tpu_custom_call.1} parent=5 // pred_check
        %p8081 = pneg %p8080
      $region54: #{tpu_custom_call.1} parent=5 // pred_check_branch
        %8083 = sbr.rel (%p8081) target = $region56
      $region55: #{tpu_custom_call.1} parent=5 // pred_region
        %s8084 = ssub.s32 %s16, 2
        // Predicated region
        $region57: #{tpu_custom_call.1} parent=55 // pred_check
          %p8085 = pneg %p176
        $region58: #{tpu_custom_call.1} parent=55 // pred_check_branch
          %8087 = sbr.rel (%p8085) target = $region60
        $region59: #{tpu_custom_call.1} parent=55 // pred_region
          %s8088 = sand.u32 %s161, 1
          %s8089 = scalar_lea.sflag [#allocation6], %s8088
          %s8090 = sand.u32 %s161, 1
          %s8091 = smul.addr %s8090, 144
          %s8092 = scalar_lea.vmem [#allocation7], %s8091
          %8094 = dma.done %s8089, 2304
        $region60: #{tpu_custom_call.1} parent=55 // pred_fallthru
          _
      $region56: #{tpu_custom_call.1} parent=5 // pred_fallthru
        _
    $region6: #{tpu_custom_call.1} parent=1 // loop_footer
      %s20 = sadd.s32 1, %s16
    $region7: #{tpu_custom_call.1} parent=1 // loop_footer_branch
      %15 = sbr.rel target = $region3
    $region8: #{tpu_custom_call.1} parent=1 // loop_exit
      _
    %8095 = vsyncpa [#allocation5], 1
    %s8096 = scalar_lea.sflag [#allocation5], 1
    %8097 = vsyncpa %s8096, 1
    %8098 = vsyncpa [#allocation6], 1
    %s8099 = scalar_lea.sflag [#allocation6], 1
    %8100 = vsyncpa %s8099, 1

</llo_original>
